<compile_context>
chip_gen: v7x
topology: tpu7x:2x2x1
jax: 0.10.0
libtpu: 0.0.40
codegen_flags: <defaults>
</compile_context>

<pallas_src>
import functools

import numpy as np
import jax
import jax.numpy as jnp
from jax.experimental import pallas as pl
from jax.experimental.pallas import tpu as pltpu


_VMEM_LIMIT = 32 * 1024 * 1024  # safe explicit scoped-VMEM limit on v5e/v6e/v7x


def _round_up(x, m):
    return (x + m - 1) // m * m


# --------------------------------------------------------------------------- #
# Trilinear upsample (align_corners=True) -- separable, two small Pallas calls.
# --------------------------------------------------------------------------- #

def _linear_interp_matrix(in_size, out_size):
    """1D linear interpolation matrix, align_corners=True (matches the module's
    nn.Upsample(..., mode='trilinear', align_corners=True))."""
    if out_size == 1 or in_size == 1:
        A = np.zeros((out_size, in_size), np.float32)
        A[:, 0] = 1.0
        return A
    pos = np.arange(out_size, dtype=np.float64) * (in_size - 1) / (out_size - 1)
    i0 = np.clip(np.floor(pos).astype(np.int64), 0, in_size - 1)
    i1 = np.minimum(i0 + 1, in_size - 1)
    w = (pos - i0).astype(np.float32)
    A = np.zeros((out_size, in_size), np.float32)
    A[np.arange(out_size), i0] += 1.0 - w
    A[np.arange(out_size), i1] += w
    return A


def _upsample_hw_kernel(x_ref, awt_ref, ah_ref, o_ref):
    # x_ref: (B, Hin, Win) bf16  awt_ref: (Win, Wout) bf16  ah_ref: (Hout, Hin) bf16
    # o_ref: (B, Hout, Wout) bf16
    b, hin, win = x_ref.shape
    wout = awt_ref.shape[1]
    hout = ah_ref.shape[0]
    # W interpolation: one 2-D MXU matmul (leading dims merged -- layout-free).
    x2 = x_ref[...].reshape(b * hin, win)
    t = jnp.dot(x2, awt_ref[...], preferred_element_type=jnp.float32)
    t = t.astype(jnp.bfloat16).reshape(b, hin, wout)
    # H interpolation: canonical batched matmul (batch dim first on both operands).
    ah_b = jnp.broadcast_to(ah_ref[...], (b, hout, hin))
    o = jnp.einsum('bqh,bhw->bqw', ah_b, t, preferred_element_type=jnp.float32)
    o_ref[...] = o.astype(o_ref.dtype)


def _upsample_d_kernel(x_ref, ad_ref, o_ref):
    # x_ref: (B, Din, HWout) bf16   ad_ref: (Dout, Din) bf16   o_ref: (B, Dout, HWout)
    b = x_ref.shape[0]
    ad_b = jnp.broadcast_to(ad_ref[...], (b,) + ad_ref.shape)
    o = jnp.einsum('bpd,bdx->bpx', ad_b, x_ref[...], preferred_element_type=jnp.float32)
    o_ref[...] = o.astype(o_ref.dtype)


def upsample_trilinear(x, scale=2):
    """Separable trilinear upsample: pass 1 interpolates W then H (grid over the fused
    N*C*D axis), pass 2 interpolates D on the lane-flattened Hout*Wout axis.  Operands
    are bf16 (f32 accumulation); intermediates never use a quadratic Kronecker matrix
    so VMEM stays O(H^2 + W^2 + D^2) per step."""
    N, C, Din, Hin, Win = x.shape
    Dout, Hout, Wout = Din * scale, Hin * scale, Win * scale
    awt = jnp.asarray(_linear_interp_matrix(Win, Wout).T, jnp.bfloat16)   # (Win, Wout)
    ah = jnp.asarray(_linear_interp_matrix(Hin, Hout), jnp.bfloat16)      # (Hout, Hin)
    ad = jnp.asarray(_linear_interp_matrix(Din, Dout), jnp.bfloat16)      # (Dout, Din)

    # ---- pass 1: H & W interpolation ----
    NCD = N * C * Din
    Bncd = NCD // 2 if NCD % 2 == 0 else NCD           # several slices per step
    x1 = x.reshape(NCD, Hin, Win).astype(jnp.bfloat16)
    hw = pl.pallas_call(
        _upsample_hw_kernel,
        out_shape=jax.ShapeDtypeStruct((NCD, Hout, Wout), jnp.bfloat16),
        grid=(NCD // Bncd,),
        in_specs=[
            pl.BlockSpec((Bncd, Hin, Win), lambda b: (b, 0, 0)),
            pl.BlockSpec((Win, Wout), lambda b: (0, 0)),
            pl.BlockSpec((Hout, Hin), lambda b: (0, 0)),
        ],
        out_specs=pl.BlockSpec((Bncd, Hout, Wout), lambda b: (b, 0, 0)),
        compiler_params=pltpu.CompilerParams(
            dimension_semantics=("parallel",), vmem_limit_bytes=_VMEM_LIMIT),
    )(x1, awt, ah)

    # ---- pass 2: D interpolation on the flattened H*W lane axis ----
    NC = N * C
    Bnc = NC // 2 if NC % 2 == 0 else NC
    x2 = hw.reshape(NC, Din, Hout * Wout)               # free row-major reshape
    out = pl.pallas_call(
        _upsample_d_kernel,
        out_shape=jax.ShapeDtypeStruct((NC, Dout, Hout * Wout), jnp.bfloat16),
        grid=(NC // Bnc,),
        in_specs=[
            pl.BlockSpec((Bnc, Din, Hout * Wout), lambda b: (b, 0, 0)),
            pl.BlockSpec((Dout, Din), lambda b: (0, 0)),
        ],
        out_specs=pl.BlockSpec((Bnc, Dout, Hout * Wout), lambda b: (b, 0, 0)),
        compiler_params=pltpu.CompilerParams(
            dimension_semantics=("parallel",), vmem_limit_bytes=_VMEM_LIMIT),
    )(x2, ad)
    return out.reshape(N, C, Dout, Hout, Wout)


# --------------------------------------------------------------------------- #
# Conv3d (stride 1) with fused bias / InstanceNorm3d / ReLU epilogue.
# --------------------------------------------------------------------------- #

def _conv_kernel(x_ref, w_ref, b_ref, mask_ref, o_ref, *,
                 K, Cout, Wp, HW128, sp_out, span, Nb,
                 apply_in, apply_relu, inv_count, eps):
    # x_ref:   (Nb, Cin, L) bf16    -- depth-plane-aligned flat layout (stride HW128)
    # w_ref:   (Cout, K^3*Cin) bf16 -- im2col row order (kh, kw, kd, cin)
    # b_ref:   (Cout, 1) f32        mask_ref: (1, sp_out) f32
    # o_ref:   (Nb*Cout, sp_out)
    for nb in range(Nb):
        # In-kernel im2col: one lane-realigned slice per (kh, kw) in-plane offset,
        # K lane-ALIGNED depth windows each (depth stride HW128 is a multiple of 128).
        pieces = []
        for kh in range(K):
            for kw in range(K):
                o = kh * Wp + kw
                xo = x_ref[nb, :, o:o + span]                         # (Cin, span)
                for kd in range(K):
                    pieces.append(xo[:, kd * HW128:kd * HW128 + sp_out])
        patches = jnp.concatenate(pieces, axis=0)                     # (K^3*Cin, sp_out)
        # Single MXU call per sample: contraction dim = K^3 * Cin.
        y = jnp.dot(w_ref[...], patches, preferred_element_type=jnp.float32)
        y = y + b_ref[...]                                            # (Cout, sp_out)
        if apply_in:
            # InstanceNorm3d (affine=False, biased var), one masked pass for both
            # moments; garbage lanes (plane padding / 128-lane tail) are excluded.
            m = mask_ref[...]
            ym = y * m
            mean = jnp.sum(ym, axis=1, keepdims=True) * inv_count
            ex2 = jnp.sum(ym * y, axis=1, keepdims=True) * inv_count
            var = jnp.maximum(ex2 - mean * mean, 0.0)
            y = (y - mean) * jax.lax.rsqrt(var + eps)
        if apply_relu:
            y = jnp.maximum(y, 0.0)
        o_ref[nb * Cout:(nb + 1) * Cout, :] = y.astype(o_ref.dtype)


def conv3d_fused(x, weight, bias, *, padding=0, apply_in=False, apply_relu=False,
                 eps=1e-5, out_dtype=jnp.bfloat16):
    """PyTorch-style Conv3d (cross-correlation, stride 1) with optional fused
    InstanceNorm3d + ReLU epilogue.
    x: (N, Cin, D, H, W); weight: (Cout, Cin, K, K, K); bias: (Cout,)."""
    N, Cin, D, H, W = x.shape
    Cout, Cin2, K, _, _ = weight.shape
    assert Cin2 == Cin
    p = padding
    Dp, Hp, Wp = D + 2 * p, H + 2 * p, W + 2 * p
    Do, Ho, Wo = Dp - K + 1, Hp - K + 1, Wp - K + 1
    HW = Hp * Wp
    HW128 = _round_up(HW, 128)                  # lane-aligned depth-plane stride
    sp_out = Do * HW128                         # flat output positions (multiple of 128)
    span = Dp * HW128                           # per in-plane-offset read window
    d_extra = -(-((K - 1) * (Wp + 1)) // HW128)  # zero planes so reads stay in bounds
    Dtot = Dp + d_extra
    L = Dtot * HW128

    # Padded, per-plane lane-aligned flat layout (bf16 -- consumed straight by the MXU).
    xb = x.astype(jnp.bfloat16)
    xp = jnp.pad(xb, ((0, 0), (0, 0), (p, p + d_extra), (p, p), (p, p)))
    xp = xp.reshape(N, Cin, Dtot, HW)
    xp = jnp.pad(xp, ((0, 0), (0, 0), (0, 0), (0, HW128 - HW)))
    x_flat = xp.reshape(N, Cin, L)

    # Weight in im2col row order (kh, kw, kd, cin); weight is (Cout, Cin, Kd, Kh, Kw).
    w_mat = jnp.transpose(weight, (0, 3, 4, 2, 1)).reshape(Cout, K ** 3 * Cin)
    w_mat = w_mat.astype(jnp.bfloat16)
    b2 = bias.reshape(Cout, 1).astype(jnp.float32)

    # Lane-validity mask for IN statistics (identical for every output depth plane).
    ip = np.arange(HW128)
    h_idx, w_idx = ip // Wp, ip % Wp
    plane_valid = ((ip < HW) & (h_idx < Ho) & (w_idx < Wo)).astype(np.float32)
    mask = np.tile(plane_valid, Do).reshape(1, sp_out)
    inv_count = 1.0 / float(Do * Ho * Wo)

    # Block batch samples per grid step so the store slab approaches 8 full sublanes.
    target = max(1, 8 // Cout)
    if N % target == 0 and (target * Cout) % 8 == 0:
        Nb = target
    else:
        Nb = N
    grid = (N // Nb,)

    kernel = functools.partial(
        _conv_kernel, K=K, Cout=Cout, Wp=Wp, HW128=HW128, sp_out=sp_out, span=span,
        Nb=Nb, apply_in=apply_in, apply_relu=apply_relu, inv_count=inv_count, eps=eps)

    out = pl.pallas_call(
        kernel,
        out_shape=jax.ShapeDtypeStruct((N * Cout, sp_out), out_dtype),
        grid=grid,
        in_specs=[
            pl.BlockSpec((Nb, Cin, L), lambda i: (i, 0, 0)),
            pl.BlockSpec((Cout, K ** 3 * Cin), lambda i: (0, 0)),
            pl.BlockSpec((Cout, 1), lambda i: (0, 0)),
            pl.BlockSpec((1, sp_out), lambda i: (0, 0)),
        ],
        out_specs=pl.BlockSpec((Nb * Cout, sp_out), lambda i: (i, 0)),
        compiler_params=pltpu.CompilerParams(
            dimension_semantics=("parallel",), vmem_limit_bytes=_VMEM_LIMIT),
    )(x_flat, w_mat, b2, jnp.asarray(mask))

    # Drop the lane-padding tail and the padded output coordinates (cheap strided copy).
    out = out.reshape(N, Cout, Do, HW128)[:, :, :, :HW]
    out = out.reshape(N, Cout, Do, Hp, Wp)[:, :, :, :Ho, :Wo]
    return out


# --------------------------------------------------------------------------- #
# ExpandingBlock forward pass.
# --------------------------------------------------------------------------- #

def center_crop(image, new_shape):
    """Exact translation of ExpandingBlock.crop."""
    sd = image.shape[2] // 2 - new_shape[2] // 2
    sh = image.shape[3] // 2 - new_shape[3] // 2
    sw = image.shape[4] // 2 - new_shape[4] // 2
    return image[:, :, sd:sd + new_shape[2], sh:sh + new_shape[3], sw:sw + new_shape[4]]


def expanding_block_forward(params, x, skip_con_x, use_bn=True, use_dropout=False, s1=2):
    x = upsample_trilinear(x, scale=s1)                                   # bf16
    x = conv3d_fused(x, params["w1"], params["b1"], padding=0,
                     out_dtype=jnp.bfloat16)                              # kernel_size=2
    skip = center_crop(skip_con_x, x.shape).astype(x.dtype)
    x = jnp.concatenate([x, skip], axis=1)

    # conv2 -> (optional InstanceNorm3d) -> ReLU, fused into one kernel epilogue.
    ho2 = x.shape[3] + 2 * 1 - 3 + 1                                      # H after conv2
    x = conv3d_fused(x, params["w2"], params["b2"], padding=1,
                     apply_in=(use_bn and ho2 > 1), apply_relu=True,
                     out_dtype=jnp.bfloat16)                              # kernel_size=3
    # TODO(synk): nn.Dropout (train-mode RNG masking) not implemented; use_dropout=False only.

    # conv3 -> (optional InstanceNorm3d) -> ReLU, fused; final output kept f32.
    x = conv3d_fused(x, params["w3"], params["b3"], padding=1,
                     apply_in=use_bn, apply_relu=True,
                     out_dtype=jnp.float32)                               # kernel_size=2
    return x


# --------------------------------------------------------------------------- #
# Pure-JAX reference (for a tolerance check) and param init.
# --------------------------------------------------------------------------- #

def _reference_forward(params, x, skip_con_x, use_bn=True, s1=2):
    N, C, D, H, W = x.shape
    A_d = jnp.asarray(_linear_interp_matrix(D, D * s1))
    A_h = jnp.asarray(_linear_interp_matrix(H, H * s1))
    A_w = jnp.asarray(_linear_interp_matrix(W, W * s1))
    y = jnp.einsum("ncdhw,pd,qh,rw->ncpqr", x, A_d, A_h, A_w,
                   precision=jax.lax.Precision.HIGHEST)

    def conv(z, w, b, p):
        out = jax.lax.conv_general_dilated(
            z, w, window_strides=(1, 1, 1), padding=[(p, p)] * 3,
            dimension_numbers=("NCDHW", "OIDHW", "NCDHW"),
            precision=jax.lax.Precision.HIGHEST)
        return out + b.reshape(1, -1, 1, 1, 1)

    def instnorm(z):
        mean = z.mean(axis=(2, 3, 4), keepdims=True)
        var = ((z - mean) ** 2).mean(axis=(2, 3, 4), keepdims=True)
        return (z - mean) * jax.lax.rsqrt(var + 1e-5)

    y = conv(y, params["w1"], params["b1"], 0)
    skip = center_crop(skip_con_x, y.shape)
    y = jnp.concatenate([y, skip], axis=1)
    y = conv(y, params["w2"], params["b2"], 1)
    if use_bn and y.shape[3] > 1:
        y = instnorm(y)
    y = jnp.maximum(y, 0.0)
    y = conv(y, params["w3"], params["b3"], 1)
    if use_bn:
        y = instnorm(y)
    y = jnp.maximum(y, 0.0)
    return y


def conv_init(key, cout, cin, ksize):
    """Deterministic Conv3d-style init (uniform +-1/sqrt(fan_in))."""
    kw, kb = jax.random.split(key)
    fan_in = cin * ksize ** 3
    bound = 1.0 / float(np.sqrt(fan_in))
    w = jax.random.uniform(kw, (cout, cin, ksize, ksize, ksize), jnp.float32, -bound, bound)
    b = jax.random.uniform(kb, (cout,), jnp.float32, -bound, bound)
    return w, b


if __name__ == "__main__":
    key = jax.random.PRNGKey(0)
    kx, ks, kp = jax.random.split(key, 3)

    input_channels = 4
    # x: (N, C, D, H, W); skip_con_x carries C//2 channels from the contracting path.
    x = jax.random.normal(kx, (2, input_channels, 4, 4, 4), jnp.float32)
    skip_con_x = jax.random.normal(ks, (2, input_channels // 2, 8, 8, 8), jnp.float32)

    k1, k2, k3 = jax.random.split(kp, 3)
    w1, b1 = conv_init(k1, input_channels // 2, input_channels, 2)
    w2, b2 = conv_init(k2, input_channels // 2, input_channels, 3)
    w3, b3 = conv_init(k3, input_channels // 2, input_channels // 2, 2)
    params = dict(w1=w1, b1=b1, w2=w2, b2=b2, w3=w3, b3=b3)

    out = jax.jit(expanding_block_forward)(params, x, skip_con_x)
    out = jax.block_until_ready(out)
    assert out.shape == (2, input_channels // 2, 8, 8, 8), out.shape
    assert bool(jnp.all(jnp.isfinite(out)))

    # Tolerance check against a pure-JAX f32 reference (kernels use bf16 MXU operands
    # and bf16 intermediate activations).
    ref = _reference_forward(params, x, skip_con_x)
    np.testing.assert_allclose(np.asarray(out), np.asarray(ref), rtol=6e-2, atol=8e-2)

    print("KERNEL_OK")
</pallas_src>

<mosaic_0001>
module attributes {stable_mosaic.version = 11 : i64} {
  func.func @_upsample_d_kernel(%arg0: i32, %arg1: memref<4x4x64xbf16, #tpu.memory_space<vmem>>, %arg2: memref<8x4xbf16, #tpu.memory_space<vmem>>, %arg3: memref<4x8x64xbf16, #tpu.memory_space<vmem>>) attributes {dimension_semantics = [#tpu.dimension_semantics<parallel>], iteration_bounds = array<i64: 2>, scalar_prefetch = 0 : i64, scratch_operands = 0 : i64, tpu.core_type = #tpu.core_type<tc>, window_params = [{transform_indices = @transform_0, window_bounds = array<i64: 4, 4, 64>}, {pipeline_mode = #tpu.pipeline_mode<synchronous>, transform_indices = @transform_1, window_bounds = array<i64: 8, 4>}, {transform_indices = @transform_2, window_bounds = array<i64: 4, 8, 64>}]} {
    %c0 = arith.constant 0 : index
    %c0_0 = arith.constant 0 : index
    %0 = vector.load %arg2[%c0, %c0_0] : memref<8x4xbf16, #tpu.memory_space<vmem>>, vector<8x4xbf16>
    %1 = vector.shape_cast %0 : vector<8x4xbf16> to vector<1x8x4xbf16>
    %2 = vector.broadcast %1 : vector<1x8x4xbf16> to vector<4x8x4xbf16>
    %c0_1 = arith.constant 0 : index
    %c0_2 = arith.constant 0 : index
    %c0_3 = arith.constant 0 : index
    %3 = vector.load %arg1[%c0_1, %c0_2, %c0_3] : memref<4x4x64xbf16, #tpu.memory_space<vmem>>, vector<4x4x64xbf16>
    "tpu.trace_start"() <{level = 10 : i32, message = "bpd,bdx->bpx"}> : () -> ()
    %cst = arith.constant dense<0.000000e+00> : vector<4x8x64xf32>
    %4 = tpu.matmul %2, %3, %cst {dimension_numbers = #tpu.dot_dimension_numbers<[2], [1], [1], [2], [0, 0, 0, 1, 1, 2], [0], [0]>} : vector<4x8x4xbf16>, vector<4x4x64xbf16>, vector<4x8x64xf32> -> vector<4x8x64xf32>
    "tpu.trace_stop"() : () -> ()
    %5 = arith.truncf %4 : vector<4x8x64xf32> to vector<4x8x64xbf16>
    %c0_4 = arith.constant 0 : index
    %c0_5 = arith.constant 0 : index
    %c0_6 = arith.constant 0 : index
    %6 = vector.load %arg3[%c0_4, %c0_5, %c0_6] : memref<4x8x64xbf16, #tpu.memory_space<vmem>>, vector<4x8x64xbf16>
    tpu.vector_store %arg3[%c0_4, %c0_5, %c0_6], %5 {strides = array<i32>} : memref<4x8x64xbf16, #tpu.memory_space<vmem>>, vector<4x8x64xbf16>,
    return
  }
  func.func @transform_0(%arg0: i32) -> (i32, i32, i32) {
    %c0_i32 = arith.constant 0 : i32
    %c0_i32_0 = arith.constant 0 : i32
    %c0_i32_1 = arith.constant 0 : i32
    return %arg0, %c0_i32, %c0_i32_0 : i32, i32, i32
  }
  func.func @transform_1(%arg0: i32) -> (i32, i32) {
    %c0_i32 = arith.constant 0 : i32
    %c0_i32_0 = arith.constant 0 : i32
    %c0_i32_1 = arith.constant 0 : i32
    return %c0_i32, %c0_i32_0 : i32, i32
  }
  func.func @transform_2(%arg0: i32) -> (i32, i32, i32) {
    %c0_i32 = arith.constant 0 : i32
    %c0_i32_0 = arith.constant 0 : i32
    %c0_i32_1 = arith.constant 0 : i32
    return %arg0, %c0_i32, %c0_i32_0 : i32, i32, i32
  }
}

module attributes {stable_mosaic.version = 11 : i64} {
  func.func @_upsample_hw_kernel(%arg0: i32, %arg1: memref<16x4x4xbf16, #tpu.memory_space<vmem>>, %arg2: memref<4x8xbf16, #tpu.memory_space<vmem>>, %arg3: memref<8x4xbf16, #tpu.memory_space<vmem>>, %arg4: memref<16x8x8xbf16, #tpu.memory_space<vmem>>) attributes {dimension_semantics = [#tpu.dimension_semantics<parallel>], iteration_bounds = array<i64: 2>, scalar_prefetch = 0 : i64, scratch_operands = 0 : i64, tpu.core_type = #tpu.core_type<tc>, window_params = [{transform_indices = @transform_0, window_bounds = array<i64: 16, 4, 4>}, {pipeline_mode = #tpu.pipeline_mode<synchronous>, transform_indices = @transform_1, window_bounds = array<i64: 4, 8>}, {pipeline_mode = #tpu.pipeline_mode<synchronous>, transform_indices = @transform_2, window_bounds = array<i64: 8, 4>}, {transform_indices = @transform_3, window_bounds = array<i64: 16, 8, 8>}]} {
    %c0 = arith.constant 0 : index
    %c0_0 = arith.constant 0 : index
    %c0_1 = arith.constant 0 : index
    %0 = vector.load %arg1[%c0, %c0_0, %c0_1] : memref<16x4x4xbf16, #tpu.memory_space<vmem>>, vector<16x4x4xbf16>
    %1 = vector.shape_cast %0 : vector<16x4x4xbf16> to vector<64x4xbf16>
    %c0_2 = arith.constant 0 : index
    %c0_3 = arith.constant 0 : index
    %2 = vector.load %arg2[%c0_2, %c0_3] : memref<4x8xbf16, #tpu.memory_space<vmem>>, vector<4x8xbf16>
    %cst = arith.constant dense<0.000000e+00> : vector<64x8xf32>
    %3 = tpu.matmul %1, %2, %cst {dimension_numbers = #tpu.dot_dimension_numbers<[1], [0], [0], [1], [0, 0, 1, 1], [], []>} : vector<64x4xbf16>, vector<4x8xbf16>, vector<64x8xf32> -> vector<64x8xf32>
    %4 = arith.truncf %3 : vector<64x8xf32> to vector<64x8xbf16>
    %5 = vector.shape_cast %4 : vector<64x8xbf16> to vector<16x4x8xbf16>
    %c0_4 = arith.constant 0 : index
    %c0_5 = arith.constant 0 : index
    %6 = vector.load %arg3[%c0_4, %c0_5] : memref<8x4xbf16, #tpu.memory_space<vmem>>, vector<8x4xbf16>
    %7 = vector.shape_cast %6 : vector<8x4xbf16> to vector<1x8x4xbf16>
    %8 = vector.broadcast %7 : vector<1x8x4xbf16> to vector<16x8x4xbf16>
    "tpu.trace_start"() <{level = 10 : i32, message = "bqh,bhw->bqw"}> : () -> ()
    %cst_6 = arith.constant dense<0.000000e+00> : vector<16x8x8xf32>
    %9 = tpu.matmul %8, %5, %cst_6 {dimension_numbers = #tpu.dot_dimension_numbers<[2], [1], [1], [2], [0, 0, 0, 1, 1, 2], [0], [0]>} : vector<16x8x4xbf16>, vector<16x4x8xbf16>, vector<16x8x8xf32> -> vector<16x8x8xf32>
    "tpu.trace_stop"() : () -> ()
    %10 = arith.truncf %9 : vector<16x8x8xf32> to vector<16x8x8xbf16>
    %c0_7 = arith.constant 0 : index
    %c0_8 = arith.constant 0 : index
    %c0_9 = arith.constant 0 : index
    %11 = vector.load %arg4[%c0_7, %c0_8, %c0_9] : memref<16x8x8xbf16, #tpu.memory_space<vmem>>, vector<16x8x8xbf16>
    tpu.vector_store %arg4[%c0_7, %c0_8, %c0_9], %10 {strides = array<i32>} : memref<16x8x8xbf16, #tpu.memory_space<vmem>>, vector<16x8x8xbf16>,
    return
  }
  func.func @transform_0(%arg0: i32) -> (i32, i32, i32) {
    %c0_i32 = arith.constant 0 : i32
    %c0_i32_0 = arith.constant 0 : i32
    %c0_i32_1 = arith.constant 0 : i32
    return %arg0, %c0_i32, %c0_i32_0 : i32, i32, i32
  }
  func.func @transform_1(%arg0: i32) -> (i32, i32) {
    %c0_i32 = arith.constant 0 : i32
    %c0_i32_0 = arith.constant 0 : i32
    %c0_i32_1 = arith.constant 0 : i32
    return %c0_i32, %c0_i32_0 : i32, i32
  }
  func.func @transform_2(%arg0: i32) -> (i32, i32) {
    %c0_i32 = arith.constant 0 : i32
    %c0_i32_0 = arith.constant 0 : i32
    %c0_i32_1 = arith.constant 0 : i32
    return %c0_i32, %c0_i32_0 : i32, i32
  }
  func.func @transform_3(%arg0: i32) -> (i32, i32, i32) {
    %c0_i32 = arith.constant 0 : i32
    %c0_i32_0 = arith.constant 0 : i32
    %c0_i32_1 = arith.constant 0 : i32
    return %arg0, %c0_i32, %c0_i32_0 : i32, i32, i32
  }
}

module attributes {stable_mosaic.version = 11 : i64} {
  func.func @_conv_kernel(%arg0: i32, %arg1: memref<2x4x1152xbf16, #tpu.memory_space<vmem>>, %arg2: memref<2x32xbf16, #tpu.memory_space<vmem>>, %arg3: memref<2x1xf32, #tpu.memory_space<vmem>>, %arg4: memref<1x896xf32, #tpu.memory_space<vmem>>, %arg5: memref<4x896xbf16, #tpu.memory_space<vmem>>) attributes {dimension_semantics = [#tpu.dimension_semantics<parallel>], iteration_bounds = array<i64: 1>, scalar_prefetch = 0 : i64, scratch_operands = 0 : i64, tpu.core_type = #tpu.core_type<tc>, window_params = [{transform_indices = @transform_0, window_bounds = array<i64: 2, 4, 1152>}, {pipeline_mode = #tpu.pipeline_mode<synchronous>, transform_indices = @transform_1, window_bounds = array<i64: 2, 32>}, {pipeline_mode = #tpu.pipeline_mode<synchronous>, transform_indices = @transform_2, window_bounds = array<i64: 2, 1>}, {pipeline_mode = #tpu.pipeline_mode<synchronous>, transform_indices = @transform_3, window_bounds = array<i64: 1, 896>}, {transform_indices = @transform_4, window_bounds = array<i64: 4, 896>}]} {
    %c0 = arith.constant 0 : index
    %c0_0 = arith.constant 0 : index
    %c0_1 = arith.constant 0 : index
    %0 = vector.load %arg1[%c0, %c0_0, %c0_1] : memref<2x4x1152xbf16, #tpu.memory_space<vmem>>, vector<1x4x1024xbf16>
    %1 = vector.shape_cast %0 : vector<1x4x1024xbf16> to vector<4x1024xbf16>
    %2 = vector.extract_strided_slice %1 {offsets = [0, 0], sizes = [4, 896], strides = [1, 1]} : vector<4x1024xbf16> to vector<4x896xbf16>
    %3 = vector.extract_strided_slice %1 {offsets = [0, 128], sizes = [4, 896], strides = [1, 1]} : vector<4x1024xbf16> to vector<4x896xbf16>
    %c0_2 = arith.constant 0 : index
    %c0_3 = arith.constant 0 : index
    %c1 = arith.constant 1 : index
    %4 = vector.load %arg1[%c0_2, %c0_3, %c1] : memref<2x4x1152xbf16, #tpu.memory_space<vmem>>, vector<1x4x1024xbf16>
    %5 = vector.shape_cast %4 : vector<1x4x1024xbf16> to vector<4x1024xbf16>
    %6 = vector.extract_strided_slice %5 {offsets = [0, 0], sizes = [4, 896], strides = [1, 1]} : vector<4x1024xbf16> to vector<4x896xbf16>
    %7 = vector.extract_strided_slice %5 {offsets = [0, 128], sizes = [4, 896], strides = [1, 1]} : vector<4x1024xbf16> to vector<4x896xbf16>
    %c0_4 = arith.constant 0 : index
    %c0_5 = arith.constant 0 : index
    %c8 = arith.constant 8 : index
    %8 = vector.load %arg1[%c0_4, %c0_5, %c8] : memref<2x4x1152xbf16, #tpu.memory_space<vmem>>, vector<1x4x1024xbf16>
    %9 = vector.shape_cast %8 : vector<1x4x1024xbf16> to vector<4x1024xbf16>
    %10 = vector.extract_strided_slice %9 {offsets = [0, 0], sizes = [4, 896], strides = [1, 1]} : vector<4x1024xbf16> to vector<4x896xbf16>
    %11 = vector.extract_strided_slice %9 {offsets = [0, 128], sizes = [4, 896], strides = [1, 1]} : vector<4x1024xbf16> to vector<4x896xbf16>
    %c0_6 = arith.constant 0 : index
    %c0_7 = arith.constant 0 : index
    %c9 = arith.constant 9 : index
    %12 = vector.load %arg1[%c0_6, %c0_7, %c9] : memref<2x4x1152xbf16, #tpu.memory_space<vmem>>, vector<1x4x1024xbf16>
    %13 = vector.shape_cast %12 : vector<1x4x1024xbf16> to vector<4x1024xbf16>
    %14 = vector.extract_strided_slice %13 {offsets = [0, 0], sizes = [4, 896], strides = [1, 1]} : vector<4x1024xbf16> to vector<4x896xbf16>
    %15 = vector.extract_strided_slice %13 {offsets = [0, 128], sizes = [4, 896], strides = [1, 1]} : vector<4x1024xbf16> to vector<4x896xbf16>
    %16 = tpu.concatenate %2, %3, %6, %7, %10, %11, %14, %15 in 0 : vector<4x896xbf16>, vector<4x896xbf16>, vector<4x896xbf16>, vector<4x896xbf16>, vector<4x896xbf16>, vector<4x896xbf16>, vector<4x896xbf16>, vector<4x896xbf16> -> vector<32x896xbf16>
    %c0_8 = arith.constant 0 : index
    %c0_9 = arith.constant 0 : index
    %17 = vector.load %arg2[%c0_8, %c0_9] : memref<2x32xbf16, #tpu.memory_space<vmem>>, vector<2x32xbf16>
    %cst = arith.constant dense<0.000000e+00> : vector<2x896xf32>
    %18 = tpu.matmul %17, %16, %cst {dimension_numbers = #tpu.dot_dimension_numbers<[1], [0], [0], [1], [0, 0, 1, 1], [], []>} : vector<2x32xbf16>, vector<32x896xbf16>, vector<2x896xf32> -> vector<2x896xf32>
    %c0_10 = arith.constant 0 : index
    %c0_11 = arith.constant 0 : index
    %19 = vector.load %arg3[%c0_10, %c0_11] : memref<2x1xf32, #tpu.memory_space<vmem>>, vector<2x1xf32>
    %20 = vector.broadcast %19 : vector<2x1xf32> to vector<2x896xf32>
    %21 = arith.addf %18, %20 : vector<2x896xf32>
    %22 = arith.truncf %21 : vector<2x896xf32> to vector<2x896xbf16>
    %c0_12 = arith.constant 0 : index
    %c0_13 = arith.constant 0 : index
    %23 = vector.load %arg5[%c0_12, %c0_13] : memref<4x896xbf16, #tpu.memory_space<vmem>>, vector<2x896xbf16>
    tpu.vector_store %arg5[%c0_12, %c0_13], %22 {strides = array<i32>} : memref<4x896xbf16, #tpu.memory_space<vmem>>, vector<2x896xbf16>,
    %c1_14 = arith.constant 1 : index
    %c0_15 = arith.constant 0 : index
    %c0_16 = arith.constant 0 : index
    %24 = vector.load %arg1[%c1_14, %c0_15, %c0_16] : memref<2x4x1152xbf16, #tpu.memory_space<vmem>>, vector<1x4x1024xbf16>
    %25 = vector.shape_cast %24 : vector<1x4x1024xbf16> to vector<4x1024xbf16>
    %26 = vector.extract_strided_slice %25 {offsets = [0, 0], sizes = [4, 896], strides = [1, 1]} : vector<4x1024xbf16> to vector<4x896xbf16>
    %27 = vector.extract_strided_slice %25 {offsets = [0, 128], sizes = [4, 896], strides = [1, 1]} : vector<4x1024xbf16> to vector<4x896xbf16>
    %c1_17 = arith.constant 1 : index
    %c0_18 = arith.constant 0 : index
    %c1_19 = arith.constant 1 : index
    %28 = vector.load %arg1[%c1_17, %c0_18, %c1_19] : memref<2x4x1152xbf16, #tpu.memory_space<vmem>>, vector<1x4x1024xbf16>
    %29 = vector.shape_cast %28 : vector<1x4x1024xbf16> to vector<4x1024xbf16>
    %30 = vector.extract_strided_slice %29 {offsets = [0, 0], sizes = [4, 896], strides = [1, 1]} : vector<4x1024xbf16> to vector<4x896xbf16>
    %31 = vector.extract_strided_slice %29 {offsets = [0, 128], sizes = [4, 896], strides = [1, 1]} : vector<4x1024xbf16> to vector<4x896xbf16>
    %c1_20 = arith.constant 1 : index
    %c0_21 = arith.constant 0 : index
    %c8_22 = arith.constant 8 : index
    %32 = vector.load %arg1[%c1_20, %c0_21, %c8_22] : memref<2x4x1152xbf16, #tpu.memory_space<vmem>>, vector<1x4x1024xbf16>
    %33 = vector.shape_cast %32 : vector<1x4x1024xbf16> to vector<4x1024xbf16>
    %34 = vector.extract_strided_slice %33 {offsets = [0, 0], sizes = [4, 896], strides = [1, 1]} : vector<4x1024xbf16> to vector<4x896xbf16>
    %35 = vector.extract_strided_slice %33 {offsets = [0, 128], sizes = [4, 896], strides = [1, 1]} : vector<4x1024xbf16> to vector<4x896xbf16>
    %c1_23 = arith.constant 1 : index
    %c0_24 = arith.constant 0 : index
    %c9_25 = arith.constant 9 : index
    %36 = vector.load %arg1[%c1_23, %c0_24, %c9_25] : memref<2x4x1152xbf16, #tpu.memory_space<vmem>>, vector<1x4x1024xbf16>
    %37 = vector.shape_cast %36 : vector<1x4x1024xbf16> to vector<4x1024xbf16>
    %38 = vector.extract_strided_slice %37 {offsets = [0, 0], sizes = [4, 896], strides = [1, 1]} : vector<4x1024xbf16> to vector<4x896xbf16>
    %39 = vector.extract_strided_slice %37 {offsets = [0, 128], sizes = [4, 896], strides = [1, 1]} : vector<4x1024xbf16> to vector<4x896xbf16>
    %40 = tpu.concatenate %26, %27, %30, %31, %34, %35, %38, %39 in 0 : vector<4x896xbf16>, vector<4x896xbf16>, vector<4x896xbf16>, vector<4x896xbf16>, vector<4x896xbf16>, vector<4x896xbf16>, vector<4x896xbf16>, vector<4x896xbf16> -> vector<32x896xbf16>
    %c0_26 = arith.constant 0 : index
    %c0_27 = arith.constant 0 : index
    %41 = vector.load %arg2[%c0_26, %c0_27] : memref<2x32xbf16, #tpu.memory_space<vmem>>, vector<2x32xbf16>
    %cst_28 = arith.constant dense<0.000000e+00> : vector<2x896xf32>
    %42 = tpu.matmul %41, %40, %cst_28 {dimension_numbers = #tpu.dot_dimension_numbers<[1], [0], [0], [1], [0, 0, 1, 1], [], []>} : vector<2x32xbf16>, vector<32x896xbf16>, vector<2x896xf32> -> vector<2x896xf32>
    %c0_29 = arith.constant 0 : index
    %c0_30 = arith.constant 0 : index
    %43 = vector.load %arg3[%c0_29, %c0_30] : memref<2x1xf32, #tpu.memory_space<vmem>>, vector<2x1xf32>
    %44 = vector.broadcast %43 : vector<2x1xf32> to vector<2x896xf32>
    %45 = arith.addf %42, %44 : vector<2x896xf32>
    %46 = arith.truncf %45 : vector<2x896xf32> to vector<2x896xbf16>
    %c2 = arith.constant 2 : index
    %c0_31 = arith.constant 0 : index
    %47 = vector.load %arg5[%c2, %c0_31] : memref<4x896xbf16, #tpu.memory_space<vmem>>, vector<2x896xbf16>
    tpu.vector_store %arg5[%c2, %c0_31], %46 {strides = array<i32>} : memref<4x896xbf16, #tpu.memory_space<vmem>>, vector<2x896xbf16>,
    return
  }
  func.func @transform_0(%arg0: i32) -> (i32, i32, i32) {
    %c0_i32 = arith.constant 0 : i32
    %c0_i32_0 = arith.constant 0 : i32
    %c0_i32_1 = arith.constant 0 : i32
    return %arg0, %c0_i32, %c0_i32_0 : i32, i32, i32
  }
  func.func @transform_1(%arg0: i32) -> (i32, i32) {
    %c0_i32 = arith.constant 0 : i32
    %c0_i32_0 = arith.constant 0 : i32
    %c0_i32_1 = arith.constant 0 : i32
    return %c0_i32, %c0_i32_0 : i32, i32
  }
  func.func @transform_2(%arg0: i32) -> (i32, i32) {
    %c0_i32 = arith.constant 0 : i32
    %c0_i32_0 = arith.constant 0 : i32
    %c0_i32_1 = arith.constant 0 : i32
    return %c0_i32, %c0_i32_0 : i32, i32
  }
  func.func @transform_3(%arg0: i32) -> (i32, i32) {
    %c0_i32 = arith.constant 0 : i32
    %c0_i32_0 = arith.constant 0 : i32
    %c0_i32_1 = arith.constant 0 : i32
    return %c0_i32, %c0_i32_0 : i32, i32
  }
  func.func @transform_4(%arg0: i32) -> (i32, i32) {
    %c0_i32 = arith.constant 0 : i32
    %c0_i32_0 = arith.constant 0 : i32
    return %arg0, %c0_i32 : i32, i32
  }
}

module attributes {stable_mosaic.version = 11 : i64} {
  func.func @_conv_kernel(%arg0: i32, %arg1: memref<2x4x1280xbf16, #tpu.memory_space<vmem>>, %arg2: memref<2x108xbf16, #tpu.memory_space<vmem>>, %arg3: memref<2x1xf32, #tpu.memory_space<vmem>>, %arg4: memref<1x896xf32, #tpu.memory_space<vmem>>, %arg5: memref<4x896xbf16, #tpu.memory_space<vmem>>) attributes {dimension_semantics = [#tpu.dimension_semantics<parallel>], iteration_bounds = array<i64: 1>, scalar_prefetch = 0 : i64, scratch_operands = 0 : i64, tpu.core_type = #tpu.core_type<tc>, window_params = [{transform_indices = @transform_0, window_bounds = array<i64: 2, 4, 1280>}, {pipeline_mode = #tpu.pipeline_mode<synchronous>, transform_indices = @transform_1, window_bounds = array<i64: 2, 108>}, {pipeline_mode = #tpu.pipeline_mode<synchronous>, transform_indices = @transform_2, window_bounds = array<i64: 2, 1>}, {pipeline_mode = #tpu.pipeline_mode<synchronous>, transform_indices = @transform_3, window_bounds = array<i64: 1, 896>}, {transform_indices = @transform_4, window_bounds = array<i64: 4, 896>}]} {
    %c0 = arith.constant 0 : index
    %c0_0 = arith.constant 0 : index
    %c0_1 = arith.constant 0 : index
    %0 = vector.load %arg1[%c0, %c0_0, %c0_1] : memref<2x4x1280xbf16, #tpu.memory_space<vmem>>, vector<1x4x1152xbf16>
    %1 = vector.shape_cast %0 : vector<1x4x1152xbf16> to vector<4x1152xbf16>
    %2 = vector.extract_strided_slice %1 {offsets = [0, 0], sizes = [4, 896], strides = [1, 1]} : vector<4x1152xbf16> to vector<4x896xbf16>
    %3 = vector.extract_strided_slice %1 {offsets = [0, 128], sizes = [4, 896], strides = [1, 1]} : vector<4x1152xbf16> to vector<4x896xbf16>
    %4 = vector.extract_strided_slice %1 {offsets = [0, 256], sizes = [4, 896], strides = [1, 1]} : vector<4x1152xbf16> to vector<4x896xbf16>
    %c0_2 = arith.constant 0 : index
    %c0_3 = arith.constant 0 : index
    %c1 = arith.constant 1 : index
    %5 = vector.load %arg1[%c0_2, %c0_3, %c1] : memref<2x4x1280xbf16, #tpu.memory_space<vmem>>, vector<1x4x1152xbf16>
    %6 = vector.shape_cast %5 : vector<1x4x1152xbf16> to vector<4x1152xbf16>
    %7 = vector.extract_strided_slice %6 {offsets = [0, 0], sizes = [4, 896], strides = [1, 1]} : vector<4x1152xbf16> to vector<4x896xbf16>
    %8 = vector.extract_strided_slice %6 {offsets = [0, 128], sizes = [4, 896], strides = [1, 1]} : vector<4x1152xbf16> to vector<4x896xbf16>
    %9 = vector.extract_strided_slice %6 {offsets = [0, 256], sizes = [4, 896], strides = [1, 1]} : vector<4x1152xbf16> to vector<4x896xbf16>
    %c0_4 = arith.constant 0 : index
    %c0_5 = arith.constant 0 : index
    %c2 = arith.constant 2 : index
    %10 = vector.load %arg1[%c0_4, %c0_5, %c2] : memref<2x4x1280xbf16, #tpu.memory_space<vmem>>, vector<1x4x1152xbf16>
    %11 = vector.shape_cast %10 : vector<1x4x1152xbf16> to vector<4x1152xbf16>
    %12 = vector.extract_strided_slice %11 {offsets = [0, 0], sizes = [4, 896], strides = [1, 1]} : vector<4x1152xbf16> to vector<4x896xbf16>
    %13 = vector.extract_strided_slice %11 {offsets = [0, 128], sizes = [4, 896], strides = [1, 1]} : vector<4x1152xbf16> to vector<4x896xbf16>
    %14 = vector.extract_strided_slice %11 {offsets = [0, 256], sizes = [4, 896], strides = [1, 1]} : vector<4x1152xbf16> to vector<4x896xbf16>
    %c0_6 = arith.constant 0 : index
    %c0_7 = arith.constant 0 : index
    %c9 = arith.constant 9 : index
    %15 = vector.load %arg1[%c0_6, %c0_7, %c9] : memref<2x4x1280xbf16, #tpu.memory_space<vmem>>, vector<1x4x1152xbf16>
    %16 = vector.shape_cast %15 : vector<1x4x1152xbf16> to vector<4x1152xbf16>
    %17 = vector.extract_strided_slice %16 {offsets = [0, 0], sizes = [4, 896], strides = [1, 1]} : vector<4x1152xbf16> to vector<4x896xbf16>
    %18 = vector.extract_strided_slice %16 {offsets = [0, 128], sizes = [4, 896], strides = [1, 1]} : vector<4x1152xbf16> to vector<4x896xbf16>
    %19 = vector.extract_strided_slice %16 {offsets = [0, 256], sizes = [4, 896], strides = [1, 1]} : vector<4x1152xbf16> to vector<4x896xbf16>
    %c0_8 = arith.constant 0 : index
    %c0_9 = arith.constant 0 : index
    %c10 = arith.constant 10 : index
    %20 = vector.load %arg1[%c0_8, %c0_9, %c10] : memref<2x4x1280xbf16, #tpu.memory_space<vmem>>, vector<1x4x1152xbf16>
    %21 = vector.shape_cast %20 : vector<1x4x1152xbf16> to vector<4x1152xbf16>
    %22 = vector.extract_strided_slice %21 {offsets = [0, 0], sizes = [4, 896], strides = [1, 1]} : vector<4x1152xbf16> to vector<4x896xbf16>
    %23 = vector.extract_strided_slice %21 {offsets = [0, 128], sizes = [4, 896], strides = [1, 1]} : vector<4x1152xbf16> to vector<4x896xbf16>
    %24 = vector.extract_strided_slice %21 {offsets = [0, 256], sizes = [4, 896], strides = [1, 1]} : vector<4x1152xbf16> to vector<4x896xbf16>
    %c0_10 = arith.constant 0 : index
    %c0_11 = arith.constant 0 : index
    %c11 = arith.constant 11 : index
    %25 = vector.load %arg1[%c0_10, %c0_11, %c11] : memref<2x4x1280xbf16, #tpu.memory_space<vmem>>, vector<1x4x1152xbf16>
    %26 = vector.shape_cast %25 : vector<1x4x1152xbf16> to vector<4x1152xbf16>
    %27 = vector.extract_strided_slice %26 {offsets = [0, 0], sizes = [4, 896], strides = [1, 1]} : vector<4x1152xbf16> to vector<4x896xbf16>
    %28 = vector.extract_strided_slice %26 {offsets = [0, 128], sizes = [4, 896], strides = [1, 1]} : vector<4x1152xbf16> to vector<4x896xbf16>
    %29 = vector.extract_strided_slice %26 {offsets = [0, 256], sizes = [4, 896], strides = [1, 1]} : vector<4x1152xbf16> to vector<4x896xbf16>
    %c0_12 = arith.constant 0 : index
    %c0_13 = arith.constant 0 : index
    %c18 = arith.constant 18 : index
    %30 = vector.load %arg1[%c0_12, %c0_13, %c18] : memref<2x4x1280xbf16, #tpu.memory_space<vmem>>, vector<1x4x1152xbf16>
    %31 = vector.shape_cast %30 : vector<1x4x1152xbf16> to vector<4x1152xbf16>
    %32 = vector.extract_strided_slice %31 {offsets = [0, 0], sizes = [4, 896], strides = [1, 1]} : vector<4x1152xbf16> to vector<4x896xbf16>
    %33 = vector.extract_strided_slice %31 {offsets = [0, 128], sizes = [4, 896], strides = [1, 1]} : vector<4x1152xbf16> to vector<4x896xbf16>
    %34 = vector.extract_strided_slice %31 {offsets = [0, 256], sizes = [4, 896], strides = [1, 1]} : vector<4x1152xbf16> to vector<4x896xbf16>
    %c0_14 = arith.constant 0 : index
    %c0_15 = arith.constant 0 : index
    %c19 = arith.constant 19 : index
    %35 = vector.load %arg1[%c0_14, %c0_15, %c19] : memref<2x4x1280xbf16, #tpu.memory_space<vmem>>, vector<1x4x1152xbf16>
    %36 = vector.shape_cast %35 : vector<1x4x1152xbf16> to vector<4x1152xbf16>
    %37 = vector.extract_strided_slice %36 {offsets = [0, 0], sizes = [4, 896], strides = [1, 1]} : vector<4x1152xbf16> to vector<4x896xbf16>
    %38 = vector.extract_strided_slice %36 {offsets = [0, 128], sizes = [4, 896], strides = [1, 1]} : vector<4x1152xbf16> to vector<4x896xbf16>
    %39 = vector.extract_strided_slice %36 {offsets = [0, 256], sizes = [4, 896], strides = [1, 1]} : vector<4x1152xbf16> to vector<4x896xbf16>
    %c0_16 = arith.constant 0 : index
    %c0_17 = arith.constant 0 : index
    %c20 = arith.constant 20 : index
    %40 = vector.load %arg1[%c0_16, %c0_17, %c20] : memref<2x4x1280xbf16, #tpu.memory_space<vmem>>, vector<1x4x1152xbf16>
    %41 = vector.shape_cast %40 : vector<1x4x1152xbf16> to vector<4x1152xbf16>
    %42 = vector.extract_strided_slice %41 {offsets = [0, 0], sizes = [4, 896], strides = [1, 1]} : vector<4x1152xbf16> to vector<4x896xbf16>
    %43 = vector.extract_strided_slice %41 {offsets = [0, 128], sizes = [4, 896], strides = [1, 1]} : vector<4x1152xbf16> to vector<4x896xbf16>
    %44 = vector.extract_strided_slice %41 {offsets = [0, 256], sizes = [4, 896], strides = [1, 1]} : vector<4x1152xbf16> to vector<4x896xbf16>
    %45 = tpu.concatenate %2, %3, %4, %7, %8, %9, %12, %13, %14, %17, %18, %19, %22, %23, %24, %27 in 0 : vector<4x896xbf16>, vector<4x896xbf16>, vector<4x896xbf16>, vector<4x896xbf16>, vector<4x896xbf16>, vector<4x896xbf16>, vector<4x896xbf16>, vector<4x896xbf16>, vector<4x896xbf16>, vector<4x896xbf16>, vector<4x896xbf16>, vector<4x896xbf16>, vector<4x896xbf16>, vector<4x896xbf16>, vector<4x896xbf16>, vector<4x896xbf16> -> vector<64x896xbf16>
    %46 = tpu.concatenate %28, %29, %32, %33, %34, %37, %38, %39, %42, %43, %44 in 0 : vector<4x896xbf16>, vector<4x896xbf16>, vector<4x896xbf16>, vector<4x896xbf16>, vector<4x896xbf16>, vector<4x896xbf16>, vector<4x896xbf16>, vector<4x896xbf16>, vector<4x896xbf16>, vector<4x896xbf16>, vector<4x896xbf16> -> vector<44x896xbf16>
    %47 = tpu.concatenate %45, %46 in 0 : vector<64x896xbf16>, vector<44x896xbf16> -> vector<108x896xbf16>
    %c0_18 = arith.constant 0 : index
    %c0_19 = arith.constant 0 : index
    %48 = vector.load %arg2[%c0_18, %c0_19] : memref<2x108xbf16, #tpu.memory_space<vmem>>, vector<2x108xbf16>
    %cst = arith.constant dense<0.000000e+00> : vector<2x896xf32>
    %49 = tpu.matmul %48, %47, %cst {dimension_numbers = #tpu.dot_dimension_numbers<[1], [0], [0], [1], [0, 0, 1, 1], [], []>} : vector<2x108xbf16>, vector<108x896xbf16>, vector<2x896xf32> -> vector<2x896xf32>
    %c0_20 = arith.constant 0 : index
    %c0_21 = arith.constant 0 : index
    %50 = vector.load %arg3[%c0_20, %c0_21] : memref<2x1xf32, #tpu.memory_space<vmem>>, vector<2x1xf32>
    %51 = vector.broadcast %50 : vector<2x1xf32> to vector<2x896xf32>
    %52 = arith.addf %49, %51 : vector<2x896xf32>
    %c0_22 = arith.constant 0 : index
    %c0_23 = arith.constant 0 : index
    %53 = vector.load %arg4[%c0_22, %c0_23] : memref<1x896xf32, #tpu.memory_space<vmem>>, vector<1x896xf32>
    %54 = vector.broadcast %53 : vector<1x896xf32> to vector<2x896xf32>
    %55 = arith.mulf %52, %54 : vector<2x896xf32>
    %cst_24 = arith.constant dense<0.000000e+00> : vector<2xf32>
    %56 = vector.multi_reduction <add>, %55, %cst_24 [1] : vector<2x896xf32> to vector<2xf32>
    %57 = vector.shape_cast %56 : vector<2xf32> to vector<2x1xf32>
    %cst_25 = arith.constant 0.002915452 : f32
    %58 = vector.broadcast %cst_25 : f32 to vector<2x1xf32>
    %59 = arith.mulf %57, %58 : vector<2x1xf32>
    %60 = arith.mulf %55, %52 : vector<2x896xf32>
    %cst_26 = arith.constant dense<0.000000e+00> : vector<2xf32>
    %61 = vector.multi_reduction <add>, %60, %cst_26 [1] : vector<2x896xf32> to vector<2xf32>
    %62 = vector.shape_cast %61 : vector<2xf32> to vector<2x1xf32>
    %cst_27 = arith.constant 0.002915452 : f32
    %63 = vector.broadcast %cst_27 : f32 to vector<2x1xf32>
    %64 = arith.mulf %62, %63 : vector<2x1xf32>
    %65 = arith.mulf %59, %59 : vector<2x1xf32>
    %66 = arith.subf %64, %65 : vector<2x1xf32>
    %cst_28 = arith.constant 0.000000e+00 : f32
    %67 = vector.broadcast %cst_28 : f32 to vector<2x1xf32>
    %68 = arith.maximumf %66, %67 : vector<2x1xf32>
    %69 = vector.broadcast %59 : vector<2x1xf32> to vector<2x896xf32>
    %70 = arith.subf %52, %69 : vector<2x896xf32>
    %cst_29 = arith.constant 9.99999974E-6 : f32
    %71 = vector.broadcast %cst_29 : f32 to vector<2x1xf32>
    %72 = arith.addf %68, %71 : vector<2x1xf32>
    %73 = math.rsqrt %72 : vector<2x1xf32>
    %74 = vector.broadcast %73 : vector<2x1xf32> to vector<2x896xf32>
    %75 = arith.mulf %70, %74 : vector<2x896xf32>
    %cst_30 = arith.constant 0.000000e+00 : f32
    %76 = vector.broadcast %cst_30 : f32 to vector<2x896xf32>
    %77 = arith.maximumf %75, %76 : vector<2x896xf32>
    %78 = arith.truncf %77 : vector<2x896xf32> to vector<2x896xbf16>
    %c0_31 = arith.constant 0 : index
    %c0_32 = arith.constant 0 : index
    %79 = vector.load %arg5[%c0_31, %c0_32] : memref<4x896xbf16, #tpu.memory_space<vmem>>, vector<2x896xbf16>
    tpu.vector_store %arg5[%c0_31, %c0_32], %78 {strides = array<i32>} : memref<4x896xbf16, #tpu.memory_space<vmem>>, vector<2x896xbf16>,
    %c1_33 = arith.constant 1 : index
    %c0_34 = arith.constant 0 : index
    %c0_35 = arith.constant 0 : index
    %80 = vector.load %arg1[%c1_33, %c0_34, %c0_35] : memref<2x4x1280xbf16, #tpu.memory_space<vmem>>, vector<1x4x1152xbf16>
    %81 = vector.shape_cast %80 : vector<1x4x1152xbf16> to vector<4x1152xbf16>
    %82 = vector.extract_strided_slice %81 {offsets = [0, 0], sizes = [4, 896], strides = [1, 1]} : vector<4x1152xbf16> to vector<4x896xbf16>
    %83 = vector.extract_strided_slice %81 {offsets = [0, 128], sizes = [4, 896], strides = [1, 1]} : vector<4x1152xbf16> to vector<4x896xbf16>
    %84 = vector.extract_strided_slice %81 {offsets = [0, 256], sizes = [4, 896], strides = [1, 1]} : vector<4x1152xbf16> to vector<4x896xbf16>
    %c1_36 = arith.constant 1 : index
    %c0_37 = arith.constant 0 : index
    %c1_38 = arith.constant 1 : index
    %85 = vector.load %arg1[%c1_36, %c0_37, %c1_38] : memref<2x4x1280xbf16, #tpu.memory_space<vmem>>, vector<1x4x1152xbf16>
    %86 = vector.shape_cast %85 : vector<1x4x1152xbf16> to vector<4x1152xbf16>
    %87 = vector.extract_strided_slice %86 {offsets = [0, 0], sizes = [4, 896], strides = [1, 1]} : vector<4x1152xbf16> to vector<4x896xbf16>
    %88 = vector.extract_strided_slice %86 {offsets = [0, 128], sizes = [4, 896], strides = [1, 1]} : vector<4x1152xbf16> to vector<4x896xbf16>
    %89 = vector.extract_strided_slice %86 {offsets = [0, 256], sizes = [4, 896], strides = [1, 1]} : vector<4x1152xbf16> to vector<4x896xbf16>
    %c1_39 = arith.constant 1 : index
    %c0_40 = arith.constant 0 : index
    %c2_41 = arith.constant 2 : index
    %90 = vector.load %arg1[%c1_39, %c0_40, %c2_41] : memref<2x4x1280xbf16, #tpu.memory_space<vmem>>, vector<1x4x1152xbf16>
    %91 = vector.shape_cast %90 : vector<1x4x1152xbf16> to vector<4x1152xbf16>
    %92 = vector.extract_strided_slice %91 {offsets = [0, 0], sizes = [4, 896], strides = [1, 1]} : vector<4x1152xbf16> to vector<4x896xbf16>
    %93 = vector.extract_strided_slice %91 {offsets = [0, 128], sizes = [4, 896], strides = [1, 1]} : vector<4x1152xbf16> to vector<4x896xbf16>
    %94 = vector.extract_strided_slice %91 {offsets = [0, 256], sizes = [4, 896], strides = [1, 1]} : vector<4x1152xbf16> to vector<4x896xbf16>
    %c1_42 = arith.constant 1 : index
    %c0_43 = arith.constant 0 : index
    %c9_44 = arith.constant 9 : index
    %95 = vector.load %arg1[%c1_42, %c0_43, %c9_44] : memref<2x4x1280xbf16, #tpu.memory_space<vmem>>, vector<1x4x1152xbf16>
    %96 = vector.shape_cast %95 : vector<1x4x1152xbf16> to vector<4x1152xbf16>
    %97 = vector.extract_strided_slice %96 {offsets = [0, 0], sizes = [4, 896], strides = [1, 1]} : vector<4x1152xbf16> to vector<4x896xbf16>
    %98 = vector.extract_strided_slice %96 {offsets = [0, 128], sizes = [4, 896], strides = [1, 1]} : vector<4x1152xbf16> to vector<4x896xbf16>
    %99 = vector.extract_strided_slice %96 {offsets = [0, 256], sizes = [4, 896], strides = [1, 1]} : vector<4x1152xbf16> to vector<4x896xbf16>
    %c1_45 = arith.constant 1 : index
    %c0_46 = arith.constant 0 : index
    %c10_47 = arith.constant 10 : index
    %100 = vector.load %arg1[%c1_45, %c0_46, %c10_47] : memref<2x4x1280xbf16, #tpu.memory_space<vmem>>, vector<1x4x1152xbf16>
    %101 = vector.shape_cast %100 : vector<1x4x1152xbf16> to vector<4x1152xbf16>
    %102 = vector.extract_strided_slice %101 {offsets = [0, 0], sizes = [4, 896], strides = [1, 1]} : vector<4x1152xbf16> to vector<4x896xbf16>
    %103 = vector.extract_strided_slice %101 {offsets = [0, 128], sizes = [4, 896], strides = [1, 1]} : vector<4x1152xbf16> to vector<4x896xbf16>
    %104 = vector.extract_strided_slice %101 {offsets = [0, 256], sizes = [4, 896], strides = [1, 1]} : vector<4x1152xbf16> to vector<4x896xbf16>
    %c1_48 = arith.constant 1 : index
    %c0_49 = arith.constant 0 : index
    %c11_50 = arith.constant 11 : index
    %105 = vector.load %arg1[%c1_48, %c0_49, %c11_50] : memref<2x4x1280xbf16, #tpu.memory_space<vmem>>, vector<1x4x1152xbf16>
    %106 = vector.shape_cast %105 : vector<1x4x1152xbf16> to vector<4x1152xbf16>
    %107 = vector.extract_strided_slice %106 {offsets = [0, 0], sizes = [4, 896], strides = [1, 1]} : vector<4x1152xbf16> to vector<4x896xbf16>
    %108 = vector.extract_strided_slice %106 {offsets = [0, 128], sizes = [4, 896], strides = [1, 1]} : vector<4x1152xbf16> to vector<4x896xbf16>
    %109 = vector.extract_strided_slice %106 {offsets = [0, 256], sizes = [4, 896], strides = [1, 1]} : vector<4x1152xbf16> to vector<4x896xbf16>
    %c1_51 = arith.constant 1 : index
    %c0_52 = arith.constant 0 : index
    %c18_53 = arith.constant 18 : index
    %110 = vector.load %arg1[%c1_51, %c0_52, %c18_53] : memref<2x4x1280xbf16, #tpu.memory_space<vmem>>, vector<1x4x1152xbf16>
    %111 = vector.shape_cast %110 : vector<1x4x1152xbf16> to vector<4x1152xbf16>
    %112 = vector.extract_strided_slice %111 {offsets = [0, 0], sizes = [4, 896], strides = [1, 1]} : vector<4x1152xbf16> to vector<4x896xbf16>
    %113 = vector.extract_strided_slice %111 {offsets = [0, 128], sizes = [4, 896], strides = [1, 1]} : vector<4x1152xbf16> to vector<4x896xbf16>
    %114 = vector.extract_strided_slice %111 {offsets = [0, 256], sizes = [4, 896], strides = [1, 1]} : vector<4x1152xbf16> to vector<4x896xbf16>
    %c1_54 = arith.constant 1 : index
    %c0_55 = arith.constant 0 : index
    %c19_56 = arith.constant 19 : index
    %115 = vector.load %arg1[%c1_54, %c0_55, %c19_56] : memref<2x4x1280xbf16, #tpu.memory_space<vmem>>, vector<1x4x1152xbf16>
    %116 = vector.shape_cast %115 : vector<1x4x1152xbf16> to vector<4x1152xbf16>
    %117 = vector.extract_strided_slice %116 {offsets = [0, 0], sizes = [4, 896], strides = [1, 1]} : vector<4x1152xbf16> to vector<4x896xbf16>
    %118 = vector.extract_strided_slice %116 {offsets = [0, 128], sizes = [4, 896], strides = [1, 1]} : vector<4x1152xbf16> to vector<4x896xbf16>
    %119 = vector.extract_strided_slice %116 {offsets = [0, 256], sizes = [4, 896], strides = [1, 1]} : vector<4x1152xbf16> to vector<4x896xbf16>
    %c1_57 = arith.constant 1 : index
    %c0_58 = arith.constant 0 : index
    %c20_59 = arith.constant 20 : index
    %120 = vector.load %arg1[%c1_57, %c0_58, %c20_59] : memref<2x4x1280xbf16, #tpu.memory_space<vmem>>, vector<1x4x1152xbf16>
    %121 = vector.shape_cast %120 : vector<1x4x1152xbf16> to vector<4x1152xbf16>
    %122 = vector.extract_strided_slice %121 {offsets = [0, 0], sizes = [4, 896], strides = [1, 1]} : vector<4x1152xbf16> to vector<4x896xbf16>
    %123 = vector.extract_strided_slice %121 {offsets = [0, 128], sizes = [4, 896], strides = [1, 1]} : vector<4x1152xbf16> to vector<4x896xbf16>
    %124 = vector.extract_strided_slice %121 {offsets = [0, 256], sizes = [4, 896], strides = [1, 1]} : vector<4x1152xbf16> to vector<4x896xbf16>
    %125 = tpu.concatenate %82, %83, %84, %87, %88, %89, %92, %93, %94, %97, %98, %99, %102, %103, %104, %107 in 0 : vector<4x896xbf16>, vector<4x896xbf16>, vector<4x896xbf16>, vector<4x896xbf16>, vector<4x896xbf16>, vector<4x896xbf16>, vector<4x896xbf16>, vector<4x896xbf16>, vector<4x896xbf16>, vector<4x896xbf16>, vector<4x896xbf16>, vector<4x896xbf16>, vector<4x896xbf16>, vector<4x896xbf16>, vector<4x896xbf16>, vector<4x896xbf16> -> vector<64x896xbf16>
    %126 = tpu.concatenate %108, %109, %112, %113, %114, %117, %118, %119, %122, %123, %124 in 0 : vector<4x896xbf16>, vector<4x896xbf16>, vector<4x896xbf16>, vector<4x896xbf16>, vector<4x896xbf16>, vector<4x896xbf16>, vector<4x896xbf16>, vector<4x896xbf16>, vector<4x896xbf16>, vector<4x896xbf16>, vector<4x896xbf16> -> vector<44x896xbf16>
    %127 = tpu.concatenate %125, %126 in 0 : vector<64x896xbf16>, vector<44x896xbf16> -> vector<108x896xbf16>
    %c0_60 = arith.constant 0 : index
    %c0_61 = arith.constant 0 : index
    %128 = vector.load %arg2[%c0_60, %c0_61] : memref<2x108xbf16, #tpu.memory_space<vmem>>, vector<2x108xbf16>
    %cst_62 = arith.constant dense<0.000000e+00> : vector<2x896xf32>
    %129 = tpu.matmul %128, %127, %cst_62 {dimension_numbers = #tpu.dot_dimension_numbers<[1], [0], [0], [1], [0, 0, 1, 1], [], []>} : vector<2x108xbf16>, vector<108x896xbf16>, vector<2x896xf32> -> vector<2x896xf32>
    %c0_63 = arith.constant 0 : index
    %c0_64 = arith.constant 0 : index
    %130 = vector.load %arg3[%c0_63, %c0_64] : memref<2x1xf32, #tpu.memory_space<vmem>>, vector<2x1xf32>
    %131 = vector.broadcast %130 : vector<2x1xf32> to vector<2x896xf32>
    %132 = arith.addf %129, %131 : vector<2x896xf32>
    %c0_65 = arith.constant 0 : index
    %c0_66 = arith.constant 0 : index
    %133 = vector.load %arg4[%c0_65, %c0_66] : memref<1x896xf32, #tpu.memory_space<vmem>>, vector<1x896xf32>
    %134 = vector.broadcast %133 : vector<1x896xf32> to vector<2x896xf32>
    %135 = arith.mulf %132, %134 : vector<2x896xf32>
    %cst_67 = arith.constant dense<0.000000e+00> : vector<2xf32>
    %136 = vector.multi_reduction <add>, %135, %cst_67 [1] : vector<2x896xf32> to vector<2xf32>
    %137 = vector.shape_cast %136 : vector<2xf32> to vector<2x1xf32>
    %cst_68 = arith.constant 0.002915452 : f32
    %138 = vector.broadcast %cst_68 : f32 to vector<2x1xf32>
    %139 = arith.mulf %137, %138 : vector<2x1xf32>
    %140 = arith.mulf %135, %132 : vector<2x896xf32>
    %cst_69 = arith.constant dense<0.000000e+00> : vector<2xf32>
    %141 = vector.multi_reduction <add>, %140, %cst_69 [1] : vector<2x896xf32> to vector<2xf32>
    %142 = vector.shape_cast %141 : vector<2xf32> to vector<2x1xf32>
    %cst_70 = arith.constant 0.002915452 : f32
    %143 = vector.broadcast %cst_70 : f32 to vector<2x1xf32>
    %144 = arith.mulf %142, %143 : vector<2x1xf32>
    %145 = arith.mulf %139, %139 : vector<2x1xf32>
    %146 = arith.subf %144, %145 : vector<2x1xf32>
    %cst_71 = arith.constant 0.000000e+00 : f32
    %147 = vector.broadcast %cst_71 : f32 to vector<2x1xf32>
    %148 = arith.maximumf %146, %147 : vector<2x1xf32>
    %149 = vector.broadcast %139 : vector<2x1xf32> to vector<2x896xf32>
    %150 = arith.subf %132, %149 : vector<2x896xf32>
    %cst_72 = arith.constant 9.99999974E-6 : f32
    %151 = vector.broadcast %cst_72 : f32 to vector<2x1xf32>
    %152 = arith.addf %148, %151 : vector<2x1xf32>
    %153 = math.rsqrt %152 : vector<2x1xf32>
    %154 = vector.broadcast %153 : vector<2x1xf32> to vector<2x896xf32>
    %155 = arith.mulf %150, %154 : vector<2x896xf32>
    %cst_73 = arith.constant 0.000000e+00 : f32
    %156 = vector.broadcast %cst_73 : f32 to vector<2x896xf32>
    %157 = arith.maximumf %155, %156 : vector<2x896xf32>
    %158 = arith.truncf %157 : vector<2x896xf32> to vector<2x896xbf16>
    %c2_74 = arith.constant 2 : index
    %c0_75 = arith.constant 0 : index
    %159 = vector.load %arg5[%c2_74, %c0_75] : memref<4x896xbf16, #tpu.memory_space<vmem>>, vector<2x896xbf16>
    tpu.vector_store %arg5[%c2_74, %c0_75], %158 {strides = array<i32>} : memref<4x896xbf16, #tpu.memory_space<vmem>>, vector<2x896xbf16>,
    return
  }
  func.func @transform_0(%arg0: i32) -> (i32, i32, i32) {
    %c0_i32 = arith.constant 0 : i32
    %c0_i32_0 = arith.constant 0 : i32
    %c0_i32_1 = arith.constant 0 : i32
    return %arg0, %c0_i32, %c0_i32_0 : i32, i32, i32
  }
  func.func @transform_1(%arg0: i32) -> (i32, i32) {
    %c0_i32 = arith.constant 0 : i32
    %c0_i32_0 = arith.constant 0 : i32
    %c0_i32_1 = arith.constant 0 : i32
    return %c0_i32, %c0_i32_0 : i32, i32
  }
  func.func @transform_2(%arg0: i32) -> (i32, i32) {
    %c0_i32 = arith.constant 0 : i32
    %c0_i32_0 = arith.constant 0 : i32
    %c0_i32_1 = arith.constant 0 : i32
    return %c0_i32, %c0_i32_0 : i32, i32
  }
  func.func @transform_3(%arg0: i32) -> (i32, i32) {
    %c0_i32 = arith.constant 0 : i32
    %c0_i32_0 = arith.constant 0 : i32
    %c0_i32_1 = arith.constant 0 : i32
    return %c0_i32, %c0_i32_0 : i32, i32
  }
  func.func @transform_4(%arg0: i32) -> (i32, i32) {
    %c0_i32 = arith.constant 0 : i32
    %c0_i32_0 = arith.constant 0 : i32
    return %arg0, %c0_i32 : i32, i32
  }
}

module attributes {stable_mosaic.version = 11 : i64} {
  func.func @_conv_kernel(%arg0: i32, %arg1: memref<2x2x1280xbf16, #tpu.memory_space<vmem>>, %arg2: memref<2x16xbf16, #tpu.memory_space<vmem>>, %arg3: memref<2x1xf32, #tpu.memory_space<vmem>>, %arg4: memref<1x1024xf32, #tpu.memory_space<vmem>>, %arg5: memref<4x1024xf32, #tpu.memory_space<vmem>>) attributes {dimension_semantics = [#tpu.dimension_semantics<parallel>], iteration_bounds = array<i64: 1>, scalar_prefetch = 0 : i64, scratch_operands = 0 : i64, tpu.core_type = #tpu.core_type<tc>, window_params = [{transform_indices = @transform_0, window_bounds = array<i64: 2, 2, 1280>}, {pipeline_mode = #tpu.pipeline_mode<synchronous>, transform_indices = @transform_1, window_bounds = array<i64: 2, 16>}, {pipeline_mode = #tpu.pipeline_mode<synchronous>, transform_indices = @transform_2, window_bounds = array<i64: 2, 1>}, {pipeline_mode = #tpu.pipeline_mode<synchronous>, transform_indices = @transform_3, window_bounds = array<i64: 1, 1024>}, {transform_indices = @transform_4, window_bounds = array<i64: 4, 1024>}]} {
    %c0 = arith.constant 0 : index
    %c0_0 = arith.constant 0 : index
    %c0_1 = arith.constant 0 : index
    %0 = vector.load %arg1[%c0, %c0_0, %c0_1] : memref<2x2x1280xbf16, #tpu.memory_space<vmem>>, vector<1x2x1152xbf16>
    %1 = vector.shape_cast %0 : vector<1x2x1152xbf16> to vector<2x1152xbf16>
    %2 = vector.extract_strided_slice %1 {offsets = [0, 0], sizes = [2, 1024], strides = [1, 1]} : vector<2x1152xbf16> to vector<2x1024xbf16>
    %3 = vector.extract_strided_slice %1 {offsets = [0, 128], sizes = [2, 1024], strides = [1, 1]} : vector<2x1152xbf16> to vector<2x1024xbf16>
    %c0_2 = arith.constant 0 : index
    %c0_3 = arith.constant 0 : index
    %c1 = arith.constant 1 : index
    %4 = vector.load %arg1[%c0_2, %c0_3, %c1] : memref<2x2x1280xbf16, #tpu.memory_space<vmem>>, vector<1x2x1152xbf16>
    %5 = vector.shape_cast %4 : vector<1x2x1152xbf16> to vector<2x1152xbf16>
    %6 = vector.extract_strided_slice %5 {offsets = [0, 0], sizes = [2, 1024], strides = [1, 1]} : vector<2x1152xbf16> to vector<2x1024xbf16>
    %7 = vector.extract_strided_slice %5 {offsets = [0, 128], sizes = [2, 1024], strides = [1, 1]} : vector<2x1152xbf16> to vector<2x1024xbf16>
    %c0_4 = arith.constant 0 : index
    %c0_5 = arith.constant 0 : index
    %c9 = arith.constant 9 : index
    %8 = vector.load %arg1[%c0_4, %c0_5, %c9] : memref<2x2x1280xbf16, #tpu.memory_space<vmem>>, vector<1x2x1152xbf16>
    %9 = vector.shape_cast %8 : vector<1x2x1152xbf16> to vector<2x1152xbf16>
    %10 = vector.extract_strided_slice %9 {offsets = [0, 0], sizes = [2, 1024], strides = [1, 1]} : vector<2x1152xbf16> to vector<2x1024xbf16>
    %11 = vector.extract_strided_slice %9 {offsets = [0, 128], sizes = [2, 1024], strides = [1, 1]} : vector<2x1152xbf16> to vector<2x1024xbf16>
    %c0_6 = arith.constant 0 : index
    %c0_7 = arith.constant 0 : index
    %c10 = arith.constant 10 : index
    %12 = vector.load %arg1[%c0_6, %c0_7, %c10] : memref<2x2x1280xbf16, #tpu.memory_space<vmem>>, vector<1x2x1152xbf16>
    %13 = vector.shape_cast %12 : vector<1x2x1152xbf16> to vector<2x1152xbf16>
    %14 = vector.extract_strided_slice %13 {offsets = [0, 0], sizes = [2, 1024], strides = [1, 1]} : vector<2x1152xbf16> to vector<2x1024xbf16>
    %15 = vector.extract_strided_slice %13 {offsets = [0, 128], sizes = [2, 1024], strides = [1, 1]} : vector<2x1152xbf16> to vector<2x1024xbf16>
    %16 = tpu.concatenate %2, %3, %6, %7, %10, %11, %14, %15 in 0 : vector<2x1024xbf16>, vector<2x1024xbf16>, vector<2x1024xbf16>, vector<2x1024xbf16>, vector<2x1024xbf16>, vector<2x1024xbf16>, vector<2x1024xbf16>, vector<2x1024xbf16> -> vector<16x1024xbf16>
    %c0_8 = arith.constant 0 : index
    %c0_9 = arith.constant 0 : index
    %17 = vector.load %arg2[%c0_8, %c0_9] : memref<2x16xbf16, #tpu.memory_space<vmem>>, vector<2x16xbf16>
    %cst = arith.constant dense<0.000000e+00> : vector<2x1024xf32>
    %18 = tpu.matmul %17, %16, %cst {dimension_numbers = #tpu.dot_dimension_numbers<[1], [0], [0], [1], [0, 0, 1, 1], [], []>} : vector<2x16xbf16>, vector<16x1024xbf16>, vector<2x1024xf32> -> vector<2x1024xf32>
    %c0_10 = arith.constant 0 : index
    %c0_11 = arith.constant 0 : index
    %19 = vector.load %arg3[%c0_10, %c0_11] : memref<2x1xf32, #tpu.memory_space<vmem>>, vector<2x1xf32>
    %20 = vector.broadcast %19 : vector<2x1xf32> to vector<2x1024xf32>
    %21 = arith.addf %18, %20 : vector<2x1024xf32>
    %c0_12 = arith.constant 0 : index
    %c0_13 = arith.constant 0 : index
    %22 = vector.load %arg4[%c0_12, %c0_13] : memref<1x1024xf32, #tpu.memory_space<vmem>>, vector<1x1024xf32>
    %23 = vector.broadcast %22 : vector<1x1024xf32> to vector<2x1024xf32>
    %24 = arith.mulf %21, %23 : vector<2x1024xf32>
    %cst_14 = arith.constant dense<0.000000e+00> : vector<2xf32>
    %25 = vector.multi_reduction <add>, %24, %cst_14 [1] : vector<2x1024xf32> to vector<2xf32>
    %26 = vector.shape_cast %25 : vector<2xf32> to vector<2x1xf32>
    %cst_15 = arith.constant 0.001953125 : f32
    %27 = vector.broadcast %cst_15 : f32 to vector<2x1xf32>
    %28 = arith.mulf %26, %27 : vector<2x1xf32>
    %29 = arith.mulf %24, %21 : vector<2x1024xf32>
    %cst_16 = arith.constant dense<0.000000e+00> : vector<2xf32>
    %30 = vector.multi_reduction <add>, %29, %cst_16 [1] : vector<2x1024xf32> to vector<2xf32>
    %31 = vector.shape_cast %30 : vector<2xf32> to vector<2x1xf32>
    %cst_17 = arith.constant 0.001953125 : f32
    %32 = vector.broadcast %cst_17 : f32 to vector<2x1xf32>
    %33 = arith.mulf %31, %32 : vector<2x1xf32>
    %34 = arith.mulf %28, %28 : vector<2x1xf32>
    %35 = arith.subf %33, %34 : vector<2x1xf32>
    %cst_18 = arith.constant 0.000000e+00 : f32
    %36 = vector.broadcast %cst_18 : f32 to vector<2x1xf32>
    %37 = arith.maximumf %35, %36 : vector<2x1xf32>
    %38 = vector.broadcast %28 : vector<2x1xf32> to vector<2x1024xf32>
    %39 = arith.subf %21, %38 : vector<2x1024xf32>
    %cst_19 = arith.constant 9.99999974E-6 : f32
    %40 = vector.broadcast %cst_19 : f32 to vector<2x1xf32>
    %41 = arith.addf %37, %40 : vector<2x1xf32>
    %42 = math.rsqrt %41 : vector<2x1xf32>
    %43 = vector.broadcast %42 : vector<2x1xf32> to vector<2x1024xf32>
    %44 = arith.mulf %39, %43 : vector<2x1024xf32>
    %cst_20 = arith.constant 0.000000e+00 : f32
    %45 = vector.broadcast %cst_20 : f32 to vector<2x1024xf32>
    %46 = arith.maximumf %44, %45 : vector<2x1024xf32>
    %c0_21 = arith.constant 0 : index
    %c0_22 = arith.constant 0 : index
    %47 = vector.load %arg5[%c0_21, %c0_22] : memref<4x1024xf32, #tpu.memory_space<vmem>>, vector<2x1024xf32>
    tpu.vector_store %arg5[%c0_21, %c0_22], %46 {strides = array<i32>} : memref<4x1024xf32, #tpu.memory_space<vmem>>, vector<2x1024xf32>,
    %c1_23 = arith.constant 1 : index
    %c0_24 = arith.constant 0 : index
    %c0_25 = arith.constant 0 : index
    %48 = vector.load %arg1[%c1_23, %c0_24, %c0_25] : memref<2x2x1280xbf16, #tpu.memory_space<vmem>>, vector<1x2x1152xbf16>
    %49 = vector.shape_cast %48 : vector<1x2x1152xbf16> to vector<2x1152xbf16>
    %50 = vector.extract_strided_slice %49 {offsets = [0, 0], sizes = [2, 1024], strides = [1, 1]} : vector<2x1152xbf16> to vector<2x1024xbf16>
    %51 = vector.extract_strided_slice %49 {offsets = [0, 128], sizes = [2, 1024], strides = [1, 1]} : vector<2x1152xbf16> to vector<2x1024xbf16>
    %c1_26 = arith.constant 1 : index
    %c0_27 = arith.constant 0 : index
    %c1_28 = arith.constant 1 : index
    %52 = vector.load %arg1[%c1_26, %c0_27, %c1_28] : memref<2x2x1280xbf16, #tpu.memory_space<vmem>>, vector<1x2x1152xbf16>
    %53 = vector.shape_cast %52 : vector<1x2x1152xbf16> to vector<2x1152xbf16>
    %54 = vector.extract_strided_slice %53 {offsets = [0, 0], sizes = [2, 1024], strides = [1, 1]} : vector<2x1152xbf16> to vector<2x1024xbf16>
    %55 = vector.extract_strided_slice %53 {offsets = [0, 128], sizes = [2, 1024], strides = [1, 1]} : vector<2x1152xbf16> to vector<2x1024xbf16>
    %c1_29 = arith.constant 1 : index
    %c0_30 = arith.constant 0 : index
    %c9_31 = arith.constant 9 : index
    %56 = vector.load %arg1[%c1_29, %c0_30, %c9_31] : memref<2x2x1280xbf16, #tpu.memory_space<vmem>>, vector<1x2x1152xbf16>
    %57 = vector.shape_cast %56 : vector<1x2x1152xbf16> to vector<2x1152xbf16>
    %58 = vector.extract_strided_slice %57 {offsets = [0, 0], sizes = [2, 1024], strides = [1, 1]} : vector<2x1152xbf16> to vector<2x1024xbf16>
    %59 = vector.extract_strided_slice %57 {offsets = [0, 128], sizes = [2, 1024], strides = [1, 1]} : vector<2x1152xbf16> to vector<2x1024xbf16>
    %c1_32 = arith.constant 1 : index
    %c0_33 = arith.constant 0 : index
    %c10_34 = arith.constant 10 : index
    %60 = vector.load %arg1[%c1_32, %c0_33, %c10_34] : memref<2x2x1280xbf16, #tpu.memory_space<vmem>>, vector<1x2x1152xbf16>
    %61 = vector.shape_cast %60 : vector<1x2x1152xbf16> to vector<2x1152xbf16>
    %62 = vector.extract_strided_slice %61 {offsets = [0, 0], sizes = [2, 1024], strides = [1, 1]} : vector<2x1152xbf16> to vector<2x1024xbf16>
    %63 = vector.extract_strided_slice %61 {offsets = [0, 128], sizes = [2, 1024], strides = [1, 1]} : vector<2x1152xbf16> to vector<2x1024xbf16>
    %64 = tpu.concatenate %50, %51, %54, %55, %58, %59, %62, %63 in 0 : vector<2x1024xbf16>, vector<2x1024xbf16>, vector<2x1024xbf16>, vector<2x1024xbf16>, vector<2x1024xbf16>, vector<2x1024xbf16>, vector<2x1024xbf16>, vector<2x1024xbf16> -> vector<16x1024xbf16>
    %c0_35 = arith.constant 0 : index
    %c0_36 = arith.constant 0 : index
    %65 = vector.load %arg2[%c0_35, %c0_36] : memref<2x16xbf16, #tpu.memory_space<vmem>>, vector<2x16xbf16>
    %cst_37 = arith.constant dense<0.000000e+00> : vector<2x1024xf32>
    %66 = tpu.matmul %65, %64, %cst_37 {dimension_numbers = #tpu.dot_dimension_numbers<[1], [0], [0], [1], [0, 0, 1, 1], [], []>} : vector<2x16xbf16>, vector<16x1024xbf16>, vector<2x1024xf32> -> vector<2x1024xf32>
    %c0_38 = arith.constant 0 : index
    %c0_39 = arith.constant 0 : index
    %67 = vector.load %arg3[%c0_38, %c0_39] : memref<2x1xf32, #tpu.memory_space<vmem>>, vector<2x1xf32>
    %68 = vector.broadcast %67 : vector<2x1xf32> to vector<2x1024xf32>
    %69 = arith.addf %66, %68 : vector<2x1024xf32>
    %c0_40 = arith.constant 0 : index
    %c0_41 = arith.constant 0 : index
    %70 = vector.load %arg4[%c0_40, %c0_41] : memref<1x1024xf32, #tpu.memory_space<vmem>>, vector<1x1024xf32>
    %71 = vector.broadcast %70 : vector<1x1024xf32> to vector<2x1024xf32>
    %72 = arith.mulf %69, %71 : vector<2x1024xf32>
    %cst_42 = arith.constant dense<0.000000e+00> : vector<2xf32>
    %73 = vector.multi_reduction <add>, %72, %cst_42 [1] : vector<2x1024xf32> to vector<2xf32>
    %74 = vector.shape_cast %73 : vector<2xf32> to vector<2x1xf32>
    %cst_43 = arith.constant 0.001953125 : f32
    %75 = vector.broadcast %cst_43 : f32 to vector<2x1xf32>
    %76 = arith.mulf %74, %75 : vector<2x1xf32>
    %77 = arith.mulf %72, %69 : vector<2x1024xf32>
    %cst_44 = arith.constant dense<0.000000e+00> : vector<2xf32>
    %78 = vector.multi_reduction <add>, %77, %cst_44 [1] : vector<2x1024xf32> to vector<2xf32>
    %79 = vector.shape_cast %78 : vector<2xf32> to vector<2x1xf32>
    %cst_45 = arith.constant 0.001953125 : f32
    %80 = vector.broadcast %cst_45 : f32 to vector<2x1xf32>
    %81 = arith.mulf %79, %80 : vector<2x1xf32>
    %82 = arith.mulf %76, %76 : vector<2x1xf32>
    %83 = arith.subf %81, %82 : vector<2x1xf32>
    %cst_46 = arith.constant 0.000000e+00 : f32
    %84 = vector.broadcast %cst_46 : f32 to vector<2x1xf32>
    %85 = arith.maximumf %83, %84 : vector<2x1xf32>
    %86 = vector.broadcast %76 : vector<2x1xf32> to vector<2x1024xf32>
    %87 = arith.subf %69, %86 : vector<2x1024xf32>
    %cst_47 = arith.constant 9.99999974E-6 : f32
    %88 = vector.broadcast %cst_47 : f32 to vector<2x1xf32>
    %89 = arith.addf %85, %88 : vector<2x1xf32>
    %90 = math.rsqrt %89 : vector<2x1xf32>
    %91 = vector.broadcast %90 : vector<2x1xf32> to vector<2x1024xf32>
    %92 = arith.mulf %87, %91 : vector<2x1024xf32>
    %cst_48 = arith.constant 0.000000e+00 : f32
    %93 = vector.broadcast %cst_48 : f32 to vector<2x1024xf32>
    %94 = arith.maximumf %92, %93 : vector<2x1024xf32>
    %c2 = arith.constant 2 : index
    %c0_49 = arith.constant 0 : index
    %95 = vector.load %arg5[%c2, %c0_49] : memref<4x1024xf32, #tpu.memory_space<vmem>>, vector<2x1024xf32>
    tpu.vector_store %arg5[%c2, %c0_49], %94 {strides = array<i32>} : memref<4x1024xf32, #tpu.memory_space<vmem>>, vector<2x1024xf32>,
    return
  }
  func.func @transform_0(%arg0: i32) -> (i32, i32, i32) {
    %c0_i32 = arith.constant 0 : i32
    %c0_i32_0 = arith.constant 0 : i32
    %c0_i32_1 = arith.constant 0 : i32
    return %arg0, %c0_i32, %c0_i32_0 : i32, i32, i32
  }
  func.func @transform_1(%arg0: i32) -> (i32, i32) {
    %c0_i32 = arith.constant 0 : i32
    %c0_i32_0 = arith.constant 0 : i32
    %c0_i32_1 = arith.constant 0 : i32
    return %c0_i32, %c0_i32_0 : i32, i32
  }
  func.func @transform_2(%arg0: i32) -> (i32, i32) {
    %c0_i32 = arith.constant 0 : i32
    %c0_i32_0 = arith.constant 0 : i32
    %c0_i32_1 = arith.constant 0 : i32
    return %c0_i32, %c0_i32_0 : i32, i32
  }
  func.func @transform_3(%arg0: i32) -> (i32, i32) {
    %c0_i32 = arith.constant 0 : i32
    %c0_i32_0 = arith.constant 0 : i32
    %c0_i32_1 = arith.constant 0 : i32
    return %c0_i32, %c0_i32_0 : i32, i32
  }
  func.func @transform_4(%arg0: i32) -> (i32, i32) {
    %c0_i32 = arith.constant 0 : i32
    %c0_i32_0 = arith.constant 0 : i32
    return %arg0, %c0_i32 : i32, i32
  }
}

</mosaic_0001>

<llo_original>
// kernel: expanding_block_forward.6
$region0: #{expanding_block_forward.6}
  #allocation0 [shape = 'u32[]', space=smem, size = 0x4, offset = 0x4, fixed_abs, tag = 'smem constant byte address 0x4 - core index']
  #allocation1 [shape = 'u32[144,128]{1,0:T(1,128)}', space=vmem, size = 0x12000, scoped, tag = 'internal scratch']
  %s0 = inlined_call_operand.vmem [shape: bf16[8,4,64], index: 0, kind: input, shape index: {}]
  %s1 = inlined_call_operand.vmem [shape: bf16[8,4], index: 1, kind: input, shape index: {}]
  %s2 = inlined_call_operand.vmem [shape: bf16[8,8,64], index: 2, kind: output, shape index: {}]
  %s3 = sld [smem:[#allocation0]]
  $region41: #{expanding_block_forward.6} parent=0
    _
  %s5 = ssub.s32 1, %s3
  %s6 = scalar_select 0, %s5, %s3
  loop: start=0, step=1, limit=4
  $region2: #{expanding_block_forward.6} parent=0 // loop_pre_header
    _
  $region3: #{expanding_block_forward.6} parent=0 // loop_header
    %s8 = sphi 0, %s12
    %p9 = scmp.ge.s32.totalorder %s8, 4
    %s18 = sphi 0, %s20
    %s21 = sphi 0, %s18
    %s22 = sphi 0, %s21
    %s38 = sphi 0, %s22
    %s42 = sphi 0, %s42
    %s44 = sphi 0, %s42
    %s45 = sphi 0, %s44
    %s59 = sphi 0, %s45
    %s65 = sphi 0, %s67
    %s68 = sphi 0, %s65
    %s69 = sphi 0, %s68
    %s85 = sphi 0, %s69
  $region4: #{expanding_block_forward.6} parent=0 // loop_header_branch
    %11 = sbr.rel (%p9) target = $region8
  $region5: #{expanding_block_forward.6} parent=0 // loop_body
    %s13 = ssub.s32 %s8, 1
    %s14 = ssub.s32 %s8, 2
    %s15 = sadd.s32 %s8, 1
    %s16 = ssub.s32 %s8, %s15
    %p17 = scmp.eq.s32.totalorder %s16, 0
    %s19 = sadd.s32 %s18, 1
    %s20 = scalar_select %p17, %s18, %s19
    %p23 = pneg %p17
    %p24 = scmp.eq.s32.totalorder %s8, 1
    %p25 = por %p23, %p24
    %p26 = scmp.ne.s32.totalorder %s18, %s21
    %p27 = scmp.eq.s32.totalorder %s8, 0
    %p28 = por %p26, %p27
    %p29 = scmp.ne.s32.totalorder %s18, %s21
    %p30 = scmp.eq.s32.totalorder %s13, 1
    %p31 = por %p29, %p30
    %p32 = scmp.ne.s32.totalorder %s21, %s22
    %p33 = scmp.eq.s32.totalorder %s13, 0
    %p34 = por %p32, %p33
    %p35 = scmp.ne.s32.totalorder %s21, %s22
    %p36 = scmp.eq.s32.totalorder %s14, 1
    %p37 = por %p35, %p36
    %p39 = scmp.ne.s32.totalorder %s22, %s38
    %p40 = scmp.eq.s32.totalorder %s14, 0
    %p41 = por %p39, %p40
    %s43 = sadd.s32 %s42, 1
    %p46 = scmp.eq.s32.totalorder %s8, 1
    %p47 = scmp.ne.s32.totalorder %s42, %s44
    %p48 = scmp.eq.s32.totalorder %s8, 0
    %p49 = por %p47, %p48
    %p50 = scmp.ne.s32.totalorder %s42, %s44
    %p51 = scmp.eq.s32.totalorder %s13, 1
    %p52 = por %p50, %p51
    %p53 = scmp.ne.s32.totalorder %s44, %s45
    %p54 = scmp.eq.s32.totalorder %s13, 0
    %p55 = por %p53, %p54
    %p56 = scmp.ne.s32.totalorder %s44, %s45
    %p57 = scmp.eq.s32.totalorder %s14, 1
    %p58 = por %p56, %p57
    %p60 = scmp.ne.s32.totalorder %s45, %s59
    %p61 = scmp.eq.s32.totalorder %s14, 0
    %p62 = por %p60, %p61
    %s63 = ssub.s32 %s8, %s15
    %p64 = scmp.eq.s32.totalorder %s63, 0
    %s66 = sadd.s32 %s65, 1
    %s67 = scalar_select %p64, %s65, %s66
    %p70 = pneg %p64
    %p71 = scmp.eq.s32.totalorder %s8, 1
    %p72 = por %p70, %p71
    %p73 = scmp.ne.s32.totalorder %s65, %s68
    %p74 = scmp.eq.s32.totalorder %s8, 0
    %p75 = por %p73, %p74
    %p76 = scmp.ne.s32.totalorder %s65, %s68
    %p77 = scmp.eq.s32.totalorder %s13, 1
    %p78 = por %p76, %p77
    %p79 = scmp.ne.s32.totalorder %s68, %s69
    %p80 = scmp.eq.s32.totalorder %s13, 0
    %p81 = por %p79, %p80
    %p82 = scmp.ne.s32.totalorder %s68, %s69
    %p83 = scmp.eq.s32.totalorder %s14, 1
    %p84 = por %p82, %p83
    %p86 = scmp.ne.s32.totalorder %s69, %s85
    %p87 = scmp.eq.s32.totalorder %s14, 0
    %p88 = por %p86, %p87
    %p89 = scmp.le.s32.totalorder 1, %s8
    %p90 = scmp.lt.s32.totalorder %s8, 3
    %p91 = pnand %p89, %p90
    %p92 = pneg %p91
    // Predicated region
    $region9: #{expanding_block_forward.6} parent=5 // pred_check
      _
    $region10: #{expanding_block_forward.6} parent=5 // pred_check_branch
      %94 = sbr.rel (%p91) target = $region12
    $region11: #{expanding_block_forward.6} parent=5 // pred_region
      %s95 = ssub.s32 %s8, 1
      // Predicated region
      $region13: #{expanding_block_forward.6} parent=11 // pred_check
        %p96 = pneg %p55
      $region14: #{expanding_block_forward.6} parent=11 // pred_check_branch
        %98 = sbr.rel (%p96) target = $region16
      $region15: #{expanding_block_forward.6} parent=11 // pred_region
        _
      $region16: #{expanding_block_forward.6} parent=11 // pred_fallthru
        _
    $region12: #{expanding_block_forward.6} parent=5 // pred_fallthru
      _
    %p99 = scmp.lt.s32.totalorder %s8, 2
    // Predicated region
    $region17: #{expanding_block_forward.6} parent=5 // pred_check
      %p100 = pneg %p99
    $region18: #{expanding_block_forward.6} parent=5 // pred_check_branch
      %102 = sbr.rel (%p100) target = $region20
    $region19: #{expanding_block_forward.6} parent=5 // pred_region
      // Predicated region
      $region21: #{expanding_block_forward.6} parent=19 // pred_check
        %p103 = pneg %p28
      $region22: #{expanding_block_forward.6} parent=19 // pred_check_branch
        %105 = sbr.rel (%p103) target = $region24
      $region23: #{expanding_block_forward.6} parent=19 // pred_region
        %s106 = smul.u32 4, %s8
        %p107 = scmp.lt.s32.totalorder %s106, 7
        %s108 = scalar_select %p107, %s106, 7
        %s109 = smul.addr %s108, 2
        %s110 = scalar_lea.vmem %s0, %s109
        %s111 = smul.u32 4, %s8
      $region24: #{expanding_block_forward.6} parent=19 // pred_fallthru
        _
    $region20: #{expanding_block_forward.6} parent=5 // pred_fallthru
      _
    %p112 = scmp.le.s32.totalorder 1, %s8
    %p113 = scmp.lt.s32.totalorder %s8, 3
    %p114 = pnand %p112, %p113
    %p115 = pneg %p114
    // Predicated region
    $region25: #{expanding_block_forward.6} parent=5 // pred_check
      _
    $region26: #{expanding_block_forward.6} parent=5 // pred_check_branch
      %117 = sbr.rel (%p114) target = $region28
    $region27: #{expanding_block_forward.6} parent=5 // pred_region
      %s118 = ssub.s32 %s8, 1
      %s119 = smul.u32 4, %s13
      %p120 = scmp.lt.s32.totalorder %s119, 7
      %s121 = scalar_select %p120, %s119, 7
      %s122 = smul.addr %s121, 2
      %s123 = scalar_lea.vmem %s0, %s122
      %p124 = pneg %p34
      %p125 = pneg %p31
      %p126 = pneg %p55
      %p127 = pneg %p52
      %p128 = pneg %p81
      %p129 = pneg %p78
      %s130 = smul.u32 4, %s13
      %p131 = scmp.lt.s32.totalorder %s130, 7
      %s132 = scalar_select %p131, %s130, 7
      %s133 = smul.addr %s132, 4
      %s134 = scalar_lea.vmem %s2, %s133
      %s135 = smul.u32 4, %s13
      %p136 = scmp.lt.s32.totalorder %s135, 7
      %s137 = scalar_select %p136, %s135, 7
      %s138 = smul.addr %s137, 2
      %s139 = scalar_lea.vmem %s0, %s138
      %s140 = smul.u32 4, %s13
      %s141 = smul.u32 4, %s13
      %p142 = scmp.lt.s32.totalorder %s141, 7
      %s143 = scalar_select %p142, %s141, 7
      %s144 = smul.addr %s143, 4
      %s145 = scalar_lea.vmem %s2, %s144
      %s146 = smul.u32 4, %s13
      %v148 = vld [vmem:[%s1] sm:$0xf]
      %v149 = vld [vmem:[%s139] sm:$0x3]
      %v150 = vld [vmem:[%s139 + $0x2] sm:$0x3]
      %v151 = vld [vmem:[%s139 + $0x4] sm:$0x3]
      %v152 = vld [vmem:[%s139 + $0x6] sm:$0x3]
      %vm153 = vcmask 31744
      %v155 = vsel %vm153, %v148, 0
      %vm157 = vcmask 1041408
      %v159 = vsel %vm157, %v149, 0
      %161 = vmatprep.subr.bf16.mxu0 0
      %162 = vmatpush1.bf16.msra.mxu0 %v159
      %163 = vmatprep.subr.bf16.mxu0 0
      %164 = vmatpush1.bf16.msra.mxu0 0
      %165 = vmatprep.subr.bf16.mxu0 0
      %166 = vmatpush1.bf16.msra.mxu0 0
      %167 = vmatprep.subr.bf16.mxu0 0
      %168 = vmatpush1.bf16.msra.mxu0 0
      %169 = vmatprep.subr.bf16.mxu0 0
      %170 = vmatpush1.bf16.msra.mxu0 0
      %171 = vmatprep.subr.bf16.mxu0 0
      %172 = vmatpush1.bf16.msra.mxu0 0
      %173 = vmatprep.subr.bf16.mxu0 0
      %174 = vmatpush1.bf16.msra.mxu0 0
      %175 = vmatprep.subr.bf16.mxu0 0
      %176 = vmatpush1.bf16.msra.mxu0 0
      %177 = vmatprep.subr.bf16.mxu0 0
      %178 = vmatpush1.bf16.msra.mxu0 0
      %179 = vmatprep.subr.bf16.mxu0 0
      %180 = vmatpush1.bf16.msra.mxu0 0
      %181 = vmatprep.subr.bf16.mxu0 0
      %182 = vmatpush1.bf16.msra.mxu0 0
      %183 = vmatprep.subr.bf16.mxu0 0
      %184 = vmatpush1.bf16.msra.mxu0 0
      %185 = vmatprep.subr.bf16.mxu0 0
      %186 = vmatpush1.bf16.msra.mxu0 0
      %187 = vmatprep.subr.bf16.mxu0 0
      %188 = vmatpush1.bf16.msra.mxu0 0
      %189 = vmatprep.subr.bf16.mxu0 0
      %190 = vmatpush1.bf16.msra.mxu0 0
      %191 = vmatprep.subr.bf16.mxu0 0
      %192 = vmatpush1.bf16.msra.mxu0 0
      %193 = vmatprep.mubr.bf16.mxu0 0
      %194 = vmatmul.mubr.bf16.gmra.mrb[0].mxu0 %v155
      %v195 = vpop.f32.mrb[0].mxu0
      %v196 = vadd.f32 0.0, %v195
      %v197 = vpop.f32.mrb[0].mxu0
      %v198 = vpop.f32.mrb[0].mxu0
      %v199 = vpop.f32.mrb[0].mxu0
      %200 = vdwg.mxu0
      %v202 = vsel %vm157, %v150, 0
      %204 = vmatprep.subr.bf16.mxu0 0
      %205 = vmatpush1.bf16.msra.mxu0 %v202
      %206 = vmatprep.subr.bf16.mxu0 0
      %207 = vmatpush1.bf16.msra.mxu0 0
      %208 = vmatprep.subr.bf16.mxu0 0
      %209 = vmatpush1.bf16.msra.mxu0 0
      %210 = vmatprep.subr.bf16.mxu0 0
      %211 = vmatpush1.bf16.msra.mxu0 0
      %212 = vmatprep.subr.bf16.mxu0 0
      %213 = vmatpush1.bf16.msra.mxu0 0
      %214 = vmatprep.subr.bf16.mxu0 0
      %215 = vmatpush1.bf16.msra.mxu0 0
      %216 = vmatprep.subr.bf16.mxu0 0
      %217 = vmatpush1.bf16.msra.mxu0 0
      %218 = vmatprep.subr.bf16.mxu0 0
      %219 = vmatpush1.bf16.msra.mxu0 0
      %220 = vmatprep.subr.bf16.mxu0 0
      %221 = vmatpush1.bf16.msra.mxu0 0
      %222 = vmatprep.subr.bf16.mxu0 0
      %223 = vmatpush1.bf16.msra.mxu0 0
      %224 = vmatprep.subr.bf16.mxu0 0
      %225 = vmatpush1.bf16.msra.mxu0 0
      %226 = vmatprep.subr.bf16.mxu0 0
      %227 = vmatpush1.bf16.msra.mxu0 0
      %228 = vmatprep.subr.bf16.mxu0 0
      %229 = vmatpush1.bf16.msra.mxu0 0
      %230 = vmatprep.subr.bf16.mxu0 0
      %231 = vmatpush1.bf16.msra.mxu0 0
      %232 = vmatprep.subr.bf16.mxu0 0
      %233 = vmatpush1.bf16.msra.mxu0 0
      %234 = vmatprep.subr.bf16.mxu0 0
      %235 = vmatpush1.bf16.msra.mxu0 0
      %236 = vmatprep.mubr.bf16.mxu0 0
      %237 = vmatmul.mubr.bf16.gmra.mrb[0].mxu0 %v155
      %v238 = vpop.f32.mrb[0].mxu0
      %v239 = vadd.f32 0.0, %v238
      %v240 = vpop.f32.mrb[0].mxu0
      %v241 = vpop.f32.mrb[0].mxu0
      %v242 = vpop.f32.mrb[0].mxu0
      %243 = vdwg.mxu0
      %v245 = vsel %vm157, %v151, 0
      %247 = vmatprep.subr.bf16.mxu0 0
      %248 = vmatpush1.bf16.msra.mxu0 %v245
      %249 = vmatprep.subr.bf16.mxu0 0
      %250 = vmatpush1.bf16.msra.mxu0 0
      %251 = vmatprep.subr.bf16.mxu0 0
      %252 = vmatpush1.bf16.msra.mxu0 0
      %253 = vmatprep.subr.bf16.mxu0 0
      %254 = vmatpush1.bf16.msra.mxu0 0
      %255 = vmatprep.subr.bf16.mxu0 0
      %256 = vmatpush1.bf16.msra.mxu0 0
      %257 = vmatprep.subr.bf16.mxu0 0
      %258 = vmatpush1.bf16.msra.mxu0 0
      %259 = vmatprep.subr.bf16.mxu0 0
      %260 = vmatpush1.bf16.msra.mxu0 0
      %261 = vmatprep.subr.bf16.mxu0 0
      %262 = vmatpush1.bf16.msra.mxu0 0
      %263 = vmatprep.subr.bf16.mxu0 0
      %264 = vmatpush1.bf16.msra.mxu0 0
      %265 = vmatprep.subr.bf16.mxu0 0
      %266 = vmatpush1.bf16.msra.mxu0 0
      %267 = vmatprep.subr.bf16.mxu0 0
      %268 = vmatpush1.bf16.msra.mxu0 0
      %269 = vmatprep.subr.bf16.mxu0 0
      %270 = vmatpush1.bf16.msra.mxu0 0
      %271 = vmatprep.subr.bf16.mxu0 0
      %272 = vmatpush1.bf16.msra.mxu0 0
      %273 = vmatprep.subr.bf16.mxu0 0
      %274 = vmatpush1.bf16.msra.mxu0 0
      %275 = vmatprep.subr.bf16.mxu0 0
      %276 = vmatpush1.bf16.msra.mxu0 0
      %277 = vmatprep.subr.bf16.mxu0 0
      %278 = vmatpush1.bf16.msra.mxu0 0
      %279 = vmatprep.mubr.bf16.mxu0 0
      %280 = vmatmul.mubr.bf16.gmra.mrb[0].mxu0 %v155
      %v281 = vpop.f32.mrb[0].mxu0
      %v282 = vadd.f32 0.0, %v281
      %v283 = vpop.f32.mrb[0].mxu0
      %v284 = vpop.f32.mrb[0].mxu0
      %v285 = vpop.f32.mrb[0].mxu0
      %286 = vdwg.mxu0
      %v288 = vsel %vm157, %v152, 0
      %290 = vmatprep.subr.bf16.mxu0 0
      %291 = vmatpush1.bf16.msra.mxu0 %v288
      %292 = vmatprep.subr.bf16.mxu0 0
      %293 = vmatpush1.bf16.msra.mxu0 0
      %294 = vmatprep.subr.bf16.mxu0 0
      %295 = vmatpush1.bf16.msra.mxu0 0
      %296 = vmatprep.subr.bf16.mxu0 0
      %297 = vmatpush1.bf16.msra.mxu0 0
      %298 = vmatprep.subr.bf16.mxu0 0
      %299 = vmatpush1.bf16.msra.mxu0 0
      %300 = vmatprep.subr.bf16.mxu0 0
      %301 = vmatpush1.bf16.msra.mxu0 0
      %302 = vmatprep.subr.bf16.mxu0 0
      %303 = vmatpush1.bf16.msra.mxu0 0
      %304 = vmatprep.subr.bf16.mxu0 0
      %305 = vmatpush1.bf16.msra.mxu0 0
      %306 = vmatprep.subr.bf16.mxu0 0
      %307 = vmatpush1.bf16.msra.mxu0 0
      %308 = vmatprep.subr.bf16.mxu0 0
      %309 = vmatpush1.bf16.msra.mxu0 0
      %310 = vmatprep.subr.bf16.mxu0 0
      %311 = vmatpush1.bf16.msra.mxu0 0
      %312 = vmatprep.subr.bf16.mxu0 0
      %313 = vmatpush1.bf16.msra.mxu0 0
      %314 = vmatprep.subr.bf16.mxu0 0
      %315 = vmatpush1.bf16.msra.mxu0 0
      %316 = vmatprep.subr.bf16.mxu0 0
      %317 = vmatpush1.bf16.msra.mxu0 0
      %318 = vmatprep.subr.bf16.mxu0 0
      %319 = vmatpush1.bf16.msra.mxu0 0
      %320 = vmatprep.subr.bf16.mxu0 0
      %321 = vmatpush1.bf16.msra.mxu0 0
      %322 = vmatprep.mubr.bf16.mxu0 0
      %323 = vmatmul.mubr.bf16.gmra.mrb[0].mxu0 %v155
      %v324 = vpop.f32.mrb[0].mxu0
      %v325 = vadd.f32 0.0, %v324
      %v326 = vpop.f32.mrb[0].mxu0
      %v327 = vpop.f32.mrb[0].mxu0
      %v328 = vpop.f32.mrb[0].mxu0
      %329 = vdwg.mxu0
      %v330 = vpack.c.bf16 %v196, %v196
      %v331 = vpack.c.bf16 %v239, %v239
      %v332 = vpack.c.bf16 %v282, %v282
      %v333 = vpack.c.bf16 %v325, %v325
      %vm334 = vcmask 519168
      %335 = vst.msk [vmem:[%s145] sm:$0xf] %vm334, %v330
      %336 = vst.msk [vmem:[%s145 + $0x4] sm:$0xf] %vm334, %v331
      %337 = vst.msk [vmem:[%s145 + $0x8] sm:$0xf] %vm334, %v332
      %338 = vst.msk [vmem:[%s145 + $0xc] sm:$0xf] %vm334, %v333
      %s339 = smul.u32 4, %s13
      %p340 = scmp.lt.s32.totalorder %s339, 7
      %s341 = scalar_select %p340, %s339, 7
      %s342 = smul.addr %s341, 4
      %s343 = scalar_lea.vmem %s2, %s342
      // Predicated region
      $region29: #{expanding_block_forward.6} parent=27 // pred_check
        %p344 = pneg %p78
      $region30: #{expanding_block_forward.6} parent=27 // pred_check_branch
        %346 = sbr.rel (%p344) target = $region32
      $region31: #{expanding_block_forward.6} parent=27 // pred_region
        %s347 = smul.u32 4, %s13
      $region32: #{expanding_block_forward.6} parent=27 // pred_fallthru
        _
    $region28: #{expanding_block_forward.6} parent=5 // pred_fallthru
      _
    %p348 = scmp.le.s32.totalorder 2, %s8
    // Predicated region
    $region33: #{expanding_block_forward.6} parent=5 // pred_check
      %p349 = pneg %p348
    $region34: #{expanding_block_forward.6} parent=5 // pred_check_branch
      %351 = sbr.rel (%p349) target = $region36
    $region35: #{expanding_block_forward.6} parent=5 // pred_region
      %s352 = ssub.s32 %s8, 2
      // Predicated region
      $region37: #{expanding_block_forward.6} parent=35 // pred_check
        %p353 = pneg %p84
      $region38: #{expanding_block_forward.6} parent=35 // pred_check_branch
        %355 = sbr.rel (%p353) target = $region40
      $region39: #{expanding_block_forward.6} parent=35 // pred_region
        %s356 = smul.u32 4, %s14
        %p357 = scmp.lt.s32.totalorder %s356, 7
        %s358 = scalar_select %p357, %s356, 7
        %s359 = smul.addr %s358, 4
        %s360 = scalar_lea.vmem %s2, %s359
      $region40: #{expanding_block_forward.6} parent=35 // pred_fallthru
        _
    $region36: #{expanding_block_forward.6} parent=5 // pred_fallthru
      _
  $region6: #{expanding_block_forward.6} parent=0 // loop_footer
    %s12 = sadd.s32 1, %s8
  $region7: #{expanding_block_forward.6} parent=0 // loop_footer_branch
    %7 = sbr.rel target = $region3
  $region8: #{expanding_block_forward.6} parent=0 // loop_exit
    _

// kernel: expanding_block_forward.5
$region0: #{expanding_block_forward.5}
  #allocation0 [shape = 'u32[]', space=smem, size = 0x4, offset = 0x4, fixed_abs, tag = 'smem constant byte address 0x4 - core index']
  #allocation1 [shape = 'u32[144,128]{1,0:T(1,128)}', space=vmem, size = 0x12000, scoped, tag = 'internal scratch']
  %s0 = inlined_call_operand.vmem [shape: bf16[32,4,4], index: 0, kind: input, shape index: {}]
  %s1 = inlined_call_operand.vmem [shape: bf16[4,8], index: 1, kind: input, shape index: {}]
  %s2 = inlined_call_operand.vmem [shape: bf16[8,4], index: 2, kind: input, shape index: {}]
  %s3 = inlined_call_operand.vmem [shape: bf16[32,8,8], index: 3, kind: output, shape index: {}]
  %s4 = sld [smem:[#allocation0]]
  $region45: #{expanding_block_forward.5} parent=0
    _
  %s6 = ssub.s32 1, %s4
  %s7 = scalar_select 0, %s6, %s4
  loop: start=0, step=1, limit=4
  $region2: #{expanding_block_forward.5} parent=0 // loop_pre_header
    _
  $region3: #{expanding_block_forward.5} parent=0 // loop_header
    %s9 = sphi 0, %s13
    %p10 = scmp.ge.s32.totalorder %s9, 4
    %s19 = sphi 0, %s21
    %s22 = sphi 0, %s19
    %s23 = sphi 0, %s22
    %s39 = sphi 0, %s23
    %s43 = sphi 0, %s43
    %s45 = sphi 0, %s43
    %s46 = sphi 0, %s45
    %s60 = sphi 0, %s46
    %s64 = sphi 0, %s64
    %s66 = sphi 0, %s64
    %s67 = sphi 0, %s66
    %s81 = sphi 0, %s67
    %s87 = sphi 0, %s89
    %s90 = sphi 0, %s87
    %s91 = sphi 0, %s90
    %s107 = sphi 0, %s91
  $region4: #{expanding_block_forward.5} parent=0 // loop_header_branch
    %12 = sbr.rel (%p10) target = $region8
  $region5: #{expanding_block_forward.5} parent=0 // loop_body
    %s14 = ssub.s32 %s9, 1
    %s15 = ssub.s32 %s9, 2
    %s16 = sadd.s32 %s9, 1
    %s17 = ssub.s32 %s9, %s16
    %p18 = scmp.eq.s32.totalorder %s17, 0
    %s20 = sadd.s32 %s19, 1
    %s21 = scalar_select %p18, %s19, %s20
    %p24 = pneg %p18
    %p25 = scmp.eq.s32.totalorder %s9, 1
    %p26 = por %p24, %p25
    %p27 = scmp.ne.s32.totalorder %s19, %s22
    %p28 = scmp.eq.s32.totalorder %s9, 0
    %p29 = por %p27, %p28
    %p30 = scmp.ne.s32.totalorder %s19, %s22
    %p31 = scmp.eq.s32.totalorder %s14, 1
    %p32 = por %p30, %p31
    %p33 = scmp.ne.s32.totalorder %s22, %s23
    %p34 = scmp.eq.s32.totalorder %s14, 0
    %p35 = por %p33, %p34
    %p36 = scmp.ne.s32.totalorder %s22, %s23
    %p37 = scmp.eq.s32.totalorder %s15, 1
    %p38 = por %p36, %p37
    %p40 = scmp.ne.s32.totalorder %s23, %s39
    %p41 = scmp.eq.s32.totalorder %s15, 0
    %p42 = por %p40, %p41
    %s44 = sadd.s32 %s43, 1
    %p47 = scmp.eq.s32.totalorder %s9, 1
    %p48 = scmp.ne.s32.totalorder %s43, %s45
    %p49 = scmp.eq.s32.totalorder %s9, 0
    %p50 = por %p48, %p49
    %p51 = scmp.ne.s32.totalorder %s43, %s45
    %p52 = scmp.eq.s32.totalorder %s14, 1
    %p53 = por %p51, %p52
    %p54 = scmp.ne.s32.totalorder %s45, %s46
    %p55 = scmp.eq.s32.totalorder %s14, 0
    %p56 = por %p54, %p55
    %p57 = scmp.ne.s32.totalorder %s45, %s46
    %p58 = scmp.eq.s32.totalorder %s15, 1
    %p59 = por %p57, %p58
    %p61 = scmp.ne.s32.totalorder %s46, %s60
    %p62 = scmp.eq.s32.totalorder %s15, 0
    %p63 = por %p61, %p62
    %s65 = sadd.s32 %s64, 1
    %p68 = scmp.eq.s32.totalorder %s9, 1
    %p69 = scmp.ne.s32.totalorder %s64, %s66
    %p70 = scmp.eq.s32.totalorder %s9, 0
    %p71 = por %p69, %p70
    %p72 = scmp.ne.s32.totalorder %s64, %s66
    %p73 = scmp.eq.s32.totalorder %s14, 1
    %p74 = por %p72, %p73
    %p75 = scmp.ne.s32.totalorder %s66, %s67
    %p76 = scmp.eq.s32.totalorder %s14, 0
    %p77 = por %p75, %p76
    %p78 = scmp.ne.s32.totalorder %s66, %s67
    %p79 = scmp.eq.s32.totalorder %s15, 1
    %p80 = por %p78, %p79
    %p82 = scmp.ne.s32.totalorder %s67, %s81
    %p83 = scmp.eq.s32.totalorder %s15, 0
    %p84 = por %p82, %p83
    %s85 = ssub.s32 %s9, %s16
    %p86 = scmp.eq.s32.totalorder %s85, 0
    %s88 = sadd.s32 %s87, 1
    %s89 = scalar_select %p86, %s87, %s88
    %p92 = pneg %p86
    %p93 = scmp.eq.s32.totalorder %s9, 1
    %p94 = por %p92, %p93
    %p95 = scmp.ne.s32.totalorder %s87, %s90
    %p96 = scmp.eq.s32.totalorder %s9, 0
    %p97 = por %p95, %p96
    %p98 = scmp.ne.s32.totalorder %s87, %s90
    %p99 = scmp.eq.s32.totalorder %s14, 1
    %p100 = por %p98, %p99
    %p101 = scmp.ne.s32.totalorder %s90, %s91
    %p102 = scmp.eq.s32.totalorder %s14, 0
    %p103 = por %p101, %p102
    %p104 = scmp.ne.s32.totalorder %s90, %s91
    %p105 = scmp.eq.s32.totalorder %s15, 1
    %p106 = por %p104, %p105
    %p108 = scmp.ne.s32.totalorder %s91, %s107
    %p109 = scmp.eq.s32.totalorder %s15, 0
    %p110 = por %p108, %p109
    %p111 = scmp.le.s32.totalorder 1, %s9
    %p112 = scmp.lt.s32.totalorder %s9, 3
    %p113 = pnand %p111, %p112
    %p114 = pneg %p113
    // Predicated region
    $region9: #{expanding_block_forward.5} parent=5 // pred_check
      _
    $region10: #{expanding_block_forward.5} parent=5 // pred_check_branch
      %116 = sbr.rel (%p113) target = $region12
    $region11: #{expanding_block_forward.5} parent=5 // pred_region
      %s117 = ssub.s32 %s9, 1
      // Predicated region
      $region13: #{expanding_block_forward.5} parent=11 // pred_check
        %p118 = pneg %p56
      $region14: #{expanding_block_forward.5} parent=11 // pred_check_branch
        %120 = sbr.rel (%p118) target = $region16
      $region15: #{expanding_block_forward.5} parent=11 // pred_region
        _
      $region16: #{expanding_block_forward.5} parent=11 // pred_fallthru
        _
      // Predicated region
      $region17: #{expanding_block_forward.5} parent=11 // pred_check
        %p121 = pneg %p77
      $region18: #{expanding_block_forward.5} parent=11 // pred_check_branch
        %123 = sbr.rel (%p121) target = $region20
      $region19: #{expanding_block_forward.5} parent=11 // pred_region
        _
      $region20: #{expanding_block_forward.5} parent=11 // pred_fallthru
        _
    $region12: #{expanding_block_forward.5} parent=5 // pred_fallthru
      _
    %p124 = scmp.lt.s32.totalorder %s9, 2
    // Predicated region
    $region21: #{expanding_block_forward.5} parent=5 // pred_check
      %p125 = pneg %p124
    $region22: #{expanding_block_forward.5} parent=5 // pred_check_branch
      %127 = sbr.rel (%p125) target = $region24
    $region23: #{expanding_block_forward.5} parent=5 // pred_region
      // Predicated region
      $region25: #{expanding_block_forward.5} parent=23 // pred_check
        %p128 = pneg %p29
      $region26: #{expanding_block_forward.5} parent=23 // pred_check_branch
        %130 = sbr.rel (%p128) target = $region28
      $region27: #{expanding_block_forward.5} parent=23 // pred_region
        %s131 = smul.u32 16, %s9
        %p132 = scmp.lt.s32.totalorder %s131, 31
        %s133 = scalar_select %p132, %s131, 31
        %s134 = smul.addr %s133, 2
        %s135 = scalar_lea.vmem %s0, %s134
        %s136 = smul.u32 16, %s9
      $region28: #{expanding_block_forward.5} parent=23 // pred_fallthru
        _
    $region24: #{expanding_block_forward.5} parent=5 // pred_fallthru
      _
    %p137 = scmp.le.s32.totalorder 1, %s9
    %p138 = scmp.lt.s32.totalorder %s9, 3
    %p139 = pnand %p137, %p138
    %p140 = pneg %p139
    // Predicated region
    $region29: #{expanding_block_forward.5} parent=5 // pred_check
      _
    $region30: #{expanding_block_forward.5} parent=5 // pred_check_branch
      %142 = sbr.rel (%p139) target = $region32
    $region31: #{expanding_block_forward.5} parent=5 // pred_region
      %s143 = ssub.s32 %s9, 1
      %s144 = smul.u32 16, %s14
      %p145 = scmp.lt.s32.totalorder %s144, 31
      %s146 = scalar_select %p145, %s144, 31
      %s147 = smul.addr %s146, 2
      %s148 = scalar_lea.vmem %s0, %s147
      %p149 = pneg %p35
      %p150 = pneg %p32
      %p151 = pneg %p56
      %p152 = pneg %p53
      %p153 = pneg %p77
      %p154 = pneg %p74
      %p155 = pneg %p103
      %p156 = pneg %p100
      %s157 = smul.u32 16, %s14
      %p158 = scmp.lt.s32.totalorder %s157, 31
      %s159 = scalar_select %p158, %s157, 31
      %s160 = smul.addr %s159, 4
      %s161 = scalar_lea.vmem %s3, %s160
      %s162 = smul.u32 16, %s14
      %p163 = scmp.lt.s32.totalorder %s162, 31
      %s164 = scalar_select %p163, %s162, 31
      %s165 = smul.addr %s164, 2
      %s166 = scalar_lea.vmem %s0, %s165
      %s167 = smul.u32 16, %s14
      %s168 = smul.u32 16, %s14
      %p169 = scmp.lt.s32.totalorder %s168, 31
      %s170 = scalar_select %p169, %s168, 31
      %s171 = smul.addr %s170, 4
      %s172 = scalar_lea.vmem %s3, %s171
      %s173 = smul.u32 16, %s14
      %v175 = vld [vmem:[%s166] sm:$0x3]
      %v176 = vld [vmem:[%s166 + $0x2] sm:$0x3]
      %v177 = vld [vmem:[%s166 + $0x4] sm:$0x3]
      %v178 = vld [vmem:[%s166 + $0x6] sm:$0x3]
      %v179 = vld [vmem:[%s166 + $0x8] sm:$0x3]
      %v180 = vld [vmem:[%s166 + $0xa] sm:$0x3]
      %v181 = vld [vmem:[%s166 + $0xc] sm:$0x3]
      %v182 = vld [vmem:[%s166 + $0xe] sm:$0x3]
      %v183 = vld [vmem:[%s166 + $0x10] sm:$0x3]
      %v184 = vld [vmem:[%s166 + $0x12] sm:$0x3]
      %v185 = vld [vmem:[%s166 + $0x14] sm:$0x3]
      %v186 = vld [vmem:[%s166 + $0x16] sm:$0x3]
      %v187 = vld [vmem:[%s166 + $0x18] sm:$0x3]
      %v188 = vld [vmem:[%s166 + $0x1a] sm:$0x3]
      %v189 = vld [vmem:[%s166 + $0x1c] sm:$0x3]
      %v190 = vld [vmem:[%s166 + $0x1e] sm:$0x3]
      %v191 = vld [vmem:[%s1] sm:$0x3]
      %v208 = vcombine.low %v175, %v176
      %v209 = vcombine.low %v177, %v178
      %v211 = vunpack.c.l.s4 1983009808
      %v212 = vunpack.c.0.s8 %v211
      %v213 = vlaneseq
      %v214 = vshrl.u32 %v213, 7
      %v215 = vsub.s32 %v212, %v214
      %v216 = vrot.slane %v208, %v215
      %v218 = vunpack.c.l.s4 1983009808
      %v219 = vunpack.c.0.s8 %v218
      %v220 = vlaneseq
      %v221 = vshrl.u32 %v220, 7
      %v222 = vsub.s32 %v219, %v221
      %v223 = vrot.slane %v209, %v222
      %v224 = vcombine.low %v216, %v223
      %v225 = vcombine.low %v179, %v180
      %v226 = vcombine.low %v181, %v182
      %v228 = vunpack.c.l.s4 1983009808
      %v229 = vunpack.c.0.s8 %v228
      %v230 = vlaneseq
      %v231 = vshrl.u32 %v230, 7
      %v232 = vsub.s32 %v229, %v231
      %v233 = vrot.slane %v225, %v232
      %v235 = vunpack.c.l.s4 1983009808
      %v236 = vunpack.c.0.s8 %v235
      %v237 = vlaneseq
      %v238 = vshrl.u32 %v237, 7
      %v239 = vsub.s32 %v236, %v238
      %v240 = vrot.slane %v226, %v239
      %v241 = vcombine.low %v233, %v240
      %v242 = vcombine.low %v183, %v184
      %v243 = vcombine.low %v185, %v186
      %v245 = vunpack.c.l.s4 1983009808
      %v246 = vunpack.c.0.s8 %v245
      %v247 = vlaneseq
      %v248 = vshrl.u32 %v247, 7
      %v249 = vsub.s32 %v246, %v248
      %v250 = vrot.slane %v242, %v249
      %v252 = vunpack.c.l.s4 1983009808
      %v253 = vunpack.c.0.s8 %v252
      %v254 = vlaneseq
      %v255 = vshrl.u32 %v254, 7
      %v256 = vsub.s32 %v253, %v255
      %v257 = vrot.slane %v243, %v256
      %v258 = vcombine.low %v250, %v257
      %v259 = vcombine.low %v187, %v188
      %v260 = vcombine.low %v189, %v190
      %v262 = vunpack.c.l.s4 1983009808
      %v263 = vunpack.c.0.s8 %v262
      %v264 = vlaneseq
      %v265 = vshrl.u32 %v264, 7
      %v266 = vsub.s32 %v263, %v265
      %v267 = vrot.slane %v259, %v266
      %v269 = vunpack.c.l.s4 1983009808
      %v270 = vunpack.c.0.s8 %v269
      %v271 = vlaneseq
      %v272 = vshrl.u32 %v271, 7
      %v273 = vsub.s32 %v270, %v272
      %v274 = vrot.slane %v260, %v273
      %v275 = vcombine.low %v267, %v274
      %vm276 = vcmask 31744
      %v278 = vsel %vm276, %v224, 0
      %v281 = vsel %vm276, %v241, 0
      %v284 = vsel %vm276, %v258, 0
      %v287 = vsel %vm276, %v275, 0
      %vm289 = vcmask 1041408
      %v291 = vsel %vm289, %v191, 0
      %293 = vmatprep.subr.bf16.mxu0 0
      %294 = vmatpush1.bf16.msra.mxu0 %v291
      %295 = vmatprep.subr.bf16.mxu0 0
      %296 = vmatpush1.bf16.msra.mxu0 0
      %297 = vmatprep.subr.bf16.mxu0 0
      %298 = vmatpush1.bf16.msra.mxu0 0
      %299 = vmatprep.subr.bf16.mxu0 0
      %300 = vmatpush1.bf16.msra.mxu0 0
      %301 = vmatprep.subr.bf16.mxu0 0
      %302 = vmatpush1.bf16.msra.mxu0 0
      %303 = vmatprep.subr.bf16.mxu0 0
      %304 = vmatpush1.bf16.msra.mxu0 0
      %305 = vmatprep.subr.bf16.mxu0 0
      %306 = vmatpush1.bf16.msra.mxu0 0
      %307 = vmatprep.subr.bf16.mxu0 0
      %308 = vmatpush1.bf16.msra.mxu0 0
      %309 = vmatprep.subr.bf16.mxu0 0
      %310 = vmatpush1.bf16.msra.mxu0 0
      %311 = vmatprep.subr.bf16.mxu0 0
      %312 = vmatpush1.bf16.msra.mxu0 0
      %313 = vmatprep.subr.bf16.mxu0 0
      %314 = vmatpush1.bf16.msra.mxu0 0
      %315 = vmatprep.subr.bf16.mxu0 0
      %316 = vmatpush1.bf16.msra.mxu0 0
      %317 = vmatprep.subr.bf16.mxu0 0
      %318 = vmatpush1.bf16.msra.mxu0 0
      %319 = vmatprep.subr.bf16.mxu0 0
      %320 = vmatpush1.bf16.msra.mxu0 0
      %321 = vmatprep.subr.bf16.mxu0 0
      %322 = vmatpush1.bf16.msra.mxu0 0
      %323 = vmatprep.subr.bf16.mxu0 0
      %324 = vmatpush1.bf16.msra.mxu0 0
      %325 = vmatprep.mubr.bf16.mxu0 0
      %326 = vmatmul.mubr.bf16.gmra.mrb[0].mxu0 %v278
      %v327 = vpop.f32.mrb[0].mxu0
      %v328 = vadd.f32 0.0, %v327
      %v329 = vpop.f32.mrb[0].mxu0
      %v330 = vpop.f32.mrb[0].mxu0
      %v331 = vadd.f32 0.0, %v330
      %v332 = vpop.f32.mrb[0].mxu0
      %333 = vmatprep.mubr.bf16.mxu0 0
      %334 = vmatmul.mubr.bf16.gmra.mrb[0].mxu0 %v281
      %v335 = vpop.f32.mrb[0].mxu0
      %v336 = vadd.f32 0.0, %v335
      %v337 = vpop.f32.mrb[0].mxu0
      %v338 = vpop.f32.mrb[0].mxu0
      %v339 = vadd.f32 0.0, %v338
      %v340 = vpop.f32.mrb[0].mxu0
      %341 = vmatprep.mubr.bf16.mxu0 0
      %342 = vmatmul.mubr.bf16.gmra.mrb[0].mxu0 %v284
      %v343 = vpop.f32.mrb[0].mxu0
      %v344 = vadd.f32 0.0, %v343
      %v345 = vpop.f32.mrb[0].mxu0
      %v346 = vpop.f32.mrb[0].mxu0
      %v347 = vadd.f32 0.0, %v346
      %v348 = vpop.f32.mrb[0].mxu0
      %349 = vmatprep.mubr.bf16.mxu0 0
      %350 = vmatmul.mubr.bf16.gmra.mrb[0].mxu0 %v287
      %v351 = vpop.f32.mrb[0].mxu0
      %v352 = vadd.f32 0.0, %v351
      %v353 = vpop.f32.mrb[0].mxu0
      %v354 = vpop.f32.mrb[0].mxu0
      %v355 = vadd.f32 0.0, %v354
      %v356 = vpop.f32.mrb[0].mxu0
      %357 = vdwg.mxu0
      %v358 = vpack.c.bf16 %v331, %v328
      %v359 = vpack.c.bf16 %v339, %v336
      %v360 = vpack.c.bf16 %v347, %v344
      %v361 = vpack.c.bf16 %v355, %v352
      %v366 = vcombine.high %v358, %v358
      %v368 = vunpack.c.l.s4 1983009808
      %v369 = vunpack.c.0.s8 %v368
      %v370 = vlaneseq
      %v371 = vshrl.u32 %v370, 7
      %v372 = vsub.s32 %v369, %v371
      %v373 = vrot.slane %v358, %v372
      %v375 = vunpack.c.l.s4 1983009808
      %v376 = vunpack.c.0.s8 %v375
      %v377 = vlaneseq
      %v378 = vshrl.u32 %v377, 7
      %v379 = vsub.s32 %v376, %v378
      %v380 = vrot.slane %v366, %v379
      %v381 = vcombine.high %v373, %v373
      %v382 = vcombine.high %v380, %v380
      %v383 = vcombine.high %v359, %v359
      %v385 = vunpack.c.l.s4 1983009808
      %v386 = vunpack.c.0.s8 %v385
      %v387 = vlaneseq
      %v388 = vshrl.u32 %v387, 7
      %v389 = vsub.s32 %v386, %v388
      %v390 = vrot.slane %v359, %v389
      %v392 = vunpack.c.l.s4 1983009808
      %v393 = vunpack.c.0.s8 %v392
      %v394 = vlaneseq
      %v395 = vshrl.u32 %v394, 7
      %v396 = vsub.s32 %v393, %v395
      %v397 = vrot.slane %v383, %v396
      %v398 = vcombine.high %v390, %v390
      %v399 = vcombine.high %v397, %v397
      %v400 = vcombine.high %v360, %v360
      %v402 = vunpack.c.l.s4 1983009808
      %v403 = vunpack.c.0.s8 %v402
      %v404 = vlaneseq
      %v405 = vshrl.u32 %v404, 7
      %v406 = vsub.s32 %v403, %v405
      %v407 = vrot.slane %v360, %v406
      %v409 = vunpack.c.l.s4 1983009808
      %v410 = vunpack.c.0.s8 %v409
      %v411 = vlaneseq
      %v412 = vshrl.u32 %v411, 7
      %v413 = vsub.s32 %v410, %v412
      %v414 = vrot.slane %v400, %v413
      %v415 = vcombine.high %v407, %v407
      %v416 = vcombine.high %v414, %v414
      %v417 = vcombine.high %v361, %v361
      %v419 = vunpack.c.l.s4 1983009808
      %v420 = vunpack.c.0.s8 %v419
      %v421 = vlaneseq
      %v422 = vshrl.u32 %v421, 7
      %v423 = vsub.s32 %v420, %v422
      %v424 = vrot.slane %v361, %v423
      %v426 = vunpack.c.l.s4 1983009808
      %v427 = vunpack.c.0.s8 %v426
      %v428 = vlaneseq
      %v429 = vshrl.u32 %v428, 7
      %v430 = vsub.s32 %v427, %v429
      %v431 = vrot.slane %v417, %v430
      %v432 = vcombine.high %v424, %v424
      %v433 = vcombine.high %v431, %v431
      %v434 = vld [vmem:[%s2] sm:$0xf]
      %v436 = vsel %vm276, %v434, 0
      %v439 = vsel %vm289, %v373, 0
      %441 = vmatprep.subr.bf16.mxu0 0
      %442 = vmatpush1.bf16.msra.mxu0 %v439
      %443 = vmatprep.subr.bf16.mxu0 0
      %444 = vmatpush1.bf16.msra.mxu0 0
      %445 = vmatprep.subr.bf16.mxu0 0
      %446 = vmatpush1.bf16.msra.mxu0 0
      %447 = vmatprep.subr.bf16.mxu0 0
      %448 = vmatpush1.bf16.msra.mxu0 0
      %449 = vmatprep.subr.bf16.mxu0 0
      %450 = vmatpush1.bf16.msra.mxu0 0
      %451 = vmatprep.subr.bf16.mxu0 0
      %452 = vmatpush1.bf16.msra.mxu0 0
      %453 = vmatprep.subr.bf16.mxu0 0
      %454 = vmatpush1.bf16.msra.mxu0 0
      %455 = vmatprep.subr.bf16.mxu0 0
      %456 = vmatpush1.bf16.msra.mxu0 0
      %457 = vmatprep.subr.bf16.mxu0 0
      %458 = vmatpush1.bf16.msra.mxu0 0
      %459 = vmatprep.subr.bf16.mxu0 0
      %460 = vmatpush1.bf16.msra.mxu0 0
      %461 = vmatprep.subr.bf16.mxu0 0
      %462 = vmatpush1.bf16.msra.mxu0 0
      %463 = vmatprep.subr.bf16.mxu0 0
      %464 = vmatpush1.bf16.msra.mxu0 0
      %465 = vmatprep.subr.bf16.mxu0 0
      %466 = vmatpush1.bf16.msra.mxu0 0
      %467 = vmatprep.subr.bf16.mxu0 0
      %468 = vmatpush1.bf16.msra.mxu0 0
      %469 = vmatprep.subr.bf16.mxu0 0
      %470 = vmatpush1.bf16.msra.mxu0 0
      %471 = vmatprep.subr.bf16.mxu0 0
      %472 = vmatpush1.bf16.msra.mxu0 0
      %473 = vmatprep.mubr.bf16.mxu0 0
      %474 = vmatmul.mubr.bf16.gmra.mrb[0].mxu0 %v436
      %v475 = vpop.f32.mrb[0].mxu0
      %v476 = vadd.f32 0.0, %v475
      %v477 = vpop.f32.mrb[0].mxu0
      %v478 = vpop.f32.mrb[0].mxu0
      %v479 = vpop.f32.mrb[0].mxu0
      %480 = vdwg.mxu0
      %v482 = vsel %vm289, %v381, 0
      %484 = vmatprep.subr.bf16.mxu0 0
      %485 = vmatpush1.bf16.msra.mxu0 %v482
      %486 = vmatprep.subr.bf16.mxu0 0
      %487 = vmatpush1.bf16.msra.mxu0 0
      %488 = vmatprep.subr.bf16.mxu0 0
      %489 = vmatpush1.bf16.msra.mxu0 0
      %490 = vmatprep.subr.bf16.mxu0 0
      %491 = vmatpush1.bf16.msra.mxu0 0
      %492 = vmatprep.subr.bf16.mxu0 0
      %493 = vmatpush1.bf16.msra.mxu0 0
      %494 = vmatprep.subr.bf16.mxu0 0
      %495 = vmatpush1.bf16.msra.mxu0 0
      %496 = vmatprep.subr.bf16.mxu0 0
      %497 = vmatpush1.bf16.msra.mxu0 0
      %498 = vmatprep.subr.bf16.mxu0 0
      %499 = vmatpush1.bf16.msra.mxu0 0
      %500 = vmatprep.subr.bf16.mxu0 0
      %501 = vmatpush1.bf16.msra.mxu0 0
      %502 = vmatprep.subr.bf16.mxu0 0
      %503 = vmatpush1.bf16.msra.mxu0 0
      %504 = vmatprep.subr.bf16.mxu0 0
      %505 = vmatpush1.bf16.msra.mxu0 0
      %506 = vmatprep.subr.bf16.mxu0 0
      %507 = vmatpush1.bf16.msra.mxu0 0
      %508 = vmatprep.subr.bf16.mxu0 0
      %509 = vmatpush1.bf16.msra.mxu0 0
      %510 = vmatprep.subr.bf16.mxu0 0
      %511 = vmatpush1.bf16.msra.mxu0 0
      %512 = vmatprep.subr.bf16.mxu0 0
      %513 = vmatpush1.bf16.msra.mxu0 0
      %514 = vmatprep.subr.bf16.mxu0 0
      %515 = vmatpush1.bf16.msra.mxu0 0
      %516 = vmatprep.mubr.bf16.mxu0 0
      %517 = vmatmul.mubr.bf16.gmra.mrb[0].mxu0 %v436
      %v518 = vpop.f32.mrb[0].mxu0
      %v519 = vadd.f32 0.0, %v518
      %v520 = vpop.f32.mrb[0].mxu0
      %v521 = vpop.f32.mrb[0].mxu0
      %v522 = vpop.f32.mrb[0].mxu0
      %523 = vdwg.mxu0
      %v525 = vsel %vm289, %v380, 0
      %527 = vmatprep.subr.bf16.mxu0 0
      %528 = vmatpush1.bf16.msra.mxu0 %v525
      %529 = vmatprep.subr.bf16.mxu0 0
      %530 = vmatpush1.bf16.msra.mxu0 0
      %531 = vmatprep.subr.bf16.mxu0 0
      %532 = vmatpush1.bf16.msra.mxu0 0
      %533 = vmatprep.subr.bf16.mxu0 0
      %534 = vmatpush1.bf16.msra.mxu0 0
      %535 = vmatprep.subr.bf16.mxu0 0
      %536 = vmatpush1.bf16.msra.mxu0 0
      %537 = vmatprep.subr.bf16.mxu0 0
      %538 = vmatpush1.bf16.msra.mxu0 0
      %539 = vmatprep.subr.bf16.mxu0 0
      %540 = vmatpush1.bf16.msra.mxu0 0
      %541 = vmatprep.subr.bf16.mxu0 0
      %542 = vmatpush1.bf16.msra.mxu0 0
      %543 = vmatprep.subr.bf16.mxu0 0
      %544 = vmatpush1.bf16.msra.mxu0 0
      %545 = vmatprep.subr.bf16.mxu0 0
      %546 = vmatpush1.bf16.msra.mxu0 0
      %547 = vmatprep.subr.bf16.mxu0 0
      %548 = vmatpush1.bf16.msra.mxu0 0
      %549 = vmatprep.subr.bf16.mxu0 0
      %550 = vmatpush1.bf16.msra.mxu0 0
      %551 = vmatprep.subr.bf16.mxu0 0
      %552 = vmatpush1.bf16.msra.mxu0 0
      %553 = vmatprep.subr.bf16.mxu0 0
      %554 = vmatpush1.bf16.msra.mxu0 0
      %555 = vmatprep.subr.bf16.mxu0 0
      %556 = vmatpush1.bf16.msra.mxu0 0
      %557 = vmatprep.subr.bf16.mxu0 0
      %558 = vmatpush1.bf16.msra.mxu0 0
      %559 = vmatprep.mubr.bf16.mxu0 0
      %560 = vmatmul.mubr.bf16.gmra.mrb[0].mxu0 %v436
      %v561 = vpop.f32.mrb[0].mxu0
      %v562 = vadd.f32 0.0, %v561
      %v563 = vpop.f32.mrb[0].mxu0
      %v564 = vpop.f32.mrb[0].mxu0
      %v565 = vpop.f32.mrb[0].mxu0
      %566 = vdwg.mxu0
      %v568 = vsel %vm289, %v382, 0
      %570 = vmatprep.subr.bf16.mxu0 0
      %571 = vmatpush1.bf16.msra.mxu0 %v568
      %572 = vmatprep.subr.bf16.mxu0 0
      %573 = vmatpush1.bf16.msra.mxu0 0
      %574 = vmatprep.subr.bf16.mxu0 0
      %575 = vmatpush1.bf16.msra.mxu0 0
      %576 = vmatprep.subr.bf16.mxu0 0
      %577 = vmatpush1.bf16.msra.mxu0 0
      %578 = vmatprep.subr.bf16.mxu0 0
      %579 = vmatpush1.bf16.msra.mxu0 0
      %580 = vmatprep.subr.bf16.mxu0 0
      %581 = vmatpush1.bf16.msra.mxu0 0
      %582 = vmatprep.subr.bf16.mxu0 0
      %583 = vmatpush1.bf16.msra.mxu0 0
      %584 = vmatprep.subr.bf16.mxu0 0
      %585 = vmatpush1.bf16.msra.mxu0 0
      %586 = vmatprep.subr.bf16.mxu0 0
      %587 = vmatpush1.bf16.msra.mxu0 0
      %588 = vmatprep.subr.bf16.mxu0 0
      %589 = vmatpush1.bf16.msra.mxu0 0
      %590 = vmatprep.subr.bf16.mxu0 0
      %591 = vmatpush1.bf16.msra.mxu0 0
      %592 = vmatprep.subr.bf16.mxu0 0
      %593 = vmatpush1.bf16.msra.mxu0 0
      %594 = vmatprep.subr.bf16.mxu0 0
      %595 = vmatpush1.bf16.msra.mxu0 0
      %596 = vmatprep.subr.bf16.mxu0 0
      %597 = vmatpush1.bf16.msra.mxu0 0
      %598 = vmatprep.subr.bf16.mxu0 0
      %599 = vmatpush1.bf16.msra.mxu0 0
      %600 = vmatprep.subr.bf16.mxu0 0
      %601 = vmatpush1.bf16.msra.mxu0 0
      %602 = vmatprep.mubr.bf16.mxu0 0
      %603 = vmatmul.mubr.bf16.gmra.mrb[0].mxu0 %v436
      %v604 = vpop.f32.mrb[0].mxu0
      %v605 = vadd.f32 0.0, %v604
      %v606 = vpop.f32.mrb[0].mxu0
      %v607 = vpop.f32.mrb[0].mxu0
      %v608 = vpop.f32.mrb[0].mxu0
      %609 = vdwg.mxu0
      %v611 = vsel %vm289, %v390, 0
      %613 = vmatprep.subr.bf16.mxu0 0
      %614 = vmatpush1.bf16.msra.mxu0 %v611
      %615 = vmatprep.subr.bf16.mxu0 0
      %616 = vmatpush1.bf16.msra.mxu0 0
      %617 = vmatprep.subr.bf16.mxu0 0
      %618 = vmatpush1.bf16.msra.mxu0 0
      %619 = vmatprep.subr.bf16.mxu0 0
      %620 = vmatpush1.bf16.msra.mxu0 0
      %621 = vmatprep.subr.bf16.mxu0 0
      %622 = vmatpush1.bf16.msra.mxu0 0
      %623 = vmatprep.subr.bf16.mxu0 0
      %624 = vmatpush1.bf16.msra.mxu0 0
      %625 = vmatprep.subr.bf16.mxu0 0
      %626 = vmatpush1.bf16.msra.mxu0 0
      %627 = vmatprep.subr.bf16.mxu0 0
      %628 = vmatpush1.bf16.msra.mxu0 0
      %629 = vmatprep.subr.bf16.mxu0 0
      %630 = vmatpush1.bf16.msra.mxu0 0
      %631 = vmatprep.subr.bf16.mxu0 0
      %632 = vmatpush1.bf16.msra.mxu0 0
      %633 = vmatprep.subr.bf16.mxu0 0
      %634 = vmatpush1.bf16.msra.mxu0 0
      %635 = vmatprep.subr.bf16.mxu0 0
      %636 = vmatpush1.bf16.msra.mxu0 0
      %637 = vmatprep.subr.bf16.mxu0 0
      %638 = vmatpush1.bf16.msra.mxu0 0
      %639 = vmatprep.subr.bf16.mxu0 0
      %640 = vmatpush1.bf16.msra.mxu0 0
      %641 = vmatprep.subr.bf16.mxu0 0
      %642 = vmatpush1.bf16.msra.mxu0 0
      %643 = vmatprep.subr.bf16.mxu0 0
      %644 = vmatpush1.bf16.msra.mxu0 0
      %645 = vmatprep.mubr.bf16.mxu0 0
      %646 = vmatmul.mubr.bf16.gmra.mrb[0].mxu0 %v436
      %v647 = vpop.f32.mrb[0].mxu0
      %v648 = vadd.f32 0.0, %v647
      %v649 = vpop.f32.mrb[0].mxu0
      %v650 = vpop.f32.mrb[0].mxu0
      %v651 = vpop.f32.mrb[0].mxu0
      %652 = vdwg.mxu0
      %v654 = vsel %vm289, %v398, 0
      %656 = vmatprep.subr.bf16.mxu0 0
      %657 = vmatpush1.bf16.msra.mxu0 %v654
      %658 = vmatprep.subr.bf16.mxu0 0
      %659 = vmatpush1.bf16.msra.mxu0 0
      %660 = vmatprep.subr.bf16.mxu0 0
      %661 = vmatpush1.bf16.msra.mxu0 0
      %662 = vmatprep.subr.bf16.mxu0 0
      %663 = vmatpush1.bf16.msra.mxu0 0
      %664 = vmatprep.subr.bf16.mxu0 0
      %665 = vmatpush1.bf16.msra.mxu0 0
      %666 = vmatprep.subr.bf16.mxu0 0
      %667 = vmatpush1.bf16.msra.mxu0 0
      %668 = vmatprep.subr.bf16.mxu0 0
      %669 = vmatpush1.bf16.msra.mxu0 0
      %670 = vmatprep.subr.bf16.mxu0 0
      %671 = vmatpush1.bf16.msra.mxu0 0
      %672 = vmatprep.subr.bf16.mxu0 0
      %673 = vmatpush1.bf16.msra.mxu0 0
      %674 = vmatprep.subr.bf16.mxu0 0
      %675 = vmatpush1.bf16.msra.mxu0 0
      %676 = vmatprep.subr.bf16.mxu0 0
      %677 = vmatpush1.bf16.msra.mxu0 0
      %678 = vmatprep.subr.bf16.mxu0 0
      %679 = vmatpush1.bf16.msra.mxu0 0
      %680 = vmatprep.subr.bf16.mxu0 0
      %681 = vmatpush1.bf16.msra.mxu0 0
      %682 = vmatprep.subr.bf16.mxu0 0
      %683 = vmatpush1.bf16.msra.mxu0 0
      %684 = vmatprep.subr.bf16.mxu0 0
      %685 = vmatpush1.bf16.msra.mxu0 0
      %686 = vmatprep.subr.bf16.mxu0 0
      %687 = vmatpush1.bf16.msra.mxu0 0
      %688 = vmatprep.mubr.bf16.mxu0 0
      %689 = vmatmul.mubr.bf16.gmra.mrb[0].mxu0 %v436
      %v690 = vpop.f32.mrb[0].mxu0
      %v691 = vadd.f32 0.0, %v690
      %v692 = vpop.f32.mrb[0].mxu0
      %v693 = vpop.f32.mrb[0].mxu0
      %v694 = vpop.f32.mrb[0].mxu0
      %695 = vdwg.mxu0
      %v697 = vsel %vm289, %v397, 0
      %699 = vmatprep.subr.bf16.mxu0 0
      %700 = vmatpush1.bf16.msra.mxu0 %v697
      %701 = vmatprep.subr.bf16.mxu0 0
      %702 = vmatpush1.bf16.msra.mxu0 0
      %703 = vmatprep.subr.bf16.mxu0 0
      %704 = vmatpush1.bf16.msra.mxu0 0
      %705 = vmatprep.subr.bf16.mxu0 0
      %706 = vmatpush1.bf16.msra.mxu0 0
      %707 = vmatprep.subr.bf16.mxu0 0
      %708 = vmatpush1.bf16.msra.mxu0 0
      %709 = vmatprep.subr.bf16.mxu0 0
      %710 = vmatpush1.bf16.msra.mxu0 0
      %711 = vmatprep.subr.bf16.mxu0 0
      %712 = vmatpush1.bf16.msra.mxu0 0
      %713 = vmatprep.subr.bf16.mxu0 0
      %714 = vmatpush1.bf16.msra.mxu0 0
      %715 = vmatprep.subr.bf16.mxu0 0
      %716 = vmatpush1.bf16.msra.mxu0 0
      %717 = vmatprep.subr.bf16.mxu0 0
      %718 = vmatpush1.bf16.msra.mxu0 0
      %719 = vmatprep.subr.bf16.mxu0 0
      %720 = vmatpush1.bf16.msra.mxu0 0
      %721 = vmatprep.subr.bf16.mxu0 0
      %722 = vmatpush1.bf16.msra.mxu0 0
      %723 = vmatprep.subr.bf16.mxu0 0
      %724 = vmatpush1.bf16.msra.mxu0 0
      %725 = vmatprep.subr.bf16.mxu0 0
      %726 = vmatpush1.bf16.msra.mxu0 0
      %727 = vmatprep.subr.bf16.mxu0 0
      %728 = vmatpush1.bf16.msra.mxu0 0
      %729 = vmatprep.subr.bf16.mxu0 0
      %730 = vmatpush1.bf16.msra.mxu0 0
      %731 = vmatprep.mubr.bf16.mxu0 0
      %732 = vmatmul.mubr.bf16.gmra.mrb[0].mxu0 %v436
      %v733 = vpop.f32.mrb[0].mxu0
      %v734 = vadd.f32 0.0, %v733
      %v735 = vpop.f32.mrb[0].mxu0
      %v736 = vpop.f32.mrb[0].mxu0
      %v737 = vpop.f32.mrb[0].mxu0
      %738 = vdwg.mxu0
      %v740 = vsel %vm289, %v399, 0
      %742 = vmatprep.subr.bf16.mxu0 0
      %743 = vmatpush1.bf16.msra.mxu0 %v740
      %744 = vmatprep.subr.bf16.mxu0 0
      %745 = vmatpush1.bf16.msra.mxu0 0
      %746 = vmatprep.subr.bf16.mxu0 0
      %747 = vmatpush1.bf16.msra.mxu0 0
      %748 = vmatprep.subr.bf16.mxu0 0
      %749 = vmatpush1.bf16.msra.mxu0 0
      %750 = vmatprep.subr.bf16.mxu0 0
      %751 = vmatpush1.bf16.msra.mxu0 0
      %752 = vmatprep.subr.bf16.mxu0 0
      %753 = vmatpush1.bf16.msra.mxu0 0
      %754 = vmatprep.subr.bf16.mxu0 0
      %755 = vmatpush1.bf16.msra.mxu0 0
      %756 = vmatprep.subr.bf16.mxu0 0
      %757 = vmatpush1.bf16.msra.mxu0 0
      %758 = vmatprep.subr.bf16.mxu0 0
      %759 = vmatpush1.bf16.msra.mxu0 0
      %760 = vmatprep.subr.bf16.mxu0 0
      %761 = vmatpush1.bf16.msra.mxu0 0
      %762 = vmatprep.subr.bf16.mxu0 0
      %763 = vmatpush1.bf16.msra.mxu0 0
      %764 = vmatprep.subr.bf16.mxu0 0
      %765 = vmatpush1.bf16.msra.mxu0 0
      %766 = vmatprep.subr.bf16.mxu0 0
      %767 = vmatpush1.bf16.msra.mxu0 0
      %768 = vmatprep.subr.bf16.mxu0 0
      %769 = vmatpush1.bf16.msra.mxu0 0
      %770 = vmatprep.subr.bf16.mxu0 0
      %771 = vmatpush1.bf16.msra.mxu0 0
      %772 = vmatprep.subr.bf16.mxu0 0
      %773 = vmatpush1.bf16.msra.mxu0 0
      %774 = vmatprep.mubr.bf16.mxu0 0
      %775 = vmatmul.mubr.bf16.gmra.mrb[0].mxu0 %v436
      %v776 = vpop.f32.mrb[0].mxu0
      %v777 = vadd.f32 0.0, %v776
      %v778 = vpop.f32.mrb[0].mxu0
      %v779 = vpop.f32.mrb[0].mxu0
      %v780 = vpop.f32.mrb[0].mxu0
      %781 = vdwg.mxu0
      %v783 = vsel %vm289, %v407, 0
      %785 = vmatprep.subr.bf16.mxu0 0
      %786 = vmatpush1.bf16.msra.mxu0 %v783
      %787 = vmatprep.subr.bf16.mxu0 0
      %788 = vmatpush1.bf16.msra.mxu0 0
      %789 = vmatprep.subr.bf16.mxu0 0
      %790 = vmatpush1.bf16.msra.mxu0 0
      %791 = vmatprep.subr.bf16.mxu0 0
      %792 = vmatpush1.bf16.msra.mxu0 0
      %793 = vmatprep.subr.bf16.mxu0 0
      %794 = vmatpush1.bf16.msra.mxu0 0
      %795 = vmatprep.subr.bf16.mxu0 0
      %796 = vmatpush1.bf16.msra.mxu0 0
      %797 = vmatprep.subr.bf16.mxu0 0
      %798 = vmatpush1.bf16.msra.mxu0 0
      %799 = vmatprep.subr.bf16.mxu0 0
      %800 = vmatpush1.bf16.msra.mxu0 0
      %801 = vmatprep.subr.bf16.mxu0 0
      %802 = vmatpush1.bf16.msra.mxu0 0
      %803 = vmatprep.subr.bf16.mxu0 0
      %804 = vmatpush1.bf16.msra.mxu0 0
      %805 = vmatprep.subr.bf16.mxu0 0
      %806 = vmatpush1.bf16.msra.mxu0 0
      %807 = vmatprep.subr.bf16.mxu0 0
      %808 = vmatpush1.bf16.msra.mxu0 0
      %809 = vmatprep.subr.bf16.mxu0 0
      %810 = vmatpush1.bf16.msra.mxu0 0
      %811 = vmatprep.subr.bf16.mxu0 0
      %812 = vmatpush1.bf16.msra.mxu0 0
      %813 = vmatprep.subr.bf16.mxu0 0
      %814 = vmatpush1.bf16.msra.mxu0 0
      %815 = vmatprep.subr.bf16.mxu0 0
      %816 = vmatpush1.bf16.msra.mxu0 0
      %817 = vmatprep.mubr.bf16.mxu0 0
      %818 = vmatmul.mubr.bf16.gmra.mrb[0].mxu0 %v436
      %v819 = vpop.f32.mrb[0].mxu0
      %v820 = vadd.f32 0.0, %v819
      %v821 = vpop.f32.mrb[0].mxu0
      %v822 = vpop.f32.mrb[0].mxu0
      %v823 = vpop.f32.mrb[0].mxu0
      %824 = vdwg.mxu0
      %v826 = vsel %vm289, %v415, 0
      %828 = vmatprep.subr.bf16.mxu0 0
      %829 = vmatpush1.bf16.msra.mxu0 %v826
      %830 = vmatprep.subr.bf16.mxu0 0
      %831 = vmatpush1.bf16.msra.mxu0 0
      %832 = vmatprep.subr.bf16.mxu0 0
      %833 = vmatpush1.bf16.msra.mxu0 0
      %834 = vmatprep.subr.bf16.mxu0 0
      %835 = vmatpush1.bf16.msra.mxu0 0
      %836 = vmatprep.subr.bf16.mxu0 0
      %837 = vmatpush1.bf16.msra.mxu0 0
      %838 = vmatprep.subr.bf16.mxu0 0
      %839 = vmatpush1.bf16.msra.mxu0 0
      %840 = vmatprep.subr.bf16.mxu0 0
      %841 = vmatpush1.bf16.msra.mxu0 0
      %842 = vmatprep.subr.bf16.mxu0 0
      %843 = vmatpush1.bf16.msra.mxu0 0
      %844 = vmatprep.subr.bf16.mxu0 0
      %845 = vmatpush1.bf16.msra.mxu0 0
      %846 = vmatprep.subr.bf16.mxu0 0
      %847 = vmatpush1.bf16.msra.mxu0 0
      %848 = vmatprep.subr.bf16.mxu0 0
      %849 = vmatpush1.bf16.msra.mxu0 0
      %850 = vmatprep.subr.bf16.mxu0 0
      %851 = vmatpush1.bf16.msra.mxu0 0
      %852 = vmatprep.subr.bf16.mxu0 0
      %853 = vmatpush1.bf16.msra.mxu0 0
      %854 = vmatprep.subr.bf16.mxu0 0
      %855 = vmatpush1.bf16.msra.mxu0 0
      %856 = vmatprep.subr.bf16.mxu0 0
      %857 = vmatpush1.bf16.msra.mxu0 0
      %858 = vmatprep.subr.bf16.mxu0 0
      %859 = vmatpush1.bf16.msra.mxu0 0
      %860 = vmatprep.mubr.bf16.mxu0 0
      %861 = vmatmul.mubr.bf16.gmra.mrb[0].mxu0 %v436
      %v862 = vpop.f32.mrb[0].mxu0
      %v863 = vadd.f32 0.0, %v862
      %v864 = vpop.f32.mrb[0].mxu0
      %v865 = vpop.f32.mrb[0].mxu0
      %v866 = vpop.f32.mrb[0].mxu0
      %867 = vdwg.mxu0
      %v869 = vsel %vm289, %v414, 0
      %871 = vmatprep.subr.bf16.mxu0 0
      %872 = vmatpush1.bf16.msra.mxu0 %v869
      %873 = vmatprep.subr.bf16.mxu0 0
      %874 = vmatpush1.bf16.msra.mxu0 0
      %875 = vmatprep.subr.bf16.mxu0 0
      %876 = vmatpush1.bf16.msra.mxu0 0
      %877 = vmatprep.subr.bf16.mxu0 0
      %878 = vmatpush1.bf16.msra.mxu0 0
      %879 = vmatprep.subr.bf16.mxu0 0
      %880 = vmatpush1.bf16.msra.mxu0 0
      %881 = vmatprep.subr.bf16.mxu0 0
      %882 = vmatpush1.bf16.msra.mxu0 0
      %883 = vmatprep.subr.bf16.mxu0 0
      %884 = vmatpush1.bf16.msra.mxu0 0
      %885 = vmatprep.subr.bf16.mxu0 0
      %886 = vmatpush1.bf16.msra.mxu0 0
      %887 = vmatprep.subr.bf16.mxu0 0
      %888 = vmatpush1.bf16.msra.mxu0 0
      %889 = vmatprep.subr.bf16.mxu0 0
      %890 = vmatpush1.bf16.msra.mxu0 0
      %891 = vmatprep.subr.bf16.mxu0 0
      %892 = vmatpush1.bf16.msra.mxu0 0
      %893 = vmatprep.subr.bf16.mxu0 0
      %894 = vmatpush1.bf16.msra.mxu0 0
      %895 = vmatprep.subr.bf16.mxu0 0
      %896 = vmatpush1.bf16.msra.mxu0 0
      %897 = vmatprep.subr.bf16.mxu0 0
      %898 = vmatpush1.bf16.msra.mxu0 0
      %899 = vmatprep.subr.bf16.mxu0 0
      %900 = vmatpush1.bf16.msra.mxu0 0
      %901 = vmatprep.subr.bf16.mxu0 0
      %902 = vmatpush1.bf16.msra.mxu0 0
      %903 = vmatprep.mubr.bf16.mxu0 0
      %904 = vmatmul.mubr.bf16.gmra.mrb[0].mxu0 %v436
      %v905 = vpop.f32.mrb[0].mxu0
      %v906 = vadd.f32 0.0, %v905
      %v907 = vpop.f32.mrb[0].mxu0
      %v908 = vpop.f32.mrb[0].mxu0
      %v909 = vpop.f32.mrb[0].mxu0
      %910 = vdwg.mxu0
      %v912 = vsel %vm289, %v416, 0
      %914 = vmatprep.subr.bf16.mxu0 0
      %915 = vmatpush1.bf16.msra.mxu0 %v912
      %916 = vmatprep.subr.bf16.mxu0 0
      %917 = vmatpush1.bf16.msra.mxu0 0
      %918 = vmatprep.subr.bf16.mxu0 0
      %919 = vmatpush1.bf16.msra.mxu0 0
      %920 = vmatprep.subr.bf16.mxu0 0
      %921 = vmatpush1.bf16.msra.mxu0 0
      %922 = vmatprep.subr.bf16.mxu0 0
      %923 = vmatpush1.bf16.msra.mxu0 0
      %924 = vmatprep.subr.bf16.mxu0 0
      %925 = vmatpush1.bf16.msra.mxu0 0
      %926 = vmatprep.subr.bf16.mxu0 0
      %927 = vmatpush1.bf16.msra.mxu0 0
      %928 = vmatprep.subr.bf16.mxu0 0
      %929 = vmatpush1.bf16.msra.mxu0 0
      %930 = vmatprep.subr.bf16.mxu0 0
      %931 = vmatpush1.bf16.msra.mxu0 0
      %932 = vmatprep.subr.bf16.mxu0 0
      %933 = vmatpush1.bf16.msra.mxu0 0
      %934 = vmatprep.subr.bf16.mxu0 0
      %935 = vmatpush1.bf16.msra.mxu0 0
      %936 = vmatprep.subr.bf16.mxu0 0
      %937 = vmatpush1.bf16.msra.mxu0 0
      %938 = vmatprep.subr.bf16.mxu0 0
      %939 = vmatpush1.bf16.msra.mxu0 0
      %940 = vmatprep.subr.bf16.mxu0 0
      %941 = vmatpush1.bf16.msra.mxu0 0
      %942 = vmatprep.subr.bf16.mxu0 0
      %943 = vmatpush1.bf16.msra.mxu0 0
      %944 = vmatprep.subr.bf16.mxu0 0
      %945 = vmatpush1.bf16.msra.mxu0 0
      %946 = vmatprep.mubr.bf16.mxu0 0
      %947 = vmatmul.mubr.bf16.gmra.mrb[0].mxu0 %v436
      %v948 = vpop.f32.mrb[0].mxu0
      %v949 = vadd.f32 0.0, %v948
      %v950 = vpop.f32.mrb[0].mxu0
      %v951 = vpop.f32.mrb[0].mxu0
      %v952 = vpop.f32.mrb[0].mxu0
      %953 = vdwg.mxu0
      %v955 = vsel %vm289, %v424, 0
      %957 = vmatprep.subr.bf16.mxu0 0
      %958 = vmatpush1.bf16.msra.mxu0 %v955
      %959 = vmatprep.subr.bf16.mxu0 0
      %960 = vmatpush1.bf16.msra.mxu0 0
      %961 = vmatprep.subr.bf16.mxu0 0
      %962 = vmatpush1.bf16.msra.mxu0 0
      %963 = vmatprep.subr.bf16.mxu0 0
      %964 = vmatpush1.bf16.msra.mxu0 0
      %965 = vmatprep.subr.bf16.mxu0 0
      %966 = vmatpush1.bf16.msra.mxu0 0
      %967 = vmatprep.subr.bf16.mxu0 0
      %968 = vmatpush1.bf16.msra.mxu0 0
      %969 = vmatprep.subr.bf16.mxu0 0
      %970 = vmatpush1.bf16.msra.mxu0 0
      %971 = vmatprep.subr.bf16.mxu0 0
      %972 = vmatpush1.bf16.msra.mxu0 0
      %973 = vmatprep.subr.bf16.mxu0 0
      %974 = vmatpush1.bf16.msra.mxu0 0
      %975 = vmatprep.subr.bf16.mxu0 0
      %976 = vmatpush1.bf16.msra.mxu0 0
      %977 = vmatprep.subr.bf16.mxu0 0
      %978 = vmatpush1.bf16.msra.mxu0 0
      %979 = vmatprep.subr.bf16.mxu0 0
      %980 = vmatpush1.bf16.msra.mxu0 0
      %981 = vmatprep.subr.bf16.mxu0 0
      %982 = vmatpush1.bf16.msra.mxu0 0
      %983 = vmatprep.subr.bf16.mxu0 0
      %984 = vmatpush1.bf16.msra.mxu0 0
      %985 = vmatprep.subr.bf16.mxu0 0
      %986 = vmatpush1.bf16.msra.mxu0 0
      %987 = vmatprep.subr.bf16.mxu0 0
      %988 = vmatpush1.bf16.msra.mxu0 0
      %989 = vmatprep.mubr.bf16.mxu0 0
      %990 = vmatmul.mubr.bf16.gmra.mrb[0].mxu0 %v436
      %v991 = vpop.f32.mrb[0].mxu0
      %v992 = vadd.f32 0.0, %v991
      %v993 = vpop.f32.mrb[0].mxu0
      %v994 = vpop.f32.mrb[0].mxu0
      %v995 = vpop.f32.mrb[0].mxu0
      %996 = vdwg.mxu0
      %v998 = vsel %vm289, %v432, 0
      %1000 = vmatprep.subr.bf16.mxu0 0
      %1001 = vmatpush1.bf16.msra.mxu0 %v998
      %1002 = vmatprep.subr.bf16.mxu0 0
      %1003 = vmatpush1.bf16.msra.mxu0 0
      %1004 = vmatprep.subr.bf16.mxu0 0
      %1005 = vmatpush1.bf16.msra.mxu0 0
      %1006 = vmatprep.subr.bf16.mxu0 0
      %1007 = vmatpush1.bf16.msra.mxu0 0
      %1008 = vmatprep.subr.bf16.mxu0 0
      %1009 = vmatpush1.bf16.msra.mxu0 0
      %1010 = vmatprep.subr.bf16.mxu0 0
      %1011 = vmatpush1.bf16.msra.mxu0 0
      %1012 = vmatprep.subr.bf16.mxu0 0
      %1013 = vmatpush1.bf16.msra.mxu0 0
      %1014 = vmatprep.subr.bf16.mxu0 0
      %1015 = vmatpush1.bf16.msra.mxu0 0
      %1016 = vmatprep.subr.bf16.mxu0 0
      %1017 = vmatpush1.bf16.msra.mxu0 0
      %1018 = vmatprep.subr.bf16.mxu0 0
      %1019 = vmatpush1.bf16.msra.mxu0 0
      %1020 = vmatprep.subr.bf16.mxu0 0
      %1021 = vmatpush1.bf16.msra.mxu0 0
      %1022 = vmatprep.subr.bf16.mxu0 0
      %1023 = vmatpush1.bf16.msra.mxu0 0
      %1024 = vmatprep.subr.bf16.mxu0 0
      %1025 = vmatpush1.bf16.msra.mxu0 0
      %1026 = vmatprep.subr.bf16.mxu0 0
      %1027 = vmatpush1.bf16.msra.mxu0 0
      %1028 = vmatprep.subr.bf16.mxu0 0
      %1029 = vmatpush1.bf16.msra.mxu0 0
      %1030 = vmatprep.subr.bf16.mxu0 0
      %1031 = vmatpush1.bf16.msra.mxu0 0
      %1032 = vmatprep.mubr.bf16.mxu0 0
      %1033 = vmatmul.mubr.bf16.gmra.mrb[0].mxu0 %v436
      %v1034 = vpop.f32.mrb[0].mxu0
      %v1035 = vadd.f32 0.0, %v1034
      %v1036 = vpop.f32.mrb[0].mxu0
      %v1037 = vpop.f32.mrb[0].mxu0
      %v1038 = vpop.f32.mrb[0].mxu0
      %1039 = vdwg.mxu0
      %v1041 = vsel %vm289, %v431, 0
      %1043 = vmatprep.subr.bf16.mxu0 0
      %1044 = vmatpush1.bf16.msra.mxu0 %v1041
      %1045 = vmatprep.subr.bf16.mxu0 0
      %1046 = vmatpush1.bf16.msra.mxu0 0
      %1047 = vmatprep.subr.bf16.mxu0 0
      %1048 = vmatpush1.bf16.msra.mxu0 0
      %1049 = vmatprep.subr.bf16.mxu0 0
      %1050 = vmatpush1.bf16.msra.mxu0 0
      %1051 = vmatprep.subr.bf16.mxu0 0
      %1052 = vmatpush1.bf16.msra.mxu0 0
      %1053 = vmatprep.subr.bf16.mxu0 0
      %1054 = vmatpush1.bf16.msra.mxu0 0
      %1055 = vmatprep.subr.bf16.mxu0 0
      %1056 = vmatpush1.bf16.msra.mxu0 0
      %1057 = vmatprep.subr.bf16.mxu0 0
      %1058 = vmatpush1.bf16.msra.mxu0 0
      %1059 = vmatprep.subr.bf16.mxu0 0
      %1060 = vmatpush1.bf16.msra.mxu0 0
      %1061 = vmatprep.subr.bf16.mxu0 0
      %1062 = vmatpush1.bf16.msra.mxu0 0
      %1063 = vmatprep.subr.bf16.mxu0 0
      %1064 = vmatpush1.bf16.msra.mxu0 0
      %1065 = vmatprep.subr.bf16.mxu0 0
      %1066 = vmatpush1.bf16.msra.mxu0 0
      %1067 = vmatprep.subr.bf16.mxu0 0
      %1068 = vmatpush1.bf16.msra.mxu0 0
      %1069 = vmatprep.subr.bf16.mxu0 0
      %1070 = vmatpush1.bf16.msra.mxu0 0
      %1071 = vmatprep.subr.bf16.mxu0 0
      %1072 = vmatpush1.bf16.msra.mxu0 0
      %1073 = vmatprep.subr.bf16.mxu0 0
      %1074 = vmatpush1.bf16.msra.mxu0 0
      %1075 = vmatprep.mubr.bf16.mxu0 0
      %1076 = vmatmul.mubr.bf16.gmra.mrb[0].mxu0 %v436
      %v1077 = vpop.f32.mrb[0].mxu0
      %v1078 = vadd.f32 0.0, %v1077
      %v1079 = vpop.f32.mrb[0].mxu0
      %v1080 = vpop.f32.mrb[0].mxu0
      %v1081 = vpop.f32.mrb[0].mxu0
      %1082 = vdwg.mxu0
      %v1084 = vsel %vm289, %v433, 0
      %1086 = vmatprep.subr.bf16.mxu0 0
      %1087 = vmatpush1.bf16.msra.mxu0 %v1084
      %1088 = vmatprep.subr.bf16.mxu0 0
      %1089 = vmatpush1.bf16.msra.mxu0 0
      %1090 = vmatprep.subr.bf16.mxu0 0
      %1091 = vmatpush1.bf16.msra.mxu0 0
      %1092 = vmatprep.subr.bf16.mxu0 0
      %1093 = vmatpush1.bf16.msra.mxu0 0
      %1094 = vmatprep.subr.bf16.mxu0 0
      %1095 = vmatpush1.bf16.msra.mxu0 0
      %1096 = vmatprep.subr.bf16.mxu0 0
      %1097 = vmatpush1.bf16.msra.mxu0 0
      %1098 = vmatprep.subr.bf16.mxu0 0
      %1099 = vmatpush1.bf16.msra.mxu0 0
      %1100 = vmatprep.subr.bf16.mxu0 0
      %1101 = vmatpush1.bf16.msra.mxu0 0
      %1102 = vmatprep.subr.bf16.mxu0 0
      %1103 = vmatpush1.bf16.msra.mxu0 0
      %1104 = vmatprep.subr.bf16.mxu0 0
      %1105 = vmatpush1.bf16.msra.mxu0 0
      %1106 = vmatprep.subr.bf16.mxu0 0
      %1107 = vmatpush1.bf16.msra.mxu0 0
      %1108 = vmatprep.subr.bf16.mxu0 0
      %1109 = vmatpush1.bf16.msra.mxu0 0
      %1110 = vmatprep.subr.bf16.mxu0 0
      %1111 = vmatpush1.bf16.msra.mxu0 0
      %1112 = vmatprep.subr.bf16.mxu0 0
      %1113 = vmatpush1.bf16.msra.mxu0 0
      %1114 = vmatprep.subr.bf16.mxu0 0
      %1115 = vmatpush1.bf16.msra.mxu0 0
      %1116 = vmatprep.subr.bf16.mxu0 0
      %1117 = vmatpush1.bf16.msra.mxu0 0
      %1118 = vmatprep.mubr.bf16.mxu0 0
      %1119 = vmatmul.mubr.bf16.gmra.mrb[0].mxu0 %v436
      %v1120 = vpop.f32.mrb[0].mxu0
      %v1121 = vadd.f32 0.0, %v1120
      %v1122 = vpop.f32.mrb[0].mxu0
      %v1123 = vpop.f32.mrb[0].mxu0
      %v1124 = vpop.f32.mrb[0].mxu0
      %1125 = vdwg.mxu0
      %v1126 = vpack.c.bf16 %v476, %v476
      %v1127 = vpack.c.bf16 %v519, %v519
      %v1128 = vpack.c.bf16 %v562, %v562
      %v1129 = vpack.c.bf16 %v605, %v605
      %v1130 = vpack.c.bf16 %v648, %v648
      %v1131 = vpack.c.bf16 %v691, %v691
      %v1132 = vpack.c.bf16 %v734, %v734
      %v1133 = vpack.c.bf16 %v777, %v777
      %v1134 = vpack.c.bf16 %v820, %v820
      %v1135 = vpack.c.bf16 %v863, %v863
      %v1136 = vpack.c.bf16 %v906, %v906
      %v1137 = vpack.c.bf16 %v949, %v949
      %v1138 = vpack.c.bf16 %v992, %v992
      %v1139 = vpack.c.bf16 %v1035, %v1035
      %v1140 = vpack.c.bf16 %v1078, %v1078
      %v1141 = vpack.c.bf16 %v1121, %v1121
      %vm1142 = vcmask 60416
      %1143 = vst.msk [vmem:[%s172] sm:$0xf] %vm1142, %v1126
      %1144 = vst.msk [vmem:[%s172 + $0x4] sm:$0xf] %vm1142, %v1127
      %1145 = vst.msk [vmem:[%s172 + $0x8] sm:$0xf] %vm1142, %v1128
      %1146 = vst.msk [vmem:[%s172 + $0xc] sm:$0xf] %vm1142, %v1129
      %1147 = vst.msk [vmem:[%s172 + $0x10] sm:$0xf] %vm1142, %v1130
      %1148 = vst.msk [vmem:[%s172 + $0x14] sm:$0xf] %vm1142, %v1131
      %1149 = vst.msk [vmem:[%s172 + $0x18] sm:$0xf] %vm1142, %v1132
      %1150 = vst.msk [vmem:[%s172 + $0x1c] sm:$0xf] %vm1142, %v1133
      %1151 = vst.msk [vmem:[%s172 + $0x20] sm:$0xf] %vm1142, %v1134
      %1152 = vst.msk [vmem:[%s172 + $0x24] sm:$0xf] %vm1142, %v1135
      %1153 = vst.msk [vmem:[%s172 + $0x28] sm:$0xf] %vm1142, %v1136
      %1154 = vst.msk [vmem:[%s172 + $0x2c] sm:$0xf] %vm1142, %v1137
      %1155 = vst.msk [vmem:[%s172 + $0x30] sm:$0xf] %vm1142, %v1138
      %1156 = vst.msk [vmem:[%s172 + $0x34] sm:$0xf] %vm1142, %v1139
      %1157 = vst.msk [vmem:[%s172 + $0x38] sm:$0xf] %vm1142, %v1140
      %1158 = vst.msk [vmem:[%s172 + $0x3c] sm:$0xf] %vm1142, %v1141
      %s1159 = smul.u32 16, %s14
      %p1160 = scmp.lt.s32.totalorder %s1159, 31
      %s1161 = scalar_select %p1160, %s1159, 31
      %s1162 = smul.addr %s1161, 4
      %s1163 = scalar_lea.vmem %s3, %s1162
      // Predicated region
      $region33: #{expanding_block_forward.5} parent=31 // pred_check
        %p1164 = pneg %p100
      $region34: #{expanding_block_forward.5} parent=31 // pred_check_branch
        %1166 = sbr.rel (%p1164) target = $region36
      $region35: #{expanding_block_forward.5} parent=31 // pred_region
        %s1167 = smul.u32 16, %s14
      $region36: #{expanding_block_forward.5} parent=31 // pred_fallthru
        _
    $region32: #{expanding_block_forward.5} parent=5 // pred_fallthru
      _
    %p1168 = scmp.le.s32.totalorder 2, %s9
    // Predicated region
    $region37: #{expanding_block_forward.5} parent=5 // pred_check
      %p1169 = pneg %p1168
    $region38: #{expanding_block_forward.5} parent=5 // pred_check_branch
      %1171 = sbr.rel (%p1169) target = $region40
    $region39: #{expanding_block_forward.5} parent=5 // pred_region
      %s1172 = ssub.s32 %s9, 2
      // Predicated region
      $region41: #{expanding_block_forward.5} parent=39 // pred_check
        %p1173 = pneg %p106
      $region42: #{expanding_block_forward.5} parent=39 // pred_check_branch
        %1175 = sbr.rel (%p1173) target = $region44
      $region43: #{expanding_block_forward.5} parent=39 // pred_region
        %s1176 = smul.u32 16, %s15
        %p1177 = scmp.lt.s32.totalorder %s1176, 31
        %s1178 = scalar_select %p1177, %s1176, 31
        %s1179 = smul.addr %s1178, 4
        %s1180 = scalar_lea.vmem %s3, %s1179
      $region44: #{expanding_block_forward.5} parent=39 // pred_fallthru
        _
    $region40: #{expanding_block_forward.5} parent=5 // pred_fallthru
      _
  $region6: #{expanding_block_forward.5} parent=0 // loop_footer
    %s13 = sadd.s32 1, %s9
  $region7: #{expanding_block_forward.5} parent=0 // loop_footer_branch
    %8 = sbr.rel target = $region3
  $region8: #{expanding_block_forward.5} parent=0 // loop_exit
    _

// kernel: expanding_block_forward.7
$region0: #{expanding_block_forward.7}
  #allocation0 [shape = 'u32[]', space=smem, size = 0x4, offset = 0x4, fixed_abs, tag = 'smem constant byte address 0x4 - core index']
  #allocation1 [shape = 'u32[144,128]{1,0:T(1,128)}', space=vmem, size = 0x12000, scoped, tag = 'internal scratch']
  %s0 = inlined_call_operand.vmem [shape: bf16[2,4,1152], index: 0, kind: input, shape index: {}]
  %s1 = inlined_call_operand.vmem [shape: bf16[2,32], index: 1, kind: input, shape index: {}]
  %s2 = inlined_call_operand.vmem [shape: f32[2,1], index: 2, kind: input, shape index: {}]
  %s3 = inlined_call_operand.vmem [shape: f32[1,896], index: 3, kind: input, shape index: {}]
  %s4 = inlined_call_operand.vmem [shape: bf16[4,896], index: 4, kind: output, shape index: {}]
  %s5 = sld [smem:[#allocation0]]
  $region26: #{expanding_block_forward.7} parent=0
    _
  %s7 = ssub.s32 1, %s5
  %s8 = scalar_select 0, %s7, %s5
  // Predicated region
  $region2: #{expanding_block_forward.7} parent=0 // pred_check
    _
  $region3: #{expanding_block_forward.7} parent=0 // pred_check_branch
    %10 = sbr.rel (0) target = $region5
  $region4: #{expanding_block_forward.7} parent=0 // pred_region
    _
  $region5: #{expanding_block_forward.7} parent=0 // pred_fallthru
    _
  // Predicated region
  $region6: #{expanding_block_forward.7} parent=0 // pred_check
    _
  $region7: #{expanding_block_forward.7} parent=0 // pred_check_branch
    %12 = sbr.rel (0) target = $region9
  $region8: #{expanding_block_forward.7} parent=0 // pred_region
    _
  $region9: #{expanding_block_forward.7} parent=0 // pred_fallthru
    _
  // Predicated region
  $region10: #{expanding_block_forward.7} parent=0 // pred_check
    _
  $region11: #{expanding_block_forward.7} parent=0 // pred_check_branch
    %14 = sbr.rel (0) target = $region13
  $region12: #{expanding_block_forward.7} parent=0 // pred_region
    _
  $region13: #{expanding_block_forward.7} parent=0 // pred_fallthru
    _
  // Predicated region
  $region14: #{expanding_block_forward.7} parent=0 // pred_check
    _
  $region15: #{expanding_block_forward.7} parent=0 // pred_check_branch
    %16 = sbr.rel (0) target = $region17
  $region16: #{expanding_block_forward.7} parent=0 // pred_region
    _
  $region17: #{expanding_block_forward.7} parent=0 // pred_fallthru
    _
  %v18 = vld [vmem:[%s0] sm:$0xff]
  %v19 = vld [vmem:[%s0 + $0x8] sm:$0xff]
  %v20 = vld [vmem:[%s0 + $0x10] sm:$0x3]
  %v23 = vcombine.high %v18, %v18
  %v25 = vunpack.c.l.s4 1983009808
  %v26 = vunpack.c.0.s8 %v25
  %v27 = vlaneseq
  %v28 = vshrl.u32 %v27, 7
  %v29 = vsub.s32 %v26, %v28
  %v30 = vrot.slane %v18, %v29
  %v32 = vunpack.c.l.s4 1983009808
  %v33 = vunpack.c.0.s8 %v32
  %v34 = vlaneseq
  %v35 = vshrl.u32 %v34, 7
  %v36 = vsub.s32 %v33, %v35
  %v37 = vrot.slane %v23, %v36
  %v38 = vcombine.high %v30, %v30
  %v39 = vcombine.high %v37, %v37
  %v40 = vcombine.high %v19, %v19
  %v42 = vunpack.c.l.s4 1983009808
  %v43 = vunpack.c.0.s8 %v42
  %v44 = vlaneseq
  %v45 = vshrl.u32 %v44, 7
  %v46 = vsub.s32 %v43, %v45
  %v47 = vrot.slane %v19, %v46
  %v49 = vunpack.c.l.s4 1983009808
  %v50 = vunpack.c.0.s8 %v49
  %v51 = vlaneseq
  %v52 = vshrl.u32 %v51, 7
  %v53 = vsub.s32 %v50, %v52
  %v54 = vrot.slane %v40, %v53
  %v55 = vcombine.high %v47, %v47
  %v56 = vcombine.low %v18, %v18
  %v58 = vunpack.c.l.s4 1983009808
  %v59 = vunpack.c.0.s8 %v58
  %v60 = vlaneseq
  %v61 = vshrl.u32 %v60, 7
  %v62 = vsub.s32 %v59, %v61
  %v63 = vrot.slane %v56, %v62
  %v64 = vcombine.high %v63, %v63
  %v65 = vcombine.low %v19, %v19
  %v67 = vunpack.c.l.s4 1983009808
  %v68 = vunpack.c.0.s8 %v67
  %v69 = vlaneseq
  %v70 = vshrl.u32 %v69, 7
  %v71 = vsub.s32 %v68, %v70
  %v72 = vrot.slane %v65, %v71
  %v73 = vcombine.high %v72, %v72
  %v74 = vcombine.low %v30, %v30
  %v75 = vcombine.low %v37, %v37
  %v76 = vcombine.low %v47, %v47
  %v77 = vcombine.low %v54, %v54
  %78 = vrot.lane.b32.xlu0 %v74, 127
  %v79 = vpop.permute.xlu0 %78
  %80 = vrot.lane.b32.xlu0 %v30, 127
  %v81 = vpop.permute.xlu0 %80
  %82 = vrot.lane.b32.xlu0 %v75, 127
  %v83 = vpop.permute.xlu0 %82
  %84 = vrot.lane.b32.xlu0 %v37, 127
  %v85 = vpop.permute.xlu0 %84
  %86 = vrot.lane.b32.xlu0 %v76, 127
  %v87 = vpop.permute.xlu0 %86
  %88 = vrot.lane.b32.xlu0 %v47, 127
  %v89 = vpop.permute.xlu0 %88
  %90 = vrot.lane.b32.xlu0 %v77, 127
  %v91 = vpop.permute.xlu0 %90
  %92 = vrot.lane.b32.xlu0 %v54, 127
  %v93 = vpop.permute.xlu0 %92
  %vm94 = vcmask 1039360
  %v95 = vsel %vm94, %v79, %v81
  %v96 = vsel %vm94, %v81, %v83
  %v97 = vsel %vm94, %v83, %v85
  %v98 = vsel %vm94, %v85, %v87
  %v99 = vsel %vm94, %v87, %v89
  %v100 = vsel %vm94, %v89, %v91
  %v101 = vsel %vm94, %v91, %v93
  %v103 = vcombine.low %v72, %v72
  %v104 = vcombine.low %v20, %v20
  %v106 = vunpack.c.l.s4 1983009808
  %v107 = vunpack.c.0.s8 %v106
  %v108 = vlaneseq
  %v109 = vshrl.u32 %v108, 7
  %v110 = vsub.s32 %v107, %v109
  %v111 = vrot.slane %v104, %v110
  %v112 = vcombine.low %v111, %v111
  %113 = vrot.lane.b32.xlu0 %v63, 127
  %v114 = vpop.permute.xlu0 %113
  %115 = vrot.lane.b32.xlu0 %v103, 127
  %v116 = vpop.permute.xlu0 %115
  %117 = vrot.lane.b32.xlu0 %v72, 127
  %v118 = vpop.permute.xlu0 %117
  %119 = vrot.lane.b32.xlu0 %v112, 127
  %v120 = vpop.permute.xlu0 %119
  %v121 = vsel %vm94, %v114, %v79
  %v122 = vsel %vm94, %v81, %v116
  %v123 = vsel %vm94, %v116, %v118
  %v124 = vsel %vm94, %v118, %v87
  %v125 = vsel %vm94, %v89, %v120
  %v126 = vcombine.high %v54, %v54
  %127 = vrot.lane.b32.xlu0 %v30, 120
  %v128 = vpop.permute.xlu0 %127
  %129 = vrot.lane.b32.xlu0 %v38, 120
  %v130 = vpop.permute.xlu0 %129
  %131 = vrot.lane.b32.xlu0 %v37, 120
  %v132 = vpop.permute.xlu0 %131
  %133 = vrot.lane.b32.xlu0 %v39, 120
  %v134 = vpop.permute.xlu0 %133
  %135 = vrot.lane.b32.xlu0 %v47, 120
  %v136 = vpop.permute.xlu0 %135
  %137 = vrot.lane.b32.xlu0 %v55, 120
  %v138 = vpop.permute.xlu0 %137
  %139 = vrot.lane.b32.xlu0 %v54, 120
  %v140 = vpop.permute.xlu0 %139
  %141 = vrot.lane.b32.xlu0 %v126, 120
  %v142 = vpop.permute.xlu0 %141
  %vm143 = vcmask 982016
  %v144 = vsel %vm143, %v128, %v130
  %v145 = vsel %vm143, %v130, %v132
  %v146 = vsel %vm143, %v132, %v134
  %v147 = vsel %vm143, %v134, %v136
  %v148 = vsel %vm143, %v136, %v138
  %v149 = vsel %vm143, %v138, %v140
  %v150 = vsel %vm143, %v140, %v142
  %151 = vrot.lane.b32.xlu0 %v64, 120
  %v152 = vpop.permute.xlu0 %151
  %153 = vrot.lane.b32.xlu0 %v72, 120
  %v154 = vpop.permute.xlu0 %153
  %155 = vrot.lane.b32.xlu0 %v73, 120
  %v156 = vpop.permute.xlu0 %155
  %157 = vrot.lane.b32.xlu0 %v111, 120
  %v158 = vpop.permute.xlu0 %157
  %v159 = vsel %vm143, %v152, %v128
  %v160 = vsel %vm143, %v130, %v154
  %v161 = vsel %vm143, %v154, %v156
  %v162 = vsel %vm143, %v156, %v136
  %v163 = vsel %vm143, %v138, %v158
  %164 = vrot.lane.b32.xlu0 %v74, 119
  %v165 = vpop.permute.xlu0 %164
  %166 = vrot.lane.b32.xlu0 %v30, 119
  %v167 = vpop.permute.xlu0 %166
  %168 = vrot.lane.b32.xlu0 %v75, 119
  %v169 = vpop.permute.xlu0 %168
  %170 = vrot.lane.b32.xlu0 %v37, 119
  %v171 = vpop.permute.xlu0 %170
  %172 = vrot.lane.b32.xlu0 %v76, 119
  %v173 = vpop.permute.xlu0 %172
  %174 = vrot.lane.b32.xlu0 %v47, 119
  %v175 = vpop.permute.xlu0 %174
  %176 = vrot.lane.b32.xlu0 %v77, 119
  %v177 = vpop.permute.xlu0 %176
  %178 = vrot.lane.b32.xlu0 %v54, 119
  %v179 = vpop.permute.xlu0 %178
  %vm180 = vcmask 973824
  %v181 = vsel %vm180, %v165, %v167
  %v182 = vsel %vm180, %v167, %v169
  %v183 = vsel %vm180, %v169, %v171
  %v184 = vsel %vm180, %v171, %v173
  %v185 = vsel %vm180, %v173, %v175
  %v186 = vsel %vm180, %v175, %v177
  %v187 = vsel %vm180, %v177, %v179
  %188 = vrot.lane.b32.xlu0 %v63, 119
  %v189 = vpop.permute.xlu0 %188
  %190 = vrot.lane.b32.xlu0 %v103, 119
  %v191 = vpop.permute.xlu0 %190
  %192 = vrot.lane.b32.xlu0 %v72, 119
  %v193 = vpop.permute.xlu0 %192
  %194 = vrot.lane.b32.xlu0 %v112, 119
  %v195 = vpop.permute.xlu0 %194
  %v196 = vsel %vm180, %v189, %v165
  %v197 = vsel %vm180, %v167, %v191
  %v198 = vsel %vm180, %v191, %v193
  %v199 = vsel %vm180, %v193, %v173
  %v200 = vsel %vm180, %v175, %v195
  %vm201 = vcmask 1041408
  %v204 = vsel %vm201, %v30, %v64
  %v206 = vsel %vm201, %v38, %v30
  %v208 = vsel %vm201, %v37, %v38
  %v211 = vsel %vm201, %v39, %v72
  %v214 = vsel %vm201, %v47, %v73
  %v216 = vsel %vm201, %v55, %v47
  %v218 = vsel %vm201, %v54, %v55
  %vm219 = vcmask 1043456
  %v221 = vsel %vm219, %v204, %v95
  %v223 = vsel %vm219, %v206, %v96
  %v225 = vsel %vm219, %v208, %v97
  %v227 = vsel %vm219, %v211, %v98
  %v229 = vsel %vm219, %v214, %v99
  %v231 = vsel %vm219, %v216, %v100
  %v233 = vsel %vm219, %v218, %v101
  %vm234 = vcmask 1045504
  %v236 = vsel %vm234, %v221, %v121
  %v238 = vsel %vm234, %v223, %v95
  %v241 = vsel %vm234, %v225, %v122
  %v244 = vsel %vm234, %v227, %v123
  %v247 = vsel %vm234, %v229, %v124
  %v249 = vsel %vm234, %v231, %v99
  %v252 = vsel %vm234, %v233, %v125
  %v256 = vsel %vm201, %v144, %v159
  %v258 = vsel %vm201, %v145, %v144
  %v261 = vsel %vm201, %v146, %v160
  %v264 = vsel %vm201, %v147, %v161
  %v267 = vsel %vm201, %v148, %v162
  %v269 = vsel %vm201, %v149, %v148
  %v272 = vsel %vm201, %v150, %v163
  %v274 = vsel %vm219, %v256, %v181
  %v276 = vsel %vm219, %v258, %v182
  %v278 = vsel %vm219, %v261, %v183
  %v280 = vsel %vm219, %v264, %v184
  %v282 = vsel %vm219, %v267, %v185
  %v284 = vsel %vm219, %v269, %v186
  %v286 = vsel %vm219, %v272, %v187
  %v288 = vsel %vm234, %v274, %v196
  %v290 = vsel %vm234, %v276, %v181
  %v293 = vsel %vm234, %v278, %v197
  %v296 = vsel %vm234, %v280, %v198
  %v299 = vsel %vm234, %v282, %v199
  %v301 = vsel %vm234, %v284, %v185
  %v304 = vsel %vm234, %v286, %v200
  %v306 = vld [vmem:[%s1] sm:$0x1]
  %v307 = vld [vmem:[%s2] sm:$0x3]
  %309 = vset.pattern.permute.xlu0 0
  %310 = vperm.xlu0 %309, %v307
  %v311 = vpop.permute.xlu0 %310
  %vm313 = vcmask 261120
  %v315 = vsel %vm313, %v306, 0
  %317 = vmatprep.subr.bf16.mxu0 %v238
  %318 = vmatpush1.bf16.msra.mxu0 %v236
  %319 = vmatprep.subr.bf16.mxu0 %v290
  %320 = vmatpush1.bf16.msra.mxu0 %v288
  %321 = vmatprep.subr.bf16.mxu0 0
  %322 = vmatpush1.bf16.msra.mxu0 0
  %323 = vmatprep.subr.bf16.mxu0 0
  %324 = vmatpush1.bf16.msra.mxu0 0
  %325 = vmatprep.subr.bf16.mxu0 0
  %326 = vmatpush1.bf16.msra.mxu0 0
  %327 = vmatprep.subr.bf16.mxu0 0
  %328 = vmatpush1.bf16.msra.mxu0 0
  %329 = vmatprep.subr.bf16.mxu0 0
  %330 = vmatpush1.bf16.msra.mxu0 0
  %331 = vmatprep.subr.bf16.mxu0 0
  %332 = vmatpush1.bf16.msra.mxu0 0
  %333 = vmatprep.subr.bf16.mxu0 0
  %334 = vmatpush1.bf16.msra.mxu0 0
  %335 = vmatprep.subr.bf16.mxu0 0
  %336 = vmatpush1.bf16.msra.mxu0 0
  %337 = vmatprep.subr.bf16.mxu0 0
  %338 = vmatpush1.bf16.msra.mxu0 0
  %339 = vmatprep.subr.bf16.mxu0 0
  %340 = vmatpush1.bf16.msra.mxu0 0
  %341 = vmatprep.subr.bf16.mxu0 0
  %342 = vmatpush1.bf16.msra.mxu0 0
  %343 = vmatprep.subr.bf16.mxu0 0
  %344 = vmatpush1.bf16.msra.mxu0 0
  %345 = vmatprep.subr.bf16.mxu0 0
  %346 = vmatpush1.bf16.msra.mxu0 0
  %347 = vmatprep.subr.bf16.mxu0 0
  %348 = vmatpush1.bf16.msra.mxu0 0
  %349 = vmatprep.mubr.bf16.mxu0 0
  %350 = vmatmul.mubr.bf16.gmra.mrb[0].mxu0 %v315
  %v351 = vpop.f32.mrb[0].mxu0
  %v352 = vadd.f32 %v311, %v351
  %v353 = vpop.f32.mrb[0].mxu0
  %v354 = vadd.f32 %v311, %v353
  %v355 = vpop.f32.mrb[0].mxu0
  %v356 = vpop.f32.mrb[0].mxu0
  %357 = vdwg.mxu0
  %358 = vmatprep.subr.bf16.mxu0 %v244
  %359 = vmatpush1.bf16.msra.mxu0 %v241
  %360 = vmatprep.subr.bf16.mxu0 %v296
  %361 = vmatpush1.bf16.msra.mxu0 %v293
  %362 = vmatprep.subr.bf16.mxu0 0
  %363 = vmatpush1.bf16.msra.mxu0 0
  %364 = vmatprep.subr.bf16.mxu0 0
  %365 = vmatpush1.bf16.msra.mxu0 0
  %366 = vmatprep.subr.bf16.mxu0 0
  %367 = vmatpush1.bf16.msra.mxu0 0
  %368 = vmatprep.subr.bf16.mxu0 0
  %369 = vmatpush1.bf16.msra.mxu0 0
  %370 = vmatprep.subr.bf16.mxu0 0
  %371 = vmatpush1.bf16.msra.mxu0 0
  %372 = vmatprep.subr.bf16.mxu0 0
  %373 = vmatpush1.bf16.msra.mxu0 0
  %374 = vmatprep.subr.bf16.mxu0 0
  %375 = vmatpush1.bf16.msra.mxu0 0
  %376 = vmatprep.subr.bf16.mxu0 0
  %377 = vmatpush1.bf16.msra.mxu0 0
  %378 = vmatprep.subr.bf16.mxu0 0
  %379 = vmatpush1.bf16.msra.mxu0 0
  %380 = vmatprep.subr.bf16.mxu0 0
  %381 = vmatpush1.bf16.msra.mxu0 0
  %382 = vmatprep.subr.bf16.mxu0 0
  %383 = vmatpush1.bf16.msra.mxu0 0
  %384 = vmatprep.subr.bf16.mxu0 0
  %385 = vmatpush1.bf16.msra.mxu0 0
  %386 = vmatprep.subr.bf16.mxu0 0
  %387 = vmatpush1.bf16.msra.mxu0 0
  %388 = vmatprep.subr.bf16.mxu0 0
  %389 = vmatpush1.bf16.msra.mxu0 0
  %390 = vmatprep.mubr.bf16.mxu0 0
  %391 = vmatmul.mubr.bf16.gmra.mrb[0].mxu0 %v315
  %v392 = vpop.f32.mrb[0].mxu0
  %v393 = vadd.f32 %v311, %v392
  %v394 = vpop.f32.mrb[0].mxu0
  %v395 = vadd.f32 %v311, %v394
  %v396 = vpop.f32.mrb[0].mxu0
  %v397 = vpop.f32.mrb[0].mxu0
  %398 = vdwg.mxu0
  %399 = vmatprep.subr.bf16.mxu0 %v249
  %400 = vmatpush1.bf16.msra.mxu0 %v247
  %401 = vmatprep.subr.bf16.mxu0 %v301
  %402 = vmatpush1.bf16.msra.mxu0 %v299
  %403 = vmatprep.subr.bf16.mxu0 0
  %404 = vmatpush1.bf16.msra.mxu0 0
  %405 = vmatprep.subr.bf16.mxu0 0
  %406 = vmatpush1.bf16.msra.mxu0 0
  %407 = vmatprep.subr.bf16.mxu0 0
  %408 = vmatpush1.bf16.msra.mxu0 0
  %409 = vmatprep.subr.bf16.mxu0 0
  %410 = vmatpush1.bf16.msra.mxu0 0
  %411 = vmatprep.subr.bf16.mxu0 0
  %412 = vmatpush1.bf16.msra.mxu0 0
  %413 = vmatprep.subr.bf16.mxu0 0
  %414 = vmatpush1.bf16.msra.mxu0 0
  %415 = vmatprep.subr.bf16.mxu0 0
  %416 = vmatpush1.bf16.msra.mxu0 0
  %417 = vmatprep.subr.bf16.mxu0 0
  %418 = vmatpush1.bf16.msra.mxu0 0
  %419 = vmatprep.subr.bf16.mxu0 0
  %420 = vmatpush1.bf16.msra.mxu0 0
  %421 = vmatprep.subr.bf16.mxu0 0
  %422 = vmatpush1.bf16.msra.mxu0 0
  %423 = vmatprep.subr.bf16.mxu0 0
  %424 = vmatpush1.bf16.msra.mxu0 0
  %425 = vmatprep.subr.bf16.mxu0 0
  %426 = vmatpush1.bf16.msra.mxu0 0
  %427 = vmatprep.subr.bf16.mxu0 0
  %428 = vmatpush1.bf16.msra.mxu0 0
  %429 = vmatprep.subr.bf16.mxu0 0
  %430 = vmatpush1.bf16.msra.mxu0 0
  %431 = vmatprep.mubr.bf16.mxu0 0
  %432 = vmatmul.mubr.bf16.gmra.mrb[0].mxu0 %v315
  %v433 = vpop.f32.mrb[0].mxu0
  %v434 = vadd.f32 %v311, %v433
  %v435 = vpop.f32.mrb[0].mxu0
  %v436 = vadd.f32 %v311, %v435
  %v437 = vpop.f32.mrb[0].mxu0
  %v438 = vpop.f32.mrb[0].mxu0
  %439 = vdwg.mxu0
  %440 = vmatprep.subr.bf16.mxu0 0
  %441 = vmatpush1.bf16.msra.mxu0 %v252
  %442 = vmatprep.subr.bf16.mxu0 0
  %443 = vmatpush1.bf16.msra.mxu0 %v304
  %444 = vmatprep.subr.bf16.mxu0 0
  %445 = vmatpush1.bf16.msra.mxu0 0
  %446 = vmatprep.subr.bf16.mxu0 0
  %447 = vmatpush1.bf16.msra.mxu0 0
  %448 = vmatprep.subr.bf16.mxu0 0
  %449 = vmatpush1.bf16.msra.mxu0 0
  %450 = vmatprep.subr.bf16.mxu0 0
  %451 = vmatpush1.bf16.msra.mxu0 0
  %452 = vmatprep.subr.bf16.mxu0 0
  %453 = vmatpush1.bf16.msra.mxu0 0
  %454 = vmatprep.subr.bf16.mxu0 0
  %455 = vmatpush1.bf16.msra.mxu0 0
  %456 = vmatprep.subr.bf16.mxu0 0
  %457 = vmatpush1.bf16.msra.mxu0 0
  %458 = vmatprep.subr.bf16.mxu0 0
  %459 = vmatpush1.bf16.msra.mxu0 0
  %460 = vmatprep.subr.bf16.mxu0 0
  %461 = vmatpush1.bf16.msra.mxu0 0
  %462 = vmatprep.subr.bf16.mxu0 0
  %463 = vmatpush1.bf16.msra.mxu0 0
  %464 = vmatprep.subr.bf16.mxu0 0
  %465 = vmatpush1.bf16.msra.mxu0 0
  %466 = vmatprep.subr.bf16.mxu0 0
  %467 = vmatpush1.bf16.msra.mxu0 0
  %468 = vmatprep.subr.bf16.mxu0 0
  %469 = vmatpush1.bf16.msra.mxu0 0
  %470 = vmatprep.subr.bf16.mxu0 0
  %471 = vmatpush1.bf16.msra.mxu0 0
  %472 = vmatprep.mubr.bf16.mxu0 0
  %473 = vmatmul.mubr.bf16.gmra.mrb[0].mxu0 %v315
  %v474 = vpop.f32.mrb[0].mxu0
  %v475 = vadd.f32 %v311, %v474
  %v476 = vpop.f32.mrb[0].mxu0
  %v477 = vpop.f32.mrb[0].mxu0
  %v478 = vpop.f32.mrb[0].mxu0
  %479 = vdwg.mxu0
  %v480 = vpack.c.bf16 %v352, %v352
  %v481 = vpack.c.bf16 %v354, %v354
  %v482 = vpack.c.bf16 %v393, %v393
  %v483 = vpack.c.bf16 %v395, %v395
  %v484 = vpack.c.bf16 %v434, %v434
  %v485 = vpack.c.bf16 %v436, %v436
  %v486 = vpack.c.bf16 %v475, %v475
  %v494 = vcombine.low %v480, %v481
  %v495 = vcombine.low %v482, %v483
  %v497 = vunpack.c.l.s4 1983009808
  %v498 = vunpack.c.0.s8 %v497
  %v499 = vlaneseq
  %v500 = vshrl.u32 %v499, 7
  %v501 = vsub.s32 %v498, %v500
  %v502 = vrot.slane %v494, %v501
  %v504 = vunpack.c.l.s4 1983009808
  %v505 = vunpack.c.0.s8 %v504
  %v506 = vlaneseq
  %v507 = vshrl.u32 %v506, 7
  %v508 = vsub.s32 %v505, %v507
  %v509 = vrot.slane %v495, %v508
  %v510 = vcombine.low %v502, %v509
  %v511 = vcombine.low %v484, %v485
  %v513 = vunpack.c.l.s4 1983009808
  %v514 = vunpack.c.0.s8 %v513
  %v515 = vlaneseq
  %v516 = vshrl.u32 %v515, 7
  %v517 = vsub.s32 %v514, %v516
  %v518 = vrot.slane %v511, %v517
  %v520 = vunpack.c.l.s4 1983009808
  %v521 = vunpack.c.0.s8 %v520
  %v522 = vlaneseq
  %v523 = vshrl.u32 %v522, 7
  %v524 = vsub.s32 %v521, %v523
  %v525 = vrot.slane %v486, %v524
  %v526 = vcombine.low %v518, %v525
  %529 = vst [vmem:[%s4] sm:$0x55] %v510
  %530 = vst [vmem:[%s4 + $0x8] sm:$0x15] %v526
  %s531 = scalar_lea.vmem %s0, 18
  %v532 = vld [vmem:[%s531] sm:$0xff]
  %v533 = vld [vmem:[%s531 + $0x8] sm:$0xff]
  %v534 = vld [vmem:[%s531 + $0x10] sm:$0x3]
  %v537 = vcombine.high %v532, %v532
  %v539 = vunpack.c.l.s4 1983009808
  %v540 = vunpack.c.0.s8 %v539
  %v541 = vlaneseq
  %v542 = vshrl.u32 %v541, 7
  %v543 = vsub.s32 %v540, %v542
  %v544 = vrot.slane %v532, %v543
  %v546 = vunpack.c.l.s4 1983009808
  %v547 = vunpack.c.0.s8 %v546
  %v548 = vlaneseq
  %v549 = vshrl.u32 %v548, 7
  %v550 = vsub.s32 %v547, %v549
  %v551 = vrot.slane %v537, %v550
  %v552 = vcombine.high %v544, %v544
  %v553 = vcombine.high %v551, %v551
  %v554 = vcombine.high %v533, %v533
  %v556 = vunpack.c.l.s4 1983009808
  %v557 = vunpack.c.0.s8 %v556
  %v558 = vlaneseq
  %v559 = vshrl.u32 %v558, 7
  %v560 = vsub.s32 %v557, %v559
  %v561 = vrot.slane %v533, %v560
  %v563 = vunpack.c.l.s4 1983009808
  %v564 = vunpack.c.0.s8 %v563
  %v565 = vlaneseq
  %v566 = vshrl.u32 %v565, 7
  %v567 = vsub.s32 %v564, %v566
  %v568 = vrot.slane %v554, %v567
  %v569 = vcombine.high %v561, %v561
  %v570 = vcombine.low %v532, %v532
  %v572 = vunpack.c.l.s4 1983009808
  %v573 = vunpack.c.0.s8 %v572
  %v574 = vlaneseq
  %v575 = vshrl.u32 %v574, 7
  %v576 = vsub.s32 %v573, %v575
  %v577 = vrot.slane %v570, %v576
  %v578 = vcombine.high %v577, %v577
  %v579 = vcombine.low %v533, %v533
  %v581 = vunpack.c.l.s4 1983009808
  %v582 = vunpack.c.0.s8 %v581
  %v583 = vlaneseq
  %v584 = vshrl.u32 %v583, 7
  %v585 = vsub.s32 %v582, %v584
  %v586 = vrot.slane %v579, %v585
  %v587 = vcombine.high %v586, %v586
  %v588 = vcombine.low %v544, %v544
  %v589 = vcombine.low %v551, %v551
  %v590 = vcombine.low %v561, %v561
  %v591 = vcombine.low %v568, %v568
  %592 = vrot.lane.b32.xlu0 %v588, 127
  %v593 = vpop.permute.xlu0 %592
  %594 = vrot.lane.b32.xlu0 %v544, 127
  %v595 = vpop.permute.xlu0 %594
  %596 = vrot.lane.b32.xlu0 %v589, 127
  %v597 = vpop.permute.xlu0 %596
  %598 = vrot.lane.b32.xlu0 %v551, 127
  %v599 = vpop.permute.xlu0 %598
  %600 = vrot.lane.b32.xlu0 %v590, 127
  %v601 = vpop.permute.xlu0 %600
  %602 = vrot.lane.b32.xlu0 %v561, 127
  %v603 = vpop.permute.xlu0 %602
  %604 = vrot.lane.b32.xlu0 %v591, 127
  %v605 = vpop.permute.xlu0 %604
  %606 = vrot.lane.b32.xlu0 %v568, 127
  %v607 = vpop.permute.xlu0 %606
  %v608 = vsel %vm94, %v593, %v595
  %v609 = vsel %vm94, %v595, %v597
  %v610 = vsel %vm94, %v597, %v599
  %v611 = vsel %vm94, %v599, %v601
  %v612 = vsel %vm94, %v601, %v603
  %v613 = vsel %vm94, %v603, %v605
  %v614 = vsel %vm94, %v605, %v607
  %v616 = vcombine.low %v586, %v586
  %v617 = vcombine.low %v534, %v534
  %v619 = vunpack.c.l.s4 1983009808
  %v620 = vunpack.c.0.s8 %v619
  %v621 = vlaneseq
  %v622 = vshrl.u32 %v621, 7
  %v623 = vsub.s32 %v620, %v622
  %v624 = vrot.slane %v617, %v623
  %v625 = vcombine.low %v624, %v624
  %626 = vrot.lane.b32.xlu0 %v577, 127
  %v627 = vpop.permute.xlu0 %626
  %628 = vrot.lane.b32.xlu0 %v616, 127
  %v629 = vpop.permute.xlu0 %628
  %630 = vrot.lane.b32.xlu0 %v586, 127
  %v631 = vpop.permute.xlu0 %630
  %632 = vrot.lane.b32.xlu0 %v625, 127
  %v633 = vpop.permute.xlu0 %632
  %v634 = vsel %vm94, %v627, %v593
  %v635 = vsel %vm94, %v595, %v629
  %v636 = vsel %vm94, %v629, %v631
  %v637 = vsel %vm94, %v631, %v601
  %v638 = vsel %vm94, %v603, %v633
  %v639 = vcombine.high %v568, %v568
  %640 = vrot.lane.b32.xlu0 %v544, 120
  %v641 = vpop.permute.xlu0 %640
  %642 = vrot.lane.b32.xlu0 %v552, 120
  %v643 = vpop.permute.xlu0 %642
  %644 = vrot.lane.b32.xlu0 %v551, 120
  %v645 = vpop.permute.xlu0 %644
  %646 = vrot.lane.b32.xlu0 %v553, 120
  %v647 = vpop.permute.xlu0 %646
  %648 = vrot.lane.b32.xlu0 %v561, 120
  %v649 = vpop.permute.xlu0 %648
  %650 = vrot.lane.b32.xlu0 %v569, 120
  %v651 = vpop.permute.xlu0 %650
  %652 = vrot.lane.b32.xlu0 %v568, 120
  %v653 = vpop.permute.xlu0 %652
  %654 = vrot.lane.b32.xlu0 %v639, 120
  %v655 = vpop.permute.xlu0 %654
  %v656 = vsel %vm143, %v641, %v643
  %v657 = vsel %vm143, %v643, %v645
  %v658 = vsel %vm143, %v645, %v647
  %v659 = vsel %vm143, %v647, %v649
  %v660 = vsel %vm143, %v649, %v651
  %v661 = vsel %vm143, %v651, %v653
  %v662 = vsel %vm143, %v653, %v655
  %663 = vrot.lane.b32.xlu0 %v578, 120
  %v664 = vpop.permute.xlu0 %663
  %665 = vrot.lane.b32.xlu0 %v586, 120
  %v666 = vpop.permute.xlu0 %665
  %667 = vrot.lane.b32.xlu0 %v587, 120
  %v668 = vpop.permute.xlu0 %667
  %669 = vrot.lane.b32.xlu0 %v624, 120
  %v670 = vpop.permute.xlu0 %669
  %v671 = vsel %vm143, %v664, %v641
  %v672 = vsel %vm143, %v643, %v666
  %v673 = vsel %vm143, %v666, %v668
  %v674 = vsel %vm143, %v668, %v649
  %v675 = vsel %vm143, %v651, %v670
  %676 = vrot.lane.b32.xlu0 %v588, 119
  %v677 = vpop.permute.xlu0 %676
  %678 = vrot.lane.b32.xlu0 %v544, 119
  %v679 = vpop.permute.xlu0 %678
  %680 = vrot.lane.b32.xlu0 %v589, 119
  %v681 = vpop.permute.xlu0 %680
  %682 = vrot.lane.b32.xlu0 %v551, 119
  %v683 = vpop.permute.xlu0 %682
  %684 = vrot.lane.b32.xlu0 %v590, 119
  %v685 = vpop.permute.xlu0 %684
  %686 = vrot.lane.b32.xlu0 %v561, 119
  %v687 = vpop.permute.xlu0 %686
  %688 = vrot.lane.b32.xlu0 %v591, 119
  %v689 = vpop.permute.xlu0 %688
  %690 = vrot.lane.b32.xlu0 %v568, 119
  %v691 = vpop.permute.xlu0 %690
  %v692 = vsel %vm180, %v677, %v679
  %v693 = vsel %vm180, %v679, %v681
  %v694 = vsel %vm180, %v681, %v683
  %v695 = vsel %vm180, %v683, %v685
  %v696 = vsel %vm180, %v685, %v687
  %v697 = vsel %vm180, %v687, %v689
  %v698 = vsel %vm180, %v689, %v691
  %699 = vrot.lane.b32.xlu0 %v577, 119
  %v700 = vpop.permute.xlu0 %699
  %701 = vrot.lane.b32.xlu0 %v616, 119
  %v702 = vpop.permute.xlu0 %701
  %703 = vrot.lane.b32.xlu0 %v586, 119
  %v704 = vpop.permute.xlu0 %703
  %705 = vrot.lane.b32.xlu0 %v625, 119
  %v706 = vpop.permute.xlu0 %705
  %v707 = vsel %vm180, %v700, %v677
  %v708 = vsel %vm180, %v679, %v702
  %v709 = vsel %vm180, %v702, %v704
  %v710 = vsel %vm180, %v704, %v685
  %v711 = vsel %vm180, %v687, %v706
  %v714 = vsel %vm201, %v544, %v578
  %v716 = vsel %vm201, %v552, %v544
  %v718 = vsel %vm201, %v551, %v552
  %v721 = vsel %vm201, %v553, %v586
  %v724 = vsel %vm201, %v561, %v587
  %v726 = vsel %vm201, %v569, %v561
  %v728 = vsel %vm201, %v568, %v569
  %v730 = vsel %vm219, %v714, %v608
  %v732 = vsel %vm219, %v716, %v609
  %v734 = vsel %vm219, %v718, %v610
  %v736 = vsel %vm219, %v721, %v611
  %v738 = vsel %vm219, %v724, %v612
  %v740 = vsel %vm219, %v726, %v613
  %v742 = vsel %vm219, %v728, %v614
  %v744 = vsel %vm234, %v730, %v634
  %v746 = vsel %vm234, %v732, %v608
  %v749 = vsel %vm234, %v734, %v635
  %v752 = vsel %vm234, %v736, %v636
  %v755 = vsel %vm234, %v738, %v637
  %v757 = vsel %vm234, %v740, %v612
  %v760 = vsel %vm234, %v742, %v638
  %v764 = vsel %vm201, %v656, %v671
  %v766 = vsel %vm201, %v657, %v656
  %v769 = vsel %vm201, %v658, %v672
  %v772 = vsel %vm201, %v659, %v673
  %v775 = vsel %vm201, %v660, %v674
  %v777 = vsel %vm201, %v661, %v660
  %v780 = vsel %vm201, %v662, %v675
  %v782 = vsel %vm219, %v764, %v692
  %v784 = vsel %vm219, %v766, %v693
  %v786 = vsel %vm219, %v769, %v694
  %v788 = vsel %vm219, %v772, %v695
  %v790 = vsel %vm219, %v775, %v696
  %v792 = vsel %vm219, %v777, %v697
  %v794 = vsel %vm219, %v780, %v698
  %v796 = vsel %vm234, %v782, %v707
  %v798 = vsel %vm234, %v784, %v692
  %v801 = vsel %vm234, %v786, %v708
  %v804 = vsel %vm234, %v788, %v709
  %v807 = vsel %vm234, %v790, %v710
  %v809 = vsel %vm234, %v792, %v696
  %v812 = vsel %vm234, %v794, %v711
  %v814 = vld [vmem:[%s1] sm:$0x1]
  %v815 = vld [vmem:[%s2] sm:$0x3]
  %817 = vset.pattern.permute.xlu0 0
  %818 = vperm.xlu0 %817, %v815
  %v819 = vpop.permute.xlu0 %818
  %v822 = vsel %vm313, %v814, 0
  %824 = vmatprep.subr.bf16.mxu0 %v746
  %825 = vmatpush1.bf16.msra.mxu0 %v744
  %826 = vmatprep.subr.bf16.mxu0 %v798
  %827 = vmatpush1.bf16.msra.mxu0 %v796
  %828 = vmatprep.subr.bf16.mxu0 0
  %829 = vmatpush1.bf16.msra.mxu0 0
  %830 = vmatprep.subr.bf16.mxu0 0
  %831 = vmatpush1.bf16.msra.mxu0 0
  %832 = vmatprep.subr.bf16.mxu0 0
  %833 = vmatpush1.bf16.msra.mxu0 0
  %834 = vmatprep.subr.bf16.mxu0 0
  %835 = vmatpush1.bf16.msra.mxu0 0
  %836 = vmatprep.subr.bf16.mxu0 0
  %837 = vmatpush1.bf16.msra.mxu0 0
  %838 = vmatprep.subr.bf16.mxu0 0
  %839 = vmatpush1.bf16.msra.mxu0 0
  %840 = vmatprep.subr.bf16.mxu0 0
  %841 = vmatpush1.bf16.msra.mxu0 0
  %842 = vmatprep.subr.bf16.mxu0 0
  %843 = vmatpush1.bf16.msra.mxu0 0
  %844 = vmatprep.subr.bf16.mxu0 0
  %845 = vmatpush1.bf16.msra.mxu0 0
  %846 = vmatprep.subr.bf16.mxu0 0
  %847 = vmatpush1.bf16.msra.mxu0 0
  %848 = vmatprep.subr.bf16.mxu0 0
  %849 = vmatpush1.bf16.msra.mxu0 0
  %850 = vmatprep.subr.bf16.mxu0 0
  %851 = vmatpush1.bf16.msra.mxu0 0
  %852 = vmatprep.subr.bf16.mxu0 0
  %853 = vmatpush1.bf16.msra.mxu0 0
  %854 = vmatprep.subr.bf16.mxu0 0
  %855 = vmatpush1.bf16.msra.mxu0 0
  %856 = vmatprep.mubr.bf16.mxu0 0
  %857 = vmatmul.mubr.bf16.gmra.mrb[0].mxu0 %v822
  %v858 = vpop.f32.mrb[0].mxu0
  %v859 = vadd.f32 %v819, %v858
  %v860 = vpop.f32.mrb[0].mxu0
  %v861 = vadd.f32 %v819, %v860
  %v862 = vpop.f32.mrb[0].mxu0
  %v863 = vpop.f32.mrb[0].mxu0
  %864 = vdwg.mxu0
  %865 = vmatprep.subr.bf16.mxu0 %v752
  %866 = vmatpush1.bf16.msra.mxu0 %v749
  %867 = vmatprep.subr.bf16.mxu0 %v804
  %868 = vmatpush1.bf16.msra.mxu0 %v801
  %869 = vmatprep.subr.bf16.mxu0 0
  %870 = vmatpush1.bf16.msra.mxu0 0
  %871 = vmatprep.subr.bf16.mxu0 0
  %872 = vmatpush1.bf16.msra.mxu0 0
  %873 = vmatprep.subr.bf16.mxu0 0
  %874 = vmatpush1.bf16.msra.mxu0 0
  %875 = vmatprep.subr.bf16.mxu0 0
  %876 = vmatpush1.bf16.msra.mxu0 0
  %877 = vmatprep.subr.bf16.mxu0 0
  %878 = vmatpush1.bf16.msra.mxu0 0
  %879 = vmatprep.subr.bf16.mxu0 0
  %880 = vmatpush1.bf16.msra.mxu0 0
  %881 = vmatprep.subr.bf16.mxu0 0
  %882 = vmatpush1.bf16.msra.mxu0 0
  %883 = vmatprep.subr.bf16.mxu0 0
  %884 = vmatpush1.bf16.msra.mxu0 0
  %885 = vmatprep.subr.bf16.mxu0 0
  %886 = vmatpush1.bf16.msra.mxu0 0
  %887 = vmatprep.subr.bf16.mxu0 0
  %888 = vmatpush1.bf16.msra.mxu0 0
  %889 = vmatprep.subr.bf16.mxu0 0
  %890 = vmatpush1.bf16.msra.mxu0 0
  %891 = vmatprep.subr.bf16.mxu0 0
  %892 = vmatpush1.bf16.msra.mxu0 0
  %893 = vmatprep.subr.bf16.mxu0 0
  %894 = vmatpush1.bf16.msra.mxu0 0
  %895 = vmatprep.subr.bf16.mxu0 0
  %896 = vmatpush1.bf16.msra.mxu0 0
  %897 = vmatprep.mubr.bf16.mxu0 0
  %898 = vmatmul.mubr.bf16.gmra.mrb[0].mxu0 %v822
  %v899 = vpop.f32.mrb[0].mxu0
  %v900 = vadd.f32 %v819, %v899
  %v901 = vpop.f32.mrb[0].mxu0
  %v902 = vadd.f32 %v819, %v901
  %v903 = vpop.f32.mrb[0].mxu0
  %v904 = vpop.f32.mrb[0].mxu0
  %905 = vdwg.mxu0
  %906 = vmatprep.subr.bf16.mxu0 %v757
  %907 = vmatpush1.bf16.msra.mxu0 %v755
  %908 = vmatprep.subr.bf16.mxu0 %v809
  %909 = vmatpush1.bf16.msra.mxu0 %v807
  %910 = vmatprep.subr.bf16.mxu0 0
  %911 = vmatpush1.bf16.msra.mxu0 0
  %912 = vmatprep.subr.bf16.mxu0 0
  %913 = vmatpush1.bf16.msra.mxu0 0
  %914 = vmatprep.subr.bf16.mxu0 0
  %915 = vmatpush1.bf16.msra.mxu0 0
  %916 = vmatprep.subr.bf16.mxu0 0
  %917 = vmatpush1.bf16.msra.mxu0 0
  %918 = vmatprep.subr.bf16.mxu0 0
  %919 = vmatpush1.bf16.msra.mxu0 0
  %920 = vmatprep.subr.bf16.mxu0 0
  %921 = vmatpush1.bf16.msra.mxu0 0
  %922 = vmatprep.subr.bf16.mxu0 0
  %923 = vmatpush1.bf16.msra.mxu0 0
  %924 = vmatprep.subr.bf16.mxu0 0
  %925 = vmatpush1.bf16.msra.mxu0 0
  %926 = vmatprep.subr.bf16.mxu0 0
  %927 = vmatpush1.bf16.msra.mxu0 0
  %928 = vmatprep.subr.bf16.mxu0 0
  %929 = vmatpush1.bf16.msra.mxu0 0
  %930 = vmatprep.subr.bf16.mxu0 0
  %931 = vmatpush1.bf16.msra.mxu0 0
  %932 = vmatprep.subr.bf16.mxu0 0
  %933 = vmatpush1.bf16.msra.mxu0 0
  %934 = vmatprep.subr.bf16.mxu0 0
  %935 = vmatpush1.bf16.msra.mxu0 0
  %936 = vmatprep.subr.bf16.mxu0 0
  %937 = vmatpush1.bf16.msra.mxu0 0
  %938 = vmatprep.mubr.bf16.mxu0 0
  %939 = vmatmul.mubr.bf16.gmra.mrb[0].mxu0 %v822
  %v940 = vpop.f32.mrb[0].mxu0
  %v941 = vadd.f32 %v819, %v940
  %v942 = vpop.f32.mrb[0].mxu0
  %v943 = vadd.f32 %v819, %v942
  %v944 = vpop.f32.mrb[0].mxu0
  %v945 = vpop.f32.mrb[0].mxu0
  %946 = vdwg.mxu0
  %947 = vmatprep.subr.bf16.mxu0 0
  %948 = vmatpush1.bf16.msra.mxu0 %v760
  %949 = vmatprep.subr.bf16.mxu0 0
  %950 = vmatpush1.bf16.msra.mxu0 %v812
  %951 = vmatprep.subr.bf16.mxu0 0
  %952 = vmatpush1.bf16.msra.mxu0 0
  %953 = vmatprep.subr.bf16.mxu0 0
  %954 = vmatpush1.bf16.msra.mxu0 0
  %955 = vmatprep.subr.bf16.mxu0 0
  %956 = vmatpush1.bf16.msra.mxu0 0
  %957 = vmatprep.subr.bf16.mxu0 0
  %958 = vmatpush1.bf16.msra.mxu0 0
  %959 = vmatprep.subr.bf16.mxu0 0
  %960 = vmatpush1.bf16.msra.mxu0 0
  %961 = vmatprep.subr.bf16.mxu0 0
  %962 = vmatpush1.bf16.msra.mxu0 0
  %963 = vmatprep.subr.bf16.mxu0 0
  %964 = vmatpush1.bf16.msra.mxu0 0
  %965 = vmatprep.subr.bf16.mxu0 0
  %966 = vmatpush1.bf16.msra.mxu0 0
  %967 = vmatprep.subr.bf16.mxu0 0
  %968 = vmatpush1.bf16.msra.mxu0 0
  %969 = vmatprep.subr.bf16.mxu0 0
  %970 = vmatpush1.bf16.msra.mxu0 0
  %971 = vmatprep.subr.bf16.mxu0 0
  %972 = vmatpush1.bf16.msra.mxu0 0
  %973 = vmatprep.subr.bf16.mxu0 0
  %974 = vmatpush1.bf16.msra.mxu0 0
  %975 = vmatprep.subr.bf16.mxu0 0
  %976 = vmatpush1.bf16.msra.mxu0 0
  %977 = vmatprep.subr.bf16.mxu0 0
  %978 = vmatpush1.bf16.msra.mxu0 0
  %979 = vmatprep.mubr.bf16.mxu0 0
  %980 = vmatmul.mubr.bf16.gmra.mrb[0].mxu0 %v822
  %v981 = vpop.f32.mrb[0].mxu0
  %v982 = vadd.f32 %v819, %v981
  %v983 = vpop.f32.mrb[0].mxu0
  %v984 = vpop.f32.mrb[0].mxu0
  %v985 = vpop.f32.mrb[0].mxu0
  %986 = vdwg.mxu0
  %v987 = vpack.c.bf16 %v859, %v859
  %v988 = vpack.c.bf16 %v861, %v861
  %v989 = vpack.c.bf16 %v900, %v900
  %v990 = vpack.c.bf16 %v902, %v902
  %v991 = vpack.c.bf16 %v941, %v941
  %v992 = vpack.c.bf16 %v943, %v943
  %v993 = vpack.c.bf16 %v982, %v982
  %v1001 = vcombine.low %v987, %v988
  %v1002 = vcombine.low %v989, %v990
  %v1004 = vunpack.c.l.s4 1983009808
  %v1005 = vunpack.c.0.s8 %v1004
  %v1006 = vlaneseq
  %v1007 = vshrl.u32 %v1006, 7
  %v1008 = vsub.s32 %v1005, %v1007
  %v1009 = vrot.slane %v1001, %v1008
  %v1011 = vunpack.c.l.s4 1983009808
  %v1012 = vunpack.c.0.s8 %v1011
  %v1013 = vlaneseq
  %v1014 = vshrl.u32 %v1013, 7
  %v1015 = vsub.s32 %v1012, %v1014
  %v1016 = vrot.slane %v1002, %v1015
  %v1017 = vcombine.low %v1009, %v1016
  %v1018 = vcombine.low %v991, %v992
  %v1020 = vunpack.c.l.s4 1983009808
  %v1021 = vunpack.c.0.s8 %v1020
  %v1022 = vlaneseq
  %v1023 = vshrl.u32 %v1022, 7
  %v1024 = vsub.s32 %v1021, %v1023
  %v1025 = vrot.slane %v1018, %v1024
  %v1027 = vunpack.c.l.s4 1983009808
  %v1028 = vunpack.c.0.s8 %v1027
  %v1029 = vlaneseq
  %v1030 = vshrl.u32 %v1029, 7
  %v1031 = vsub.s32 %v1028, %v1030
  %v1032 = vrot.slane %v993, %v1031
  %v1033 = vcombine.low %v1025, %v1032
  %v1034 = vrot.slane %v1017, 7
  %v1035 = vrot.slane %v1033, 7
  %1038 = vst [vmem:[%s4] sm:$0xaa] %v1034
  %1039 = vst [vmem:[%s4 + $0x8] sm:$0x2a] %v1035
  // Predicated region
  $region18: #{expanding_block_forward.7} parent=0 // pred_check
    _
  $region19: #{expanding_block_forward.7} parent=0 // pred_check_branch
    %1041 = sbr.rel (0) target = $region21
  $region20: #{expanding_block_forward.7} parent=0 // pred_region
    _
  $region21: #{expanding_block_forward.7} parent=0 // pred_fallthru
    _
  // Predicated region
  $region22: #{expanding_block_forward.7} parent=0 // pred_check
    _
  $region23: #{expanding_block_forward.7} parent=0 // pred_check_branch
    %1043 = sbr.rel (0) target = $region25
  $region24: #{expanding_block_forward.7} parent=0 // pred_region
    _
  $region25: #{expanding_block_forward.7} parent=0 // pred_fallthru
    _

// kernel: expanding_block_forward.8
$region0: #{expanding_block_forward.8}
  #allocation0 [shape = 'u32[]', space=smem, size = 0x4, offset = 0x4, fixed_abs, tag = 'smem constant byte address 0x4 - core index']
  #allocation1 [shape = 'u32[144,128]{1,0:T(1,128)}', space=vmem, size = 0x12000, scoped, tag = 'internal scratch']
  %s0 = inlined_call_operand.vmem [shape: bf16[2,4,1280], index: 0, kind: input, shape index: {}]
  %s1 = inlined_call_operand.vmem [shape: bf16[2,108], index: 1, kind: input, shape index: {}]
  %s2 = inlined_call_operand.vmem [shape: f32[2,1], index: 2, kind: input, shape index: {}]
  %s3 = inlined_call_operand.vmem [shape: f32[1,896], index: 3, kind: input, shape index: {}]
  %s4 = inlined_call_operand.vmem [shape: bf16[4,896], index: 4, kind: output, shape index: {}]
  %s5 = sld [smem:[#allocation0]]
  $region26: #{expanding_block_forward.8} parent=0
    _
  %s7 = ssub.s32 1, %s5
  %s8 = scalar_select 0, %s7, %s5
  // Predicated region
  $region2: #{expanding_block_forward.8} parent=0 // pred_check
    _
  $region3: #{expanding_block_forward.8} parent=0 // pred_check_branch
    %10 = sbr.rel (0) target = $region5
  $region4: #{expanding_block_forward.8} parent=0 // pred_region
    _
  $region5: #{expanding_block_forward.8} parent=0 // pred_fallthru
    _
  // Predicated region
  $region6: #{expanding_block_forward.8} parent=0 // pred_check
    _
  $region7: #{expanding_block_forward.8} parent=0 // pred_check_branch
    %12 = sbr.rel (0) target = $region9
  $region8: #{expanding_block_forward.8} parent=0 // pred_region
    _
  $region9: #{expanding_block_forward.8} parent=0 // pred_fallthru
    _
  // Predicated region
  $region10: #{expanding_block_forward.8} parent=0 // pred_check
    _
  $region11: #{expanding_block_forward.8} parent=0 // pred_check_branch
    %14 = sbr.rel (0) target = $region13
  $region12: #{expanding_block_forward.8} parent=0 // pred_region
    _
  $region13: #{expanding_block_forward.8} parent=0 // pred_fallthru
    _
  // Predicated region
  $region14: #{expanding_block_forward.8} parent=0 // pred_check
    _
  $region15: #{expanding_block_forward.8} parent=0 // pred_check_branch
    %16 = sbr.rel (0) target = $region17
  $region16: #{expanding_block_forward.8} parent=0 // pred_region
    _
  $region17: #{expanding_block_forward.8} parent=0 // pred_fallthru
    _
  %v18 = vld [vmem:[%s0] sm:$0xff]
  %v19 = vld [vmem:[%s0 + $0x8] sm:$0xff]
  %v20 = vld [vmem:[%s0 + $0x10] sm:$0x3]
  %v21 = vld [vmem:[%s0 + $0x10] sm:$0xf]
  %v24 = vcombine.high %v18, %v18
  %v26 = vunpack.c.l.s4 1983009808
  %v27 = vunpack.c.0.s8 %v26
  %v28 = vlaneseq
  %v29 = vshrl.u32 %v28, 7
  %v30 = vsub.s32 %v27, %v29
  %v31 = vrot.slane %v18, %v30
  %v33 = vunpack.c.l.s4 1983009808
  %v34 = vunpack.c.0.s8 %v33
  %v35 = vlaneseq
  %v36 = vshrl.u32 %v35, 7
  %v37 = vsub.s32 %v34, %v36
  %v38 = vrot.slane %v24, %v37
  %v39 = vcombine.high %v31, %v31
  %v40 = vcombine.high %v38, %v38
  %v41 = vcombine.high %v19, %v19
  %v43 = vunpack.c.l.s4 1983009808
  %v44 = vunpack.c.0.s8 %v43
  %v45 = vlaneseq
  %v46 = vshrl.u32 %v45, 7
  %v47 = vsub.s32 %v44, %v46
  %v48 = vrot.slane %v19, %v47
  %v50 = vunpack.c.l.s4 1983009808
  %v51 = vunpack.c.0.s8 %v50
  %v52 = vlaneseq
  %v53 = vshrl.u32 %v52, 7
  %v54 = vsub.s32 %v51, %v53
  %v55 = vrot.slane %v41, %v54
  %v56 = vcombine.high %v48, %v48
  %v57 = vcombine.low %v18, %v18
  %v59 = vunpack.c.l.s4 1983009808
  %v60 = vunpack.c.0.s8 %v59
  %v61 = vlaneseq
  %v62 = vshrl.u32 %v61, 7
  %v63 = vsub.s32 %v60, %v62
  %v64 = vrot.slane %v57, %v63
  %v65 = vcombine.high %v64, %v64
  %v66 = vcombine.low %v19, %v19
  %v68 = vunpack.c.l.s4 1983009808
  %v69 = vunpack.c.0.s8 %v68
  %v70 = vlaneseq
  %v71 = vshrl.u32 %v70, 7
  %v72 = vsub.s32 %v69, %v71
  %v73 = vrot.slane %v66, %v72
  %v74 = vcombine.high %v73, %v73
  %v76 = vcombine.low %v38, %v38
  %v77 = vcombine.low %v48, %v48
  %v78 = vcombine.low %v55, %v55
  %v80 = vunpack.c.l.s4 1983009808
  %v81 = vunpack.c.0.s8 %v80
  %v82 = vlaneseq
  %v83 = vshrl.u32 %v82, 7
  %v84 = vsub.s32 %v81, %v83
  %v85 = vrot.slane %v20, %v84
  %v86 = vcombine.low %v85, %v85
  %v87 = vcombine.low %v64, %v64
  %v88 = vcombine.low %v31, %v31
  %v89 = vcombine.low %v73, %v73
  %90 = vrot.lane.b32.xlu0 %v87, 127
  %v91 = vpop.permute.xlu0 %90
  %92 = vrot.lane.b32.xlu0 %v64, 127
  %v93 = vpop.permute.xlu0 %92
  %94 = vrot.lane.b32.xlu0 %v88, 127
  %v95 = vpop.permute.xlu0 %94
  %96 = vrot.lane.b32.xlu0 %v31, 127
  %v97 = vpop.permute.xlu0 %96
  %98 = vrot.lane.b32.xlu0 %v89, 127
  %v99 = vpop.permute.xlu0 %98
  %100 = vrot.lane.b32.xlu0 %v73, 127
  %v101 = vpop.permute.xlu0 %100
  %102 = vrot.lane.b32.xlu0 %v77, 127
  %v103 = vpop.permute.xlu0 %102
  %104 = vrot.lane.b32.xlu0 %v48, 127
  %v105 = vpop.permute.xlu0 %104
  %vm106 = vcmask 1039360
  %v107 = vsel %vm106, %v91, %v93
  %v108 = vsel %vm106, %v93, %v95
  %v109 = vsel %vm106, %v95, %v97
  %v110 = vsel %vm106, %v97, %v99
  %v111 = vsel %vm106, %v99, %v101
  %v112 = vsel %vm106, %v101, %v103
  %v113 = vsel %vm106, %v103, %v105
  %v115 = vcombine.high %v55, %v55
  %v117 = vunpack.c.l.s4 1983009808
  %v118 = vunpack.c.0.s8 %v117
  %v119 = vlaneseq
  %v120 = vshrl.u32 %v119, 7
  %v121 = vsub.s32 %v118, %v120
  %v122 = vrot.slane %v21, %v121
  %123 = vrot.lane.b32.xlu0 %v39, 127
  %v124 = vpop.permute.xlu0 %123
  %125 = vrot.lane.b32.xlu0 %v38, 127
  %v126 = vpop.permute.xlu0 %125
  %127 = vrot.lane.b32.xlu0 %v40, 127
  %v128 = vpop.permute.xlu0 %127
  %129 = vrot.lane.b32.xlu0 %v56, 127
  %v130 = vpop.permute.xlu0 %129
  %131 = vrot.lane.b32.xlu0 %v55, 127
  %v132 = vpop.permute.xlu0 %131
  %133 = vrot.lane.b32.xlu0 %v115, 127
  %v134 = vpop.permute.xlu0 %133
  %135 = vrot.lane.b32.xlu0 %v122, 127
  %v136 = vpop.permute.xlu0 %135
  %v137 = vsel %vm106, %v124, %v126
  %v138 = vsel %vm106, %v126, %v128
  %v139 = vsel %vm106, %v128, %v105
  %v140 = vsel %vm106, %v105, %v130
  %v141 = vsel %vm106, %v130, %v132
  %v142 = vsel %vm106, %v132, %v134
  %v143 = vsel %vm106, %v134, %v136
  %v144 = vcombine.low %v21, %v21
  %v146 = vunpack.c.l.s4 1983009808
  %v147 = vunpack.c.0.s8 %v146
  %v148 = vlaneseq
  %v149 = vshrl.u32 %v148, 7
  %v150 = vsub.s32 %v147, %v149
  %v151 = vrot.slane %v144, %v150
  %v152 = vcombine.high %v151, %v151
  %153 = vrot.lane.b32.xlu0 %v74, 127
  %v154 = vpop.permute.xlu0 %153
  %155 = vrot.lane.b32.xlu0 %v151, 127
  %v156 = vpop.permute.xlu0 %155
  %157 = vrot.lane.b32.xlu0 %v152, 127
  %v158 = vpop.permute.xlu0 %157
  %v159 = vsel %vm106, %v97, %v124
  %v160 = vsel %vm106, %v124, %v101
  %v161 = vsel %vm106, %v101, %v154
  %v162 = vsel %vm106, %v154, %v105
  %v163 = vsel %vm106, %v130, %v156
  %v164 = vsel %vm106, %v156, %v158
  %165 = vrot.lane.b32.xlu0 %v88, 126
  %v166 = vpop.permute.xlu0 %165
  %167 = vrot.lane.b32.xlu0 %v31, 126
  %v168 = vpop.permute.xlu0 %167
  %169 = vrot.lane.b32.xlu0 %v76, 126
  %v170 = vpop.permute.xlu0 %169
  %171 = vrot.lane.b32.xlu0 %v38, 126
  %v172 = vpop.permute.xlu0 %171
  %173 = vrot.lane.b32.xlu0 %v77, 126
  %v174 = vpop.permute.xlu0 %173
  %175 = vrot.lane.b32.xlu0 %v48, 126
  %v176 = vpop.permute.xlu0 %175
  %177 = vrot.lane.b32.xlu0 %v78, 126
  %v178 = vpop.permute.xlu0 %177
  %179 = vrot.lane.b32.xlu0 %v55, 126
  %v180 = vpop.permute.xlu0 %179
  %vm181 = vcmask 1031168
  %v182 = vsel %vm181, %v166, %v168
  %v183 = vsel %vm181, %v168, %v170
  %v184 = vsel %vm181, %v170, %v172
  %v185 = vsel %vm181, %v172, %v174
  %v186 = vsel %vm181, %v174, %v176
  %v187 = vsel %vm181, %v176, %v178
  %v188 = vsel %vm181, %v178, %v180
  %v189 = vcombine.low %v151, %v151
  %190 = vrot.lane.b32.xlu0 %v64, 126
  %v191 = vpop.permute.xlu0 %190
  %192 = vrot.lane.b32.xlu0 %v89, 126
  %v193 = vpop.permute.xlu0 %192
  %194 = vrot.lane.b32.xlu0 %v73, 126
  %v195 = vpop.permute.xlu0 %194
  %196 = vrot.lane.b32.xlu0 %v189, 126
  %v197 = vpop.permute.xlu0 %196
  %v198 = vsel %vm181, %v191, %v166
  %v199 = vsel %vm181, %v168, %v193
  %v200 = vsel %vm181, %v193, %v195
  %v201 = vsel %vm181, %v195, %v174
  %v202 = vsel %vm181, %v176, %v197
  %v203 = vcombine.high %v122, %v122
  %204 = vrot.lane.b32.xlu0 %v40, 126
  %v205 = vpop.permute.xlu0 %204
  %206 = vrot.lane.b32.xlu0 %v56, 126
  %v207 = vpop.permute.xlu0 %206
  %208 = vrot.lane.b32.xlu0 %v115, 126
  %v209 = vpop.permute.xlu0 %208
  %210 = vrot.lane.b32.xlu0 %v122, 126
  %v211 = vpop.permute.xlu0 %210
  %212 = vrot.lane.b32.xlu0 %v203, 126
  %v213 = vpop.permute.xlu0 %212
  %v214 = vsel %vm181, %v172, %v205
  %v215 = vsel %vm181, %v205, %v176
  %v216 = vsel %vm181, %v176, %v207
  %v217 = vsel %vm181, %v207, %v180
  %v218 = vsel %vm181, %v180, %v209
  %v219 = vsel %vm181, %v209, %v211
  %v220 = vsel %vm181, %v211, %v213
  %221 = vrot.lane.b32.xlu0 %v64, 119
  %v222 = vpop.permute.xlu0 %221
  %223 = vrot.lane.b32.xlu0 %v65, 119
  %v224 = vpop.permute.xlu0 %223
  %225 = vrot.lane.b32.xlu0 %v31, 119
  %v226 = vpop.permute.xlu0 %225
  %227 = vrot.lane.b32.xlu0 %v39, 119
  %v228 = vpop.permute.xlu0 %227
  %229 = vrot.lane.b32.xlu0 %v73, 119
  %v230 = vpop.permute.xlu0 %229
  %231 = vrot.lane.b32.xlu0 %v74, 119
  %v232 = vpop.permute.xlu0 %231
  %233 = vrot.lane.b32.xlu0 %v48, 119
  %v234 = vpop.permute.xlu0 %233
  %235 = vrot.lane.b32.xlu0 %v56, 119
  %v236 = vpop.permute.xlu0 %235
  %vm237 = vcmask 973824
  %v238 = vsel %vm237, %v222, %v224
  %v239 = vsel %vm237, %v224, %v226
  %v240 = vsel %vm237, %v226, %v228
  %v241 = vsel %vm237, %v228, %v230
  %v242 = vsel %vm237, %v230, %v232
  %v243 = vsel %vm237, %v232, %v234
  %v244 = vsel %vm237, %v234, %v236
  %v245 = vcombine.low %v122, %v122
  %246 = vrot.lane.b32.xlu0 %v76, 119
  %v247 = vpop.permute.xlu0 %246
  %248 = vrot.lane.b32.xlu0 %v38, 119
  %v249 = vpop.permute.xlu0 %248
  %250 = vrot.lane.b32.xlu0 %v77, 119
  %v251 = vpop.permute.xlu0 %250
  %252 = vrot.lane.b32.xlu0 %v78, 119
  %v253 = vpop.permute.xlu0 %252
  %254 = vrot.lane.b32.xlu0 %v55, 119
  %v255 = vpop.permute.xlu0 %254
  %256 = vrot.lane.b32.xlu0 %v245, 119
  %v257 = vpop.permute.xlu0 %256
  %v258 = vsel %vm237, %v226, %v247
  %v259 = vsel %vm237, %v247, %v249
  %v260 = vsel %vm237, %v249, %v251
  %v261 = vsel %vm237, %v251, %v234
  %v262 = vsel %vm237, %v234, %v253
  %v263 = vsel %vm237, %v253, %v255
  %v264 = vsel %vm237, %v255, %v257
  %265 = vrot.lane.b32.xlu0 %v88, 119
  %v266 = vpop.permute.xlu0 %265
  %267 = vrot.lane.b32.xlu0 %v89, 119
  %v268 = vpop.permute.xlu0 %267
  %269 = vrot.lane.b32.xlu0 %v189, 119
  %v270 = vpop.permute.xlu0 %269
  %271 = vrot.lane.b32.xlu0 %v151, 119
  %v272 = vpop.permute.xlu0 %271
  %v273 = vsel %vm237, %v266, %v226
  %v274 = vsel %vm237, %v226, %v268
  %v275 = vsel %vm237, %v268, %v230
  %v276 = vsel %vm237, %v230, %v251
  %v277 = vsel %vm237, %v234, %v270
  %v278 = vsel %vm237, %v270, %v272
  %279 = vrot.lane.b32.xlu0 %v31, 118
  %v280 = vpop.permute.xlu0 %279
  %281 = vrot.lane.b32.xlu0 %v39, 118
  %v282 = vpop.permute.xlu0 %281
  %283 = vrot.lane.b32.xlu0 %v38, 118
  %v284 = vpop.permute.xlu0 %283
  %285 = vrot.lane.b32.xlu0 %v40, 118
  %v286 = vpop.permute.xlu0 %285
  %287 = vrot.lane.b32.xlu0 %v48, 118
  %v288 = vpop.permute.xlu0 %287
  %289 = vrot.lane.b32.xlu0 %v56, 118
  %v290 = vpop.permute.xlu0 %289
  %291 = vrot.lane.b32.xlu0 %v55, 118
  %v292 = vpop.permute.xlu0 %291
  %293 = vrot.lane.b32.xlu0 %v115, 118
  %v294 = vpop.permute.xlu0 %293
  %vm295 = vcmask 965632
  %v296 = vsel %vm295, %v280, %v282
  %v297 = vsel %vm295, %v282, %v284
  %v298 = vsel %vm295, %v284, %v286
  %v299 = vsel %vm295, %v286, %v288
  %v300 = vsel %vm295, %v288, %v290
  %v301 = vsel %vm295, %v290, %v292
  %v302 = vsel %vm295, %v292, %v294
  %303 = vrot.lane.b32.xlu0 %v65, 118
  %v304 = vpop.permute.xlu0 %303
  %305 = vrot.lane.b32.xlu0 %v73, 118
  %v306 = vpop.permute.xlu0 %305
  %307 = vrot.lane.b32.xlu0 %v74, 118
  %v308 = vpop.permute.xlu0 %307
  %309 = vrot.lane.b32.xlu0 %v151, 118
  %v310 = vpop.permute.xlu0 %309
  %v311 = vsel %vm295, %v304, %v280
  %v312 = vsel %vm295, %v282, %v306
  %v313 = vsel %vm295, %v306, %v308
  %v314 = vsel %vm295, %v308, %v288
  %v315 = vsel %vm295, %v290, %v310
  %316 = vrot.lane.b32.xlu0 %v76, 118
  %v317 = vpop.permute.xlu0 %316
  %318 = vrot.lane.b32.xlu0 %v77, 118
  %v319 = vpop.permute.xlu0 %318
  %320 = vrot.lane.b32.xlu0 %v78, 118
  %v321 = vpop.permute.xlu0 %320
  %322 = vrot.lane.b32.xlu0 %v245, 118
  %v323 = vpop.permute.xlu0 %322
  %324 = vrot.lane.b32.xlu0 %v122, 118
  %v325 = vpop.permute.xlu0 %324
  %v326 = vsel %vm295, %v317, %v284
  %v327 = vsel %vm295, %v284, %v319
  %v328 = vsel %vm295, %v319, %v288
  %v329 = vsel %vm295, %v288, %v321
  %v330 = vsel %vm295, %v321, %v292
  %v331 = vsel %vm295, %v292, %v323
  %v332 = vsel %vm295, %v323, %v325
  %333 = vrot.lane.b32.xlu0 %v87, 117
  %v334 = vpop.permute.xlu0 %333
  %335 = vrot.lane.b32.xlu0 %v64, 117
  %v336 = vpop.permute.xlu0 %335
  %337 = vrot.lane.b32.xlu0 %v88, 117
  %v338 = vpop.permute.xlu0 %337
  %339 = vrot.lane.b32.xlu0 %v31, 117
  %v340 = vpop.permute.xlu0 %339
  %341 = vrot.lane.b32.xlu0 %v89, 117
  %v342 = vpop.permute.xlu0 %341
  %343 = vrot.lane.b32.xlu0 %v73, 117
  %v344 = vpop.permute.xlu0 %343
  %345 = vrot.lane.b32.xlu0 %v77, 117
  %v346 = vpop.permute.xlu0 %345
  %347 = vrot.lane.b32.xlu0 %v48, 117
  %v348 = vpop.permute.xlu0 %347
  %vm349 = vcmask 957440
  %v350 = vsel %vm349, %v334, %v336
  %v351 = vsel %vm349, %v336, %v338
  %v352 = vsel %vm349, %v338, %v340
  %v353 = vsel %vm349, %v340, %v342
  %v354 = vsel %vm349, %v342, %v344
  %v355 = vsel %vm349, %v344, %v346
  %v356 = vsel %vm349, %v346, %v348
  %vm357 = vcmask 1041408
  %v360 = vsel %vm357, %v31, %v65
  %v362 = vsel %vm357, %v39, %v31
  %v364 = vsel %vm357, %v38, %v39
  %v367 = vsel %vm357, %v40, %v73
  %v370 = vsel %vm357, %v48, %v74
  %v372 = vsel %vm357, %v56, %v48
  %v374 = vsel %vm357, %v55, %v56
  %vm375 = vcmask 1043456
  %v377 = vsel %vm375, %v360, %v76
  %v378 = vsel %vm375, %v362, %v38
  %v380 = vsel %vm375, %v364, %v77
  %v381 = vsel %vm375, %v367, %v48
  %v383 = vsel %vm375, %v370, %v78
  %v384 = vsel %vm375, %v372, %v55
  %v386 = vsel %vm375, %v374, %v86
  %vm387 = vcmask 1045504
  %v389 = vsel %vm387, %v377, %v107
  %v392 = vsel %vm387, %v378, %v108
  %v395 = vsel %vm387, %v380, %v109
  %v398 = vsel %vm387, %v381, %v110
  %v401 = vsel %vm387, %v383, %v111
  %v404 = vsel %vm387, %v384, %v112
  %v407 = vsel %vm387, %v386, %v113
  %v411 = vsel %vm357, %v137, %v159
  %v414 = vsel %vm357, %v138, %v160
  %v417 = vsel %vm357, %v139, %v161
  %v420 = vsel %vm357, %v140, %v162
  %v422 = vsel %vm357, %v141, %v140
  %v425 = vsel %vm357, %v142, %v163
  %v428 = vsel %vm357, %v143, %v164
  %v430 = vsel %vm375, %v411, %v182
  %v432 = vsel %vm375, %v414, %v183
  %v434 = vsel %vm375, %v417, %v184
  %v436 = vsel %vm375, %v420, %v185
  %v438 = vsel %vm375, %v422, %v186
  %v440 = vsel %vm375, %v425, %v187
  %v442 = vsel %vm375, %v428, %v188
  %v444 = vsel %vm387, %v430, %v198
  %v446 = vsel %vm387, %v432, %v182
  %v449 = vsel %vm387, %v434, %v199
  %v452 = vsel %vm387, %v436, %v200
  %v455 = vsel %vm387, %v438, %v201
  %v457 = vsel %vm387, %v440, %v186
  %v460 = vsel %vm387, %v442, %v202
  %v464 = vsel %vm357, %v214, %v238
  %v467 = vsel %vm357, %v215, %v239
  %v470 = vsel %vm357, %v216, %v240
  %v473 = vsel %vm357, %v217, %v241
  %v476 = vsel %vm357, %v218, %v242
  %v479 = vsel %vm357, %v219, %v243
  %v482 = vsel %vm357, %v220, %v244
  %v484 = vsel %vm375, %v464, %v258
  %v486 = vsel %vm375, %v467, %v259
  %v488 = vsel %vm375, %v470, %v260
  %v490 = vsel %vm375, %v473, %v261
  %v492 = vsel %vm375, %v476, %v262
  %v494 = vsel %vm375, %v479, %v263
  %v496 = vsel %vm375, %v482, %v264
  %v498 = vsel %vm387, %v484, %v273
  %v501 = vsel %vm387, %v486, %v274
  %v504 = vsel %vm387, %v488, %v275
  %v507 = vsel %vm387, %v490, %v276
  %v509 = vsel %vm387, %v492, %v261
  %v512 = vsel %vm387, %v494, %v277
  %v515 = vsel %vm387, %v496, %v278
  %v519 = vsel %vm357, %v296, %v311
  %v521 = vsel %vm357, %v297, %v296
  %v524 = vsel %vm357, %v298, %v312
  %v527 = vsel %vm357, %v299, %v313
  %v530 = vsel %vm357, %v300, %v314
  %v532 = vsel %vm357, %v301, %v300
  %v535 = vsel %vm357, %v302, %v315
  %v537 = vsel %vm375, %v519, %v326
  %v539 = vsel %vm375, %v521, %v327
  %v541 = vsel %vm375, %v524, %v328
  %v543 = vsel %vm375, %v527, %v329
  %v545 = vsel %vm375, %v530, %v330
  %v547 = vsel %vm375, %v532, %v331
  %v549 = vsel %vm375, %v535, %v332
  %v551 = vsel %vm387, %v537, %v350
  %v554 = vsel %vm387, %v539, %v351
  %v557 = vsel %vm387, %v541, %v352
  %v560 = vsel %vm387, %v543, %v353
  %v563 = vsel %vm387, %v545, %v354
  %v566 = vsel %vm387, %v547, %v355
  %v569 = vsel %vm387, %v549, %v356
  %571 = vrot.lane.b32.xlu0 %v39, 117
  %v572 = vpop.permute.xlu0 %571
  %573 = vrot.lane.b32.xlu0 %v38, 117
  %v574 = vpop.permute.xlu0 %573
  %575 = vrot.lane.b32.xlu0 %v40, 117
  %v576 = vpop.permute.xlu0 %575
  %577 = vrot.lane.b32.xlu0 %v56, 117
  %v578 = vpop.permute.xlu0 %577
  %579 = vrot.lane.b32.xlu0 %v55, 117
  %v580 = vpop.permute.xlu0 %579
  %581 = vrot.lane.b32.xlu0 %v115, 117
  %v582 = vpop.permute.xlu0 %581
  %583 = vrot.lane.b32.xlu0 %v122, 117
  %v584 = vpop.permute.xlu0 %583
  %v585 = vsel %vm349, %v572, %v574
  %v586 = vsel %vm349, %v574, %v576
  %v587 = vsel %vm349, %v576, %v348
  %v588 = vsel %vm349, %v348, %v578
  %v589 = vsel %vm349, %v578, %v580
  %v590 = vsel %vm349, %v580, %v582
  %v591 = vsel %vm349, %v582, %v584
  %592 = vrot.lane.b32.xlu0 %v74, 117
  %v593 = vpop.permute.xlu0 %592
  %594 = vrot.lane.b32.xlu0 %v151, 117
  %v595 = vpop.permute.xlu0 %594
  %596 = vrot.lane.b32.xlu0 %v152, 117
  %v597 = vpop.permute.xlu0 %596
  %v598 = vsel %vm349, %v340, %v572
  %v599 = vsel %vm349, %v572, %v344
  %v600 = vsel %vm349, %v344, %v593
  %v601 = vsel %vm349, %v593, %v348
  %v602 = vsel %vm349, %v578, %v595
  %v603 = vsel %vm349, %v595, %v597
  %604 = vrot.lane.b32.xlu0 %v88, 110
  %v605 = vpop.permute.xlu0 %604
  %606 = vrot.lane.b32.xlu0 %v31, 110
  %v607 = vpop.permute.xlu0 %606
  %608 = vrot.lane.b32.xlu0 %v76, 110
  %v609 = vpop.permute.xlu0 %608
  %610 = vrot.lane.b32.xlu0 %v38, 110
  %v611 = vpop.permute.xlu0 %610
  %612 = vrot.lane.b32.xlu0 %v77, 110
  %v613 = vpop.permute.xlu0 %612
  %614 = vrot.lane.b32.xlu0 %v48, 110
  %v615 = vpop.permute.xlu0 %614
  %616 = vrot.lane.b32.xlu0 %v78, 110
  %v617 = vpop.permute.xlu0 %616
  %618 = vrot.lane.b32.xlu0 %v55, 110
  %v619 = vpop.permute.xlu0 %618
  %vm620 = vcmask 900096
  %v621 = vsel %vm620, %v605, %v607
  %v622 = vsel %vm620, %v607, %v609
  %v623 = vsel %vm620, %v609, %v611
  %v624 = vsel %vm620, %v611, %v613
  %v625 = vsel %vm620, %v613, %v615
  %v626 = vsel %vm620, %v615, %v617
  %v627 = vsel %vm620, %v617, %v619
  %628 = vrot.lane.b32.xlu0 %v64, 110
  %v629 = vpop.permute.xlu0 %628
  %630 = vrot.lane.b32.xlu0 %v89, 110
  %v631 = vpop.permute.xlu0 %630
  %632 = vrot.lane.b32.xlu0 %v73, 110
  %v633 = vpop.permute.xlu0 %632
  %634 = vrot.lane.b32.xlu0 %v189, 110
  %v635 = vpop.permute.xlu0 %634
  %v636 = vsel %vm620, %v629, %v605
  %v637 = vsel %vm620, %v607, %v631
  %v638 = vsel %vm620, %v631, %v633
  %v639 = vsel %vm620, %v633, %v613
  %v640 = vsel %vm620, %v615, %v635
  %641 = vrot.lane.b32.xlu0 %v40, 110
  %v642 = vpop.permute.xlu0 %641
  %643 = vrot.lane.b32.xlu0 %v56, 110
  %v644 = vpop.permute.xlu0 %643
  %645 = vrot.lane.b32.xlu0 %v115, 110
  %v646 = vpop.permute.xlu0 %645
  %647 = vrot.lane.b32.xlu0 %v122, 110
  %v648 = vpop.permute.xlu0 %647
  %649 = vrot.lane.b32.xlu0 %v203, 110
  %v650 = vpop.permute.xlu0 %649
  %v651 = vsel %vm620, %v611, %v642
  %v652 = vsel %vm620, %v642, %v615
  %v653 = vsel %vm620, %v615, %v644
  %v654 = vsel %vm620, %v644, %v619
  %v655 = vsel %vm620, %v619, %v646
  %v656 = vsel %vm620, %v646, %v648
  %v657 = vsel %vm620, %v648, %v650
  %658 = vrot.lane.b32.xlu0 %v64, 109
  %v659 = vpop.permute.xlu0 %658
  %660 = vrot.lane.b32.xlu0 %v65, 109
  %v661 = vpop.permute.xlu0 %660
  %662 = vrot.lane.b32.xlu0 %v31, 109
  %v663 = vpop.permute.xlu0 %662
  %664 = vrot.lane.b32.xlu0 %v39, 109
  %v665 = vpop.permute.xlu0 %664
  %666 = vrot.lane.b32.xlu0 %v73, 109
  %v667 = vpop.permute.xlu0 %666
  %668 = vrot.lane.b32.xlu0 %v74, 109
  %v669 = vpop.permute.xlu0 %668
  %670 = vrot.lane.b32.xlu0 %v48, 109
  %v671 = vpop.permute.xlu0 %670
  %672 = vrot.lane.b32.xlu0 %v56, 109
  %v673 = vpop.permute.xlu0 %672
  %vm674 = vcmask 891904
  %v675 = vsel %vm674, %v659, %v661
  %v676 = vsel %vm674, %v661, %v663
  %v677 = vsel %vm674, %v663, %v665
  %v678 = vsel %vm674, %v665, %v667
  %v679 = vsel %vm674, %v667, %v669
  %v680 = vsel %vm674, %v669, %v671
  %v681 = vsel %vm674, %v671, %v673
  %682 = vrot.lane.b32.xlu0 %v76, 109
  %v683 = vpop.permute.xlu0 %682
  %684 = vrot.lane.b32.xlu0 %v38, 109
  %v685 = vpop.permute.xlu0 %684
  %686 = vrot.lane.b32.xlu0 %v77, 109
  %v687 = vpop.permute.xlu0 %686
  %688 = vrot.lane.b32.xlu0 %v78, 109
  %v689 = vpop.permute.xlu0 %688
  %690 = vrot.lane.b32.xlu0 %v55, 109
  %v691 = vpop.permute.xlu0 %690
  %692 = vrot.lane.b32.xlu0 %v245, 109
  %v693 = vpop.permute.xlu0 %692
  %v694 = vsel %vm674, %v663, %v683
  %v695 = vsel %vm674, %v683, %v685
  %v696 = vsel %vm674, %v685, %v687
  %v697 = vsel %vm674, %v687, %v671
  %v698 = vsel %vm674, %v671, %v689
  %v699 = vsel %vm674, %v689, %v691
  %v700 = vsel %vm674, %v691, %v693
  %701 = vrot.lane.b32.xlu0 %v88, 109
  %v702 = vpop.permute.xlu0 %701
  %703 = vrot.lane.b32.xlu0 %v89, 109
  %v704 = vpop.permute.xlu0 %703
  %705 = vrot.lane.b32.xlu0 %v189, 109
  %v706 = vpop.permute.xlu0 %705
  %707 = vrot.lane.b32.xlu0 %v151, 109
  %v708 = vpop.permute.xlu0 %707
  %v709 = vsel %vm674, %v702, %v663
  %v710 = vsel %vm674, %v663, %v704
  %v711 = vsel %vm674, %v704, %v667
  %v712 = vsel %vm674, %v667, %v687
  %v713 = vsel %vm674, %v671, %v706
  %v714 = vsel %vm674, %v706, %v708
  %715 = vrot.lane.b32.xlu0 %v31, 108
  %v716 = vpop.permute.xlu0 %715
  %717 = vrot.lane.b32.xlu0 %v39, 108
  %v718 = vpop.permute.xlu0 %717
  %719 = vrot.lane.b32.xlu0 %v38, 108
  %v720 = vpop.permute.xlu0 %719
  %721 = vrot.lane.b32.xlu0 %v40, 108
  %v722 = vpop.permute.xlu0 %721
  %723 = vrot.lane.b32.xlu0 %v48, 108
  %v724 = vpop.permute.xlu0 %723
  %725 = vrot.lane.b32.xlu0 %v56, 108
  %v726 = vpop.permute.xlu0 %725
  %727 = vrot.lane.b32.xlu0 %v55, 108
  %v728 = vpop.permute.xlu0 %727
  %729 = vrot.lane.b32.xlu0 %v115, 108
  %v730 = vpop.permute.xlu0 %729
  %vm731 = vcmask 883712
  %v732 = vsel %vm731, %v716, %v718
  %v733 = vsel %vm731, %v718, %v720
  %v734 = vsel %vm731, %v720, %v722
  %v735 = vsel %vm731, %v722, %v724
  %v736 = vsel %vm731, %v724, %v726
  %v737 = vsel %vm731, %v726, %v728
  %v738 = vsel %vm731, %v728, %v730
  %739 = vrot.lane.b32.xlu0 %v65, 108
  %v740 = vpop.permute.xlu0 %739
  %741 = vrot.lane.b32.xlu0 %v73, 108
  %v742 = vpop.permute.xlu0 %741
  %743 = vrot.lane.b32.xlu0 %v74, 108
  %v744 = vpop.permute.xlu0 %743
  %745 = vrot.lane.b32.xlu0 %v151, 108
  %v746 = vpop.permute.xlu0 %745
  %v747 = vsel %vm731, %v740, %v716
  %v748 = vsel %vm731, %v718, %v742
  %v749 = vsel %vm731, %v742, %v744
  %v750 = vsel %vm731, %v744, %v724
  %v751 = vsel %vm731, %v726, %v746
  %752 = vrot.lane.b32.xlu0 %v76, 108
  %v753 = vpop.permute.xlu0 %752
  %754 = vrot.lane.b32.xlu0 %v77, 108
  %v755 = vpop.permute.xlu0 %754
  %756 = vrot.lane.b32.xlu0 %v78, 108
  %v757 = vpop.permute.xlu0 %756
  %758 = vrot.lane.b32.xlu0 %v245, 108
  %v759 = vpop.permute.xlu0 %758
  %760 = vrot.lane.b32.xlu0 %v122, 108
  %v761 = vpop.permute.xlu0 %760
  %v762 = vsel %vm731, %v753, %v720
  %v763 = vsel %vm731, %v720, %v755
  %v764 = vsel %vm731, %v755, %v724
  %v765 = vsel %vm731, %v724, %v757
  %v766 = vsel %vm731, %v757, %v728
  %v767 = vsel %vm731, %v728, %v759
  %v768 = vsel %vm731, %v759, %v761
  %v771 = vsel %vm357, %v585, %v598
  %v774 = vsel %vm357, %v586, %v599
  %v777 = vsel %vm357, %v587, %v600
  %v780 = vsel %vm357, %v588, %v601
  %v782 = vsel %vm357, %v589, %v588
  %v785 = vsel %vm357, %v590, %v602
  %v788 = vsel %vm357, %v591, %v603
  %v790 = vsel %vm375, %v771, %v621
  %v792 = vsel %vm375, %v774, %v622
  %v794 = vsel %vm375, %v777, %v623
  %v796 = vsel %vm375, %v780, %v624
  %v798 = vsel %vm375, %v782, %v625
  %v800 = vsel %vm375, %v785, %v626
  %v802 = vsel %vm375, %v788, %v627
  %v804 = vsel %vm387, %v790, %v636
  %v806 = vsel %vm387, %v792, %v621
  %v809 = vsel %vm387, %v794, %v637
  %v812 = vsel %vm387, %v796, %v638
  %v815 = vsel %vm387, %v798, %v639
  %v817 = vsel %vm387, %v800, %v625
  %v820 = vsel %vm387, %v802, %v640
  %v824 = vsel %vm357, %v651, %v675
  %v827 = vsel %vm357, %v652, %v676
  %v830 = vsel %vm357, %v653, %v677
  %v833 = vsel %vm357, %v654, %v678
  %v836 = vsel %vm357, %v655, %v679
  %v839 = vsel %vm357, %v656, %v680
  %v842 = vsel %vm357, %v657, %v681
  %v844 = vsel %vm375, %v824, %v694
  %v846 = vsel %vm375, %v827, %v695
  %v848 = vsel %vm375, %v830, %v696
  %v850 = vsel %vm375, %v833, %v697
  %v852 = vsel %vm375, %v836, %v698
  %v854 = vsel %vm375, %v839, %v699
  %v856 = vsel %vm375, %v842, %v700
  %v858 = vsel %vm387, %v844, %v709
  %v861 = vsel %vm387, %v846, %v710
  %v864 = vsel %vm387, %v848, %v711
  %v867 = vsel %vm387, %v850, %v712
  %v869 = vsel %vm387, %v852, %v697
  %v872 = vsel %vm387, %v854, %v713
  %v875 = vsel %vm387, %v856, %v714
  %v879 = vsel %vm357, %v732, %v747
  %v881 = vsel %vm357, %v733, %v732
  %v884 = vsel %vm357, %v734, %v748
  %v887 = vsel %vm357, %v735, %v749
  %v890 = vsel %vm357, %v736, %v750
  %v892 = vsel %vm357, %v737, %v736
  %v895 = vsel %vm357, %v738, %v751
  %v897 = vsel %vm375, %v879, %v762
  %v899 = vsel %vm375, %v881, %v763
  %v901 = vsel %vm375, %v884, %v764
  %v903 = vsel %vm375, %v887, %v765
  %v905 = vsel %vm375, %v890, %v766
  %v907 = vsel %vm375, %v892, %v767
  %v909 = vsel %vm375, %v895, %v768
  %v910 = vld [vmem:[%s1] sm:$0x1]
  %v911 = vld [vmem:[%s2] sm:$0x3]
  %913 = vset.pattern.permute.xlu0 0
  %914 = vperm.xlu0 %913, %v911
  %v915 = vpop.permute.xlu0 %914
  %vm917 = vcmask 883712
  %v919 = vsel %vm917, %v910, 0
  %v921 = vsel %vm387, %v897, 0
  %v923 = vsel %vm387, %v899, 0
  %v925 = vsel %vm387, %v901, 0
  %v927 = vsel %vm387, %v903, 0
  %v929 = vsel %vm387, %v905, 0
  %v931 = vsel %vm387, %v907, 0
  %v933 = vsel %vm387, %v909, 0
  %935 = vmatprep.subr.bf16.mxu0 %v392
  %936 = vmatpush1.bf16.msra.mxu0 %v389
  %937 = vmatprep.subr.bf16.mxu0 %v446
  %938 = vmatpush1.bf16.msra.mxu0 %v444
  %939 = vmatprep.subr.bf16.mxu0 %v501
  %940 = vmatpush1.bf16.msra.mxu0 %v498
  %941 = vmatprep.subr.bf16.mxu0 %v554
  %942 = vmatpush1.bf16.msra.mxu0 %v551
  %943 = vmatprep.subr.bf16.mxu0 %v806
  %944 = vmatpush1.bf16.msra.mxu0 %v804
  %945 = vmatprep.subr.bf16.mxu0 %v861
  %946 = vmatpush1.bf16.msra.mxu0 %v858
  %947 = vmatprep.subr.bf16.mxu0 %v923
  %948 = vmatpush1.bf16.msra.mxu0 %v921
  %949 = vmatprep.subr.bf16.mxu0 0
  %950 = vmatpush1.bf16.msra.mxu0 0
  %951 = vmatprep.subr.bf16.mxu0 0
  %952 = vmatpush1.bf16.msra.mxu0 0
  %953 = vmatprep.subr.bf16.mxu0 0
  %954 = vmatpush1.bf16.msra.mxu0 0
  %955 = vmatprep.subr.bf16.mxu0 0
  %956 = vmatpush1.bf16.msra.mxu0 0
  %957 = vmatprep.subr.bf16.mxu0 0
  %958 = vmatpush1.bf16.msra.mxu0 0
  %959 = vmatprep.subr.bf16.mxu0 0
  %960 = vmatpush1.bf16.msra.mxu0 0
  %961 = vmatprep.subr.bf16.mxu0 0
  %962 = vmatpush1.bf16.msra.mxu0 0
  %963 = vmatprep.subr.bf16.mxu0 0
  %964 = vmatpush1.bf16.msra.mxu0 0
  %965 = vmatprep.subr.bf16.mxu0 0
  %966 = vmatpush1.bf16.msra.mxu0 0
  %967 = vmatprep.mubr.bf16.mxu0 0
  %968 = vmatmul.mubr.bf16.gmra.mrb[0].mxu0 %v919
  %v969 = vpop.f32.mrb[0].mxu0
  %v970 = vadd.f32 %v915, %v969
  %v971 = vpop.f32.mrb[0].mxu0
  %v972 = vadd.f32 %v915, %v971
  %v973 = vpop.f32.mrb[0].mxu0
  %v974 = vpop.f32.mrb[0].mxu0
  %975 = vdwg.mxu0
  %976 = vmatprep.subr.bf16.mxu0 %v398
  %977 = vmatpush1.bf16.msra.mxu0 %v395
  %978 = vmatprep.subr.bf16.mxu0 %v452
  %979 = vmatpush1.bf16.msra.mxu0 %v449
  %980 = vmatprep.subr.bf16.mxu0 %v507
  %981 = vmatpush1.bf16.msra.mxu0 %v504
  %982 = vmatprep.subr.bf16.mxu0 %v560
  %983 = vmatpush1.bf16.msra.mxu0 %v557
  %984 = vmatprep.subr.bf16.mxu0 %v812
  %985 = vmatpush1.bf16.msra.mxu0 %v809
  %986 = vmatprep.subr.bf16.mxu0 %v867
  %987 = vmatpush1.bf16.msra.mxu0 %v864
  %988 = vmatprep.subr.bf16.mxu0 %v927
  %989 = vmatpush1.bf16.msra.mxu0 %v925
  %990 = vmatprep.subr.bf16.mxu0 0
  %991 = vmatpush1.bf16.msra.mxu0 0
  %992 = vmatprep.subr.bf16.mxu0 0
  %993 = vmatpush1.bf16.msra.mxu0 0
  %994 = vmatprep.subr.bf16.mxu0 0
  %995 = vmatpush1.bf16.msra.mxu0 0
  %996 = vmatprep.subr.bf16.mxu0 0
  %997 = vmatpush1.bf16.msra.mxu0 0
  %998 = vmatprep.subr.bf16.mxu0 0
  %999 = vmatpush1.bf16.msra.mxu0 0
  %1000 = vmatprep.subr.bf16.mxu0 0
  %1001 = vmatpush1.bf16.msra.mxu0 0
  %1002 = vmatprep.subr.bf16.mxu0 0
  %1003 = vmatpush1.bf16.msra.mxu0 0
  %1004 = vmatprep.subr.bf16.mxu0 0
  %1005 = vmatpush1.bf16.msra.mxu0 0
  %1006 = vmatprep.subr.bf16.mxu0 0
  %1007 = vmatpush1.bf16.msra.mxu0 0
  %1008 = vmatprep.mubr.bf16.mxu0 0
  %1009 = vmatmul.mubr.bf16.gmra.mrb[0].mxu0 %v919
  %v1010 = vpop.f32.mrb[0].mxu0
  %v1011 = vadd.f32 %v915, %v1010
  %v1012 = vpop.f32.mrb[0].mxu0
  %v1013 = vadd.f32 %v915, %v1012
  %v1014 = vpop.f32.mrb[0].mxu0
  %v1015 = vpop.f32.mrb[0].mxu0
  %1016 = vdwg.mxu0
  %1017 = vmatprep.subr.bf16.mxu0 %v404
  %1018 = vmatpush1.bf16.msra.mxu0 %v401
  %1019 = vmatprep.subr.bf16.mxu0 %v457
  %1020 = vmatpush1.bf16.msra.mxu0 %v455
  %1021 = vmatprep.subr.bf16.mxu0 %v512
  %1022 = vmatpush1.bf16.msra.mxu0 %v509
  %1023 = vmatprep.subr.bf16.mxu0 %v566
  %1024 = vmatpush1.bf16.msra.mxu0 %v563
  %1025 = vmatprep.subr.bf16.mxu0 %v817
  %1026 = vmatpush1.bf16.msra.mxu0 %v815
  %1027 = vmatprep.subr.bf16.mxu0 %v872
  %1028 = vmatpush1.bf16.msra.mxu0 %v869
  %1029 = vmatprep.subr.bf16.mxu0 %v931
  %1030 = vmatpush1.bf16.msra.mxu0 %v929
  %1031 = vmatprep.subr.bf16.mxu0 0
  %1032 = vmatpush1.bf16.msra.mxu0 0
  %1033 = vmatprep.subr.bf16.mxu0 0
  %1034 = vmatpush1.bf16.msra.mxu0 0
  %1035 = vmatprep.subr.bf16.mxu0 0
  %1036 = vmatpush1.bf16.msra.mxu0 0
  %1037 = vmatprep.subr.bf16.mxu0 0
  %1038 = vmatpush1.bf16.msra.mxu0 0
  %1039 = vmatprep.subr.bf16.mxu0 0
  %1040 = vmatpush1.bf16.msra.mxu0 0
  %1041 = vmatprep.subr.bf16.mxu0 0
  %1042 = vmatpush1.bf16.msra.mxu0 0
  %1043 = vmatprep.subr.bf16.mxu0 0
  %1044 = vmatpush1.bf16.msra.mxu0 0
  %1045 = vmatprep.subr.bf16.mxu0 0
  %1046 = vmatpush1.bf16.msra.mxu0 0
  %1047 = vmatprep.subr.bf16.mxu0 0
  %1048 = vmatpush1.bf16.msra.mxu0 0
  %1049 = vmatprep.mubr.bf16.mxu0 0
  %1050 = vmatmul.mubr.bf16.gmra.mrb[0].mxu0 %v919
  %v1051 = vpop.f32.mrb[0].mxu0
  %v1052 = vadd.f32 %v915, %v1051
  %v1053 = vpop.f32.mrb[0].mxu0
  %v1054 = vadd.f32 %v915, %v1053
  %v1055 = vpop.f32.mrb[0].mxu0
  %v1056 = vpop.f32.mrb[0].mxu0
  %1057 = vdwg.mxu0
  %1058 = vmatprep.subr.bf16.mxu0 0
  %1059 = vmatpush1.bf16.msra.mxu0 %v407
  %1060 = vmatprep.subr.bf16.mxu0 0
  %1061 = vmatpush1.bf16.msra.mxu0 %v460
  %1062 = vmatprep.subr.bf16.mxu0 0
  %1063 = vmatpush1.bf16.msra.mxu0 %v515
  %1064 = vmatprep.subr.bf16.mxu0 0
  %1065 = vmatpush1.bf16.msra.mxu0 %v569
  %1066 = vmatprep.subr.bf16.mxu0 0
  %1067 = vmatpush1.bf16.msra.mxu0 %v820
  %1068 = vmatprep.subr.bf16.mxu0 0
  %1069 = vmatpush1.bf16.msra.mxu0 %v875
  %1070 = vmatprep.subr.bf16.mxu0 0
  %1071 = vmatpush1.bf16.msra.mxu0 %v933
  %1072 = vmatprep.subr.bf16.mxu0 0
  %1073 = vmatpush1.bf16.msra.mxu0 0
  %1074 = vmatprep.subr.bf16.mxu0 0
  %1075 = vmatpush1.bf16.msra.mxu0 0
  %1076 = vmatprep.subr.bf16.mxu0 0
  %1077 = vmatpush1.bf16.msra.mxu0 0
  %1078 = vmatprep.subr.bf16.mxu0 0
  %1079 = vmatpush1.bf16.msra.mxu0 0
  %1080 = vmatprep.subr.bf16.mxu0 0
  %1081 = vmatpush1.bf16.msra.mxu0 0
  %1082 = vmatprep.subr.bf16.mxu0 0
  %1083 = vmatpush1.bf16.msra.mxu0 0
  %1084 = vmatprep.subr.bf16.mxu0 0
  %1085 = vmatpush1.bf16.msra.mxu0 0
  %1086 = vmatprep.subr.bf16.mxu0 0
  %1087 = vmatpush1.bf16.msra.mxu0 0
  %1088 = vmatprep.subr.bf16.mxu0 0
  %1089 = vmatpush1.bf16.msra.mxu0 0
  %1090 = vmatprep.mubr.bf16.mxu0 0
  %1091 = vmatmul.mubr.bf16.gmra.mrb[0].mxu0 %v919
  %v1092 = vpop.f32.mrb[0].mxu0
  %v1093 = vadd.f32 %v915, %v1092
  %v1094 = vpop.f32.mrb[0].mxu0
  %v1095 = vpop.f32.mrb[0].mxu0
  %v1096 = vpop.f32.mrb[0].mxu0
  %1097 = vdwg.mxu0
  %v1098 = vld [vmem:[%s3] sm:$0xff]
  %v1100 = vlaneseq
  %v1101 = vshrl.u32 %v1100, 7
  %v1102 = vsub.s32 0, %v1101
  %v1103 = vrot.slane %v1098, %v1102
  %v1104 = vlaneseq
  %v1105 = vshrl.u32 %v1104, 7
  %v1106 = vsub.s32 1, %v1105
  %v1107 = vrot.slane %v1098, %v1106
  %v1108 = vlaneseq
  %v1109 = vshrl.u32 %v1108, 7
  %v1110 = vsub.s32 2, %v1109
  %v1111 = vrot.slane %v1098, %v1110
  %v1112 = vlaneseq
  %v1113 = vshrl.u32 %v1112, 7
  %v1114 = vsub.s32 3, %v1113
  %v1115 = vrot.slane %v1098, %v1114
  %v1116 = vlaneseq
  %v1117 = vshrl.u32 %v1116, 7
  %v1118 = vsub.s32 4, %v1117
  %v1119 = vrot.slane %v1098, %v1118
  %v1120 = vlaneseq
  %v1121 = vshrl.u32 %v1120, 7
  %v1122 = vsub.s32 5, %v1121
  %v1123 = vrot.slane %v1098, %v1122
  %v1124 = vlaneseq
  %v1125 = vshrl.u32 %v1124, 7
  %v1126 = vsub.s32 6, %v1125
  %v1127 = vrot.slane %v1098, %v1126
  %v1135 = vmul.f32 %v970, %v1103
  %v1136 = vmul.f32 %v972, %v1107
  %v1137 = vmul.f32 %v1011, %v1111
  %v1138 = vmul.f32 %v1013, %v1115
  %v1139 = vmul.f32 %v1052, %v1119
  %v1140 = vmul.f32 %v1054, %v1123
  %v1141 = vmul.f32 %v1093, %v1127
  %v1142 = vsel %vm357, %v1135, 0.0
  %v1143 = vsel %vm357, %v1136, 0.0
  %v1144 = vadd.f32 %v1142, %v1143
  %v1145 = vsel %vm357, %v1137, 0.0
  %v1146 = vadd.f32 %v1144, %v1145
  %v1147 = vsel %vm357, %v1138, 0.0
  %v1148 = vadd.f32 %v1146, %v1147
  %v1149 = vsel %vm357, %v1139, 0.0
  %v1150 = vadd.f32 %v1148, %v1149
  %v1151 = vsel %vm357, %v1140, 0.0
  %v1152 = vadd.f32 %v1150, %v1151
  %v1153 = vsel %vm357, %v1141, 0.0
  %v1154 = vadd.f32 %v1152, %v1153
  %1155 = vadd.xlane.f32.xlu0 %v1154
  %v1156 = vpop.xlane.xlu0 %1155
  %v1157 = vmul.f32 %v1156, 0.002915452
  %v1158 = vmul.f32 %v1135, %v970
  %v1159 = vmul.f32 %v1136, %v972
  %v1160 = vmul.f32 %v1137, %v1011
  %v1161 = vmul.f32 %v1138, %v1013
  %v1162 = vmul.f32 %v1139, %v1052
  %v1163 = vmul.f32 %v1140, %v1054
  %v1164 = vmul.f32 %v1141, %v1093
  %v1165 = vsel %vm357, %v1158, 0.0
  %v1166 = vsel %vm357, %v1159, 0.0
  %v1167 = vadd.f32 %v1165, %v1166
  %v1168 = vsel %vm357, %v1160, 0.0
  %v1169 = vadd.f32 %v1167, %v1168
  %v1170 = vsel %vm357, %v1161, 0.0
  %v1171 = vadd.f32 %v1169, %v1170
  %v1172 = vsel %vm357, %v1162, 0.0
  %v1173 = vadd.f32 %v1171, %v1172
  %v1174 = vsel %vm357, %v1163, 0.0
  %v1175 = vadd.f32 %v1173, %v1174
  %v1176 = vsel %vm357, %v1164, 0.0
  %v1177 = vadd.f32 %v1175, %v1176
  %1178 = vadd.xlane.f32.xlu0 %v1177
  %v1179 = vpop.xlane.xlu0 %1178
  %v1180 = vmul.f32 %v1179, 0.002915452
  %v1181 = vmul.f32 %v1157, %v1157
  %v1182 = vsub.f32 %v1180, %v1181
  %v1183 = vmax.f32 %v1182, 0.0
  %v1184 = vsub.f32 %v970, %v1157
  %v1185 = vsub.f32 %v972, %v1157
  %v1186 = vsub.f32 %v1011, %v1157
  %v1187 = vsub.f32 %v1013, %v1157
  %v1188 = vsub.f32 %v1052, %v1157
  %v1189 = vsub.f32 %v1054, %v1157
  %v1190 = vsub.f32 %v1093, %v1157
  %v1191 = vadd.f32 %v1183, 1e-05
  %v1192 = vrsqrt.pop %v1191
  %v1193 = vmul.f32 %v1184, %v1192
  %v1194 = vmul.f32 %v1185, %v1192
  %v1195 = vmul.f32 %v1186, %v1192
  %v1196 = vmul.f32 %v1187, %v1192
  %v1197 = vmul.f32 %v1188, %v1192
  %v1198 = vmul.f32 %v1189, %v1192
  %v1199 = vmul.f32 %v1190, %v1192
  %v1200 = vmax.f32 %v1193, 0.0
  %v1201 = vmax.f32 %v1194, 0.0
  %v1202 = vmax.f32 %v1195, 0.0
  %v1203 = vmax.f32 %v1196, 0.0
  %v1204 = vmax.f32 %v1197, 0.0
  %v1205 = vmax.f32 %v1198, 0.0
  %v1206 = vmax.f32 %v1199, 0.0
  %v1207 = vpack.c.bf16 %v1200, %v1200
  %v1208 = vpack.c.bf16 %v1201, %v1201
  %v1209 = vpack.c.bf16 %v1202, %v1202
  %v1210 = vpack.c.bf16 %v1203, %v1203
  %v1211 = vpack.c.bf16 %v1204, %v1204
  %v1212 = vpack.c.bf16 %v1205, %v1205
  %v1213 = vpack.c.bf16 %v1206, %v1206
  %v1221 = vcombine.low %v1207, %v1208
  %v1222 = vcombine.low %v1209, %v1210
  %v1224 = vunpack.c.l.s4 1983009808
  %v1225 = vunpack.c.0.s8 %v1224
  %v1226 = vlaneseq
  %v1227 = vshrl.u32 %v1226, 7
  %v1228 = vsub.s32 %v1225, %v1227
  %v1229 = vrot.slane %v1221, %v1228
  %v1231 = vunpack.c.l.s4 1983009808
  %v1232 = vunpack.c.0.s8 %v1231
  %v1233 = vlaneseq
  %v1234 = vshrl.u32 %v1233, 7
  %v1235 = vsub.s32 %v1232, %v1234
  %v1236 = vrot.slane %v1222, %v1235
  %v1237 = vcombine.low %v1229, %v1236
  %v1238 = vcombine.low %v1211, %v1212
  %v1240 = vunpack.c.l.s4 1983009808
  %v1241 = vunpack.c.0.s8 %v1240
  %v1242 = vlaneseq
  %v1243 = vshrl.u32 %v1242, 7
  %v1244 = vsub.s32 %v1241, %v1243
  %v1245 = vrot.slane %v1238, %v1244
  %v1247 = vunpack.c.l.s4 1983009808
  %v1248 = vunpack.c.0.s8 %v1247
  %v1249 = vlaneseq
  %v1250 = vshrl.u32 %v1249, 7
  %v1251 = vsub.s32 %v1248, %v1250
  %v1252 = vrot.slane %v1213, %v1251
  %v1253 = vcombine.low %v1245, %v1252
  %1256 = vst [vmem:[%s4] sm:$0x55] %v1237
  %1257 = vst [vmem:[%s4 + $0x8] sm:$0x15] %v1253
  %s1258 = scalar_lea.vmem %s0, 20
  %v1259 = vld [vmem:[%s1258] sm:$0xff]
  %v1260 = vld [vmem:[%s1258 + $0x8] sm:$0xff]
  %v1261 = vld [vmem:[%s1258 + $0x10] sm:$0x3]
  %v1262 = vld [vmem:[%s1258 + $0x10] sm:$0xf]
  %v1265 = vcombine.high %v1259, %v1259
  %v1267 = vunpack.c.l.s4 1983009808
  %v1268 = vunpack.c.0.s8 %v1267
  %v1269 = vlaneseq
  %v1270 = vshrl.u32 %v1269, 7
  %v1271 = vsub.s32 %v1268, %v1270
  %v1272 = vrot.slane %v1259, %v1271
  %v1274 = vunpack.c.l.s4 1983009808
  %v1275 = vunpack.c.0.s8 %v1274
  %v1276 = vlaneseq
  %v1277 = vshrl.u32 %v1276, 7
  %v1278 = vsub.s32 %v1275, %v1277
  %v1279 = vrot.slane %v1265, %v1278
  %v1280 = vcombine.high %v1272, %v1272
  %v1281 = vcombine.high %v1279, %v1279
  %v1282 = vcombine.high %v1260, %v1260
  %v1284 = vunpack.c.l.s4 1983009808
  %v1285 = vunpack.c.0.s8 %v1284
  %v1286 = vlaneseq
  %v1287 = vshrl.u32 %v1286, 7
  %v1288 = vsub.s32 %v1285, %v1287
  %v1289 = vrot.slane %v1260, %v1288
  %v1291 = vunpack.c.l.s4 1983009808
  %v1292 = vunpack.c.0.s8 %v1291
  %v1293 = vlaneseq
  %v1294 = vshrl.u32 %v1293, 7
  %v1295 = vsub.s32 %v1292, %v1294
  %v1296 = vrot.slane %v1282, %v1295
  %v1297 = vcombine.high %v1289, %v1289
  %v1298 = vcombine.low %v1259, %v1259
  %v1300 = vunpack.c.l.s4 1983009808
  %v1301 = vunpack.c.0.s8 %v1300
  %v1302 = vlaneseq
  %v1303 = vshrl.u32 %v1302, 7
  %v1304 = vsub.s32 %v1301, %v1303
  %v1305 = vrot.slane %v1298, %v1304
  %v1306 = vcombine.high %v1305, %v1305
  %v1307 = vcombine.low %v1260, %v1260
  %v1309 = vunpack.c.l.s4 1983009808
  %v1310 = vunpack.c.0.s8 %v1309
  %v1311 = vlaneseq
  %v1312 = vshrl.u32 %v1311, 7
  %v1313 = vsub.s32 %v1310, %v1312
  %v1314 = vrot.slane %v1307, %v1313
  %v1315 = vcombine.high %v1314, %v1314
  %v1317 = vcombine.low %v1279, %v1279
  %v1318 = vcombine.low %v1289, %v1289
  %v1319 = vcombine.low %v1296, %v1296
  %v1321 = vunpack.c.l.s4 1983009808
  %v1322 = vunpack.c.0.s8 %v1321
  %v1323 = vlaneseq
  %v1324 = vshrl.u32 %v1323, 7
  %v1325 = vsub.s32 %v1322, %v1324
  %v1326 = vrot.slane %v1261, %v1325
  %v1327 = vcombine.low %v1326, %v1326
  %v1328 = vcombine.low %v1305, %v1305
  %v1329 = vcombine.low %v1272, %v1272
  %v1330 = vcombine.low %v1314, %v1314
  %1331 = vrot.lane.b32.xlu0 %v1328, 127
  %v1332 = vpop.permute.xlu0 %1331
  %1333 = vrot.lane.b32.xlu0 %v1305, 127
  %v1334 = vpop.permute.xlu0 %1333
  %1335 = vrot.lane.b32.xlu0 %v1329, 127
  %v1336 = vpop.permute.xlu0 %1335
  %1337 = vrot.lane.b32.xlu0 %v1272, 127
  %v1338 = vpop.permute.xlu0 %1337
  %1339 = vrot.lane.b32.xlu0 %v1330, 127
  %v1340 = vpop.permute.xlu0 %1339
  %1341 = vrot.lane.b32.xlu0 %v1314, 127
  %v1342 = vpop.permute.xlu0 %1341
  %1343 = vrot.lane.b32.xlu0 %v1318, 127
  %v1344 = vpop.permute.xlu0 %1343
  %1345 = vrot.lane.b32.xlu0 %v1289, 127
  %v1346 = vpop.permute.xlu0 %1345
  %v1347 = vsel %vm106, %v1332, %v1334
  %v1348 = vsel %vm106, %v1334, %v1336
  %v1349 = vsel %vm106, %v1336, %v1338
  %v1350 = vsel %vm106, %v1338, %v1340
  %v1351 = vsel %vm106, %v1340, %v1342
  %v1352 = vsel %vm106, %v1342, %v1344
  %v1353 = vsel %vm106, %v1344, %v1346
  %v1355 = vcombine.high %v1296, %v1296
  %v1357 = vunpack.c.l.s4 1983009808
  %v1358 = vunpack.c.0.s8 %v1357
  %v1359 = vlaneseq
  %v1360 = vshrl.u32 %v1359, 7
  %v1361 = vsub.s32 %v1358, %v1360
  %v1362 = vrot.slane %v1262, %v1361
  %1363 = vrot.lane.b32.xlu0 %v1280, 127
  %v1364 = vpop.permute.xlu0 %1363
  %1365 = vrot.lane.b32.xlu0 %v1279, 127
  %v1366 = vpop.permute.xlu0 %1365
  %1367 = vrot.lane.b32.xlu0 %v1281, 127
  %v1368 = vpop.permute.xlu0 %1367
  %1369 = vrot.lane.b32.xlu0 %v1297, 127
  %v1370 = vpop.permute.xlu0 %1369
  %1371 = vrot.lane.b32.xlu0 %v1296, 127
  %v1372 = vpop.permute.xlu0 %1371
  %1373 = vrot.lane.b32.xlu0 %v1355, 127
  %v1374 = vpop.permute.xlu0 %1373
  %1375 = vrot.lane.b32.xlu0 %v1362, 127
  %v1376 = vpop.permute.xlu0 %1375
  %v1377 = vsel %vm106, %v1364, %v1366
  %v1378 = vsel %vm106, %v1366, %v1368
  %v1379 = vsel %vm106, %v1368, %v1346
  %v1380 = vsel %vm106, %v1346, %v1370
  %v1381 = vsel %vm106, %v1370, %v1372
  %v1382 = vsel %vm106, %v1372, %v1374
  %v1383 = vsel %vm106, %v1374, %v1376
  %v1384 = vcombine.low %v1262, %v1262
  %v1386 = vunpack.c.l.s4 1983009808
  %v1387 = vunpack.c.0.s8 %v1386
  %v1388 = vlaneseq
  %v1389 = vshrl.u32 %v1388, 7
  %v1390 = vsub.s32 %v1387, %v1389
  %v1391 = vrot.slane %v1384, %v1390
  %v1392 = vcombine.high %v1391, %v1391
  %1393 = vrot.lane.b32.xlu0 %v1315, 127
  %v1394 = vpop.permute.xlu0 %1393
  %1395 = vrot.lane.b32.xlu0 %v1391, 127
  %v1396 = vpop.permute.xlu0 %1395
  %1397 = vrot.lane.b32.xlu0 %v1392, 127
  %v1398 = vpop.permute.xlu0 %1397
  %v1399 = vsel %vm106, %v1338, %v1364
  %v1400 = vsel %vm106, %v1364, %v1342
  %v1401 = vsel %vm106, %v1342, %v1394
  %v1402 = vsel %vm106, %v1394, %v1346
  %v1403 = vsel %vm106, %v1370, %v1396
  %v1404 = vsel %vm106, %v1396, %v1398
  %1405 = vrot.lane.b32.xlu0 %v1329, 126
  %v1406 = vpop.permute.xlu0 %1405
  %1407 = vrot.lane.b32.xlu0 %v1272, 126
  %v1408 = vpop.permute.xlu0 %1407
  %1409 = vrot.lane.b32.xlu0 %v1317, 126
  %v1410 = vpop.permute.xlu0 %1409
  %1411 = vrot.lane.b32.xlu0 %v1279, 126
  %v1412 = vpop.permute.xlu0 %1411
  %1413 = vrot.lane.b32.xlu0 %v1318, 126
  %v1414 = vpop.permute.xlu0 %1413
  %1415 = vrot.lane.b32.xlu0 %v1289, 126
  %v1416 = vpop.permute.xlu0 %1415
  %1417 = vrot.lane.b32.xlu0 %v1319, 126
  %v1418 = vpop.permute.xlu0 %1417
  %1419 = vrot.lane.b32.xlu0 %v1296, 126
  %v1420 = vpop.permute.xlu0 %1419
  %v1421 = vsel %vm181, %v1406, %v1408
  %v1422 = vsel %vm181, %v1408, %v1410
  %v1423 = vsel %vm181, %v1410, %v1412
  %v1424 = vsel %vm181, %v1412, %v1414
  %v1425 = vsel %vm181, %v1414, %v1416
  %v1426 = vsel %vm181, %v1416, %v1418
  %v1427 = vsel %vm181, %v1418, %v1420
  %v1428 = vcombine.low %v1391, %v1391
  %1429 = vrot.lane.b32.xlu0 %v1305, 126
  %v1430 = vpop.permute.xlu0 %1429
  %1431 = vrot.lane.b32.xlu0 %v1330, 126
  %v1432 = vpop.permute.xlu0 %1431
  %1433 = vrot.lane.b32.xlu0 %v1314, 126
  %v1434 = vpop.permute.xlu0 %1433
  %1435 = vrot.lane.b32.xlu0 %v1428, 126
  %v1436 = vpop.permute.xlu0 %1435
  %v1437 = vsel %vm181, %v1430, %v1406
  %v1438 = vsel %vm181, %v1408, %v1432
  %v1439 = vsel %vm181, %v1432, %v1434
  %v1440 = vsel %vm181, %v1434, %v1414
  %v1441 = vsel %vm181, %v1416, %v1436
  %v1442 = vcombine.high %v1362, %v1362
  %1443 = vrot.lane.b32.xlu0 %v1281, 126
  %v1444 = vpop.permute.xlu0 %1443
  %1445 = vrot.lane.b32.xlu0 %v1297, 126
  %v1446 = vpop.permute.xlu0 %1445
  %1447 = vrot.lane.b32.xlu0 %v1355, 126
  %v1448 = vpop.permute.xlu0 %1447
  %1449 = vrot.lane.b32.xlu0 %v1362, 126
  %v1450 = vpop.permute.xlu0 %1449
  %1451 = vrot.lane.b32.xlu0 %v1442, 126
  %v1452 = vpop.permute.xlu0 %1451
  %v1453 = vsel %vm181, %v1412, %v1444
  %v1454 = vsel %vm181, %v1444, %v1416
  %v1455 = vsel %vm181, %v1416, %v1446
  %v1456 = vsel %vm181, %v1446, %v1420
  %v1457 = vsel %vm181, %v1420, %v1448
  %v1458 = vsel %vm181, %v1448, %v1450
  %v1459 = vsel %vm181, %v1450, %v1452
  %1460 = vrot.lane.b32.xlu0 %v1305, 119
  %v1461 = vpop.permute.xlu0 %1460
  %1462 = vrot.lane.b32.xlu0 %v1306, 119
  %v1463 = vpop.permute.xlu0 %1462
  %1464 = vrot.lane.b32.xlu0 %v1272, 119
  %v1465 = vpop.permute.xlu0 %1464
  %1466 = vrot.lane.b32.xlu0 %v1280, 119
  %v1467 = vpop.permute.xlu0 %1466
  %1468 = vrot.lane.b32.xlu0 %v1314, 119
  %v1469 = vpop.permute.xlu0 %1468
  %1470 = vrot.lane.b32.xlu0 %v1315, 119
  %v1471 = vpop.permute.xlu0 %1470
  %1472 = vrot.lane.b32.xlu0 %v1289, 119
  %v1473 = vpop.permute.xlu0 %1472
  %1474 = vrot.lane.b32.xlu0 %v1297, 119
  %v1475 = vpop.permute.xlu0 %1474
  %v1476 = vsel %vm237, %v1461, %v1463
  %v1477 = vsel %vm237, %v1463, %v1465
  %v1478 = vsel %vm237, %v1465, %v1467
  %v1479 = vsel %vm237, %v1467, %v1469
  %v1480 = vsel %vm237, %v1469, %v1471
  %v1481 = vsel %vm237, %v1471, %v1473
  %v1482 = vsel %vm237, %v1473, %v1475
  %v1483 = vcombine.low %v1362, %v1362
  %1484 = vrot.lane.b32.xlu0 %v1317, 119
  %v1485 = vpop.permute.xlu0 %1484
  %1486 = vrot.lane.b32.xlu0 %v1279, 119
  %v1487 = vpop.permute.xlu0 %1486
  %1488 = vrot.lane.b32.xlu0 %v1318, 119
  %v1489 = vpop.permute.xlu0 %1488
  %1490 = vrot.lane.b32.xlu0 %v1319, 119
  %v1491 = vpop.permute.xlu0 %1490
  %1492 = vrot.lane.b32.xlu0 %v1296, 119
  %v1493 = vpop.permute.xlu0 %1492
  %1494 = vrot.lane.b32.xlu0 %v1483, 119
  %v1495 = vpop.permute.xlu0 %1494
  %v1496 = vsel %vm237, %v1465, %v1485
  %v1497 = vsel %vm237, %v1485, %v1487
  %v1498 = vsel %vm237, %v1487, %v1489
  %v1499 = vsel %vm237, %v1489, %v1473
  %v1500 = vsel %vm237, %v1473, %v1491
  %v1501 = vsel %vm237, %v1491, %v1493
  %v1502 = vsel %vm237, %v1493, %v1495
  %1503 = vrot.lane.b32.xlu0 %v1329, 119
  %v1504 = vpop.permute.xlu0 %1503
  %1505 = vrot.lane.b32.xlu0 %v1330, 119
  %v1506 = vpop.permute.xlu0 %1505
  %1507 = vrot.lane.b32.xlu0 %v1428, 119
  %v1508 = vpop.permute.xlu0 %1507
  %1509 = vrot.lane.b32.xlu0 %v1391, 119
  %v1510 = vpop.permute.xlu0 %1509
  %v1511 = vsel %vm237, %v1504, %v1465
  %v1512 = vsel %vm237, %v1465, %v1506
  %v1513 = vsel %vm237, %v1506, %v1469
  %v1514 = vsel %vm237, %v1469, %v1489
  %v1515 = vsel %vm237, %v1473, %v1508
  %v1516 = vsel %vm237, %v1508, %v1510
  %1517 = vrot.lane.b32.xlu0 %v1272, 118
  %v1518 = vpop.permute.xlu0 %1517
  %1519 = vrot.lane.b32.xlu0 %v1280, 118
  %v1520 = vpop.permute.xlu0 %1519
  %1521 = vrot.lane.b32.xlu0 %v1279, 118
  %v1522 = vpop.permute.xlu0 %1521
  %1523 = vrot.lane.b32.xlu0 %v1281, 118
  %v1524 = vpop.permute.xlu0 %1523
  %1525 = vrot.lane.b32.xlu0 %v1289, 118
  %v1526 = vpop.permute.xlu0 %1525
  %1527 = vrot.lane.b32.xlu0 %v1297, 118
  %v1528 = vpop.permute.xlu0 %1527
  %1529 = vrot.lane.b32.xlu0 %v1296, 118
  %v1530 = vpop.permute.xlu0 %1529
  %1531 = vrot.lane.b32.xlu0 %v1355, 118
  %v1532 = vpop.permute.xlu0 %1531
  %v1533 = vsel %vm295, %v1518, %v1520
  %v1534 = vsel %vm295, %v1520, %v1522
  %v1535 = vsel %vm295, %v1522, %v1524
  %v1536 = vsel %vm295, %v1524, %v1526
  %v1537 = vsel %vm295, %v1526, %v1528
  %v1538 = vsel %vm295, %v1528, %v1530
  %v1539 = vsel %vm295, %v1530, %v1532
  %1540 = vrot.lane.b32.xlu0 %v1306, 118
  %v1541 = vpop.permute.xlu0 %1540
  %1542 = vrot.lane.b32.xlu0 %v1314, 118
  %v1543 = vpop.permute.xlu0 %1542
  %1544 = vrot.lane.b32.xlu0 %v1315, 118
  %v1545 = vpop.permute.xlu0 %1544
  %1546 = vrot.lane.b32.xlu0 %v1391, 118
  %v1547 = vpop.permute.xlu0 %1546
  %v1548 = vsel %vm295, %v1541, %v1518
  %v1549 = vsel %vm295, %v1520, %v1543
  %v1550 = vsel %vm295, %v1543, %v1545
  %v1551 = vsel %vm295, %v1545, %v1526
  %v1552 = vsel %vm295, %v1528, %v1547
  %1553 = vrot.lane.b32.xlu0 %v1317, 118
  %v1554 = vpop.permute.xlu0 %1553
  %1555 = vrot.lane.b32.xlu0 %v1318, 118
  %v1556 = vpop.permute.xlu0 %1555
  %1557 = vrot.lane.b32.xlu0 %v1319, 118
  %v1558 = vpop.permute.xlu0 %1557
  %1559 = vrot.lane.b32.xlu0 %v1483, 118
  %v1560 = vpop.permute.xlu0 %1559
  %1561 = vrot.lane.b32.xlu0 %v1362, 118
  %v1562 = vpop.permute.xlu0 %1561
  %v1563 = vsel %vm295, %v1554, %v1522
  %v1564 = vsel %vm295, %v1522, %v1556
  %v1565 = vsel %vm295, %v1556, %v1526
  %v1566 = vsel %vm295, %v1526, %v1558
  %v1567 = vsel %vm295, %v1558, %v1530
  %v1568 = vsel %vm295, %v1530, %v1560
  %v1569 = vsel %vm295, %v1560, %v1562
  %1570 = vrot.lane.b32.xlu0 %v1328, 117
  %v1571 = vpop.permute.xlu0 %1570
  %1572 = vrot.lane.b32.xlu0 %v1305, 117
  %v1573 = vpop.permute.xlu0 %1572
  %1574 = vrot.lane.b32.xlu0 %v1329, 117
  %v1575 = vpop.permute.xlu0 %1574
  %1576 = vrot.lane.b32.xlu0 %v1272, 117
  %v1577 = vpop.permute.xlu0 %1576
  %1578 = vrot.lane.b32.xlu0 %v1330, 117
  %v1579 = vpop.permute.xlu0 %1578
  %1580 = vrot.lane.b32.xlu0 %v1314, 117
  %v1581 = vpop.permute.xlu0 %1580
  %1582 = vrot.lane.b32.xlu0 %v1318, 117
  %v1583 = vpop.permute.xlu0 %1582
  %1584 = vrot.lane.b32.xlu0 %v1289, 117
  %v1585 = vpop.permute.xlu0 %1584
  %v1586 = vsel %vm349, %v1571, %v1573
  %v1587 = vsel %vm349, %v1573, %v1575
  %v1588 = vsel %vm349, %v1575, %v1577
  %v1589 = vsel %vm349, %v1577, %v1579
  %v1590 = vsel %vm349, %v1579, %v1581
  %v1591 = vsel %vm349, %v1581, %v1583
  %v1592 = vsel %vm349, %v1583, %v1585
  %v1595 = vsel %vm357, %v1272, %v1306
  %v1597 = vsel %vm357, %v1280, %v1272
  %v1599 = vsel %vm357, %v1279, %v1280
  %v1602 = vsel %vm357, %v1281, %v1314
  %v1605 = vsel %vm357, %v1289, %v1315
  %v1607 = vsel %vm357, %v1297, %v1289
  %v1609 = vsel %vm357, %v1296, %v1297
  %v1611 = vsel %vm375, %v1595, %v1317
  %v1612 = vsel %vm375, %v1597, %v1279
  %v1614 = vsel %vm375, %v1599, %v1318
  %v1615 = vsel %vm375, %v1602, %v1289
  %v1617 = vsel %vm375, %v1605, %v1319
  %v1618 = vsel %vm375, %v1607, %v1296
  %v1620 = vsel %vm375, %v1609, %v1327
  %v1622 = vsel %vm387, %v1611, %v1347
  %v1625 = vsel %vm387, %v1612, %v1348
  %v1628 = vsel %vm387, %v1614, %v1349
  %v1631 = vsel %vm387, %v1615, %v1350
  %v1634 = vsel %vm387, %v1617, %v1351
  %v1637 = vsel %vm387, %v1618, %v1352
  %v1640 = vsel %vm387, %v1620, %v1353
  %v1644 = vsel %vm357, %v1377, %v1399
  %v1647 = vsel %vm357, %v1378, %v1400
  %v1650 = vsel %vm357, %v1379, %v1401
  %v1653 = vsel %vm357, %v1380, %v1402
  %v1655 = vsel %vm357, %v1381, %v1380
  %v1658 = vsel %vm357, %v1382, %v1403
  %v1661 = vsel %vm357, %v1383, %v1404
  %v1663 = vsel %vm375, %v1644, %v1421
  %v1665 = vsel %vm375, %v1647, %v1422
  %v1667 = vsel %vm375, %v1650, %v1423
  %v1669 = vsel %vm375, %v1653, %v1424
  %v1671 = vsel %vm375, %v1655, %v1425
  %v1673 = vsel %vm375, %v1658, %v1426
  %v1675 = vsel %vm375, %v1661, %v1427
  %v1677 = vsel %vm387, %v1663, %v1437
  %v1679 = vsel %vm387, %v1665, %v1421
  %v1682 = vsel %vm387, %v1667, %v1438
  %v1685 = vsel %vm387, %v1669, %v1439
  %v1688 = vsel %vm387, %v1671, %v1440
  %v1690 = vsel %vm387, %v1673, %v1425
  %v1693 = vsel %vm387, %v1675, %v1441
  %v1697 = vsel %vm357, %v1453, %v1476
  %v1700 = vsel %vm357, %v1454, %v1477
  %v1703 = vsel %vm357, %v1455, %v1478
  %v1706 = vsel %vm357, %v1456, %v1479
  %v1709 = vsel %vm357, %v1457, %v1480
  %v1712 = vsel %vm357, %v1458, %v1481
  %v1715 = vsel %vm357, %v1459, %v1482
  %v1717 = vsel %vm375, %v1697, %v1496
  %v1719 = vsel %vm375, %v1700, %v1497
  %v1721 = vsel %vm375, %v1703, %v1498
  %v1723 = vsel %vm375, %v1706, %v1499
  %v1725 = vsel %vm375, %v1709, %v1500
  %v1727 = vsel %vm375, %v1712, %v1501
  %v1729 = vsel %vm375, %v1715, %v1502
  %v1731 = vsel %vm387, %v1717, %v1511
  %v1734 = vsel %vm387, %v1719, %v1512
  %v1737 = vsel %vm387, %v1721, %v1513
  %v1740 = vsel %vm387, %v1723, %v1514
  %v1742 = vsel %vm387, %v1725, %v1499
  %v1745 = vsel %vm387, %v1727, %v1515
  %v1748 = vsel %vm387, %v1729, %v1516
  %v1752 = vsel %vm357, %v1533, %v1548
  %v1754 = vsel %vm357, %v1534, %v1533
  %v1757 = vsel %vm357, %v1535, %v1549
  %v1760 = vsel %vm357, %v1536, %v1550
  %v1763 = vsel %vm357, %v1537, %v1551
  %v1765 = vsel %vm357, %v1538, %v1537
  %v1768 = vsel %vm357, %v1539, %v1552
  %v1770 = vsel %vm375, %v1752, %v1563
  %v1772 = vsel %vm375, %v1754, %v1564
  %v1774 = vsel %vm375, %v1757, %v1565
  %v1776 = vsel %vm375, %v1760, %v1566
  %v1778 = vsel %vm375, %v1763, %v1567
  %v1780 = vsel %vm375, %v1765, %v1568
  %v1782 = vsel %vm375, %v1768, %v1569
  %v1784 = vsel %vm387, %v1770, %v1586
  %v1787 = vsel %vm387, %v1772, %v1587
  %v1790 = vsel %vm387, %v1774, %v1588
  %v1793 = vsel %vm387, %v1776, %v1589
  %v1796 = vsel %vm387, %v1778, %v1590
  %v1799 = vsel %vm387, %v1780, %v1591
  %v1802 = vsel %vm387, %v1782, %v1592
  %1804 = vrot.lane.b32.xlu0 %v1280, 117
  %v1805 = vpop.permute.xlu0 %1804
  %1806 = vrot.lane.b32.xlu0 %v1279, 117
  %v1807 = vpop.permute.xlu0 %1806
  %1808 = vrot.lane.b32.xlu0 %v1281, 117
  %v1809 = vpop.permute.xlu0 %1808
  %1810 = vrot.lane.b32.xlu0 %v1297, 117
  %v1811 = vpop.permute.xlu0 %1810
  %1812 = vrot.lane.b32.xlu0 %v1296, 117
  %v1813 = vpop.permute.xlu0 %1812
  %1814 = vrot.lane.b32.xlu0 %v1355, 117
  %v1815 = vpop.permute.xlu0 %1814
  %1816 = vrot.lane.b32.xlu0 %v1362, 117
  %v1817 = vpop.permute.xlu0 %1816
  %v1818 = vsel %vm349, %v1805, %v1807
  %v1819 = vsel %vm349, %v1807, %v1809
  %v1820 = vsel %vm349, %v1809, %v1585
  %v1821 = vsel %vm349, %v1585, %v1811
  %v1822 = vsel %vm349, %v1811, %v1813
  %v1823 = vsel %vm349, %v1813, %v1815
  %v1824 = vsel %vm349, %v1815, %v1817
  %1825 = vrot.lane.b32.xlu0 %v1315, 117
  %v1826 = vpop.permute.xlu0 %1825
  %1827 = vrot.lane.b32.xlu0 %v1391, 117
  %v1828 = vpop.permute.xlu0 %1827
  %1829 = vrot.lane.b32.xlu0 %v1392, 117
  %v1830 = vpop.permute.xlu0 %1829
  %v1831 = vsel %vm349, %v1577, %v1805
  %v1832 = vsel %vm349, %v1805, %v1581
  %v1833 = vsel %vm349, %v1581, %v1826
  %v1834 = vsel %vm349, %v1826, %v1585
  %v1835 = vsel %vm349, %v1811, %v1828
  %v1836 = vsel %vm349, %v1828, %v1830
  %1837 = vrot.lane.b32.xlu0 %v1329, 110
  %v1838 = vpop.permute.xlu0 %1837
  %1839 = vrot.lane.b32.xlu0 %v1272, 110
  %v1840 = vpop.permute.xlu0 %1839
  %1841 = vrot.lane.b32.xlu0 %v1317, 110
  %v1842 = vpop.permute.xlu0 %1841
  %1843 = vrot.lane.b32.xlu0 %v1279, 110
  %v1844 = vpop.permute.xlu0 %1843
  %1845 = vrot.lane.b32.xlu0 %v1318, 110
  %v1846 = vpop.permute.xlu0 %1845
  %1847 = vrot.lane.b32.xlu0 %v1289, 110
  %v1848 = vpop.permute.xlu0 %1847
  %1849 = vrot.lane.b32.xlu0 %v1319, 110
  %v1850 = vpop.permute.xlu0 %1849
  %1851 = vrot.lane.b32.xlu0 %v1296, 110
  %v1852 = vpop.permute.xlu0 %1851
  %v1853 = vsel %vm620, %v1838, %v1840
  %v1854 = vsel %vm620, %v1840, %v1842
  %v1855 = vsel %vm620, %v1842, %v1844
  %v1856 = vsel %vm620, %v1844, %v1846
  %v1857 = vsel %vm620, %v1846, %v1848
  %v1858 = vsel %vm620, %v1848, %v1850
  %v1859 = vsel %vm620, %v1850, %v1852
  %1860 = vrot.lane.b32.xlu0 %v1305, 110
  %v1861 = vpop.permute.xlu0 %1860
  %1862 = vrot.lane.b32.xlu0 %v1330, 110
  %v1863 = vpop.permute.xlu0 %1862
  %1864 = vrot.lane.b32.xlu0 %v1314, 110
  %v1865 = vpop.permute.xlu0 %1864
  %1866 = vrot.lane.b32.xlu0 %v1428, 110
  %v1867 = vpop.permute.xlu0 %1866
  %v1868 = vsel %vm620, %v1861, %v1838
  %v1869 = vsel %vm620, %v1840, %v1863
  %v1870 = vsel %vm620, %v1863, %v1865
  %v1871 = vsel %vm620, %v1865, %v1846
  %v1872 = vsel %vm620, %v1848, %v1867
  %1873 = vrot.lane.b32.xlu0 %v1281, 110
  %v1874 = vpop.permute.xlu0 %1873
  %1875 = vrot.lane.b32.xlu0 %v1297, 110
  %v1876 = vpop.permute.xlu0 %1875
  %1877 = vrot.lane.b32.xlu0 %v1355, 110
  %v1878 = vpop.permute.xlu0 %1877
  %1879 = vrot.lane.b32.xlu0 %v1362, 110
  %v1880 = vpop.permute.xlu0 %1879
  %1881 = vrot.lane.b32.xlu0 %v1442, 110
  %v1882 = vpop.permute.xlu0 %1881
  %v1883 = vsel %vm620, %v1844, %v1874
  %v1884 = vsel %vm620, %v1874, %v1848
  %v1885 = vsel %vm620, %v1848, %v1876
  %v1886 = vsel %vm620, %v1876, %v1852
  %v1887 = vsel %vm620, %v1852, %v1878
  %v1888 = vsel %vm620, %v1878, %v1880
  %v1889 = vsel %vm620, %v1880, %v1882
  %1890 = vrot.lane.b32.xlu0 %v1305, 109
  %v1891 = vpop.permute.xlu0 %1890
  %1892 = vrot.lane.b32.xlu0 %v1306, 109
  %v1893 = vpop.permute.xlu0 %1892
  %1894 = vrot.lane.b32.xlu0 %v1272, 109
  %v1895 = vpop.permute.xlu0 %1894
  %1896 = vrot.lane.b32.xlu0 %v1280, 109
  %v1897 = vpop.permute.xlu0 %1896
  %1898 = vrot.lane.b32.xlu0 %v1314, 109
  %v1899 = vpop.permute.xlu0 %1898
  %1900 = vrot.lane.b32.xlu0 %v1315, 109
  %v1901 = vpop.permute.xlu0 %1900
  %1902 = vrot.lane.b32.xlu0 %v1289, 109
  %v1903 = vpop.permute.xlu0 %1902
  %1904 = vrot.lane.b32.xlu0 %v1297, 109
  %v1905 = vpop.permute.xlu0 %1904
  %v1906 = vsel %vm674, %v1891, %v1893
  %v1907 = vsel %vm674, %v1893, %v1895
  %v1908 = vsel %vm674, %v1895, %v1897
  %v1909 = vsel %vm674, %v1897, %v1899
  %v1910 = vsel %vm674, %v1899, %v1901
  %v1911 = vsel %vm674, %v1901, %v1903
  %v1912 = vsel %vm674, %v1903, %v1905
  %1913 = vrot.lane.b32.xlu0 %v1317, 109
  %v1914 = vpop.permute.xlu0 %1913
  %1915 = vrot.lane.b32.xlu0 %v1279, 109
  %v1916 = vpop.permute.xlu0 %1915
  %1917 = vrot.lane.b32.xlu0 %v1318, 109
  %v1918 = vpop.permute.xlu0 %1917
  %1919 = vrot.lane.b32.xlu0 %v1319, 109
  %v1920 = vpop.permute.xlu0 %1919
  %1921 = vrot.lane.b32.xlu0 %v1296, 109
  %v1922 = vpop.permute.xlu0 %1921
  %1923 = vrot.lane.b32.xlu0 %v1483, 109
  %v1924 = vpop.permute.xlu0 %1923
  %v1925 = vsel %vm674, %v1895, %v1914
  %v1926 = vsel %vm674, %v1914, %v1916
  %v1927 = vsel %vm674, %v1916, %v1918
  %v1928 = vsel %vm674, %v1918, %v1903
  %v1929 = vsel %vm674, %v1903, %v1920
  %v1930 = vsel %vm674, %v1920, %v1922
  %v1931 = vsel %vm674, %v1922, %v1924
  %1932 = vrot.lane.b32.xlu0 %v1329, 109
  %v1933 = vpop.permute.xlu0 %1932
  %1934 = vrot.lane.b32.xlu0 %v1330, 109
  %v1935 = vpop.permute.xlu0 %1934
  %1936 = vrot.lane.b32.xlu0 %v1428, 109
  %v1937 = vpop.permute.xlu0 %1936
  %1938 = vrot.lane.b32.xlu0 %v1391, 109
  %v1939 = vpop.permute.xlu0 %1938
  %v1940 = vsel %vm674, %v1933, %v1895
  %v1941 = vsel %vm674, %v1895, %v1935
  %v1942 = vsel %vm674, %v1935, %v1899
  %v1943 = vsel %vm674, %v1899, %v1918
  %v1944 = vsel %vm674, %v1903, %v1937
  %v1945 = vsel %vm674, %v1937, %v1939
  %1946 = vrot.lane.b32.xlu0 %v1272, 108
  %v1947 = vpop.permute.xlu0 %1946
  %1948 = vrot.lane.b32.xlu0 %v1280, 108
  %v1949 = vpop.permute.xlu0 %1948
  %1950 = vrot.lane.b32.xlu0 %v1279, 108
  %v1951 = vpop.permute.xlu0 %1950
  %1952 = vrot.lane.b32.xlu0 %v1281, 108
  %v1953 = vpop.permute.xlu0 %1952
  %1954 = vrot.lane.b32.xlu0 %v1289, 108
  %v1955 = vpop.permute.xlu0 %1954
  %1956 = vrot.lane.b32.xlu0 %v1297, 108
  %v1957 = vpop.permute.xlu0 %1956
  %1958 = vrot.lane.b32.xlu0 %v1296, 108
  %v1959 = vpop.permute.xlu0 %1958
  %1960 = vrot.lane.b32.xlu0 %v1355, 108
  %v1961 = vpop.permute.xlu0 %1960
  %v1962 = vsel %vm731, %v1947, %v1949
  %v1963 = vsel %vm731, %v1949, %v1951
  %v1964 = vsel %vm731, %v1951, %v1953
  %v1965 = vsel %vm731, %v1953, %v1955
  %v1966 = vsel %vm731, %v1955, %v1957
  %v1967 = vsel %vm731, %v1957, %v1959
  %v1968 = vsel %vm731, %v1959, %v1961
  %1969 = vrot.lane.b32.xlu0 %v1306, 108
  %v1970 = vpop.permute.xlu0 %1969
  %1971 = vrot.lane.b32.xlu0 %v1314, 108
  %v1972 = vpop.permute.xlu0 %1971
  %1973 = vrot.lane.b32.xlu0 %v1315, 108
  %v1974 = vpop.permute.xlu0 %1973
  %1975 = vrot.lane.b32.xlu0 %v1391, 108
  %v1976 = vpop.permute.xlu0 %1975
  %v1977 = vsel %vm731, %v1970, %v1947
  %v1978 = vsel %vm731, %v1949, %v1972
  %v1979 = vsel %vm731, %v1972, %v1974
  %v1980 = vsel %vm731, %v1974, %v1955
  %v1981 = vsel %vm731, %v1957, %v1976
  %1982 = vrot.lane.b32.xlu0 %v1317, 108
  %v1983 = vpop.permute.xlu0 %1982
  %1984 = vrot.lane.b32.xlu0 %v1318, 108
  %v1985 = vpop.permute.xlu0 %1984
  %1986 = vrot.lane.b32.xlu0 %v1319, 108
  %v1987 = vpop.permute.xlu0 %1986
  %1988 = vrot.lane.b32.xlu0 %v1483, 108
  %v1989 = vpop.permute.xlu0 %1988
  %1990 = vrot.lane.b32.xlu0 %v1362, 108
  %v1991 = vpop.permute.xlu0 %1990
  %v1992 = vsel %vm731, %v1983, %v1951
  %v1993 = vsel %vm731, %v1951, %v1985
  %v1994 = vsel %vm731, %v1985, %v1955
  %v1995 = vsel %vm731, %v1955, %v1987
  %v1996 = vsel %vm731, %v1987, %v1959
  %v1997 = vsel %vm731, %v1959, %v1989
  %v1998 = vsel %vm731, %v1989, %v1991
  %v2001 = vsel %vm357, %v1818, %v1831
  %v2004 = vsel %vm357, %v1819, %v1832
  %v2007 = vsel %vm357, %v1820, %v1833
  %v2010 = vsel %vm357, %v1821, %v1834
  %v2012 = vsel %vm357, %v1822, %v1821
  %v2015 = vsel %vm357, %v1823, %v1835
  %v2018 = vsel %vm357, %v1824, %v1836
  %v2020 = vsel %vm375, %v2001, %v1853
  %v2022 = vsel %vm375, %v2004, %v1854
  %v2024 = vsel %vm375, %v2007, %v1855
  %v2026 = vsel %vm375, %v2010, %v1856
  %v2028 = vsel %vm375, %v2012, %v1857
  %v2030 = vsel %vm375, %v2015, %v1858
  %v2032 = vsel %vm375, %v2018, %v1859
  %v2034 = vsel %vm387, %v2020, %v1868
  %v2036 = vsel %vm387, %v2022, %v1853
  %v2039 = vsel %vm387, %v2024, %v1869
  %v2042 = vsel %vm387, %v2026, %v1870
  %v2045 = vsel %vm387, %v2028, %v1871
  %v2047 = vsel %vm387, %v2030, %v1857
  %v2050 = vsel %vm387, %v2032, %v1872
  %v2054 = vsel %vm357, %v1883, %v1906
  %v2057 = vsel %vm357, %v1884, %v1907
  %v2060 = vsel %vm357, %v1885, %v1908
  %v2063 = vsel %vm357, %v1886, %v1909
  %v2066 = vsel %vm357, %v1887, %v1910
  %v2069 = vsel %vm357, %v1888, %v1911
  %v2072 = vsel %vm357, %v1889, %v1912
  %v2074 = vsel %vm375, %v2054, %v1925
  %v2076 = vsel %vm375, %v2057, %v1926
  %v2078 = vsel %vm375, %v2060, %v1927
  %v2080 = vsel %vm375, %v2063, %v1928
  %v2082 = vsel %vm375, %v2066, %v1929
  %v2084 = vsel %vm375, %v2069, %v1930
  %v2086 = vsel %vm375, %v2072, %v1931
  %v2088 = vsel %vm387, %v2074, %v1940
  %v2091 = vsel %vm387, %v2076, %v1941
  %v2094 = vsel %vm387, %v2078, %v1942
  %v2097 = vsel %vm387, %v2080, %v1943
  %v2099 = vsel %vm387, %v2082, %v1928
  %v2102 = vsel %vm387, %v2084, %v1944
  %v2105 = vsel %vm387, %v2086, %v1945
  %v2109 = vsel %vm357, %v1962, %v1977
  %v2111 = vsel %vm357, %v1963, %v1962
  %v2114 = vsel %vm357, %v1964, %v1978
  %v2117 = vsel %vm357, %v1965, %v1979
  %v2120 = vsel %vm357, %v1966, %v1980
  %v2122 = vsel %vm357, %v1967, %v1966
  %v2125 = vsel %vm357, %v1968, %v1981
  %v2127 = vsel %vm375, %v2109, %v1992
  %v2129 = vsel %vm375, %v2111, %v1993
  %v2131 = vsel %vm375, %v2114, %v1994
  %v2133 = vsel %vm375, %v2117, %v1995
  %v2135 = vsel %vm375, %v2120, %v1996
  %v2137 = vsel %vm375, %v2122, %v1997
  %v2139 = vsel %vm375, %v2125, %v1998
  %v2140 = vld [vmem:[%s1] sm:$0x1]
  %v2141 = vld [vmem:[%s2] sm:$0x3]
  %2143 = vset.pattern.permute.xlu0 0
  %2144 = vperm.xlu0 %2143, %v2141
  %v2145 = vpop.permute.xlu0 %2144
  %v2148 = vsel %vm917, %v2140, 0
  %v2150 = vsel %vm387, %v2127, 0
  %v2152 = vsel %vm387, %v2129, 0
  %v2154 = vsel %vm387, %v2131, 0
  %v2156 = vsel %vm387, %v2133, 0
  %v2158 = vsel %vm387, %v2135, 0
  %v2160 = vsel %vm387, %v2137, 0
  %v2162 = vsel %vm387, %v2139, 0
  %2164 = vmatprep.subr.bf16.mxu0 %v1625
  %2165 = vmatpush1.bf16.msra.mxu0 %v1622
  %2166 = vmatprep.subr.bf16.mxu0 %v1679
  %2167 = vmatpush1.bf16.msra.mxu0 %v1677
  %2168 = vmatprep.subr.bf16.mxu0 %v1734
  %2169 = vmatpush1.bf16.msra.mxu0 %v1731
  %2170 = vmatprep.subr.bf16.mxu0 %v1787
  %2171 = vmatpush1.bf16.msra.mxu0 %v1784
  %2172 = vmatprep.subr.bf16.mxu0 %v2036
  %2173 = vmatpush1.bf16.msra.mxu0 %v2034
  %2174 = vmatprep.subr.bf16.mxu0 %v2091
  %2175 = vmatpush1.bf16.msra.mxu0 %v2088
  %2176 = vmatprep.subr.bf16.mxu0 %v2152
  %2177 = vmatpush1.bf16.msra.mxu0 %v2150
  %2178 = vmatprep.subr.bf16.mxu0 0
  %2179 = vmatpush1.bf16.msra.mxu0 0
  %2180 = vmatprep.subr.bf16.mxu0 0
  %2181 = vmatpush1.bf16.msra.mxu0 0
  %2182 = vmatprep.subr.bf16.mxu0 0
  %2183 = vmatpush1.bf16.msra.mxu0 0
  %2184 = vmatprep.subr.bf16.mxu0 0
  %2185 = vmatpush1.bf16.msra.mxu0 0
  %2186 = vmatprep.subr.bf16.mxu0 0
  %2187 = vmatpush1.bf16.msra.mxu0 0
  %2188 = vmatprep.subr.bf16.mxu0 0
  %2189 = vmatpush1.bf16.msra.mxu0 0
  %2190 = vmatprep.subr.bf16.mxu0 0
  %2191 = vmatpush1.bf16.msra.mxu0 0
  %2192 = vmatprep.subr.bf16.mxu0 0
  %2193 = vmatpush1.bf16.msra.mxu0 0
  %2194 = vmatprep.subr.bf16.mxu0 0
  %2195 = vmatpush1.bf16.msra.mxu0 0
  %2196 = vmatprep.mubr.bf16.mxu0 0
  %2197 = vmatmul.mubr.bf16.gmra.mrb[0].mxu0 %v2148
  %v2198 = vpop.f32.mrb[0].mxu0
  %v2199 = vadd.f32 %v2145, %v2198
  %v2200 = vpop.f32.mrb[0].mxu0
  %v2201 = vadd.f32 %v2145, %v2200
  %v2202 = vpop.f32.mrb[0].mxu0
  %v2203 = vpop.f32.mrb[0].mxu0
  %2204 = vdwg.mxu0
  %2205 = vmatprep.subr.bf16.mxu0 %v1631
  %2206 = vmatpush1.bf16.msra.mxu0 %v1628
  %2207 = vmatprep.subr.bf16.mxu0 %v1685
  %2208 = vmatpush1.bf16.msra.mxu0 %v1682
  %2209 = vmatprep.subr.bf16.mxu0 %v1740
  %2210 = vmatpush1.bf16.msra.mxu0 %v1737
  %2211 = vmatprep.subr.bf16.mxu0 %v1793
  %2212 = vmatpush1.bf16.msra.mxu0 %v1790
  %2213 = vmatprep.subr.bf16.mxu0 %v2042
  %2214 = vmatpush1.bf16.msra.mxu0 %v2039
  %2215 = vmatprep.subr.bf16.mxu0 %v2097
  %2216 = vmatpush1.bf16.msra.mxu0 %v2094
  %2217 = vmatprep.subr.bf16.mxu0 %v2156
  %2218 = vmatpush1.bf16.msra.mxu0 %v2154
  %2219 = vmatprep.subr.bf16.mxu0 0
  %2220 = vmatpush1.bf16.msra.mxu0 0
  %2221 = vmatprep.subr.bf16.mxu0 0
  %2222 = vmatpush1.bf16.msra.mxu0 0
  %2223 = vmatprep.subr.bf16.mxu0 0
  %2224 = vmatpush1.bf16.msra.mxu0 0
  %2225 = vmatprep.subr.bf16.mxu0 0
  %2226 = vmatpush1.bf16.msra.mxu0 0
  %2227 = vmatprep.subr.bf16.mxu0 0
  %2228 = vmatpush1.bf16.msra.mxu0 0
  %2229 = vmatprep.subr.bf16.mxu0 0
  %2230 = vmatpush1.bf16.msra.mxu0 0
  %2231 = vmatprep.subr.bf16.mxu0 0
  %2232 = vmatpush1.bf16.msra.mxu0 0
  %2233 = vmatprep.subr.bf16.mxu0 0
  %2234 = vmatpush1.bf16.msra.mxu0 0
  %2235 = vmatprep.subr.bf16.mxu0 0
  %2236 = vmatpush1.bf16.msra.mxu0 0
  %2237 = vmatprep.mubr.bf16.mxu0 0
  %2238 = vmatmul.mubr.bf16.gmra.mrb[0].mxu0 %v2148
  %v2239 = vpop.f32.mrb[0].mxu0
  %v2240 = vadd.f32 %v2145, %v2239
  %v2241 = vpop.f32.mrb[0].mxu0
  %v2242 = vadd.f32 %v2145, %v2241
  %v2243 = vpop.f32.mrb[0].mxu0
  %v2244 = vpop.f32.mrb[0].mxu0
  %2245 = vdwg.mxu0
  %2246 = vmatprep.subr.bf16.mxu0 %v1637
  %2247 = vmatpush1.bf16.msra.mxu0 %v1634
  %2248 = vmatprep.subr.bf16.mxu0 %v1690
  %2249 = vmatpush1.bf16.msra.mxu0 %v1688
  %2250 = vmatprep.subr.bf16.mxu0 %v1745
  %2251 = vmatpush1.bf16.msra.mxu0 %v1742
  %2252 = vmatprep.subr.bf16.mxu0 %v1799
  %2253 = vmatpush1.bf16.msra.mxu0 %v1796
  %2254 = vmatprep.subr.bf16.mxu0 %v2047
  %2255 = vmatpush1.bf16.msra.mxu0 %v2045
  %2256 = vmatprep.subr.bf16.mxu0 %v2102
  %2257 = vmatpush1.bf16.msra.mxu0 %v2099
  %2258 = vmatprep.subr.bf16.mxu0 %v2160
  %2259 = vmatpush1.bf16.msra.mxu0 %v2158
  %2260 = vmatprep.subr.bf16.mxu0 0
  %2261 = vmatpush1.bf16.msra.mxu0 0
  %2262 = vmatprep.subr.bf16.mxu0 0
  %2263 = vmatpush1.bf16.msra.mxu0 0
  %2264 = vmatprep.subr.bf16.mxu0 0
  %2265 = vmatpush1.bf16.msra.mxu0 0
  %2266 = vmatprep.subr.bf16.mxu0 0
  %2267 = vmatpush1.bf16.msra.mxu0 0
  %2268 = vmatprep.subr.bf16.mxu0 0
  %2269 = vmatpush1.bf16.msra.mxu0 0
  %2270 = vmatprep.subr.bf16.mxu0 0
  %2271 = vmatpush1.bf16.msra.mxu0 0
  %2272 = vmatprep.subr.bf16.mxu0 0
  %2273 = vmatpush1.bf16.msra.mxu0 0
  %2274 = vmatprep.subr.bf16.mxu0 0
  %2275 = vmatpush1.bf16.msra.mxu0 0
  %2276 = vmatprep.subr.bf16.mxu0 0
  %2277 = vmatpush1.bf16.msra.mxu0 0
  %2278 = vmatprep.mubr.bf16.mxu0 0
  %2279 = vmatmul.mubr.bf16.gmra.mrb[0].mxu0 %v2148
  %v2280 = vpop.f32.mrb[0].mxu0
  %v2281 = vadd.f32 %v2145, %v2280
  %v2282 = vpop.f32.mrb[0].mxu0
  %v2283 = vadd.f32 %v2145, %v2282
  %v2284 = vpop.f32.mrb[0].mxu0
  %v2285 = vpop.f32.mrb[0].mxu0
  %2286 = vdwg.mxu0
  %2287 = vmatprep.subr.bf16.mxu0 0
  %2288 = vmatpush1.bf16.msra.mxu0 %v1640
  %2289 = vmatprep.subr.bf16.mxu0 0
  %2290 = vmatpush1.bf16.msra.mxu0 %v1693
  %2291 = vmatprep.subr.bf16.mxu0 0
  %2292 = vmatpush1.bf16.msra.mxu0 %v1748
  %2293 = vmatprep.subr.bf16.mxu0 0
  %2294 = vmatpush1.bf16.msra.mxu0 %v1802
  %2295 = vmatprep.subr.bf16.mxu0 0
  %2296 = vmatpush1.bf16.msra.mxu0 %v2050
  %2297 = vmatprep.subr.bf16.mxu0 0
  %2298 = vmatpush1.bf16.msra.mxu0 %v2105
  %2299 = vmatprep.subr.bf16.mxu0 0
  %2300 = vmatpush1.bf16.msra.mxu0 %v2162
  %2301 = vmatprep.subr.bf16.mxu0 0
  %2302 = vmatpush1.bf16.msra.mxu0 0
  %2303 = vmatprep.subr.bf16.mxu0 0
  %2304 = vmatpush1.bf16.msra.mxu0 0
  %2305 = vmatprep.subr.bf16.mxu0 0
  %2306 = vmatpush1.bf16.msra.mxu0 0
  %2307 = vmatprep.subr.bf16.mxu0 0
  %2308 = vmatpush1.bf16.msra.mxu0 0
  %2309 = vmatprep.subr.bf16.mxu0 0
  %2310 = vmatpush1.bf16.msra.mxu0 0
  %2311 = vmatprep.subr.bf16.mxu0 0
  %2312 = vmatpush1.bf16.msra.mxu0 0
  %2313 = vmatprep.subr.bf16.mxu0 0
  %2314 = vmatpush1.bf16.msra.mxu0 0
  %2315 = vmatprep.subr.bf16.mxu0 0
  %2316 = vmatpush1.bf16.msra.mxu0 0
  %2317 = vmatprep.subr.bf16.mxu0 0
  %2318 = vmatpush1.bf16.msra.mxu0 0
  %2319 = vmatprep.mubr.bf16.mxu0 0
  %2320 = vmatmul.mubr.bf16.gmra.mrb[0].mxu0 %v2148
  %v2321 = vpop.f32.mrb[0].mxu0
  %v2322 = vadd.f32 %v2145, %v2321
  %v2323 = vpop.f32.mrb[0].mxu0
  %v2324 = vpop.f32.mrb[0].mxu0
  %v2325 = vpop.f32.mrb[0].mxu0
  %2326 = vdwg.mxu0
  %v2327 = vld [vmem:[%s3] sm:$0xff]
  %v2329 = vlaneseq
  %v2330 = vshrl.u32 %v2329, 7
  %v2331 = vsub.s32 0, %v2330
  %v2332 = vrot.slane %v2327, %v2331
  %v2333 = vlaneseq
  %v2334 = vshrl.u32 %v2333, 7
  %v2335 = vsub.s32 1, %v2334
  %v2336 = vrot.slane %v2327, %v2335
  %v2337 = vlaneseq
  %v2338 = vshrl.u32 %v2337, 7
  %v2339 = vsub.s32 2, %v2338
  %v2340 = vrot.slane %v2327, %v2339
  %v2341 = vlaneseq
  %v2342 = vshrl.u32 %v2341, 7
  %v2343 = vsub.s32 3, %v2342
  %v2344 = vrot.slane %v2327, %v2343
  %v2345 = vlaneseq
  %v2346 = vshrl.u32 %v2345, 7
  %v2347 = vsub.s32 4, %v2346
  %v2348 = vrot.slane %v2327, %v2347
  %v2349 = vlaneseq
  %v2350 = vshrl.u32 %v2349, 7
  %v2351 = vsub.s32 5, %v2350
  %v2352 = vrot.slane %v2327, %v2351
  %v2353 = vlaneseq
  %v2354 = vshrl.u32 %v2353, 7
  %v2355 = vsub.s32 6, %v2354
  %v2356 = vrot.slane %v2327, %v2355
  %v2364 = vmul.f32 %v2199, %v2332
  %v2365 = vmul.f32 %v2201, %v2336
  %v2366 = vmul.f32 %v2240, %v2340
  %v2367 = vmul.f32 %v2242, %v2344
  %v2368 = vmul.f32 %v2281, %v2348
  %v2369 = vmul.f32 %v2283, %v2352
  %v2370 = vmul.f32 %v2322, %v2356
  %v2371 = vsel %vm357, %v2364, 0.0
  %v2372 = vsel %vm357, %v2365, 0.0
  %v2373 = vadd.f32 %v2371, %v2372
  %v2374 = vsel %vm357, %v2366, 0.0
  %v2375 = vadd.f32 %v2373, %v2374
  %v2376 = vsel %vm357, %v2367, 0.0
  %v2377 = vadd.f32 %v2375, %v2376
  %v2378 = vsel %vm357, %v2368, 0.0
  %v2379 = vadd.f32 %v2377, %v2378
  %v2380 = vsel %vm357, %v2369, 0.0
  %v2381 = vadd.f32 %v2379, %v2380
  %v2382 = vsel %vm357, %v2370, 0.0
  %v2383 = vadd.f32 %v2381, %v2382
  %2384 = vadd.xlane.f32.xlu0 %v2383
  %v2385 = vpop.xlane.xlu0 %2384
  %v2386 = vmul.f32 %v2385, 0.002915452
  %v2387 = vmul.f32 %v2364, %v2199
  %v2388 = vmul.f32 %v2365, %v2201
  %v2389 = vmul.f32 %v2366, %v2240
  %v2390 = vmul.f32 %v2367, %v2242
  %v2391 = vmul.f32 %v2368, %v2281
  %v2392 = vmul.f32 %v2369, %v2283
  %v2393 = vmul.f32 %v2370, %v2322
  %v2394 = vsel %vm357, %v2387, 0.0
  %v2395 = vsel %vm357, %v2388, 0.0
  %v2396 = vadd.f32 %v2394, %v2395
  %v2397 = vsel %vm357, %v2389, 0.0
  %v2398 = vadd.f32 %v2396, %v2397
  %v2399 = vsel %vm357, %v2390, 0.0
  %v2400 = vadd.f32 %v2398, %v2399
  %v2401 = vsel %vm357, %v2391, 0.0
  %v2402 = vadd.f32 %v2400, %v2401
  %v2403 = vsel %vm357, %v2392, 0.0
  %v2404 = vadd.f32 %v2402, %v2403
  %v2405 = vsel %vm357, %v2393, 0.0
  %v2406 = vadd.f32 %v2404, %v2405
  %2407 = vadd.xlane.f32.xlu0 %v2406
  %v2408 = vpop.xlane.xlu0 %2407
  %v2409 = vmul.f32 %v2408, 0.002915452
  %v2410 = vmul.f32 %v2386, %v2386
  %v2411 = vsub.f32 %v2409, %v2410
  %v2412 = vmax.f32 %v2411, 0.0
  %v2413 = vsub.f32 %v2199, %v2386
  %v2414 = vsub.f32 %v2201, %v2386
  %v2415 = vsub.f32 %v2240, %v2386
  %v2416 = vsub.f32 %v2242, %v2386
  %v2417 = vsub.f32 %v2281, %v2386
  %v2418 = vsub.f32 %v2283, %v2386
  %v2419 = vsub.f32 %v2322, %v2386
  %v2420 = vadd.f32 %v2412, 1e-05
  %v2421 = vrsqrt.pop %v2420
  %v2422 = vmul.f32 %v2413, %v2421
  %v2423 = vmul.f32 %v2414, %v2421
  %v2424 = vmul.f32 %v2415, %v2421
  %v2425 = vmul.f32 %v2416, %v2421
  %v2426 = vmul.f32 %v2417, %v2421
  %v2427 = vmul.f32 %v2418, %v2421
  %v2428 = vmul.f32 %v2419, %v2421
  %v2429 = vmax.f32 %v2422, 0.0
  %v2430 = vmax.f32 %v2423, 0.0
  %v2431 = vmax.f32 %v2424, 0.0
  %v2432 = vmax.f32 %v2425, 0.0
  %v2433 = vmax.f32 %v2426, 0.0
  %v2434 = vmax.f32 %v2427, 0.0
  %v2435 = vmax.f32 %v2428, 0.0
  %v2436 = vpack.c.bf16 %v2429, %v2429
  %v2437 = vpack.c.bf16 %v2430, %v2430
  %v2438 = vpack.c.bf16 %v2431, %v2431
  %v2439 = vpack.c.bf16 %v2432, %v2432
  %v2440 = vpack.c.bf16 %v2433, %v2433
  %v2441 = vpack.c.bf16 %v2434, %v2434
  %v2442 = vpack.c.bf16 %v2435, %v2435
  %v2450 = vcombine.low %v2436, %v2437
  %v2451 = vcombine.low %v2438, %v2439
  %v2453 = vunpack.c.l.s4 1983009808
  %v2454 = vunpack.c.0.s8 %v2453
  %v2455 = vlaneseq
  %v2456 = vshrl.u32 %v2455, 7
  %v2457 = vsub.s32 %v2454, %v2456
  %v2458 = vrot.slane %v2450, %v2457
  %v2460 = vunpack.c.l.s4 1983009808
  %v2461 = vunpack.c.0.s8 %v2460
  %v2462 = vlaneseq
  %v2463 = vshrl.u32 %v2462, 7
  %v2464 = vsub.s32 %v2461, %v2463
  %v2465 = vrot.slane %v2451, %v2464
  %v2466 = vcombine.low %v2458, %v2465
  %v2467 = vcombine.low %v2440, %v2441
  %v2469 = vunpack.c.l.s4 1983009808
  %v2470 = vunpack.c.0.s8 %v2469
  %v2471 = vlaneseq
  %v2472 = vshrl.u32 %v2471, 7
  %v2473 = vsub.s32 %v2470, %v2472
  %v2474 = vrot.slane %v2467, %v2473
  %v2476 = vunpack.c.l.s4 1983009808
  %v2477 = vunpack.c.0.s8 %v2476
  %v2478 = vlaneseq
  %v2479 = vshrl.u32 %v2478, 7
  %v2480 = vsub.s32 %v2477, %v2479
  %v2481 = vrot.slane %v2442, %v2480
  %v2482 = vcombine.low %v2474, %v2481
  %v2483 = vrot.slane %v2466, 7
  %v2484 = vrot.slane %v2482, 7
  %2487 = vst [vmem:[%s4] sm:$0xaa] %v2483
  %2488 = vst [vmem:[%s4 + $0x8] sm:$0x2a] %v2484
  // Predicated region
  $region18: #{expanding_block_forward.8} parent=0 // pred_check
    _
  $region19: #{expanding_block_forward.8} parent=0 // pred_check_branch
    %2490 = sbr.rel (0) target = $region21
  $region20: #{expanding_block_forward.8} parent=0 // pred_region
    _
  $region21: #{expanding_block_forward.8} parent=0 // pred_fallthru
    _
  // Predicated region
  $region22: #{expanding_block_forward.8} parent=0 // pred_check
    _
  $region23: #{expanding_block_forward.8} parent=0 // pred_check_branch
    %2492 = sbr.rel (0) target = $region25
  $region24: #{expanding_block_forward.8} parent=0 // pred_region
    _
  $region25: #{expanding_block_forward.8} parent=0 // pred_fallthru
    _

// kernel: expanding_block_forward.9
$region0: #{expanding_block_forward.9}
  #allocation0 [shape = 'u32[]', space=smem, size = 0x4, offset = 0x4, fixed_abs, tag = 'smem constant byte address 0x4 - core index']
  #allocation1 [shape = 'u32[144,128]{1,0:T(1,128)}', space=vmem, size = 0x12000, scoped, tag = 'internal scratch']
  %s0 = inlined_call_operand.vmem [shape: bf16[2,2,1280], index: 0, kind: input, shape index: {}]
  %s1 = inlined_call_operand.vmem [shape: bf16[2,16], index: 1, kind: input, shape index: {}]
  %s2 = inlined_call_operand.vmem [shape: f32[2,1], index: 2, kind: input, shape index: {}]
  %s3 = inlined_call_operand.vmem [shape: f32[1,1024], index: 3, kind: input, shape index: {}]
  %s4 = inlined_call_operand.vmem [shape: f32[4,1024], index: 4, kind: output, shape index: {}]
  %s5 = sld [smem:[#allocation0]]
  $region26: #{expanding_block_forward.9} parent=0
    _
  %s7 = ssub.s32 1, %s5
  %s8 = scalar_select 0, %s7, %s5
  // Predicated region
  $region2: #{expanding_block_forward.9} parent=0 // pred_check
    _
  $region3: #{expanding_block_forward.9} parent=0 // pred_check_branch
    %10 = sbr.rel (0) target = $region5
  $region4: #{expanding_block_forward.9} parent=0 // pred_region
    _
  $region5: #{expanding_block_forward.9} parent=0 // pred_fallthru
    _
  // Predicated region
  $region6: #{expanding_block_forward.9} parent=0 // pred_check
    _
  $region7: #{expanding_block_forward.9} parent=0 // pred_check_branch
    %12 = sbr.rel (0) target = $region9
  $region8: #{expanding_block_forward.9} parent=0 // pred_region
    _
  $region9: #{expanding_block_forward.9} parent=0 // pred_fallthru
    _
  // Predicated region
  $region10: #{expanding_block_forward.9} parent=0 // pred_check
    _
  $region11: #{expanding_block_forward.9} parent=0 // pred_check_branch
    %14 = sbr.rel (0) target = $region13
  $region12: #{expanding_block_forward.9} parent=0 // pred_region
    _
  $region13: #{expanding_block_forward.9} parent=0 // pred_fallthru
    _
  // Predicated region
  $region14: #{expanding_block_forward.9} parent=0 // pred_check
    _
  $region15: #{expanding_block_forward.9} parent=0 // pred_check_branch
    %16 = sbr.rel (0) target = $region17
  $region16: #{expanding_block_forward.9} parent=0 // pred_region
    _
  $region17: #{expanding_block_forward.9} parent=0 // pred_fallthru
    _
  %v18 = vld [vmem:[%s0] sm:$0xff]
  %v19 = vld [vmem:[%s0 + $0x8] sm:$0x1]
  %v20 = vld [vmem:[%s0 + $0x8] sm:$0x3]
  %v22 = vcombine.high %v18, %v18
  %v24 = vunpack.c.l.s4 1966171168
  %v25 = vunpack.c.0.s8 %v24
  %v26 = vlaneseq
  %v27 = vshrl.u32 %v26, 7
  %v28 = vsub.s32 %v25, %v27
  %v29 = vrot.slane %v18, %v28
  %v31 = vunpack.c.l.s4 1966171168
  %v32 = vunpack.c.0.s8 %v31
  %v33 = vlaneseq
  %v34 = vshrl.u32 %v33, 7
  %v35 = vsub.s32 %v32, %v34
  %v36 = vrot.slane %v22, %v35
  %v37 = vcombine.high %v29, %v29
  %v38 = vcombine.high %v36, %v36
  %v40 = vunpack.c.l.s4 1966171168
  %v41 = vunpack.c.0.s8 %v40
  %v42 = vlaneseq
  %v43 = vshrl.u32 %v42, 7
  %v44 = vsub.s32 %v41, %v43
  %v45 = vrot.slane %v29, %v44
  %v47 = vunpack.c.l.s4 1966171168
  %v48 = vunpack.c.0.s8 %v47
  %v49 = vlaneseq
  %v50 = vshrl.u32 %v49, 7
  %v51 = vsub.s32 %v48, %v50
  %v52 = vrot.slane %v36, %v51
  %v54 = vunpack.c.l.s4 1966171168
  %v55 = vunpack.c.0.s8 %v54
  %v56 = vlaneseq
  %v57 = vshrl.u32 %v56, 7
  %v58 = vsub.s32 %v55, %v57
  %v59 = vrot.slane %v37, %v58
  %v61 = vunpack.c.l.s4 1966171168
  %v62 = vunpack.c.0.s8 %v61
  %v63 = vlaneseq
  %v64 = vshrl.u32 %v63, 7
  %v65 = vsub.s32 %v62, %v64
  %v66 = vrot.slane %v38, %v65
  %v67 = vcombine.high %v45, %v45
  %v68 = vcombine.high %v52, %v52
  %v69 = vcombine.high %v59, %v59
  %v70 = vcombine.high %v66, %v66
  %v72 = vcombine.low %v18, %v18
  %v74 = vunpack.c.l.s4 1966171168
  %v75 = vunpack.c.0.s8 %v74
  %v76 = vlaneseq
  %v77 = vshrl.u32 %v76, 7
  %v78 = vsub.s32 %v75, %v77
  %v79 = vrot.slane %v72, %v78
  %v80 = vcombine.high %v79, %v79
  %v82 = vunpack.c.l.s4 1966171168
  %v83 = vunpack.c.0.s8 %v82
  %v84 = vlaneseq
  %v85 = vshrl.u32 %v84, 7
  %v86 = vsub.s32 %v83, %v85
  %v87 = vrot.slane %v79, %v86
  %v89 = vunpack.c.l.s4 1966171168
  %v90 = vunpack.c.0.s8 %v89
  %v91 = vlaneseq
  %v92 = vshrl.u32 %v91, 7
  %v93 = vsub.s32 %v90, %v92
  %v94 = vrot.slane %v80, %v93
  %v95 = vcombine.high %v87, %v87
  %v96 = vcombine.high %v94, %v94
  %v97 = vcombine.low %v19, %v19
  %v99 = vunpack.c.l.s4 1966171168
  %v100 = vunpack.c.0.s8 %v99
  %v101 = vlaneseq
  %v102 = vshrl.u32 %v101, 7
  %v103 = vsub.s32 %v100, %v102
  %v104 = vrot.slane %v97, %v103
  %v106 = vunpack.c.l.s4 1966171168
  %v107 = vunpack.c.0.s8 %v106
  %v108 = vlaneseq
  %v109 = vshrl.u32 %v108, 7
  %v110 = vsub.s32 %v107, %v109
  %v111 = vrot.slane %v104, %v110
  %v113 = vcombine.low %v29, %v29
  %v114 = vcombine.low %v36, %v36
  %v116 = vunpack.c.l.s4 1966171168
  %v117 = vunpack.c.0.s8 %v116
  %v118 = vlaneseq
  %v119 = vshrl.u32 %v118, 7
  %v120 = vsub.s32 %v117, %v119
  %v121 = vrot.slane %v113, %v120
  %v123 = vunpack.c.l.s4 1966171168
  %v124 = vunpack.c.0.s8 %v123
  %v125 = vlaneseq
  %v126 = vshrl.u32 %v125, 7
  %v127 = vsub.s32 %v124, %v126
  %v128 = vrot.slane %v114, %v127
  %v129 = vcombine.high %v121, %v121
  %v130 = vcombine.high %v128, %v128
  %v132 = vunpack.c.l.s4 1966171168
  %v133 = vunpack.c.0.s8 %v132
  %v134 = vlaneseq
  %v135 = vshrl.u32 %v134, 7
  %v136 = vsub.s32 %v133, %v135
  %v137 = vrot.slane %v20, %v136
  %v138 = vcombine.low %v137, %v137
  %v140 = vunpack.c.l.s4 1966171168
  %v141 = vunpack.c.0.s8 %v140
  %v142 = vlaneseq
  %v143 = vshrl.u32 %v142, 7
  %v144 = vsub.s32 %v141, %v143
  %v145 = vrot.slane %v138, %v144
  %v147 = vunpack.c.l.s4 1966171168
  %v148 = vunpack.c.0.s8 %v147
  %v149 = vlaneseq
  %v150 = vshrl.u32 %v149, 7
  %v151 = vsub.s32 %v148, %v150
  %v152 = vrot.slane %v137, %v151
  %153 = vrot.lane.b32.xlu0 %v121, 127
  %v154 = vpop.permute.xlu0 %153
  %155 = vrot.lane.b32.xlu0 %v45, 127
  %v156 = vpop.permute.xlu0 %155
  %157 = vrot.lane.b32.xlu0 %v129, 127
  %v158 = vpop.permute.xlu0 %157
  %159 = vrot.lane.b32.xlu0 %v67, 127
  %v160 = vpop.permute.xlu0 %159
  %161 = vrot.lane.b32.xlu0 %v128, 127
  %v162 = vpop.permute.xlu0 %161
  %163 = vrot.lane.b32.xlu0 %v52, 127
  %v164 = vpop.permute.xlu0 %163
  %165 = vrot.lane.b32.xlu0 %v130, 127
  %v166 = vpop.permute.xlu0 %165
  %167 = vrot.lane.b32.xlu0 %v68, 127
  %v168 = vpop.permute.xlu0 %167
  %169 = vrot.lane.b32.xlu0 %v145, 127
  %v170 = vpop.permute.xlu0 %169
  %vm171 = vcmask 1039360
  %v172 = vsel %vm171, %v154, %v156
  %v173 = vsel %vm171, %v156, %v158
  %v174 = vsel %vm171, %v158, %v160
  %v175 = vsel %vm171, %v160, %v162
  %v176 = vsel %vm171, %v162, %v164
  %v177 = vsel %vm171, %v164, %v166
  %v178 = vsel %vm171, %v166, %v168
  %v179 = vsel %vm171, %v168, %v170
  %v180 = vcombine.low %v79, %v79
  %v182 = vunpack.c.l.s4 1966171168
  %v183 = vunpack.c.0.s8 %v182
  %v184 = vlaneseq
  %v185 = vshrl.u32 %v184, 7
  %v186 = vsub.s32 %v183, %v185
  %v187 = vrot.slane %v180, %v186
  %v188 = vcombine.high %v187, %v187
  %v189 = vcombine.low %v20, %v20
  %v191 = vunpack.c.l.s4 1966171168
  %v192 = vunpack.c.0.s8 %v191
  %v193 = vlaneseq
  %v194 = vshrl.u32 %v193, 7
  %v195 = vsub.s32 %v192, %v194
  %v196 = vrot.slane %v189, %v195
  %v197 = vcombine.low %v196, %v196
  %v199 = vunpack.c.l.s4 1966171168
  %v200 = vunpack.c.0.s8 %v199
  %v201 = vlaneseq
  %v202 = vshrl.u32 %v201, 7
  %v203 = vsub.s32 %v200, %v202
  %v204 = vrot.slane %v197, %v203
  %v206 = vunpack.c.l.s4 1966171168
  %v207 = vunpack.c.0.s8 %v206
  %v208 = vlaneseq
  %v209 = vshrl.u32 %v208, 7
  %v210 = vsub.s32 %v207, %v209
  %v211 = vrot.slane %v196, %v210
  %212 = vrot.lane.b32.xlu0 %v87, 127
  %v213 = vpop.permute.xlu0 %212
  %214 = vrot.lane.b32.xlu0 %v188, 127
  %v215 = vpop.permute.xlu0 %214
  %216 = vrot.lane.b32.xlu0 %v95, 127
  %v217 = vpop.permute.xlu0 %216
  %218 = vrot.lane.b32.xlu0 %v204, 127
  %v219 = vpop.permute.xlu0 %218
  %220 = vrot.lane.b32.xlu0 %v211, 127
  %v221 = vpop.permute.xlu0 %220
  %v222 = vsel %vm171, %v213, %v215
  %v223 = vsel %vm171, %v215, %v217
  %v224 = vsel %vm171, %v217, %v154
  %v225 = vsel %vm171, %v160, %v219
  %v226 = vsel %vm171, %v219, %v221
  %v227 = vcombine.low %v45, %v45
  %v228 = vcombine.low %v52, %v52
  %v229 = vcombine.low %v59, %v59
  %v230 = vcombine.low %v66, %v66
  %v231 = vcombine.low %v152, %v152
  %232 = vrot.lane.b32.xlu0 %v227, 119
  %v233 = vpop.permute.xlu0 %232
  %234 = vrot.lane.b32.xlu0 %v229, 119
  %v235 = vpop.permute.xlu0 %234
  %236 = vrot.lane.b32.xlu0 %v45, 119
  %v237 = vpop.permute.xlu0 %236
  %238 = vrot.lane.b32.xlu0 %v59, 119
  %v239 = vpop.permute.xlu0 %238
  %240 = vrot.lane.b32.xlu0 %v228, 119
  %v241 = vpop.permute.xlu0 %240
  %242 = vrot.lane.b32.xlu0 %v230, 119
  %v243 = vpop.permute.xlu0 %242
  %244 = vrot.lane.b32.xlu0 %v52, 119
  %v245 = vpop.permute.xlu0 %244
  %246 = vrot.lane.b32.xlu0 %v66, 119
  %v247 = vpop.permute.xlu0 %246
  %248 = vrot.lane.b32.xlu0 %v231, 119
  %v249 = vpop.permute.xlu0 %248
  %vm250 = vcmask 973824
  %v251 = vsel %vm250, %v233, %v235
  %v252 = vsel %vm250, %v235, %v237
  %v253 = vsel %vm250, %v237, %v239
  %v254 = vsel %vm250, %v239, %v241
  %v255 = vsel %vm250, %v241, %v243
  %v256 = vsel %vm250, %v243, %v245
  %v257 = vsel %vm250, %v245, %v247
  %v258 = vsel %vm250, %v247, %v249
  %v259 = vcombine.low %v94, %v94
  %v260 = vcombine.high %v196, %v196
  %v262 = vunpack.c.l.s4 1966171168
  %v263 = vunpack.c.0.s8 %v262
  %v264 = vlaneseq
  %v265 = vshrl.u32 %v264, 7
  %v266 = vsub.s32 %v263, %v265
  %v267 = vrot.slane %v260, %v266
  %v268 = vcombine.low %v211, %v211
  %v269 = vcombine.low %v267, %v267
  %270 = vrot.lane.b32.xlu0 %v259, 119
  %v271 = vpop.permute.xlu0 %270
  %272 = vrot.lane.b32.xlu0 %v87, 119
  %v273 = vpop.permute.xlu0 %272
  %274 = vrot.lane.b32.xlu0 %v94, 119
  %v275 = vpop.permute.xlu0 %274
  %276 = vrot.lane.b32.xlu0 %v268, 119
  %v277 = vpop.permute.xlu0 %276
  %278 = vrot.lane.b32.xlu0 %v269, 119
  %v279 = vpop.permute.xlu0 %278
  %v280 = vsel %vm250, %v271, %v273
  %v281 = vsel %vm250, %v273, %v275
  %v282 = vsel %vm250, %v275, %v233
  %v283 = vsel %vm250, %v239, %v277
  %v284 = vsel %vm250, %v277, %v279
  %v285 = vcombine.low %v121, %v121
  %v286 = vcombine.low %v128, %v128
  %v287 = vcombine.low %v145, %v145
  %288 = vrot.lane.b32.xlu0 %v285, 118
  %v289 = vpop.permute.xlu0 %288
  %290 = vrot.lane.b32.xlu0 %v227, 118
  %v291 = vpop.permute.xlu0 %290
  %292 = vrot.lane.b32.xlu0 %v121, 118
  %v293 = vpop.permute.xlu0 %292
  %294 = vrot.lane.b32.xlu0 %v45, 118
  %v295 = vpop.permute.xlu0 %294
  %296 = vrot.lane.b32.xlu0 %v286, 118
  %v297 = vpop.permute.xlu0 %296
  %298 = vrot.lane.b32.xlu0 %v228, 118
  %v299 = vpop.permute.xlu0 %298
  %300 = vrot.lane.b32.xlu0 %v128, 118
  %v301 = vpop.permute.xlu0 %300
  %302 = vrot.lane.b32.xlu0 %v52, 118
  %v303 = vpop.permute.xlu0 %302
  %304 = vrot.lane.b32.xlu0 %v287, 118
  %v305 = vpop.permute.xlu0 %304
  %vm306 = vcmask 965632
  %v307 = vsel %vm306, %v289, %v291
  %v308 = vsel %vm306, %v291, %v293
  %v309 = vsel %vm306, %v293, %v295
  %v310 = vsel %vm306, %v295, %v297
  %v311 = vsel %vm306, %v297, %v299
  %v312 = vsel %vm306, %v299, %v301
  %v313 = vsel %vm306, %v301, %v303
  %v314 = vsel %vm306, %v303, %v305
  %v315 = vcombine.low %v87, %v87
  %v316 = vcombine.low %v204, %v204
  %317 = vrot.lane.b32.xlu0 %v315, 118
  %v318 = vpop.permute.xlu0 %317
  %319 = vrot.lane.b32.xlu0 %v187, 118
  %v320 = vpop.permute.xlu0 %319
  %321 = vrot.lane.b32.xlu0 %v87, 118
  %v322 = vpop.permute.xlu0 %321
  %323 = vrot.lane.b32.xlu0 %v316, 118
  %v324 = vpop.permute.xlu0 %323
  %325 = vrot.lane.b32.xlu0 %v268, 118
  %v326 = vpop.permute.xlu0 %325
  %v327 = vsel %vm306, %v318, %v320
  %v328 = vsel %vm306, %v320, %v322
  %v329 = vsel %vm306, %v322, %v289
  %v330 = vsel %vm306, %v295, %v324
  %v331 = vsel %vm306, %v324, %v326
  %vm332 = vcmask 1040384
  %v335 = vsel %vm332, %v45, %v94
  %v338 = vsel %vm332, %v59, %v95
  %v341 = vsel %vm332, %v67, %v96
  %v343 = vsel %vm332, %v69, %v45
  %v345 = vsel %vm332, %v52, %v59
  %v347 = vsel %vm332, %v66, %v67
  %v349 = vsel %vm332, %v68, %v69
  %v352 = vsel %vm332, %v70, %v111
  %vm353 = vcmask 1041408
  %v355 = vsel %vm353, %v335, %v172
  %v357 = vsel %vm353, %v338, %v173
  %v359 = vsel %vm353, %v341, %v174
  %v361 = vsel %vm353, %v343, %v175
  %v363 = vsel %vm353, %v345, %v176
  %v365 = vsel %vm353, %v347, %v177
  %v367 = vsel %vm353, %v349, %v178
  %v369 = vsel %vm353, %v352, %v179
  %vm370 = vcmask 1042432
  %v372 = vsel %vm370, %v355, %v222
  %v374 = vsel %vm370, %v357, %v223
  %v376 = vsel %vm370, %v359, %v224
  %v377 = vsel %vm370, %v361, %v172
  %v378 = vsel %vm370, %v363, %v173
  %v379 = vsel %vm370, %v365, %v174
  %v381 = vsel %vm370, %v367, %v225
  %v383 = vsel %vm370, %v369, %v226
  %vm384 = vcmask 1043456
  %v386 = vsel %vm384, %v372, %v251
  %v388 = vsel %vm384, %v374, %v252
  %v390 = vsel %vm384, %v376, %v253
  %v392 = vsel %vm384, %v377, %v254
  %v394 = vsel %vm384, %v378, %v255
  %v396 = vsel %vm384, %v379, %v256
  %v398 = vsel %vm384, %v381, %v257
  %v400 = vsel %vm384, %v383, %v258
  %vm401 = vcmask 1044480
  %v403 = vsel %vm401, %v386, %v280
  %v405 = vsel %vm401, %v388, %v281
  %v407 = vsel %vm401, %v390, %v282
  %v408 = vsel %vm401, %v392, %v251
  %v409 = vsel %vm401, %v394, %v252
  %v410 = vsel %vm401, %v396, %v253
  %v412 = vsel %vm401, %v398, %v283
  %v414 = vsel %vm401, %v400, %v284
  %vm415 = vcmask 1045504
  %v417 = vsel %vm415, %v403, %v307
  %v419 = vsel %vm415, %v405, %v308
  %v421 = vsel %vm415, %v407, %v309
  %v423 = vsel %vm415, %v408, %v310
  %v425 = vsel %vm415, %v409, %v311
  %v427 = vsel %vm415, %v410, %v312
  %v429 = vsel %vm415, %v412, %v313
  %v431 = vsel %vm415, %v414, %v314
  %vm432 = vcmask 1046528
  %v434 = vsel %vm432, %v417, %v327
  %v437 = vsel %vm432, %v419, %v328
  %v440 = vsel %vm432, %v421, %v329
  %v442 = vsel %vm432, %v423, %v307
  %v444 = vsel %vm432, %v425, %v308
  %v446 = vsel %vm432, %v427, %v309
  %v449 = vsel %vm432, %v429, %v330
  %v452 = vsel %vm432, %v431, %v331
  %v454 = vld [vmem:[%s1] sm:$0x1]
  %v455 = vld [vmem:[%s2] sm:$0x3]
  %457 = vset.pattern.permute.xlu0 0
  %458 = vperm.xlu0 %457, %v455
  %v459 = vpop.permute.xlu0 %458
  %vm461 = vcmask 130048
  %v463 = vsel %vm461, %v454, 0
  %465 = vmatprep.subr.bf16.mxu0 %v437
  %466 = vmatpush1.bf16.msra.mxu0 %v434
  %467 = vmatprep.subr.bf16.mxu0 0
  %468 = vmatpush1.bf16.msra.mxu0 0
  %469 = vmatprep.subr.bf16.mxu0 0
  %470 = vmatpush1.bf16.msra.mxu0 0
  %471 = vmatprep.subr.bf16.mxu0 0
  %472 = vmatpush1.bf16.msra.mxu0 0
  %473 = vmatprep.subr.bf16.mxu0 0
  %474 = vmatpush1.bf16.msra.mxu0 0
  %475 = vmatprep.subr.bf16.mxu0 0
  %476 = vmatpush1.bf16.msra.mxu0 0
  %477 = vmatprep.subr.bf16.mxu0 0
  %478 = vmatpush1.bf16.msra.mxu0 0
  %479 = vmatprep.subr.bf16.mxu0 0
  %480 = vmatpush1.bf16.msra.mxu0 0
  %481 = vmatprep.subr.bf16.mxu0 0
  %482 = vmatpush1.bf16.msra.mxu0 0
  %483 = vmatprep.subr.bf16.mxu0 0
  %484 = vmatpush1.bf16.msra.mxu0 0
  %485 = vmatprep.subr.bf16.mxu0 0
  %486 = vmatpush1.bf16.msra.mxu0 0
  %487 = vmatprep.subr.bf16.mxu0 0
  %488 = vmatpush1.bf16.msra.mxu0 0
  %489 = vmatprep.subr.bf16.mxu0 0
  %490 = vmatpush1.bf16.msra.mxu0 0
  %491 = vmatprep.subr.bf16.mxu0 0
  %492 = vmatpush1.bf16.msra.mxu0 0
  %493 = vmatprep.subr.bf16.mxu0 0
  %494 = vmatpush1.bf16.msra.mxu0 0
  %495 = vmatprep.subr.bf16.mxu0 0
  %496 = vmatpush1.bf16.msra.mxu0 0
  %497 = vmatprep.mubr.bf16.mxu0 0
  %498 = vmatmul.mubr.bf16.gmra.mrb[0].mxu0 %v463
  %v499 = vpop.f32.mrb[0].mxu0
  %v500 = vadd.f32 %v459, %v499
  %v501 = vpop.f32.mrb[0].mxu0
  %v502 = vadd.f32 %v459, %v501
  %v503 = vpop.f32.mrb[0].mxu0
  %v504 = vpop.f32.mrb[0].mxu0
  %505 = vdwg.mxu0
  %506 = vmatprep.subr.bf16.mxu0 %v442
  %507 = vmatpush1.bf16.msra.mxu0 %v440
  %508 = vmatprep.subr.bf16.mxu0 0
  %509 = vmatpush1.bf16.msra.mxu0 0
  %510 = vmatprep.subr.bf16.mxu0 0
  %511 = vmatpush1.bf16.msra.mxu0 0
  %512 = vmatprep.subr.bf16.mxu0 0
  %513 = vmatpush1.bf16.msra.mxu0 0
  %514 = vmatprep.subr.bf16.mxu0 0
  %515 = vmatpush1.bf16.msra.mxu0 0
  %516 = vmatprep.subr.bf16.mxu0 0
  %517 = vmatpush1.bf16.msra.mxu0 0
  %518 = vmatprep.subr.bf16.mxu0 0
  %519 = vmatpush1.bf16.msra.mxu0 0
  %520 = vmatprep.subr.bf16.mxu0 0
  %521 = vmatpush1.bf16.msra.mxu0 0
  %522 = vmatprep.subr.bf16.mxu0 0
  %523 = vmatpush1.bf16.msra.mxu0 0
  %524 = vmatprep.subr.bf16.mxu0 0
  %525 = vmatpush1.bf16.msra.mxu0 0
  %526 = vmatprep.subr.bf16.mxu0 0
  %527 = vmatpush1.bf16.msra.mxu0 0
  %528 = vmatprep.subr.bf16.mxu0 0
  %529 = vmatpush1.bf16.msra.mxu0 0
  %530 = vmatprep.subr.bf16.mxu0 0
  %531 = vmatpush1.bf16.msra.mxu0 0
  %532 = vmatprep.subr.bf16.mxu0 0
  %533 = vmatpush1.bf16.msra.mxu0 0
  %534 = vmatprep.subr.bf16.mxu0 0
  %535 = vmatpush1.bf16.msra.mxu0 0
  %536 = vmatprep.subr.bf16.mxu0 0
  %537 = vmatpush1.bf16.msra.mxu0 0
  %538 = vmatprep.mubr.bf16.mxu0 0
  %539 = vmatmul.mubr.bf16.gmra.mrb[0].mxu0 %v463
  %v540 = vpop.f32.mrb[0].mxu0
  %v541 = vadd.f32 %v459, %v540
  %v542 = vpop.f32.mrb[0].mxu0
  %v543 = vadd.f32 %v459, %v542
  %v544 = vpop.f32.mrb[0].mxu0
  %v545 = vpop.f32.mrb[0].mxu0
  %546 = vdwg.mxu0
  %547 = vmatprep.subr.bf16.mxu0 %v446
  %548 = vmatpush1.bf16.msra.mxu0 %v444
  %549 = vmatprep.subr.bf16.mxu0 0
  %550 = vmatpush1.bf16.msra.mxu0 0
  %551 = vmatprep.subr.bf16.mxu0 0
  %552 = vmatpush1.bf16.msra.mxu0 0
  %553 = vmatprep.subr.bf16.mxu0 0
  %554 = vmatpush1.bf16.msra.mxu0 0
  %555 = vmatprep.subr.bf16.mxu0 0
  %556 = vmatpush1.bf16.msra.mxu0 0
  %557 = vmatprep.subr.bf16.mxu0 0
  %558 = vmatpush1.bf16.msra.mxu0 0
  %559 = vmatprep.subr.bf16.mxu0 0
  %560 = vmatpush1.bf16.msra.mxu0 0
  %561 = vmatprep.subr.bf16.mxu0 0
  %562 = vmatpush1.bf16.msra.mxu0 0
  %563 = vmatprep.subr.bf16.mxu0 0
  %564 = vmatpush1.bf16.msra.mxu0 0
  %565 = vmatprep.subr.bf16.mxu0 0
  %566 = vmatpush1.bf16.msra.mxu0 0
  %567 = vmatprep.subr.bf16.mxu0 0
  %568 = vmatpush1.bf16.msra.mxu0 0
  %569 = vmatprep.subr.bf16.mxu0 0
  %570 = vmatpush1.bf16.msra.mxu0 0
  %571 = vmatprep.subr.bf16.mxu0 0
  %572 = vmatpush1.bf16.msra.mxu0 0
  %573 = vmatprep.subr.bf16.mxu0 0
  %574 = vmatpush1.bf16.msra.mxu0 0
  %575 = vmatprep.subr.bf16.mxu0 0
  %576 = vmatpush1.bf16.msra.mxu0 0
  %577 = vmatprep.subr.bf16.mxu0 0
  %578 = vmatpush1.bf16.msra.mxu0 0
  %579 = vmatprep.mubr.bf16.mxu0 0
  %580 = vmatmul.mubr.bf16.gmra.mrb[0].mxu0 %v463
  %v581 = vpop.f32.mrb[0].mxu0
  %v582 = vadd.f32 %v459, %v581
  %v583 = vpop.f32.mrb[0].mxu0
  %v584 = vadd.f32 %v459, %v583
  %v585 = vpop.f32.mrb[0].mxu0
  %v586 = vpop.f32.mrb[0].mxu0
  %587 = vdwg.mxu0
  %588 = vmatprep.subr.bf16.mxu0 %v452
  %589 = vmatpush1.bf16.msra.mxu0 %v449
  %590 = vmatprep.subr.bf16.mxu0 0
  %591 = vmatpush1.bf16.msra.mxu0 0
  %592 = vmatprep.subr.bf16.mxu0 0
  %593 = vmatpush1.bf16.msra.mxu0 0
  %594 = vmatprep.subr.bf16.mxu0 0
  %595 = vmatpush1.bf16.msra.mxu0 0
  %596 = vmatprep.subr.bf16.mxu0 0
  %597 = vmatpush1.bf16.msra.mxu0 0
  %598 = vmatprep.subr.bf16.mxu0 0
  %599 = vmatpush1.bf16.msra.mxu0 0
  %600 = vmatprep.subr.bf16.mxu0 0
  %601 = vmatpush1.bf16.msra.mxu0 0
  %602 = vmatprep.subr.bf16.mxu0 0
  %603 = vmatpush1.bf16.msra.mxu0 0
  %604 = vmatprep.subr.bf16.mxu0 0
  %605 = vmatpush1.bf16.msra.mxu0 0
  %606 = vmatprep.subr.bf16.mxu0 0
  %607 = vmatpush1.bf16.msra.mxu0 0
  %608 = vmatprep.subr.bf16.mxu0 0
  %609 = vmatpush1.bf16.msra.mxu0 0
  %610 = vmatprep.subr.bf16.mxu0 0
  %611 = vmatpush1.bf16.msra.mxu0 0
  %612 = vmatprep.subr.bf16.mxu0 0
  %613 = vmatpush1.bf16.msra.mxu0 0
  %614 = vmatprep.subr.bf16.mxu0 0
  %615 = vmatpush1.bf16.msra.mxu0 0
  %616 = vmatprep.subr.bf16.mxu0 0
  %617 = vmatpush1.bf16.msra.mxu0 0
  %618 = vmatprep.subr.bf16.mxu0 0
  %619 = vmatpush1.bf16.msra.mxu0 0
  %620 = vmatprep.mubr.bf16.mxu0 0
  %621 = vmatmul.mubr.bf16.gmra.mrb[0].mxu0 %v463
  %v622 = vpop.f32.mrb[0].mxu0
  %v623 = vadd.f32 %v459, %v622
  %v624 = vpop.f32.mrb[0].mxu0
  %v625 = vadd.f32 %v459, %v624
  %v626 = vpop.f32.mrb[0].mxu0
  %v627 = vpop.f32.mrb[0].mxu0
  %628 = vdwg.mxu0
  %v629 = vld [vmem:[%s3] sm:$0xff]
  %v631 = vlaneseq
  %v632 = vshrl.u32 %v631, 7
  %v633 = vsub.s32 0, %v632
  %v634 = vrot.slane %v629, %v633
  %v635 = vlaneseq
  %v636 = vshrl.u32 %v635, 7
  %v637 = vsub.s32 1, %v636
  %v638 = vrot.slane %v629, %v637
  %v639 = vlaneseq
  %v640 = vshrl.u32 %v639, 7
  %v641 = vsub.s32 2, %v640
  %v642 = vrot.slane %v629, %v641
  %v643 = vlaneseq
  %v644 = vshrl.u32 %v643, 7
  %v645 = vsub.s32 3, %v644
  %v646 = vrot.slane %v629, %v645
  %v647 = vlaneseq
  %v648 = vshrl.u32 %v647, 7
  %v649 = vsub.s32 4, %v648
  %v650 = vrot.slane %v629, %v649
  %v651 = vlaneseq
  %v652 = vshrl.u32 %v651, 7
  %v653 = vsub.s32 5, %v652
  %v654 = vrot.slane %v629, %v653
  %v655 = vlaneseq
  %v656 = vshrl.u32 %v655, 7
  %v657 = vsub.s32 6, %v656
  %v658 = vrot.slane %v629, %v657
  %v659 = vlaneseq
  %v660 = vshrl.u32 %v659, 7
  %v661 = vsub.s32 7, %v660
  %v662 = vrot.slane %v629, %v661
  %v671 = vmul.f32 %v500, %v634
  %v672 = vmul.f32 %v502, %v638
  %v673 = vmul.f32 %v541, %v642
  %v674 = vmul.f32 %v543, %v646
  %v675 = vmul.f32 %v582, %v650
  %v676 = vmul.f32 %v584, %v654
  %v677 = vmul.f32 %v623, %v658
  %v678 = vmul.f32 %v625, %v662
  %v679 = vsel %vm353, %v671, 0.0
  %v680 = vsel %vm353, %v672, 0.0
  %v681 = vadd.f32 %v679, %v680
  %v682 = vsel %vm353, %v673, 0.0
  %v683 = vadd.f32 %v681, %v682
  %v684 = vsel %vm353, %v674, 0.0
  %v685 = vadd.f32 %v683, %v684
  %v686 = vsel %vm353, %v675, 0.0
  %v687 = vadd.f32 %v685, %v686
  %v688 = vsel %vm353, %v676, 0.0
  %v689 = vadd.f32 %v687, %v688
  %v690 = vsel %vm353, %v677, 0.0
  %v691 = vadd.f32 %v689, %v690
  %v692 = vsel %vm353, %v678, 0.0
  %v693 = vadd.f32 %v691, %v692
  %694 = vadd.xlane.f32.xlu0 %v693
  %v695 = vpop.xlane.xlu0 %694
  %v696 = vmul.f32 %v695, 0.001953125
  %v697 = vmul.f32 %v671, %v500
  %v698 = vmul.f32 %v672, %v502
  %v699 = vmul.f32 %v673, %v541
  %v700 = vmul.f32 %v674, %v543
  %v701 = vmul.f32 %v675, %v582
  %v702 = vmul.f32 %v676, %v584
  %v703 = vmul.f32 %v677, %v623
  %v704 = vmul.f32 %v678, %v625
  %v705 = vsel %vm353, %v697, 0.0
  %v706 = vsel %vm353, %v698, 0.0
  %v707 = vadd.f32 %v705, %v706
  %v708 = vsel %vm353, %v699, 0.0
  %v709 = vadd.f32 %v707, %v708
  %v710 = vsel %vm353, %v700, 0.0
  %v711 = vadd.f32 %v709, %v710
  %v712 = vsel %vm353, %v701, 0.0
  %v713 = vadd.f32 %v711, %v712
  %v714 = vsel %vm353, %v702, 0.0
  %v715 = vadd.f32 %v713, %v714
  %v716 = vsel %vm353, %v703, 0.0
  %v717 = vadd.f32 %v715, %v716
  %v718 = vsel %vm353, %v704, 0.0
  %v719 = vadd.f32 %v717, %v718
  %720 = vadd.xlane.f32.xlu0 %v719
  %v721 = vpop.xlane.xlu0 %720
  %v722 = vmul.f32 %v721, 0.001953125
  %v723 = vmul.f32 %v696, %v696
  %v724 = vsub.f32 %v722, %v723
  %v725 = vmax.f32 %v724, 0.0
  %v726 = vsub.f32 %v500, %v696
  %v727 = vsub.f32 %v502, %v696
  %v728 = vsub.f32 %v541, %v696
  %v729 = vsub.f32 %v543, %v696
  %v730 = vsub.f32 %v582, %v696
  %v731 = vsub.f32 %v584, %v696
  %v732 = vsub.f32 %v623, %v696
  %v733 = vsub.f32 %v625, %v696
  %v734 = vadd.f32 %v725, 1e-05
  %v735 = vrsqrt.pop %v734
  %v736 = vmul.f32 %v726, %v735
  %v737 = vmul.f32 %v727, %v735
  %v738 = vmul.f32 %v728, %v735
  %v739 = vmul.f32 %v729, %v735
  %v740 = vmul.f32 %v730, %v735
  %v741 = vmul.f32 %v731, %v735
  %v742 = vmul.f32 %v732, %v735
  %v743 = vmul.f32 %v733, %v735
  %v744 = vmax.f32 %v736, 0.0
  %v745 = vmax.f32 %v737, 0.0
  %v746 = vmax.f32 %v738, 0.0
  %v747 = vmax.f32 %v739, 0.0
  %v748 = vmax.f32 %v740, 0.0
  %v749 = vmax.f32 %v741, 0.0
  %v750 = vmax.f32 %v742, 0.0
  %v751 = vmax.f32 %v743, 0.0
  %v760 = vcombine.low %v744, %v745
  %v761 = vcombine.low %v746, %v747
  %v762 = vcombine.low %v748, %v749
  %v763 = vcombine.low %v750, %v751
  %768 = vst [vmem:[%s4] sm:$0x33] %v760
  %769 = vst [vmem:[%s4 + $0x8] sm:$0x33] %v761
  %770 = vst [vmem:[%s4 + $0x10] sm:$0x33] %v762
  %771 = vst [vmem:[%s4 + $0x18] sm:$0x33] %v763
  %s772 = scalar_lea.vmem %s0, 10
  %v773 = vld [vmem:[%s772] sm:$0xff]
  %v774 = vld [vmem:[%s772 + $0x8] sm:$0x1]
  %v775 = vld [vmem:[%s772 + $0x8] sm:$0x3]
  %v777 = vcombine.high %v773, %v773
  %v779 = vunpack.c.l.s4 1966171168
  %v780 = vunpack.c.0.s8 %v779
  %v781 = vlaneseq
  %v782 = vshrl.u32 %v781, 7
  %v783 = vsub.s32 %v780, %v782
  %v784 = vrot.slane %v773, %v783
  %v786 = vunpack.c.l.s4 1966171168
  %v787 = vunpack.c.0.s8 %v786
  %v788 = vlaneseq
  %v789 = vshrl.u32 %v788, 7
  %v790 = vsub.s32 %v787, %v789
  %v791 = vrot.slane %v777, %v790
  %v792 = vcombine.high %v784, %v784
  %v793 = vcombine.high %v791, %v791
  %v795 = vunpack.c.l.s4 1966171168
  %v796 = vunpack.c.0.s8 %v795
  %v797 = vlaneseq
  %v798 = vshrl.u32 %v797, 7
  %v799 = vsub.s32 %v796, %v798
  %v800 = vrot.slane %v784, %v799
  %v802 = vunpack.c.l.s4 1966171168
  %v803 = vunpack.c.0.s8 %v802
  %v804 = vlaneseq
  %v805 = vshrl.u32 %v804, 7
  %v806 = vsub.s32 %v803, %v805
  %v807 = vrot.slane %v791, %v806
  %v809 = vunpack.c.l.s4 1966171168
  %v810 = vunpack.c.0.s8 %v809
  %v811 = vlaneseq
  %v812 = vshrl.u32 %v811, 7
  %v813 = vsub.s32 %v810, %v812
  %v814 = vrot.slane %v792, %v813
  %v816 = vunpack.c.l.s4 1966171168
  %v817 = vunpack.c.0.s8 %v816
  %v818 = vlaneseq
  %v819 = vshrl.u32 %v818, 7
  %v820 = vsub.s32 %v817, %v819
  %v821 = vrot.slane %v793, %v820
  %v822 = vcombine.high %v800, %v800
  %v823 = vcombine.high %v807, %v807
  %v824 = vcombine.high %v814, %v814
  %v825 = vcombine.high %v821, %v821
  %v827 = vcombine.low %v773, %v773
  %v829 = vunpack.c.l.s4 1966171168
  %v830 = vunpack.c.0.s8 %v829
  %v831 = vlaneseq
  %v832 = vshrl.u32 %v831, 7
  %v833 = vsub.s32 %v830, %v832
  %v834 = vrot.slane %v827, %v833
  %v835 = vcombine.high %v834, %v834
  %v837 = vunpack.c.l.s4 1966171168
  %v838 = vunpack.c.0.s8 %v837
  %v839 = vlaneseq
  %v840 = vshrl.u32 %v839, 7
  %v841 = vsub.s32 %v838, %v840
  %v842 = vrot.slane %v834, %v841
  %v844 = vunpack.c.l.s4 1966171168
  %v845 = vunpack.c.0.s8 %v844
  %v846 = vlaneseq
  %v847 = vshrl.u32 %v846, 7
  %v848 = vsub.s32 %v845, %v847
  %v849 = vrot.slane %v835, %v848
  %v850 = vcombine.high %v842, %v842
  %v851 = vcombine.high %v849, %v849
  %v852 = vcombine.low %v774, %v774
  %v854 = vunpack.c.l.s4 1966171168
  %v855 = vunpack.c.0.s8 %v854
  %v856 = vlaneseq
  %v857 = vshrl.u32 %v856, 7
  %v858 = vsub.s32 %v855, %v857
  %v859 = vrot.slane %v852, %v858
  %v861 = vunpack.c.l.s4 1966171168
  %v862 = vunpack.c.0.s8 %v861
  %v863 = vlaneseq
  %v864 = vshrl.u32 %v863, 7
  %v865 = vsub.s32 %v862, %v864
  %v866 = vrot.slane %v859, %v865
  %v868 = vcombine.low %v784, %v784
  %v869 = vcombine.low %v791, %v791
  %v871 = vunpack.c.l.s4 1966171168
  %v872 = vunpack.c.0.s8 %v871
  %v873 = vlaneseq
  %v874 = vshrl.u32 %v873, 7
  %v875 = vsub.s32 %v872, %v874
  %v876 = vrot.slane %v868, %v875
  %v878 = vunpack.c.l.s4 1966171168
  %v879 = vunpack.c.0.s8 %v878
  %v880 = vlaneseq
  %v881 = vshrl.u32 %v880, 7
  %v882 = vsub.s32 %v879, %v881
  %v883 = vrot.slane %v869, %v882
  %v884 = vcombine.high %v876, %v876
  %v885 = vcombine.high %v883, %v883
  %v887 = vunpack.c.l.s4 1966171168
  %v888 = vunpack.c.0.s8 %v887
  %v889 = vlaneseq
  %v890 = vshrl.u32 %v889, 7
  %v891 = vsub.s32 %v888, %v890
  %v892 = vrot.slane %v775, %v891
  %v893 = vcombine.low %v892, %v892
  %v895 = vunpack.c.l.s4 1966171168
  %v896 = vunpack.c.0.s8 %v895
  %v897 = vlaneseq
  %v898 = vshrl.u32 %v897, 7
  %v899 = vsub.s32 %v896, %v898
  %v900 = vrot.slane %v893, %v899
  %v902 = vunpack.c.l.s4 1966171168
  %v903 = vunpack.c.0.s8 %v902
  %v904 = vlaneseq
  %v905 = vshrl.u32 %v904, 7
  %v906 = vsub.s32 %v903, %v905
  %v907 = vrot.slane %v892, %v906
  %908 = vrot.lane.b32.xlu0 %v876, 127
  %v909 = vpop.permute.xlu0 %908
  %910 = vrot.lane.b32.xlu0 %v800, 127
  %v911 = vpop.permute.xlu0 %910
  %912 = vrot.lane.b32.xlu0 %v884, 127
  %v913 = vpop.permute.xlu0 %912
  %914 = vrot.lane.b32.xlu0 %v822, 127
  %v915 = vpop.permute.xlu0 %914
  %916 = vrot.lane.b32.xlu0 %v883, 127
  %v917 = vpop.permute.xlu0 %916
  %918 = vrot.lane.b32.xlu0 %v807, 127
  %v919 = vpop.permute.xlu0 %918
  %920 = vrot.lane.b32.xlu0 %v885, 127
  %v921 = vpop.permute.xlu0 %920
  %922 = vrot.lane.b32.xlu0 %v823, 127
  %v923 = vpop.permute.xlu0 %922
  %924 = vrot.lane.b32.xlu0 %v900, 127
  %v925 = vpop.permute.xlu0 %924
  %v926 = vsel %vm171, %v909, %v911
  %v927 = vsel %vm171, %v911, %v913
  %v928 = vsel %vm171, %v913, %v915
  %v929 = vsel %vm171, %v915, %v917
  %v930 = vsel %vm171, %v917, %v919
  %v931 = vsel %vm171, %v919, %v921
  %v932 = vsel %vm171, %v921, %v923
  %v933 = vsel %vm171, %v923, %v925
  %v934 = vcombine.low %v834, %v834
  %v936 = vunpack.c.l.s4 1966171168
  %v937 = vunpack.c.0.s8 %v936
  %v938 = vlaneseq
  %v939 = vshrl.u32 %v938, 7
  %v940 = vsub.s32 %v937, %v939
  %v941 = vrot.slane %v934, %v940
  %v942 = vcombine.high %v941, %v941
  %v943 = vcombine.low %v775, %v775
  %v945 = vunpack.c.l.s4 1966171168
  %v946 = vunpack.c.0.s8 %v945
  %v947 = vlaneseq
  %v948 = vshrl.u32 %v947, 7
  %v949 = vsub.s32 %v946, %v948
  %v950 = vrot.slane %v943, %v949
  %v951 = vcombine.low %v950, %v950
  %v953 = vunpack.c.l.s4 1966171168
  %v954 = vunpack.c.0.s8 %v953
  %v955 = vlaneseq
  %v956 = vshrl.u32 %v955, 7
  %v957 = vsub.s32 %v954, %v956
  %v958 = vrot.slane %v951, %v957
  %v960 = vunpack.c.l.s4 1966171168
  %v961 = vunpack.c.0.s8 %v960
  %v962 = vlaneseq
  %v963 = vshrl.u32 %v962, 7
  %v964 = vsub.s32 %v961, %v963
  %v965 = vrot.slane %v950, %v964
  %966 = vrot.lane.b32.xlu0 %v842, 127
  %v967 = vpop.permute.xlu0 %966
  %968 = vrot.lane.b32.xlu0 %v942, 127
  %v969 = vpop.permute.xlu0 %968
  %970 = vrot.lane.b32.xlu0 %v850, 127
  %v971 = vpop.permute.xlu0 %970
  %972 = vrot.lane.b32.xlu0 %v958, 127
  %v973 = vpop.permute.xlu0 %972
  %974 = vrot.lane.b32.xlu0 %v965, 127
  %v975 = vpop.permute.xlu0 %974
  %v976 = vsel %vm171, %v967, %v969
  %v977 = vsel %vm171, %v969, %v971
  %v978 = vsel %vm171, %v971, %v909
  %v979 = vsel %vm171, %v915, %v973
  %v980 = vsel %vm171, %v973, %v975
  %v981 = vcombine.low %v800, %v800
  %v982 = vcombine.low %v807, %v807
  %v983 = vcombine.low %v814, %v814
  %v984 = vcombine.low %v821, %v821
  %v985 = vcombine.low %v907, %v907
  %986 = vrot.lane.b32.xlu0 %v981, 119
  %v987 = vpop.permute.xlu0 %986
  %988 = vrot.lane.b32.xlu0 %v983, 119
  %v989 = vpop.permute.xlu0 %988
  %990 = vrot.lane.b32.xlu0 %v800, 119
  %v991 = vpop.permute.xlu0 %990
  %992 = vrot.lane.b32.xlu0 %v814, 119
  %v993 = vpop.permute.xlu0 %992
  %994 = vrot.lane.b32.xlu0 %v982, 119
  %v995 = vpop.permute.xlu0 %994
  %996 = vrot.lane.b32.xlu0 %v984, 119
  %v997 = vpop.permute.xlu0 %996
  %998 = vrot.lane.b32.xlu0 %v807, 119
  %v999 = vpop.permute.xlu0 %998
  %1000 = vrot.lane.b32.xlu0 %v821, 119
  %v1001 = vpop.permute.xlu0 %1000
  %1002 = vrot.lane.b32.xlu0 %v985, 119
  %v1003 = vpop.permute.xlu0 %1002
  %v1004 = vsel %vm250, %v987, %v989
  %v1005 = vsel %vm250, %v989, %v991
  %v1006 = vsel %vm250, %v991, %v993
  %v1007 = vsel %vm250, %v993, %v995
  %v1008 = vsel %vm250, %v995, %v997
  %v1009 = vsel %vm250, %v997, %v999
  %v1010 = vsel %vm250, %v999, %v1001
  %v1011 = vsel %vm250, %v1001, %v1003
  %v1012 = vcombine.low %v849, %v849
  %v1013 = vcombine.high %v950, %v950
  %v1015 = vunpack.c.l.s4 1966171168
  %v1016 = vunpack.c.0.s8 %v1015
  %v1017 = vlaneseq
  %v1018 = vshrl.u32 %v1017, 7
  %v1019 = vsub.s32 %v1016, %v1018
  %v1020 = vrot.slane %v1013, %v1019
  %v1021 = vcombine.low %v965, %v965
  %v1022 = vcombine.low %v1020, %v1020
  %1023 = vrot.lane.b32.xlu0 %v1012, 119
  %v1024 = vpop.permute.xlu0 %1023
  %1025 = vrot.lane.b32.xlu0 %v842, 119
  %v1026 = vpop.permute.xlu0 %1025
  %1027 = vrot.lane.b32.xlu0 %v849, 119
  %v1028 = vpop.permute.xlu0 %1027
  %1029 = vrot.lane.b32.xlu0 %v1021, 119
  %v1030 = vpop.permute.xlu0 %1029
  %1031 = vrot.lane.b32.xlu0 %v1022, 119
  %v1032 = vpop.permute.xlu0 %1031
  %v1033 = vsel %vm250, %v1024, %v1026
  %v1034 = vsel %vm250, %v1026, %v1028
  %v1035 = vsel %vm250, %v1028, %v987
  %v1036 = vsel %vm250, %v993, %v1030
  %v1037 = vsel %vm250, %v1030, %v1032
  %v1038 = vcombine.low %v876, %v876
  %v1039 = vcombine.low %v883, %v883
  %v1040 = vcombine.low %v900, %v900
  %1041 = vrot.lane.b32.xlu0 %v1038, 118
  %v1042 = vpop.permute.xlu0 %1041
  %1043 = vrot.lane.b32.xlu0 %v981, 118
  %v1044 = vpop.permute.xlu0 %1043
  %1045 = vrot.lane.b32.xlu0 %v876, 118
  %v1046 = vpop.permute.xlu0 %1045
  %1047 = vrot.lane.b32.xlu0 %v800, 118
  %v1048 = vpop.permute.xlu0 %1047
  %1049 = vrot.lane.b32.xlu0 %v1039, 118
  %v1050 = vpop.permute.xlu0 %1049
  %1051 = vrot.lane.b32.xlu0 %v982, 118
  %v1052 = vpop.permute.xlu0 %1051
  %1053 = vrot.lane.b32.xlu0 %v883, 118
  %v1054 = vpop.permute.xlu0 %1053
  %1055 = vrot.lane.b32.xlu0 %v807, 118
  %v1056 = vpop.permute.xlu0 %1055
  %1057 = vrot.lane.b32.xlu0 %v1040, 118
  %v1058 = vpop.permute.xlu0 %1057
  %v1059 = vsel %vm306, %v1042, %v1044
  %v1060 = vsel %vm306, %v1044, %v1046
  %v1061 = vsel %vm306, %v1046, %v1048
  %v1062 = vsel %vm306, %v1048, %v1050
  %v1063 = vsel %vm306, %v1050, %v1052
  %v1064 = vsel %vm306, %v1052, %v1054
  %v1065 = vsel %vm306, %v1054, %v1056
  %v1066 = vsel %vm306, %v1056, %v1058
  %v1067 = vcombine.low %v842, %v842
  %v1068 = vcombine.low %v958, %v958
  %1069 = vrot.lane.b32.xlu0 %v1067, 118
  %v1070 = vpop.permute.xlu0 %1069
  %1071 = vrot.lane.b32.xlu0 %v941, 118
  %v1072 = vpop.permute.xlu0 %1071
  %1073 = vrot.lane.b32.xlu0 %v842, 118
  %v1074 = vpop.permute.xlu0 %1073
  %1075 = vrot.lane.b32.xlu0 %v1068, 118
  %v1076 = vpop.permute.xlu0 %1075
  %1077 = vrot.lane.b32.xlu0 %v1021, 118
  %v1078 = vpop.permute.xlu0 %1077
  %v1079 = vsel %vm306, %v1070, %v1072
  %v1080 = vsel %vm306, %v1072, %v1074
  %v1081 = vsel %vm306, %v1074, %v1042
  %v1082 = vsel %vm306, %v1048, %v1076
  %v1083 = vsel %vm306, %v1076, %v1078
  %v1086 = vsel %vm332, %v800, %v849
  %v1089 = vsel %vm332, %v814, %v850
  %v1092 = vsel %vm332, %v822, %v851
  %v1094 = vsel %vm332, %v824, %v800
  %v1096 = vsel %vm332, %v807, %v814
  %v1098 = vsel %vm332, %v821, %v822
  %v1100 = vsel %vm332, %v823, %v824
  %v1103 = vsel %vm332, %v825, %v866
  %v1105 = vsel %vm353, %v1086, %v926
  %v1107 = vsel %vm353, %v1089, %v927
  %v1109 = vsel %vm353, %v1092, %v928
  %v1111 = vsel %vm353, %v1094, %v929
  %v1113 = vsel %vm353, %v1096, %v930
  %v1115 = vsel %vm353, %v1098, %v931
  %v1117 = vsel %vm353, %v1100, %v932
  %v1119 = vsel %vm353, %v1103, %v933
  %v1121 = vsel %vm370, %v1105, %v976
  %v1123 = vsel %vm370, %v1107, %v977
  %v1125 = vsel %vm370, %v1109, %v978
  %v1126 = vsel %vm370, %v1111, %v926
  %v1127 = vsel %vm370, %v1113, %v927
  %v1128 = vsel %vm370, %v1115, %v928
  %v1130 = vsel %vm370, %v1117, %v979
  %v1132 = vsel %vm370, %v1119, %v980
  %v1134 = vsel %vm384, %v1121, %v1004
  %v1136 = vsel %vm384, %v1123, %v1005
  %v1138 = vsel %vm384, %v1125, %v1006
  %v1140 = vsel %vm384, %v1126, %v1007
  %v1142 = vsel %vm384, %v1127, %v1008
  %v1144 = vsel %vm384, %v1128, %v1009
  %v1146 = vsel %vm384, %v1130, %v1010
  %v1148 = vsel %vm384, %v1132, %v1011
  %v1150 = vsel %vm401, %v1134, %v1033
  %v1152 = vsel %vm401, %v1136, %v1034
  %v1154 = vsel %vm401, %v1138, %v1035
  %v1155 = vsel %vm401, %v1140, %v1004
  %v1156 = vsel %vm401, %v1142, %v1005
  %v1157 = vsel %vm401, %v1144, %v1006
  %v1159 = vsel %vm401, %v1146, %v1036
  %v1161 = vsel %vm401, %v1148, %v1037
  %v1163 = vsel %vm415, %v1150, %v1059
  %v1165 = vsel %vm415, %v1152, %v1060
  %v1167 = vsel %vm415, %v1154, %v1061
  %v1169 = vsel %vm415, %v1155, %v1062
  %v1171 = vsel %vm415, %v1156, %v1063
  %v1173 = vsel %vm415, %v1157, %v1064
  %v1175 = vsel %vm415, %v1159, %v1065
  %v1177 = vsel %vm415, %v1161, %v1066
  %v1179 = vsel %vm432, %v1163, %v1079
  %v1182 = vsel %vm432, %v1165, %v1080
  %v1185 = vsel %vm432, %v1167, %v1081
  %v1187 = vsel %vm432, %v1169, %v1059
  %v1189 = vsel %vm432, %v1171, %v1060
  %v1191 = vsel %vm432, %v1173, %v1061
  %v1194 = vsel %vm432, %v1175, %v1082
  %v1197 = vsel %vm432, %v1177, %v1083
  %v1199 = vld [vmem:[%s1] sm:$0x1]
  %v1200 = vld [vmem:[%s2] sm:$0x3]
  %1202 = vset.pattern.permute.xlu0 0
  %1203 = vperm.xlu0 %1202, %v1200
  %v1204 = vpop.permute.xlu0 %1203
  %v1207 = vsel %vm461, %v1199, 0
  %1209 = vmatprep.subr.bf16.mxu0 %v1182
  %1210 = vmatpush1.bf16.msra.mxu0 %v1179
  %1211 = vmatprep.subr.bf16.mxu0 0
  %1212 = vmatpush1.bf16.msra.mxu0 0
  %1213 = vmatprep.subr.bf16.mxu0 0
  %1214 = vmatpush1.bf16.msra.mxu0 0
  %1215 = vmatprep.subr.bf16.mxu0 0
  %1216 = vmatpush1.bf16.msra.mxu0 0
  %1217 = vmatprep.subr.bf16.mxu0 0
  %1218 = vmatpush1.bf16.msra.mxu0 0
  %1219 = vmatprep.subr.bf16.mxu0 0
  %1220 = vmatpush1.bf16.msra.mxu0 0
  %1221 = vmatprep.subr.bf16.mxu0 0
  %1222 = vmatpush1.bf16.msra.mxu0 0
  %1223 = vmatprep.subr.bf16.mxu0 0
  %1224 = vmatpush1.bf16.msra.mxu0 0
  %1225 = vmatprep.subr.bf16.mxu0 0
  %1226 = vmatpush1.bf16.msra.mxu0 0
  %1227 = vmatprep.subr.bf16.mxu0 0
  %1228 = vmatpush1.bf16.msra.mxu0 0
  %1229 = vmatprep.subr.bf16.mxu0 0
  %1230 = vmatpush1.bf16.msra.mxu0 0
  %1231 = vmatprep.subr.bf16.mxu0 0
  %1232 = vmatpush1.bf16.msra.mxu0 0
  %1233 = vmatprep.subr.bf16.mxu0 0
  %1234 = vmatpush1.bf16.msra.mxu0 0
  %1235 = vmatprep.subr.bf16.mxu0 0
  %1236 = vmatpush1.bf16.msra.mxu0 0
  %1237 = vmatprep.subr.bf16.mxu0 0
  %1238 = vmatpush1.bf16.msra.mxu0 0
  %1239 = vmatprep.subr.bf16.mxu0 0
  %1240 = vmatpush1.bf16.msra.mxu0 0
  %1241 = vmatprep.mubr.bf16.mxu0 0
  %1242 = vmatmul.mubr.bf16.gmra.mrb[0].mxu0 %v1207
  %v1243 = vpop.f32.mrb[0].mxu0
  %v1244 = vadd.f32 %v1204, %v1243
  %v1245 = vpop.f32.mrb[0].mxu0
  %v1246 = vadd.f32 %v1204, %v1245
  %v1247 = vpop.f32.mrb[0].mxu0
  %v1248 = vpop.f32.mrb[0].mxu0
  %1249 = vdwg.mxu0
  %1250 = vmatprep.subr.bf16.mxu0 %v1187
  %1251 = vmatpush1.bf16.msra.mxu0 %v1185
  %1252 = vmatprep.subr.bf16.mxu0 0
  %1253 = vmatpush1.bf16.msra.mxu0 0
  %1254 = vmatprep.subr.bf16.mxu0 0
  %1255 = vmatpush1.bf16.msra.mxu0 0
  %1256 = vmatprep.subr.bf16.mxu0 0
  %1257 = vmatpush1.bf16.msra.mxu0 0
  %1258 = vmatprep.subr.bf16.mxu0 0
  %1259 = vmatpush1.bf16.msra.mxu0 0
  %1260 = vmatprep.subr.bf16.mxu0 0
  %1261 = vmatpush1.bf16.msra.mxu0 0
  %1262 = vmatprep.subr.bf16.mxu0 0
  %1263 = vmatpush1.bf16.msra.mxu0 0
  %1264 = vmatprep.subr.bf16.mxu0 0
  %1265 = vmatpush1.bf16.msra.mxu0 0
  %1266 = vmatprep.subr.bf16.mxu0 0
  %1267 = vmatpush1.bf16.msra.mxu0 0
  %1268 = vmatprep.subr.bf16.mxu0 0
  %1269 = vmatpush1.bf16.msra.mxu0 0
  %1270 = vmatprep.subr.bf16.mxu0 0
  %1271 = vmatpush1.bf16.msra.mxu0 0
  %1272 = vmatprep.subr.bf16.mxu0 0
  %1273 = vmatpush1.bf16.msra.mxu0 0
  %1274 = vmatprep.subr.bf16.mxu0 0
  %1275 = vmatpush1.bf16.msra.mxu0 0
  %1276 = vmatprep.subr.bf16.mxu0 0
  %1277 = vmatpush1.bf16.msra.mxu0 0
  %1278 = vmatprep.subr.bf16.mxu0 0
  %1279 = vmatpush1.bf16.msra.mxu0 0
  %1280 = vmatprep.subr.bf16.mxu0 0
  %1281 = vmatpush1.bf16.msra.mxu0 0
  %1282 = vmatprep.mubr.bf16.mxu0 0
  %1283 = vmatmul.mubr.bf16.gmra.mrb[0].mxu0 %v1207
  %v1284 = vpop.f32.mrb[0].mxu0
  %v1285 = vadd.f32 %v1204, %v1284
  %v1286 = vpop.f32.mrb[0].mxu0
  %v1287 = vadd.f32 %v1204, %v1286
  %v1288 = vpop.f32.mrb[0].mxu0
  %v1289 = vpop.f32.mrb[0].mxu0
  %1290 = vdwg.mxu0
  %1291 = vmatprep.subr.bf16.mxu0 %v1191
  %1292 = vmatpush1.bf16.msra.mxu0 %v1189
  %1293 = vmatprep.subr.bf16.mxu0 0
  %1294 = vmatpush1.bf16.msra.mxu0 0
  %1295 = vmatprep.subr.bf16.mxu0 0
  %1296 = vmatpush1.bf16.msra.mxu0 0
  %1297 = vmatprep.subr.bf16.mxu0 0
  %1298 = vmatpush1.bf16.msra.mxu0 0
  %1299 = vmatprep.subr.bf16.mxu0 0
  %1300 = vmatpush1.bf16.msra.mxu0 0
  %1301 = vmatprep.subr.bf16.mxu0 0
  %1302 = vmatpush1.bf16.msra.mxu0 0
  %1303 = vmatprep.subr.bf16.mxu0 0
  %1304 = vmatpush1.bf16.msra.mxu0 0
  %1305 = vmatprep.subr.bf16.mxu0 0
  %1306 = vmatpush1.bf16.msra.mxu0 0
  %1307 = vmatprep.subr.bf16.mxu0 0
  %1308 = vmatpush1.bf16.msra.mxu0 0
  %1309 = vmatprep.subr.bf16.mxu0 0
  %1310 = vmatpush1.bf16.msra.mxu0 0
  %1311 = vmatprep.subr.bf16.mxu0 0
  %1312 = vmatpush1.bf16.msra.mxu0 0
  %1313 = vmatprep.subr.bf16.mxu0 0
  %1314 = vmatpush1.bf16.msra.mxu0 0
  %1315 = vmatprep.subr.bf16.mxu0 0
  %1316 = vmatpush1.bf16.msra.mxu0 0
  %1317 = vmatprep.subr.bf16.mxu0 0
  %1318 = vmatpush1.bf16.msra.mxu0 0
  %1319 = vmatprep.subr.bf16.mxu0 0
  %1320 = vmatpush1.bf16.msra.mxu0 0
  %1321 = vmatprep.subr.bf16.mxu0 0
  %1322 = vmatpush1.bf16.msra.mxu0 0
  %1323 = vmatprep.mubr.bf16.mxu0 0
  %1324 = vmatmul.mubr.bf16.gmra.mrb[0].mxu0 %v1207
  %v1325 = vpop.f32.mrb[0].mxu0
  %v1326 = vadd.f32 %v1204, %v1325
  %v1327 = vpop.f32.mrb[0].mxu0
  %v1328 = vadd.f32 %v1204, %v1327
  %v1329 = vpop.f32.mrb[0].mxu0
  %v1330 = vpop.f32.mrb[0].mxu0
  %1331 = vdwg.mxu0
  %1332 = vmatprep.subr.bf16.mxu0 %v1197
  %1333 = vmatpush1.bf16.msra.mxu0 %v1194
  %1334 = vmatprep.subr.bf16.mxu0 0
  %1335 = vmatpush1.bf16.msra.mxu0 0
  %1336 = vmatprep.subr.bf16.mxu0 0
  %1337 = vmatpush1.bf16.msra.mxu0 0
  %1338 = vmatprep.subr.bf16.mxu0 0
  %1339 = vmatpush1.bf16.msra.mxu0 0
  %1340 = vmatprep.subr.bf16.mxu0 0
  %1341 = vmatpush1.bf16.msra.mxu0 0
  %1342 = vmatprep.subr.bf16.mxu0 0
  %1343 = vmatpush1.bf16.msra.mxu0 0
  %1344 = vmatprep.subr.bf16.mxu0 0
  %1345 = vmatpush1.bf16.msra.mxu0 0
  %1346 = vmatprep.subr.bf16.mxu0 0
  %1347 = vmatpush1.bf16.msra.mxu0 0
  %1348 = vmatprep.subr.bf16.mxu0 0
  %1349 = vmatpush1.bf16.msra.mxu0 0
  %1350 = vmatprep.subr.bf16.mxu0 0
  %1351 = vmatpush1.bf16.msra.mxu0 0
  %1352 = vmatprep.subr.bf16.mxu0 0
  %1353 = vmatpush1.bf16.msra.mxu0 0
  %1354 = vmatprep.subr.bf16.mxu0 0
  %1355 = vmatpush1.bf16.msra.mxu0 0
  %1356 = vmatprep.subr.bf16.mxu0 0
  %1357 = vmatpush1.bf16.msra.mxu0 0
  %1358 = vmatprep.subr.bf16.mxu0 0
  %1359 = vmatpush1.bf16.msra.mxu0 0
  %1360 = vmatprep.subr.bf16.mxu0 0
  %1361 = vmatpush1.bf16.msra.mxu0 0
  %1362 = vmatprep.subr.bf16.mxu0 0
  %1363 = vmatpush1.bf16.msra.mxu0 0
  %1364 = vmatprep.mubr.bf16.mxu0 0
  %1365 = vmatmul.mubr.bf16.gmra.mrb[0].mxu0 %v1207
  %v1366 = vpop.f32.mrb[0].mxu0
  %v1367 = vadd.f32 %v1204, %v1366
  %v1368 = vpop.f32.mrb[0].mxu0
  %v1369 = vadd.f32 %v1204, %v1368
  %v1370 = vpop.f32.mrb[0].mxu0
  %v1371 = vpop.f32.mrb[0].mxu0
  %1372 = vdwg.mxu0
  %v1373 = vld [vmem:[%s3] sm:$0xff]
  %v1375 = vlaneseq
  %v1376 = vshrl.u32 %v1375, 7
  %v1377 = vsub.s32 0, %v1376
  %v1378 = vrot.slane %v1373, %v1377
  %v1379 = vlaneseq
  %v1380 = vshrl.u32 %v1379, 7
  %v1381 = vsub.s32 1, %v1380
  %v1382 = vrot.slane %v1373, %v1381
  %v1383 = vlaneseq
  %v1384 = vshrl.u32 %v1383, 7
  %v1385 = vsub.s32 2, %v1384
  %v1386 = vrot.slane %v1373, %v1385
  %v1387 = vlaneseq
  %v1388 = vshrl.u32 %v1387, 7
  %v1389 = vsub.s32 3, %v1388
  %v1390 = vrot.slane %v1373, %v1389
  %v1391 = vlaneseq
  %v1392 = vshrl.u32 %v1391, 7
  %v1393 = vsub.s32 4, %v1392
  %v1394 = vrot.slane %v1373, %v1393
  %v1395 = vlaneseq
  %v1396 = vshrl.u32 %v1395, 7
  %v1397 = vsub.s32 5, %v1396
  %v1398 = vrot.slane %v1373, %v1397
  %v1399 = vlaneseq
  %v1400 = vshrl.u32 %v1399, 7
  %v1401 = vsub.s32 6, %v1400
  %v1402 = vrot.slane %v1373, %v1401
  %v1403 = vlaneseq
  %v1404 = vshrl.u32 %v1403, 7
  %v1405 = vsub.s32 7, %v1404
  %v1406 = vrot.slane %v1373, %v1405
  %v1415 = vmul.f32 %v1244, %v1378
  %v1416 = vmul.f32 %v1246, %v1382
  %v1417 = vmul.f32 %v1285, %v1386
  %v1418 = vmul.f32 %v1287, %v1390
  %v1419 = vmul.f32 %v1326, %v1394
  %v1420 = vmul.f32 %v1328, %v1398
  %v1421 = vmul.f32 %v1367, %v1402
  %v1422 = vmul.f32 %v1369, %v1406
  %v1423 = vsel %vm353, %v1415, 0.0
  %v1424 = vsel %vm353, %v1416, 0.0
  %v1425 = vadd.f32 %v1423, %v1424
  %v1426 = vsel %vm353, %v1417, 0.0
  %v1427 = vadd.f32 %v1425, %v1426
  %v1428 = vsel %vm353, %v1418, 0.0
  %v1429 = vadd.f32 %v1427, %v1428
  %v1430 = vsel %vm353, %v1419, 0.0
  %v1431 = vadd.f32 %v1429, %v1430
  %v1432 = vsel %vm353, %v1420, 0.0
  %v1433 = vadd.f32 %v1431, %v1432
  %v1434 = vsel %vm353, %v1421, 0.0
  %v1435 = vadd.f32 %v1433, %v1434
  %v1436 = vsel %vm353, %v1422, 0.0
  %v1437 = vadd.f32 %v1435, %v1436
  %1438 = vadd.xlane.f32.xlu0 %v1437
  %v1439 = vpop.xlane.xlu0 %1438
  %v1440 = vmul.f32 %v1439, 0.001953125
  %v1441 = vmul.f32 %v1415, %v1244
  %v1442 = vmul.f32 %v1416, %v1246
  %v1443 = vmul.f32 %v1417, %v1285
  %v1444 = vmul.f32 %v1418, %v1287
  %v1445 = vmul.f32 %v1419, %v1326
  %v1446 = vmul.f32 %v1420, %v1328
  %v1447 = vmul.f32 %v1421, %v1367
  %v1448 = vmul.f32 %v1422, %v1369
  %v1449 = vsel %vm353, %v1441, 0.0
  %v1450 = vsel %vm353, %v1442, 0.0
  %v1451 = vadd.f32 %v1449, %v1450
  %v1452 = vsel %vm353, %v1443, 0.0
  %v1453 = vadd.f32 %v1451, %v1452
  %v1454 = vsel %vm353, %v1444, 0.0
  %v1455 = vadd.f32 %v1453, %v1454
  %v1456 = vsel %vm353, %v1445, 0.0
  %v1457 = vadd.f32 %v1455, %v1456
  %v1458 = vsel %vm353, %v1446, 0.0
  %v1459 = vadd.f32 %v1457, %v1458
  %v1460 = vsel %vm353, %v1447, 0.0
  %v1461 = vadd.f32 %v1459, %v1460
  %v1462 = vsel %vm353, %v1448, 0.0
  %v1463 = vadd.f32 %v1461, %v1462
  %1464 = vadd.xlane.f32.xlu0 %v1463
  %v1465 = vpop.xlane.xlu0 %1464
  %v1466 = vmul.f32 %v1465, 0.001953125
  %v1467 = vmul.f32 %v1440, %v1440
  %v1468 = vsub.f32 %v1466, %v1467
  %v1469 = vmax.f32 %v1468, 0.0
  %v1470 = vsub.f32 %v1244, %v1440
  %v1471 = vsub.f32 %v1246, %v1440
  %v1472 = vsub.f32 %v1285, %v1440
  %v1473 = vsub.f32 %v1287, %v1440
  %v1474 = vsub.f32 %v1326, %v1440
  %v1475 = vsub.f32 %v1328, %v1440
  %v1476 = vsub.f32 %v1367, %v1440
  %v1477 = vsub.f32 %v1369, %v1440
  %v1478 = vadd.f32 %v1469, 1e-05
  %v1479 = vrsqrt.pop %v1478
  %v1480 = vmul.f32 %v1470, %v1479
  %v1481 = vmul.f32 %v1471, %v1479
  %v1482 = vmul.f32 %v1472, %v1479
  %v1483 = vmul.f32 %v1473, %v1479
  %v1484 = vmul.f32 %v1474, %v1479
  %v1485 = vmul.f32 %v1475, %v1479
  %v1486 = vmul.f32 %v1476, %v1479
  %v1487 = vmul.f32 %v1477, %v1479
  %v1488 = vmax.f32 %v1480, 0.0
  %v1489 = vmax.f32 %v1481, 0.0
  %v1490 = vmax.f32 %v1482, 0.0
  %v1491 = vmax.f32 %v1483, 0.0
  %v1492 = vmax.f32 %v1484, 0.0
  %v1493 = vmax.f32 %v1485, 0.0
  %v1494 = vmax.f32 %v1486, 0.0
  %v1495 = vmax.f32 %v1487, 0.0
  %v1504 = vcombine.low %v1488, %v1489
  %v1505 = vcombine.low %v1490, %v1491
  %v1506 = vcombine.low %v1492, %v1493
  %v1507 = vcombine.low %v1494, %v1495
  %v1508 = vrot.slane %v1504, 6
  %v1509 = vrot.slane %v1505, 6
  %v1510 = vrot.slane %v1506, 6
  %v1511 = vrot.slane %v1507, 6
  %1516 = vst [vmem:[%s4] sm:$0xcc] %v1508
  %1517 = vst [vmem:[%s4 + $0x8] sm:$0xcc] %v1509
  %1518 = vst [vmem:[%s4 + $0x10] sm:$0xcc] %v1510
  %1519 = vst [vmem:[%s4 + $0x18] sm:$0xcc] %v1511
  // Predicated region
  $region18: #{expanding_block_forward.9} parent=0 // pred_check
    _
  $region19: #{expanding_block_forward.9} parent=0 // pred_check_branch
    %1521 = sbr.rel (0) target = $region21
  $region20: #{expanding_block_forward.9} parent=0 // pred_region
    _
  $region21: #{expanding_block_forward.9} parent=0 // pred_fallthru
    _
  // Predicated region
  $region22: #{expanding_block_forward.9} parent=0 // pred_check
    _
  $region23: #{expanding_block_forward.9} parent=0 // pred_check_branch
    %1523 = sbr.rel (0) target = $region25
  $region24: #{expanding_block_forward.9} parent=0 // pred_region
    _
  $region25: #{expanding_block_forward.9} parent=0 // pred_fallthru
    _

</llo_original>
